<compile_context>
chip_gen: v7x
topology: tpu7x:2x2x1
jax: 0.10.0
libtpu: 0.0.40
codegen_flags: <defaults>
</compile_context>

<pallas_src>
import jax
import jax.numpy as jnp
from jax.experimental import pallas as pl
from jax.experimental.pallas import tpu as pltpu

# ---- small, fixed problem size (filters=C, kernel=3) -----------------------
N, C, H, W = 2, 32, 8, 8      # batch, channels ("filters"), spatial
K = 3                         # conv kernel (odd)
EPS = 1e-5

# extended conv1 grid: one halo row/col on each side; W rounded up so the
# sublane extent stays a multiple of 8 (keeps every reshape tile-preserving).
HY, WY = H + 2, 16            # 10 x 16 extended conv1 output grid
HX, WX = HY + 2, WY + 2       # 12 x 18 zero-padded input extents
NE = N * HY * WY              # 320 extended rows
NV = N * H * W                # 128 valid pixels (BN statistics count)


# ----------------------------- Pallas kernel --------------------------------
def resblock_kernel(xe_ref, w_ref, bn_ref, o_ref):
    # ---- validity mask of the extended conv1 grid, rebuilt in-kernel.
    # f32 div/floor only (no vector integer div/mod); values are small and
    # exact, so the window tests are exact.
    row = jax.lax.broadcasted_iota(jnp.int32, (NE, C), 0).astype(jnp.float32)
    rw = row - jnp.floor(row / WY) * WY           # w index on extended grid
    rh = jnp.floor(row / WY)                      # image-row index (N*HY rows)
    hh = rh - jnp.floor(rh / HY) * HY             # h index on extended grid
    mask = jnp.where((hh >= 1.0) & (hh <= float(H)) &
                     (rw >= 1.0) & (rw <= float(W)), 1.0, 0.0)

    # ---- packed BN params: rows = [gamma1, beta1, gamma2, beta2]
    bn = bn_ref[...]                              # (4, C)
    g1, be1, g2, be2 = bn[0:1], bn[1:2], bn[2:3], bn[3:4]

    # ---- conv1 on the extended (HY, WY) grid: 9 shifted slices -> MXU dots.
    # (conv bias omitted: cancelled exactly by the training-mode BN mean.)
    acc1 = None
    for dh in range(K):
        for dw in range(K):
            patch = xe_ref[:, dh:dh + HY, dw:dw + WY, :].reshape(NE, C)
            d = jnp.dot(patch, w_ref[0, dh * K + dw],
                        preferred_element_type=jnp.float32)
            acc1 = d if acc1 is None else acc1 + d

    # ---- bn1 (training mode, stats over the NV real pixels only), single
    #      pass E[x^2] - mu^2, fused to one scale/shift, then relu.
    inv_n = 1.0 / NV
    am = acc1 * mask
    mu1 = jnp.sum(am, axis=0, keepdims=True) * inv_n
    var1 = jnp.sum(am * acc1, axis=0, keepdims=True) * inv_n - mu1 * mu1
    scale1 = jax.lax.rsqrt(var1 + EPS) * g1
    shift1 = be1 - mu1 * scale1
    y1 = jnp.maximum(acc1 * scale1 + shift1, 0.0) * mask   # exact zero halo
    y1e = y1.reshape(N, HY, WY, C)

    # ---- conv2 on the valid (H, W) grid, reading the zero halo directly.
    acc2 = None
    for dh in range(K):
        for dw in range(K):
            patch = y1e[:, dh:dh + H, dw:dw + W, :].reshape(NV, C)
            d = jnp.dot(patch, w_ref[1, dh * K + dw],
                        preferred_element_type=jnp.float32)
            acc2 = d if acc2 is None else acc2 + d

    # ---- bn2 (single-pass stats, fused scale/shift) + residual add + relu.
    mu2 = jnp.sum(acc2, axis=0, keepdims=True) * inv_n
    var2 = jnp.sum(acc2 * acc2, axis=0, keepdims=True) * inv_n - mu2 * mu2
    scale2 = jax.lax.rsqrt(var2 + EPS) * g2
    shift2 = be2 - mu2 * scale2
    res = xe_ref[:, 2:2 + H, 2:2 + W, :].reshape(NV, C)
    out = jnp.maximum(acc2 * scale2 + shift2 + res, 0.0)

    o_ref[...] = out.reshape(N, H, W, C)


# ------------------------------- wrapper -------------------------------------
@jax.jit
def resblock_forward(x_nchw, params):
    """x_nchw: (N, C, H, W) float32 — PyTorch layout.  Returns same layout."""
    w1, b1, g1, be1, w2, b2, g2, be2 = params
    del b1, b2   # cancelled exactly by training-mode BN; forward unchanged

    x = jnp.transpose(x_nchw, (0, 2, 3, 1))                           # NHWC
    # zero-padded extended input: valid pixels live at [:, 2:2+H, 2:2+W, :]
    xe = jnp.pad(x, ((0, 0), (2, HX - H - 2), (2, WX - W - 2), (0, 0)))

    # stacked conv weights (2, K*K, C, C) and packed BN vectors (4, C):
    # collapses 8 kernel operands to 3 (fewer tiny DMAs / less launch setup).
    w = jnp.stack([w1.reshape(K * K, C, C), w2.reshape(K * K, C, C)], axis=0)
    bn = jnp.concatenate([g1.reshape(1, C), be1.reshape(1, C),
                          g2.reshape(1, C), be2.reshape(1, C)], axis=0)

    out_nhwc = pl.pallas_call(
        resblock_kernel,
        out_shape=jax.ShapeDtypeStruct((N, H, W, C), jnp.float32),
        in_specs=[pl.BlockSpec(memory_space=pltpu.MemorySpace.VMEM)] * 3,
        out_specs=pl.BlockSpec(memory_space=pltpu.MemorySpace.VMEM),
    )(xe, w, bn)

    return jnp.transpose(out_nhwc, (0, 3, 1, 2))                      # NCHW


# --------------------------- pure-JAX reference -------------------------------
def resblock_ref(x_nchw, params):
    w1, b1, g1, be1, w2, b2, g2, be2 = params
    x = jnp.transpose(x_nchw, (0, 2, 3, 1))

    def conv(z, w, b):
        y = jax.lax.conv_general_dilated(
            z, w, window_strides=(1, 1), padding="SAME",
            dimension_numbers=("NHWC", "HWIO", "NHWC"))
        return y + b.reshape(1, 1, 1, C)

    def bn(y, g, be):
        m = jnp.mean(y, axis=(0, 1, 2), keepdims=True)
        v = jnp.mean(jnp.square(y - m), axis=(0, 1, 2), keepdims=True)
        return ((y - m) * jax.lax.rsqrt(v + EPS)
                * g.reshape(1, 1, 1, C) + be.reshape(1, 1, 1, C))

    inp = x
    y = jnp.maximum(bn(conv(x, w1, b1), g1, be1), 0.0)
    y = bn(conv(y, w2, b2), g2, be2)
    out = jnp.maximum(y + inp, 0.0)
    return jnp.transpose(out, (0, 3, 1, 2))


# --------------------------------- main ---------------------------------------
if __name__ == "__main__":
    key = jax.random.PRNGKey(0)
    kx, kw1, kb1, kg1, kbe1, kw2, kb2, kg2, kbe2 = jax.random.split(key, 9)

    x = jax.random.normal(kx, (N, C, H, W), dtype=jnp.float32)

    # deterministic synthetic parameters (shapes per nn.Conv2d / BatchNorm1d)
    scale = 1.0 / jnp.sqrt(jnp.float32(C * K * K))
    params = (
        jax.random.normal(kw1, (K, K, C, C), jnp.float32) * scale,   # conv1.w (HWIO)
        jax.random.normal(kb1, (1, C), jnp.float32) * 0.1,           # conv1.b
        1.0 + 0.1 * jax.random.normal(kg1, (1, C), jnp.float32),     # bn1.gamma
        0.1 * jax.random.normal(kbe1, (1, C), jnp.float32),          # bn1.beta
        jax.random.normal(kw2, (K, K, C, C), jnp.float32) * scale,   # conv2.w
        jax.random.normal(kb2, (1, C), jnp.float32) * 0.1,           # conv2.b
        1.0 + 0.1 * jax.random.normal(kg2, (1, C), jnp.float32),     # bn2.gamma
        0.1 * jax.random.normal(kbe2, (1, C), jnp.float32),          # bn2.beta
    )

    out = jax.block_until_ready(resblock_forward(x, params))
    ref = jax.block_until_ready(resblock_ref(x, params))

    assert out.shape == (N, C, H, W) and out.dtype == jnp.float32
    assert jnp.allclose(out, ref, rtol=1e-3, atol=1e-3), (
        float(jnp.max(jnp.abs(out - ref))))

    print("KERNEL_OK")
</pallas_src>

<mosaic_0001>
module attributes {stable_mosaic.version = 11 : i64} {
  func.func @resblock_kernel(%arg0: memref<2x12x18x32xf32, #tpu.memory_space<vmem>>, %arg1: memref<2x9x32x32xf32, #tpu.memory_space<vmem>>, %arg2: memref<4x32xf32, #tpu.memory_space<vmem>>, %arg3: memref<2x8x8x32xf32, #tpu.memory_space<vmem>>) attributes {dimension_semantics = [], scalar_prefetch = 0 : i64, scratch_operands = 0 : i64, tpu.core_type = #tpu.core_type<tc>} {
    %0 = tpu.iota {dimensions = array<i32: 0>} : vector<320x32xi32>
    %1 = arith.sitofp %0 : vector<320x32xi32> to vector<320x32xf32>
    %cst = arith.constant 1.600000e+01 : f32
    %2 = vector.broadcast %cst : f32 to vector<320x32xf32>
    %3 = arith.divf %1, %2 : vector<320x32xf32>
    %4 = math.floor %3 : vector<320x32xf32>
    %cst_0 = arith.constant 1.600000e+01 : f32
    %5 = vector.broadcast %cst_0 : f32 to vector<320x32xf32>
    %6 = arith.mulf %4, %5 : vector<320x32xf32>
    %7 = arith.subf %1, %6 : vector<320x32xf32>
    %cst_1 = arith.constant 1.600000e+01 : f32
    %8 = vector.broadcast %cst_1 : f32 to vector<320x32xf32>
    %9 = arith.divf %1, %8 : vector<320x32xf32>
    %10 = math.floor %9 : vector<320x32xf32>
    %cst_2 = arith.constant 1.000000e+01 : f32
    %11 = vector.broadcast %cst_2 : f32 to vector<320x32xf32>
    %12 = arith.divf %10, %11 : vector<320x32xf32>
    %13 = math.floor %12 : vector<320x32xf32>
    %cst_3 = arith.constant 1.000000e+01 : f32
    %14 = vector.broadcast %cst_3 : f32 to vector<320x32xf32>
    %15 = arith.mulf %13, %14 : vector<320x32xf32>
    %16 = arith.subf %10, %15 : vector<320x32xf32>
    %cst_4 = arith.constant 1.000000e+00 : f32
    %17 = vector.broadcast %cst_4 : f32 to vector<320x32xf32>
    %18 = arith.cmpf oge, %16, %17 : vector<320x32xf32>
    %cst_5 = arith.constant 8.000000e+00 : f32
    %19 = vector.broadcast %cst_5 : f32 to vector<320x32xf32>
    %20 = arith.cmpf ole, %16, %19 : vector<320x32xf32>
    %21 = arith.andi %18, %20 : vector<320x32xi1>
    %cst_6 = arith.constant 1.000000e+00 : f32
    %22 = vector.broadcast %cst_6 : f32 to vector<320x32xf32>
    %23 = arith.cmpf oge, %7, %22 : vector<320x32xf32>
    %24 = arith.andi %21, %23 : vector<320x32xi1>
    %cst_7 = arith.constant 8.000000e+00 : f32
    %25 = vector.broadcast %cst_7 : f32 to vector<320x32xf32>
    %26 = arith.cmpf ole, %7, %25 : vector<320x32xf32>
    %27 = arith.andi %24, %26 : vector<320x32xi1>
    %cst_8 = arith.constant 1.000000e+00 : f32
    %cst_9 = arith.constant 0.000000e+00 : f32
    %28 = vector.broadcast %cst_8 : f32 to vector<320x32xf32>
    %29 = vector.broadcast %cst_9 : f32 to vector<320x32xf32>
    %30 = arith.select %27, %28, %29 : vector<320x32xi1>, vector<320x32xf32>
    %c0 = arith.constant 0 : index
    %c0_10 = arith.constant 0 : index
    %31 = vector.load %arg2[%c0, %c0_10] : memref<4x32xf32, #tpu.memory_space<vmem>>, vector<4x32xf32>
    %32 = vector.extract_strided_slice %31 {offsets = [0, 0], sizes = [1, 32], strides = [1, 1]} : vector<4x32xf32> to vector<1x32xf32>
    %33 = vector.extract_strided_slice %31 {offsets = [1, 0], sizes = [1, 32], strides = [1, 1]} : vector<4x32xf32> to vector<1x32xf32>
    %34 = vector.extract_strided_slice %31 {offsets = [2, 0], sizes = [1, 32], strides = [1, 1]} : vector<4x32xf32> to vector<1x32xf32>
    %35 = vector.extract_strided_slice %31 {offsets = [3, 0], sizes = [1, 32], strides = [1, 1]} : vector<4x32xf32> to vector<1x32xf32>
    %c0_11 = arith.constant 0 : index
    %c0_12 = arith.constant 0 : index
    %c0_13 = arith.constant 0 : index
    %c0_14 = arith.constant 0 : index
    %36 = vector.load %arg0[%c0_11, %c0_12, %c0_13, %c0_14] : memref<2x12x18x32xf32, #tpu.memory_space<vmem>>, vector<2x10x16x32xf32>
    %37 = vector.shape_cast %36 : vector<2x10x16x32xf32> to vector<320x32xf32>
    %c0_15 = arith.constant 0 : index
    %c0_16 = arith.constant 0 : index
    %c0_17 = arith.constant 0 : index
    %c0_18 = arith.constant 0 : index
    %38 = vector.load %arg1[%c0_15, %c0_16, %c0_17, %c0_18] : memref<2x9x32x32xf32, #tpu.memory_space<vmem>>, vector<1x1x32x32xf32>
    %39 = vector.shape_cast %38 : vector<1x1x32x32xf32> to vector<32x32xf32>
    %cst_19 = arith.constant dense<0.000000e+00> : vector<320x32xf32>
    %40 = tpu.matmul %37, %39, %cst_19 {dimension_numbers = #tpu.dot_dimension_numbers<[1], [0], [0], [1], [0, 0, 1, 1], [], []>} : vector<320x32xf32>, vector<32x32xf32>, vector<320x32xf32> -> vector<320x32xf32>
    %c0_20 = arith.constant 0 : index
    %c0_21 = arith.constant 0 : index
    %c1 = arith.constant 1 : index
    %c0_22 = arith.constant 0 : index
    %41 = vector.load %arg0[%c0_20, %c0_21, %c1, %c0_22] : memref<2x12x18x32xf32, #tpu.memory_space<vmem>>, vector<2x10x16x32xf32>
    %42 = vector.shape_cast %41 : vector<2x10x16x32xf32> to vector<320x32xf32>
    %c0_23 = arith.constant 0 : index
    %c1_24 = arith.constant 1 : index
    %c0_25 = arith.constant 0 : index
    %c0_26 = arith.constant 0 : index
    %43 = vector.load %arg1[%c0_23, %c1_24, %c0_25, %c0_26] : memref<2x9x32x32xf32, #tpu.memory_space<vmem>>, vector<1x1x32x32xf32>
    %44 = vector.shape_cast %43 : vector<1x1x32x32xf32> to vector<32x32xf32>
    %cst_27 = arith.constant dense<0.000000e+00> : vector<320x32xf32>
    %45 = tpu.matmul %42, %44, %cst_27 {dimension_numbers = #tpu.dot_dimension_numbers<[1], [0], [0], [1], [0, 0, 1, 1], [], []>} : vector<320x32xf32>, vector<32x32xf32>, vector<320x32xf32> -> vector<320x32xf32>
    %46 = arith.addf %40, %45 : vector<320x32xf32>
    %c0_28 = arith.constant 0 : index
    %c0_29 = arith.constant 0 : index
    %c2 = arith.constant 2 : index
    %c0_30 = arith.constant 0 : index
    %47 = vector.load %arg0[%c0_28, %c0_29, %c2, %c0_30] : memref<2x12x18x32xf32, #tpu.memory_space<vmem>>, vector<2x10x16x32xf32>
    %48 = vector.shape_cast %47 : vector<2x10x16x32xf32> to vector<320x32xf32>
    %c0_31 = arith.constant 0 : index
    %c2_32 = arith.constant 2 : index
    %c0_33 = arith.constant 0 : index
    %c0_34 = arith.constant 0 : index
    %49 = vector.load %arg1[%c0_31, %c2_32, %c0_33, %c0_34] : memref<2x9x32x32xf32, #tpu.memory_space<vmem>>, vector<1x1x32x32xf32>
    %50 = vector.shape_cast %49 : vector<1x1x32x32xf32> to vector<32x32xf32>
    %cst_35 = arith.constant dense<0.000000e+00> : vector<320x32xf32>
    %51 = tpu.matmul %48, %50, %cst_35 {dimension_numbers = #tpu.dot_dimension_numbers<[1], [0], [0], [1], [0, 0, 1, 1], [], []>} : vector<320x32xf32>, vector<32x32xf32>, vector<320x32xf32> -> vector<320x32xf32>
    %52 = arith.addf %46, %51 : vector<320x32xf32>
    %c0_36 = arith.constant 0 : index
    %c1_37 = arith.constant 1 : index
    %c0_38 = arith.constant 0 : index
    %c0_39 = arith.constant 0 : index
    %53 = vector.load %arg0[%c0_36, %c1_37, %c0_38, %c0_39] : memref<2x12x18x32xf32, #tpu.memory_space<vmem>>, vector<2x10x16x32xf32>
    %54 = vector.shape_cast %53 : vector<2x10x16x32xf32> to vector<320x32xf32>
    %c0_40 = arith.constant 0 : index
    %c3 = arith.constant 3 : index
    %c0_41 = arith.constant 0 : index
    %c0_42 = arith.constant 0 : index
    %55 = vector.load %arg1[%c0_40, %c3, %c0_41, %c0_42] : memref<2x9x32x32xf32, #tpu.memory_space<vmem>>, vector<1x1x32x32xf32>
    %56 = vector.shape_cast %55 : vector<1x1x32x32xf32> to vector<32x32xf32>
    %cst_43 = arith.constant dense<0.000000e+00> : vector<320x32xf32>
    %57 = tpu.matmul %54, %56, %cst_43 {dimension_numbers = #tpu.dot_dimension_numbers<[1], [0], [0], [1], [0, 0, 1, 1], [], []>} : vector<320x32xf32>, vector<32x32xf32>, vector<320x32xf32> -> vector<320x32xf32>
    %58 = arith.addf %52, %57 : vector<320x32xf32>
    %c0_44 = arith.constant 0 : index
    %c1_45 = arith.constant 1 : index
    %c1_46 = arith.constant 1 : index
    %c0_47 = arith.constant 0 : index
    %59 = vector.load %arg0[%c0_44, %c1_45, %c1_46, %c0_47] : memref<2x12x18x32xf32, #tpu.memory_space<vmem>>, vector<2x10x16x32xf32>
    %60 = vector.shape_cast %59 : vector<2x10x16x32xf32> to vector<320x32xf32>
    %c0_48 = arith.constant 0 : index
    %c4 = arith.constant 4 : index
    %c0_49 = arith.constant 0 : index
    %c0_50 = arith.constant 0 : index
    %61 = vector.load %arg1[%c0_48, %c4, %c0_49, %c0_50] : memref<2x9x32x32xf32, #tpu.memory_space<vmem>>, vector<1x1x32x32xf32>
    %62 = vector.shape_cast %61 : vector<1x1x32x32xf32> to vector<32x32xf32>
    %cst_51 = arith.constant dense<0.000000e+00> : vector<320x32xf32>
    %63 = tpu.matmul %60, %62, %cst_51 {dimension_numbers = #tpu.dot_dimension_numbers<[1], [0], [0], [1], [0, 0, 1, 1], [], []>} : vector<320x32xf32>, vector<32x32xf32>, vector<320x32xf32> -> vector<320x32xf32>
    %64 = arith.addf %58, %63 : vector<320x32xf32>
    %c0_52 = arith.constant 0 : index
    %c1_53 = arith.constant 1 : index
    %c2_54 = arith.constant 2 : index
    %c0_55 = arith.constant 0 : index
    %65 = vector.load %arg0[%c0_52, %c1_53, %c2_54, %c0_55] : memref<2x12x18x32xf32, #tpu.memory_space<vmem>>, vector<2x10x16x32xf32>
    %66 = vector.shape_cast %65 : vector<2x10x16x32xf32> to vector<320x32xf32>
    %c0_56 = arith.constant 0 : index
    %c5 = arith.constant 5 : index
    %c0_57 = arith.constant 0 : index
    %c0_58 = arith.constant 0 : index
    %67 = vector.load %arg1[%c0_56, %c5, %c0_57, %c0_58] : memref<2x9x32x32xf32, #tpu.memory_space<vmem>>, vector<1x1x32x32xf32>
    %68 = vector.shape_cast %67 : vector<1x1x32x32xf32> to vector<32x32xf32>
    %cst_59 = arith.constant dense<0.000000e+00> : vector<320x32xf32>
    %69 = tpu.matmul %66, %68, %cst_59 {dimension_numbers = #tpu.dot_dimension_numbers<[1], [0], [0], [1], [0, 0, 1, 1], [], []>} : vector<320x32xf32>, vector<32x32xf32>, vector<320x32xf32> -> vector<320x32xf32>
    %70 = arith.addf %64, %69 : vector<320x32xf32>
    %c0_60 = arith.constant 0 : index
    %c2_61 = arith.constant 2 : index
    %c0_62 = arith.constant 0 : index
    %c0_63 = arith.constant 0 : index
    %71 = vector.load %arg0[%c0_60, %c2_61, %c0_62, %c0_63] : memref<2x12x18x32xf32, #tpu.memory_space<vmem>>, vector<2x10x16x32xf32>
    %72 = vector.shape_cast %71 : vector<2x10x16x32xf32> to vector<320x32xf32>
    %c0_64 = arith.constant 0 : index
    %c6 = arith.constant 6 : index
    %c0_65 = arith.constant 0 : index
    %c0_66 = arith.constant 0 : index
    %73 = vector.load %arg1[%c0_64, %c6, %c0_65, %c0_66] : memref<2x9x32x32xf32, #tpu.memory_space<vmem>>, vector<1x1x32x32xf32>
    %74 = vector.shape_cast %73 : vector<1x1x32x32xf32> to vector<32x32xf32>
    %cst_67 = arith.constant dense<0.000000e+00> : vector<320x32xf32>
    %75 = tpu.matmul %72, %74, %cst_67 {dimension_numbers = #tpu.dot_dimension_numbers<[1], [0], [0], [1], [0, 0, 1, 1], [], []>} : vector<320x32xf32>, vector<32x32xf32>, vector<320x32xf32> -> vector<320x32xf32>
    %76 = arith.addf %70, %75 : vector<320x32xf32>
    %c0_68 = arith.constant 0 : index
    %c2_69 = arith.constant 2 : index
    %c1_70 = arith.constant 1 : index
    %c0_71 = arith.constant 0 : index
    %77 = vector.load %arg0[%c0_68, %c2_69, %c1_70, %c0_71] : memref<2x12x18x32xf32, #tpu.memory_space<vmem>>, vector<2x10x16x32xf32>
    %78 = vector.shape_cast %77 : vector<2x10x16x32xf32> to vector<320x32xf32>
    %c0_72 = arith.constant 0 : index
    %c7 = arith.constant 7 : index
    %c0_73 = arith.constant 0 : index
    %c0_74 = arith.constant 0 : index
    %79 = vector.load %arg1[%c0_72, %c7, %c0_73, %c0_74] : memref<2x9x32x32xf32, #tpu.memory_space<vmem>>, vector<1x1x32x32xf32>
    %80 = vector.shape_cast %79 : vector<1x1x32x32xf32> to vector<32x32xf32>
    %cst_75 = arith.constant dense<0.000000e+00> : vector<320x32xf32>
    %81 = tpu.matmul %78, %80, %cst_75 {dimension_numbers = #tpu.dot_dimension_numbers<[1], [0], [0], [1], [0, 0, 1, 1], [], []>} : vector<320x32xf32>, vector<32x32xf32>, vector<320x32xf32> -> vector<320x32xf32>
    %82 = arith.addf %76, %81 : vector<320x32xf32>
    %c0_76 = arith.constant 0 : index
    %c2_77 = arith.constant 2 : index
    %c2_78 = arith.constant 2 : index
    %c0_79 = arith.constant 0 : index
    %83 = vector.load %arg0[%c0_76, %c2_77, %c2_78, %c0_79] : memref<2x12x18x32xf32, #tpu.memory_space<vmem>>, vector<2x10x16x32xf32>
    %84 = vector.shape_cast %83 : vector<2x10x16x32xf32> to vector<320x32xf32>
    %c0_80 = arith.constant 0 : index
    %c8 = arith.constant 8 : index
    %c0_81 = arith.constant 0 : index
    %c0_82 = arith.constant 0 : index
    %85 = vector.load %arg1[%c0_80, %c8, %c0_81, %c0_82] : memref<2x9x32x32xf32, #tpu.memory_space<vmem>>, vector<1x1x32x32xf32>
    %86 = vector.shape_cast %85 : vector<1x1x32x32xf32> to vector<32x32xf32>
    %cst_83 = arith.constant dense<0.000000e+00> : vector<320x32xf32>
    %87 = tpu.matmul %84, %86, %cst_83 {dimension_numbers = #tpu.dot_dimension_numbers<[1], [0], [0], [1], [0, 0, 1, 1], [], []>} : vector<320x32xf32>, vector<32x32xf32>, vector<320x32xf32> -> vector<320x32xf32>
    %88 = arith.addf %82, %87 : vector<320x32xf32>
    %89 = arith.mulf %88, %30 : vector<320x32xf32>
    %cst_84 = arith.constant dense<0.000000e+00> : vector<32xf32>
    %90 = vector.multi_reduction <add>, %89, %cst_84 [0] : vector<320x32xf32> to vector<32xf32>
    %91 = vector.shape_cast %90 : vector<32xf32> to vector<1x32xf32>
    %cst_85 = arith.constant 7.812500e-03 : f32
    %92 = vector.broadcast %cst_85 : f32 to vector<1x32xf32>
    %93 = arith.mulf %91, %92 : vector<1x32xf32>
    %94 = arith.mulf %89, %88 : vector<320x32xf32>
    %cst_86 = arith.constant dense<0.000000e+00> : vector<32xf32>
    %95 = vector.multi_reduction <add>, %94, %cst_86 [0] : vector<320x32xf32> to vector<32xf32>
    %96 = vector.shape_cast %95 : vector<32xf32> to vector<1x32xf32>
    %cst_87 = arith.constant 7.812500e-03 : f32
    %97 = vector.broadcast %cst_87 : f32 to vector<1x32xf32>
    %98 = arith.mulf %96, %97 : vector<1x32xf32>
    %99 = arith.mulf %93, %93 : vector<1x32xf32>
    %100 = arith.subf %98, %99 : vector<1x32xf32>
    %cst_88 = arith.constant 9.99999974E-6 : f32
    %101 = vector.broadcast %cst_88 : f32 to vector<1x32xf32>
    %102 = arith.addf %100, %101 : vector<1x32xf32>
    %103 = math.rsqrt %102 : vector<1x32xf32>
    %104 = arith.mulf %103, %32 : vector<1x32xf32>
    %105 = arith.mulf %93, %104 : vector<1x32xf32>
    %106 = arith.subf %33, %105 : vector<1x32xf32>
    %107 = vector.broadcast %104 : vector<1x32xf32> to vector<320x32xf32>
    %108 = arith.mulf %88, %107 : vector<320x32xf32>
    %109 = vector.broadcast %106 : vector<1x32xf32> to vector<320x32xf32>
    %110 = arith.addf %108, %109 : vector<320x32xf32>
    %cst_89 = arith.constant 0.000000e+00 : f32
    %111 = vector.broadcast %cst_89 : f32 to vector<320x32xf32>
    %112 = arith.maximumf %110, %111 : vector<320x32xf32>
    %113 = arith.mulf %112, %30 : vector<320x32xf32>
    %114 = vector.shape_cast %113 : vector<320x32xf32> to vector<2x10x16x32xf32>
    %115 = vector.extract_strided_slice %114 {offsets = [0, 0, 0, 0], sizes = [2, 8, 8, 32], strides = [1, 1, 1, 1]} : vector<2x10x16x32xf32> to vector<2x8x8x32xf32>
    %116 = vector.shape_cast %115 : vector<2x8x8x32xf32> to vector<128x32xf32>
    %c1_90 = arith.constant 1 : index
    %c0_91 = arith.constant 0 : index
    %c0_92 = arith.constant 0 : index
    %c0_93 = arith.constant 0 : index
    %117 = vector.load %arg1[%c1_90, %c0_91, %c0_92, %c0_93] : memref<2x9x32x32xf32, #tpu.memory_space<vmem>>, vector<1x1x32x32xf32>
    %118 = vector.shape_cast %117 : vector<1x1x32x32xf32> to vector<32x32xf32>
    %cst_94 = arith.constant dense<0.000000e+00> : vector<128x32xf32>
    %119 = tpu.matmul %116, %118, %cst_94 {dimension_numbers = #tpu.dot_dimension_numbers<[1], [0], [0], [1], [0, 0, 1, 1], [], []>} : vector<128x32xf32>, vector<32x32xf32>, vector<128x32xf32> -> vector<128x32xf32>
    %120 = vector.extract_strided_slice %114 {offsets = [0, 0, 1, 0], sizes = [2, 8, 8, 32], strides = [1, 1, 1, 1]} : vector<2x10x16x32xf32> to vector<2x8x8x32xf32>
    %121 = vector.shape_cast %120 : vector<2x8x8x32xf32> to vector<128x32xf32>
    %c1_95 = arith.constant 1 : index
    %c1_96 = arith.constant 1 : index
    %c0_97 = arith.constant 0 : index
    %c0_98 = arith.constant 0 : index
    %122 = vector.load %arg1[%c1_95, %c1_96, %c0_97, %c0_98] : memref<2x9x32x32xf32, #tpu.memory_space<vmem>>, vector<1x1x32x32xf32>
    %123 = vector.shape_cast %122 : vector<1x1x32x32xf32> to vector<32x32xf32>
    %cst_99 = arith.constant dense<0.000000e+00> : vector<128x32xf32>
    %124 = tpu.matmul %121, %123, %cst_99 {dimension_numbers = #tpu.dot_dimension_numbers<[1], [0], [0], [1], [0, 0, 1, 1], [], []>} : vector<128x32xf32>, vector<32x32xf32>, vector<128x32xf32> -> vector<128x32xf32>
    %125 = arith.addf %119, %124 : vector<128x32xf32>
    %126 = vector.extract_strided_slice %114 {offsets = [0, 0, 2, 0], sizes = [2, 8, 8, 32], strides = [1, 1, 1, 1]} : vector<2x10x16x32xf32> to vector<2x8x8x32xf32>
    %127 = vector.shape_cast %126 : vector<2x8x8x32xf32> to vector<128x32xf32>
    %c1_100 = arith.constant 1 : index
    %c2_101 = arith.constant 2 : index
    %c0_102 = arith.constant 0 : index
    %c0_103 = arith.constant 0 : index
    %128 = vector.load %arg1[%c1_100, %c2_101, %c0_102, %c0_103] : memref<2x9x32x32xf32, #tpu.memory_space<vmem>>, vector<1x1x32x32xf32>
    %129 = vector.shape_cast %128 : vector<1x1x32x32xf32> to vector<32x32xf32>
    %cst_104 = arith.constant dense<0.000000e+00> : vector<128x32xf32>
    %130 = tpu.matmul %127, %129, %cst_104 {dimension_numbers = #tpu.dot_dimension_numbers<[1], [0], [0], [1], [0, 0, 1, 1], [], []>} : vector<128x32xf32>, vector<32x32xf32>, vector<128x32xf32> -> vector<128x32xf32>
    %131 = arith.addf %125, %130 : vector<128x32xf32>
    %132 = vector.extract_strided_slice %114 {offsets = [0, 1, 0, 0], sizes = [2, 8, 8, 32], strides = [1, 1, 1, 1]} : vector<2x10x16x32xf32> to vector<2x8x8x32xf32>
    %133 = vector.shape_cast %132 : vector<2x8x8x32xf32> to vector<128x32xf32>
    %c1_105 = arith.constant 1 : index
    %c3_106 = arith.constant 3 : index
    %c0_107 = arith.constant 0 : index
    %c0_108 = arith.constant 0 : index
    %134 = vector.load %arg1[%c1_105, %c3_106, %c0_107, %c0_108] : memref<2x9x32x32xf32, #tpu.memory_space<vmem>>, vector<1x1x32x32xf32>
    %135 = vector.shape_cast %134 : vector<1x1x32x32xf32> to vector<32x32xf32>
    %cst_109 = arith.constant dense<0.000000e+00> : vector<128x32xf32>
    %136 = tpu.matmul %133, %135, %cst_109 {dimension_numbers = #tpu.dot_dimension_numbers<[1], [0], [0], [1], [0, 0, 1, 1], [], []>} : vector<128x32xf32>, vector<32x32xf32>, vector<128x32xf32> -> vector<128x32xf32>
    %137 = arith.addf %131, %136 : vector<128x32xf32>
    %138 = vector.extract_strided_slice %114 {offsets = [0, 1, 1, 0], sizes = [2, 8, 8, 32], strides = [1, 1, 1, 1]} : vector<2x10x16x32xf32> to vector<2x8x8x32xf32>
    %139 = vector.shape_cast %138 : vector<2x8x8x32xf32> to vector<128x32xf32>
    %c1_110 = arith.constant 1 : index
    %c4_111 = arith.constant 4 : index
    %c0_112 = arith.constant 0 : index
    %c0_113 = arith.constant 0 : index
    %140 = vector.load %arg1[%c1_110, %c4_111, %c0_112, %c0_113] : memref<2x9x32x32xf32, #tpu.memory_space<vmem>>, vector<1x1x32x32xf32>
    %141 = vector.shape_cast %140 : vector<1x1x32x32xf32> to vector<32x32xf32>
    %cst_114 = arith.constant dense<0.000000e+00> : vector<128x32xf32>
    %142 = tpu.matmul %139, %141, %cst_114 {dimension_numbers = #tpu.dot_dimension_numbers<[1], [0], [0], [1], [0, 0, 1, 1], [], []>} : vector<128x32xf32>, vector<32x32xf32>, vector<128x32xf32> -> vector<128x32xf32>
    %143 = arith.addf %137, %142 : vector<128x32xf32>
    %144 = vector.extract_strided_slice %114 {offsets = [0, 1, 2, 0], sizes = [2, 8, 8, 32], strides = [1, 1, 1, 1]} : vector<2x10x16x32xf32> to vector<2x8x8x32xf32>
    %145 = vector.shape_cast %144 : vector<2x8x8x32xf32> to vector<128x32xf32>
    %c1_115 = arith.constant 1 : index
    %c5_116 = arith.constant 5 : index
    %c0_117 = arith.constant 0 : index
    %c0_118 = arith.constant 0 : index
    %146 = vector.load %arg1[%c1_115, %c5_116, %c0_117, %c0_118] : memref<2x9x32x32xf32, #tpu.memory_space<vmem>>, vector<1x1x32x32xf32>
    %147 = vector.shape_cast %146 : vector<1x1x32x32xf32> to vector<32x32xf32>
    %cst_119 = arith.constant dense<0.000000e+00> : vector<128x32xf32>
    %148 = tpu.matmul %145, %147, %cst_119 {dimension_numbers = #tpu.dot_dimension_numbers<[1], [0], [0], [1], [0, 0, 1, 1], [], []>} : vector<128x32xf32>, vector<32x32xf32>, vector<128x32xf32> -> vector<128x32xf32>
    %149 = arith.addf %143, %148 : vector<128x32xf32>
    %150 = vector.extract_strided_slice %114 {offsets = [0, 2, 0, 0], sizes = [2, 8, 8, 32], strides = [1, 1, 1, 1]} : vector<2x10x16x32xf32> to vector<2x8x8x32xf32>
    %151 = vector.shape_cast %150 : vector<2x8x8x32xf32> to vector<128x32xf32>
    %c1_120 = arith.constant 1 : index
    %c6_121 = arith.constant 6 : index
    %c0_122 = arith.constant 0 : index
    %c0_123 = arith.constant 0 : index
    %152 = vector.load %arg1[%c1_120, %c6_121, %c0_122, %c0_123] : memref<2x9x32x32xf32, #tpu.memory_space<vmem>>, vector<1x1x32x32xf32>
    %153 = vector.shape_cast %152 : vector<1x1x32x32xf32> to vector<32x32xf32>
    %cst_124 = arith.constant dense<0.000000e+00> : vector<128x32xf32>
    %154 = tpu.matmul %151, %153, %cst_124 {dimension_numbers = #tpu.dot_dimension_numbers<[1], [0], [0], [1], [0, 0, 1, 1], [], []>} : vector<128x32xf32>, vector<32x32xf32>, vector<128x32xf32> -> vector<128x32xf32>
    %155 = arith.addf %149, %154 : vector<128x32xf32>
    %156 = vector.extract_strided_slice %114 {offsets = [0, 2, 1, 0], sizes = [2, 8, 8, 32], strides = [1, 1, 1, 1]} : vector<2x10x16x32xf32> to vector<2x8x8x32xf32>
    %157 = vector.shape_cast %156 : vector<2x8x8x32xf32> to vector<128x32xf32>
    %c1_125 = arith.constant 1 : index
    %c7_126 = arith.constant 7 : index
    %c0_127 = arith.constant 0 : index
    %c0_128 = arith.constant 0 : index
    %158 = vector.load %arg1[%c1_125, %c7_126, %c0_127, %c0_128] : memref<2x9x32x32xf32, #tpu.memory_space<vmem>>, vector<1x1x32x32xf32>
    %159 = vector.shape_cast %158 : vector<1x1x32x32xf32> to vector<32x32xf32>
    %cst_129 = arith.constant dense<0.000000e+00> : vector<128x32xf32>
    %160 = tpu.matmul %157, %159, %cst_129 {dimension_numbers = #tpu.dot_dimension_numbers<[1], [0], [0], [1], [0, 0, 1, 1], [], []>} : vector<128x32xf32>, vector<32x32xf32>, vector<128x32xf32> -> vector<128x32xf32>
    %161 = arith.addf %155, %160 : vector<128x32xf32>
    %162 = vector.extract_strided_slice %114 {offsets = [0, 2, 2, 0], sizes = [2, 8, 8, 32], strides = [1, 1, 1, 1]} : vector<2x10x16x32xf32> to vector<2x8x8x32xf32>
    %163 = vector.shape_cast %162 : vector<2x8x8x32xf32> to vector<128x32xf32>
    %c1_130 = arith.constant 1 : index
    %c8_131 = arith.constant 8 : index
    %c0_132 = arith.constant 0 : index
    %c0_133 = arith.constant 0 : index
    %164 = vector.load %arg1[%c1_130, %c8_131, %c0_132, %c0_133] : memref<2x9x32x32xf32, #tpu.memory_space<vmem>>, vector<1x1x32x32xf32>
    %165 = vector.shape_cast %164 : vector<1x1x32x32xf32> to vector<32x32xf32>
    %cst_134 = arith.constant dense<0.000000e+00> : vector<128x32xf32>
    %166 = tpu.matmul %163, %165, %cst_134 {dimension_numbers = #tpu.dot_dimension_numbers<[1], [0], [0], [1], [0, 0, 1, 1], [], []>} : vector<128x32xf32>, vector<32x32xf32>, vector<128x32xf32> -> vector<128x32xf32>
    %167 = arith.addf %161, %166 : vector<128x32xf32>
    %cst_135 = arith.constant dense<0.000000e+00> : vector<32xf32>
    %168 = vector.multi_reduction <add>, %167, %cst_135 [0] : vector<128x32xf32> to vector<32xf32>
    %169 = vector.shape_cast %168 : vector<32xf32> to vector<1x32xf32>
    %cst_136 = arith.constant 7.812500e-03 : f32
    %170 = vector.broadcast %cst_136 : f32 to vector<1x32xf32>
    %171 = arith.mulf %169, %170 : vector<1x32xf32>
    %172 = arith.mulf %167, %167 : vector<128x32xf32>
    %cst_137 = arith.constant dense<0.000000e+00> : vector<32xf32>
    %173 = vector.multi_reduction <add>, %172, %cst_137 [0] : vector<128x32xf32> to vector<32xf32>
    %174 = vector.shape_cast %173 : vector<32xf32> to vector<1x32xf32>
    %cst_138 = arith.constant 7.812500e-03 : f32
    %175 = vector.broadcast %cst_138 : f32 to vector<1x32xf32>
    %176 = arith.mulf %174, %175 : vector<1x32xf32>
    %177 = arith.mulf %171, %171 : vector<1x32xf32>
    %178 = arith.subf %176, %177 : vector<1x32xf32>
    %cst_139 = arith.constant 9.99999974E-6 : f32
    %179 = vector.broadcast %cst_139 : f32 to vector<1x32xf32>
    %180 = arith.addf %178, %179 : vector<1x32xf32>
    %181 = math.rsqrt %180 : vector<1x32xf32>
    %182 = arith.mulf %181, %34 : vector<1x32xf32>
    %183 = arith.mulf %171, %182 : vector<1x32xf32>
    %184 = arith.subf %35, %183 : vector<1x32xf32>
    %c0_140 = arith.constant 0 : index
    %c2_141 = arith.constant 2 : index
    %c2_142 = arith.constant 2 : index
    %c0_143 = arith.constant 0 : index
    %185 = vector.load %arg0[%c0_140, %c2_141, %c2_142, %c0_143] : memref<2x12x18x32xf32, #tpu.memory_space<vmem>>, vector<2x8x8x32xf32>
    %186 = vector.shape_cast %185 : vector<2x8x8x32xf32> to vector<128x32xf32>
    %187 = vector.broadcast %182 : vector<1x32xf32> to vector<128x32xf32>
    %188 = arith.mulf %167, %187 : vector<128x32xf32>
    %189 = vector.broadcast %184 : vector<1x32xf32> to vector<128x32xf32>
    %190 = arith.addf %188, %189 : vector<128x32xf32>
    %191 = arith.addf %190, %186 : vector<128x32xf32>
    %cst_144 = arith.constant 0.000000e+00 : f32
    %192 = vector.broadcast %cst_144 : f32 to vector<128x32xf32>
    %193 = arith.maximumf %191, %192 : vector<128x32xf32>
    %194 = vector.shape_cast %193 : vector<128x32xf32> to vector<2x8x8x32xf32>
    %c0_145 = arith.constant 0 : index
    %c0_146 = arith.constant 0 : index
    %c0_147 = arith.constant 0 : index
    %c0_148 = arith.constant 0 : index
    %195 = vector.load %arg3[%c0_145, %c0_146, %c0_147, %c0_148] : memref<2x8x8x32xf32, #tpu.memory_space<vmem>>, vector<2x8x8x32xf32>
    tpu.vector_store %arg3[%c0_145, %c0_146, %c0_147, %c0_148], %194 {strides = array<i32>} : memref<2x8x8x32xf32, #tpu.memory_space<vmem>>, vector<2x8x8x32xf32>,
    return
  }
}

</mosaic_0001>

<llo_original>
// kernel: resblock_forward.1
$region0: #{resblock_forward.1}
  #allocation0 [shape = 'u32[]', space=smem, size = 0x4, offset = 0x4, fixed_abs, tag = 'smem constant byte address 0x4 - core index']
  #allocation1 [shape = 'u32[144,128]{1,0:T(1,128)}', space=vmem, size = 0x12000, scoped, tag = 'internal scratch']
  %s0 = inlined_call_operand.vmem [shape: f32[2,12,18,32], index: 0, kind: input, shape index: {}]
  %s1 = inlined_call_operand.vmem [shape: f32[2,9,32,32], index: 1, kind: input, shape index: {}]
  %s2 = inlined_call_operand.vmem [shape: f32[4,32], index: 2, kind: input, shape index: {}]
  %s3 = inlined_call_operand.hbm [shape: f32[2,8,8,32], index: 3, kind: output, shape index: {}]
  %s4 = sld [smem:[#allocation0]]
  $region22: #{resblock_forward.1} parent=0
    _
  %s6 = ssub.s32 1, %s4
  %s7 = scalar_select 0, %s6, %s4
  $region1: #{resblock_forward.1} parent=0
    #allocation2 [shape = 'u8[65536]{0}', space=vmem, size = 0x10000, scoped, tag = 'output window, operand 0, single buffered']
    #allocation3 [shape = 's32[1]{0}', space=sflag, size = 0x4, scoped, tag = 'scoped memory for resblock_forward.1']
    %8 = vsyncpa [#allocation3], 0
    // Predicated region
    $region2: #{resblock_forward.1} parent=1 // pred_check
      _
    $region3: #{resblock_forward.1} parent=1 // pred_check_branch
      %10 = sbr.rel (0) target = $region5
    $region4: #{resblock_forward.1} parent=1 // pred_region
      _
    $region5: #{resblock_forward.1} parent=1 // pred_fallthru
      _
    // Predicated region
    $region6: #{resblock_forward.1} parent=1 // pred_check
      _
    $region7: #{resblock_forward.1} parent=1 // pred_check_branch
      %12 = sbr.rel (0) target = $region9
    $region8: #{resblock_forward.1} parent=1 // pred_region
      _
    $region9: #{resblock_forward.1} parent=1 // pred_fallthru
      _
    // Predicated region
    $region10: #{resblock_forward.1} parent=1 // pred_check
      _
    $region11: #{resblock_forward.1} parent=1 // pred_check_branch
      %14 = sbr.rel (0) target = $region13
    $region12: #{resblock_forward.1} parent=1 // pred_region
      _
    $region13: #{resblock_forward.1} parent=1 // pred_fallthru
      _
    %v15 = vlaneseq
    %v16 = vshrl.u32 %v15, 7
    %v17 = vadd.s32 %v16, 8
    %v18 = vadd.s32 %v16, 16
    %v19 = vadd.s32 %v16, 24
    %v20 = vadd.s32 %v16, 32
    %v21 = vadd.s32 %v16, 40
    %v22 = vadd.s32 %v16, 48
    %v23 = vadd.s32 %v16, 56
    %v24 = vadd.s32 %v16, 64
    %v25 = vadd.s32 %v16, 72
    %v26 = vadd.s32 %v16, 80
    %v27 = vadd.s32 %v16, 88
    %v28 = vadd.s32 %v16, 96
    %v29 = vadd.s32 %v16, 104
    %v30 = vadd.s32 %v16, 112
    %v31 = vadd.s32 %v16, 120
    %v32 = vadd.s32 %v16, 128
    %v33 = vadd.s32 %v16, 136
    %v34 = vadd.s32 %v16, 144
    %v35 = vadd.s32 %v16, 152
    %v36 = vadd.s32 %v16, 160
    %v37 = vadd.s32 %v16, 168
    %v38 = vadd.s32 %v16, 176
    %v39 = vadd.s32 %v16, 184
    %v40 = vadd.s32 %v16, 192
    %v41 = vadd.s32 %v16, 200
    %v42 = vadd.s32 %v16, 208
    %v43 = vadd.s32 %v16, 216
    %v44 = vadd.s32 %v16, 224
    %v45 = vadd.s32 %v16, 232
    %v46 = vadd.s32 %v16, 240
    %v47 = vadd.s32 %v16, 248
    %v48 = vadd.s32 %v16, 256
    %v49 = vadd.s32 %v16, 264
    %v50 = vadd.s32 %v16, 272
    %v51 = vadd.s32 %v16, 280
    %v52 = vadd.s32 %v16, 288
    %v53 = vadd.s32 %v16, 296
    %v54 = vadd.s32 %v16, 304
    %v55 = vadd.s32 %v16, 312
    %v56 = vcvt.s32.f32 %v16
    %v57 = vcvt.s32.f32 %v17
    %v58 = vcvt.s32.f32 %v18
    %v59 = vcvt.s32.f32 %v19
    %v60 = vcvt.s32.f32 %v20
    %v61 = vcvt.s32.f32 %v21
    %v62 = vcvt.s32.f32 %v22
    %v63 = vcvt.s32.f32 %v23
    %v64 = vcvt.s32.f32 %v24
    %v65 = vcvt.s32.f32 %v25
    %v66 = vcvt.s32.f32 %v26
    %v67 = vcvt.s32.f32 %v27
    %v68 = vcvt.s32.f32 %v28
    %v69 = vcvt.s32.f32 %v29
    %v70 = vcvt.s32.f32 %v30
    %v71 = vcvt.s32.f32 %v31
    %v72 = vcvt.s32.f32 %v32
    %v73 = vcvt.s32.f32 %v33
    %v74 = vcvt.s32.f32 %v34
    %v75 = vcvt.s32.f32 %v35
    %v76 = vcvt.s32.f32 %v36
    %v77 = vcvt.s32.f32 %v37
    %v78 = vcvt.s32.f32 %v38
    %v79 = vcvt.s32.f32 %v39
    %v80 = vcvt.s32.f32 %v40
    %v81 = vcvt.s32.f32 %v41
    %v82 = vcvt.s32.f32 %v42
    %v83 = vcvt.s32.f32 %v43
    %v84 = vcvt.s32.f32 %v44
    %v85 = vcvt.s32.f32 %v45
    %v86 = vcvt.s32.f32 %v46
    %v87 = vcvt.s32.f32 %v47
    %v88 = vcvt.s32.f32 %v48
    %v89 = vcvt.s32.f32 %v49
    %v90 = vcvt.s32.f32 %v50
    %v91 = vcvt.s32.f32 %v51
    %v92 = vcvt.s32.f32 %v52
    %v93 = vcvt.s32.f32 %v53
    %v94 = vcvt.s32.f32 %v54
    %v95 = vcvt.s32.f32 %v55
    %v96 = vrcp.pop 16.0
    %v97 = vmul.f32 %v56, %v96
    %v98 = vmul.f32 %v57, %v96
    %v99 = vmul.f32 %v58, %v96
    %v100 = vmul.f32 %v59, %v96
    %v101 = vmul.f32 %v60, %v96
    %v102 = vmul.f32 %v61, %v96
    %v103 = vmul.f32 %v62, %v96
    %v104 = vmul.f32 %v63, %v96
    %v105 = vmul.f32 %v64, %v96
    %v106 = vmul.f32 %v65, %v96
    %v107 = vmul.f32 %v66, %v96
    %v108 = vmul.f32 %v67, %v96
    %v109 = vmul.f32 %v68, %v96
    %v110 = vmul.f32 %v69, %v96
    %v111 = vmul.f32 %v70, %v96
    %v112 = vmul.f32 %v71, %v96
    %v113 = vmul.f32 %v72, %v96
    %v114 = vmul.f32 %v73, %v96
    %v115 = vmul.f32 %v74, %v96
    %v116 = vmul.f32 %v75, %v96
    %v117 = vmul.f32 %v76, %v96
    %v118 = vmul.f32 %v77, %v96
    %v119 = vmul.f32 %v78, %v96
    %v120 = vmul.f32 %v79, %v96
    %v121 = vmul.f32 %v80, %v96
    %v122 = vmul.f32 %v81, %v96
    %v123 = vmul.f32 %v82, %v96
    %v124 = vmul.f32 %v83, %v96
    %v125 = vmul.f32 %v84, %v96
    %v126 = vmul.f32 %v85, %v96
    %v127 = vmul.f32 %v86, %v96
    %v128 = vmul.f32 %v87, %v96
    %v129 = vmul.f32 %v88, %v96
    %v130 = vmul.f32 %v89, %v96
    %v131 = vmul.f32 %v90, %v96
    %v132 = vmul.f32 %v91, %v96
    %v133 = vmul.f32 %v92, %v96
    %v134 = vmul.f32 %v93, %v96
    %v135 = vmul.f32 %v94, %v96
    %v136 = vmul.f32 %v95, %v96
    %v137 = vfloor.f32 %v97
    %v138 = vfloor.f32 %v98
    %v139 = vfloor.f32 %v99
    %v140 = vfloor.f32 %v100
    %v141 = vfloor.f32 %v101
    %v142 = vfloor.f32 %v102
    %v143 = vfloor.f32 %v103
    %v144 = vfloor.f32 %v104
    %v145 = vfloor.f32 %v105
    %v146 = vfloor.f32 %v106
    %v147 = vfloor.f32 %v107
    %v148 = vfloor.f32 %v108
    %v149 = vfloor.f32 %v109
    %v150 = vfloor.f32 %v110
    %v151 = vfloor.f32 %v111
    %v152 = vfloor.f32 %v112
    %v153 = vfloor.f32 %v113
    %v154 = vfloor.f32 %v114
    %v155 = vfloor.f32 %v115
    %v156 = vfloor.f32 %v116
    %v157 = vfloor.f32 %v117
    %v158 = vfloor.f32 %v118
    %v159 = vfloor.f32 %v119
    %v160 = vfloor.f32 %v120
    %v161 = vfloor.f32 %v121
    %v162 = vfloor.f32 %v122
    %v163 = vfloor.f32 %v123
    %v164 = vfloor.f32 %v124
    %v165 = vfloor.f32 %v125
    %v166 = vfloor.f32 %v126
    %v167 = vfloor.f32 %v127
    %v168 = vfloor.f32 %v128
    %v169 = vfloor.f32 %v129
    %v170 = vfloor.f32 %v130
    %v171 = vfloor.f32 %v131
    %v172 = vfloor.f32 %v132
    %v173 = vfloor.f32 %v133
    %v174 = vfloor.f32 %v134
    %v175 = vfloor.f32 %v135
    %v176 = vfloor.f32 %v136
    %v177 = vmul.f32 %v137, 16.0
    %v178 = vmul.f32 %v138, 16.0
    %v179 = vmul.f32 %v139, 16.0
    %v180 = vmul.f32 %v140, 16.0
    %v181 = vmul.f32 %v141, 16.0
    %v182 = vmul.f32 %v142, 16.0
    %v183 = vmul.f32 %v143, 16.0
    %v184 = vmul.f32 %v144, 16.0
    %v185 = vmul.f32 %v145, 16.0
    %v186 = vmul.f32 %v146, 16.0
    %v187 = vmul.f32 %v147, 16.0
    %v188 = vmul.f32 %v148, 16.0
    %v189 = vmul.f32 %v149, 16.0
    %v190 = vmul.f32 %v150, 16.0
    %v191 = vmul.f32 %v151, 16.0
    %v192 = vmul.f32 %v152, 16.0
    %v193 = vmul.f32 %v153, 16.0
    %v194 = vmul.f32 %v154, 16.0
    %v195 = vmul.f32 %v155, 16.0
    %v196 = vmul.f32 %v156, 16.0
    %v197 = vmul.f32 %v157, 16.0
    %v198 = vmul.f32 %v158, 16.0
    %v199 = vmul.f32 %v159, 16.0
    %v200 = vmul.f32 %v160, 16.0
    %v201 = vmul.f32 %v161, 16.0
    %v202 = vmul.f32 %v162, 16.0
    %v203 = vmul.f32 %v163, 16.0
    %v204 = vmul.f32 %v164, 16.0
    %v205 = vmul.f32 %v165, 16.0
    %v206 = vmul.f32 %v166, 16.0
    %v207 = vmul.f32 %v167, 16.0
    %v208 = vmul.f32 %v168, 16.0
    %v209 = vmul.f32 %v169, 16.0
    %v210 = vmul.f32 %v170, 16.0
    %v211 = vmul.f32 %v171, 16.0
    %v212 = vmul.f32 %v172, 16.0
    %v213 = vmul.f32 %v173, 16.0
    %v214 = vmul.f32 %v174, 16.0
    %v215 = vmul.f32 %v175, 16.0
    %v216 = vmul.f32 %v176, 16.0
    %v217 = vsub.f32 %v56, %v177
    %v218 = vsub.f32 %v57, %v178
    %v219 = vsub.f32 %v58, %v179
    %v220 = vsub.f32 %v59, %v180
    %v221 = vsub.f32 %v60, %v181
    %v222 = vsub.f32 %v61, %v182
    %v223 = vsub.f32 %v62, %v183
    %v224 = vsub.f32 %v63, %v184
    %v225 = vsub.f32 %v64, %v185
    %v226 = vsub.f32 %v65, %v186
    %v227 = vsub.f32 %v66, %v187
    %v228 = vsub.f32 %v67, %v188
    %v229 = vsub.f32 %v68, %v189
    %v230 = vsub.f32 %v69, %v190
    %v231 = vsub.f32 %v70, %v191
    %v232 = vsub.f32 %v71, %v192
    %v233 = vsub.f32 %v72, %v193
    %v234 = vsub.f32 %v73, %v194
    %v235 = vsub.f32 %v74, %v195
    %v236 = vsub.f32 %v75, %v196
    %v237 = vsub.f32 %v76, %v197
    %v238 = vsub.f32 %v77, %v198
    %v239 = vsub.f32 %v78, %v199
    %v240 = vsub.f32 %v79, %v200
    %v241 = vsub.f32 %v80, %v201
    %v242 = vsub.f32 %v81, %v202
    %v243 = vsub.f32 %v82, %v203
    %v244 = vsub.f32 %v83, %v204
    %v245 = vsub.f32 %v84, %v205
    %v246 = vsub.f32 %v85, %v206
    %v247 = vsub.f32 %v86, %v207
    %v248 = vsub.f32 %v87, %v208
    %v249 = vsub.f32 %v88, %v209
    %v250 = vsub.f32 %v89, %v210
    %v251 = vsub.f32 %v90, %v211
    %v252 = vsub.f32 %v91, %v212
    %v253 = vsub.f32 %v92, %v213
    %v254 = vsub.f32 %v93, %v214
    %v255 = vsub.f32 %v94, %v215
    %v256 = vsub.f32 %v95, %v216
    %v257 = vrcp.pop 10.0
    %v258 = vmul.f32 %v137, %v257
    %v259 = vmul.f32 %v138, %v257
    %v260 = vmul.f32 %v139, %v257
    %v261 = vmul.f32 %v140, %v257
    %v262 = vmul.f32 %v141, %v257
    %v263 = vmul.f32 %v142, %v257
    %v264 = vmul.f32 %v143, %v257
    %v265 = vmul.f32 %v144, %v257
    %v266 = vmul.f32 %v145, %v257
    %v267 = vmul.f32 %v146, %v257
    %v268 = vmul.f32 %v147, %v257
    %v269 = vmul.f32 %v148, %v257
    %v270 = vmul.f32 %v149, %v257
    %v271 = vmul.f32 %v150, %v257
    %v272 = vmul.f32 %v151, %v257
    %v273 = vmul.f32 %v152, %v257
    %v274 = vmul.f32 %v153, %v257
    %v275 = vmul.f32 %v154, %v257
    %v276 = vmul.f32 %v155, %v257
    %v277 = vmul.f32 %v156, %v257
    %v278 = vmul.f32 %v157, %v257
    %v279 = vmul.f32 %v158, %v257
    %v280 = vmul.f32 %v159, %v257
    %v281 = vmul.f32 %v160, %v257
    %v282 = vmul.f32 %v161, %v257
    %v283 = vmul.f32 %v162, %v257
    %v284 = vmul.f32 %v163, %v257
    %v285 = vmul.f32 %v164, %v257
    %v286 = vmul.f32 %v165, %v257
    %v287 = vmul.f32 %v166, %v257
    %v288 = vmul.f32 %v167, %v257
    %v289 = vmul.f32 %v168, %v257
    %v290 = vmul.f32 %v169, %v257
    %v291 = vmul.f32 %v170, %v257
    %v292 = vmul.f32 %v171, %v257
    %v293 = vmul.f32 %v172, %v257
    %v294 = vmul.f32 %v173, %v257
    %v295 = vmul.f32 %v174, %v257
    %v296 = vmul.f32 %v175, %v257
    %v297 = vmul.f32 %v176, %v257
    %v298 = vfloor.f32 %v258
    %v299 = vfloor.f32 %v259
    %v300 = vfloor.f32 %v260
    %v301 = vfloor.f32 %v261
    %v302 = vfloor.f32 %v262
    %v303 = vfloor.f32 %v263
    %v304 = vfloor.f32 %v264
    %v305 = vfloor.f32 %v265
    %v306 = vfloor.f32 %v266
    %v307 = vfloor.f32 %v267
    %v308 = vfloor.f32 %v268
    %v309 = vfloor.f32 %v269
    %v310 = vfloor.f32 %v270
    %v311 = vfloor.f32 %v271
    %v312 = vfloor.f32 %v272
    %v313 = vfloor.f32 %v273
    %v314 = vfloor.f32 %v274
    %v315 = vfloor.f32 %v275
    %v316 = vfloor.f32 %v276
    %v317 = vfloor.f32 %v277
    %v318 = vfloor.f32 %v278
    %v319 = vfloor.f32 %v279
    %v320 = vfloor.f32 %v280
    %v321 = vfloor.f32 %v281
    %v322 = vfloor.f32 %v282
    %v323 = vfloor.f32 %v283
    %v324 = vfloor.f32 %v284
    %v325 = vfloor.f32 %v285
    %v326 = vfloor.f32 %v286
    %v327 = vfloor.f32 %v287
    %v328 = vfloor.f32 %v288
    %v329 = vfloor.f32 %v289
    %v330 = vfloor.f32 %v290
    %v331 = vfloor.f32 %v291
    %v332 = vfloor.f32 %v292
    %v333 = vfloor.f32 %v293
    %v334 = vfloor.f32 %v294
    %v335 = vfloor.f32 %v295
    %v336 = vfloor.f32 %v296
    %v337 = vfloor.f32 %v297
    %v338 = vmul.f32 %v298, 10.0
    %v339 = vmul.f32 %v299, 10.0
    %v340 = vmul.f32 %v300, 10.0
    %v341 = vmul.f32 %v301, 10.0
    %v342 = vmul.f32 %v302, 10.0
    %v343 = vmul.f32 %v303, 10.0
    %v344 = vmul.f32 %v304, 10.0
    %v345 = vmul.f32 %v305, 10.0
    %v346 = vmul.f32 %v306, 10.0
    %v347 = vmul.f32 %v307, 10.0
    %v348 = vmul.f32 %v308, 10.0
    %v349 = vmul.f32 %v309, 10.0
    %v350 = vmul.f32 %v310, 10.0
    %v351 = vmul.f32 %v311, 10.0
    %v352 = vmul.f32 %v312, 10.0
    %v353 = vmul.f32 %v313, 10.0
    %v354 = vmul.f32 %v314, 10.0
    %v355 = vmul.f32 %v315, 10.0
    %v356 = vmul.f32 %v316, 10.0
    %v357 = vmul.f32 %v317, 10.0
    %v358 = vmul.f32 %v318, 10.0
    %v359 = vmul.f32 %v319, 10.0
    %v360 = vmul.f32 %v320, 10.0
    %v361 = vmul.f32 %v321, 10.0
    %v362 = vmul.f32 %v322, 10.0
    %v363 = vmul.f32 %v323, 10.0
    %v364 = vmul.f32 %v324, 10.0
    %v365 = vmul.f32 %v325, 10.0
    %v366 = vmul.f32 %v326, 10.0
    %v367 = vmul.f32 %v327, 10.0
    %v368 = vmul.f32 %v328, 10.0
    %v369 = vmul.f32 %v329, 10.0
    %v370 = vmul.f32 %v330, 10.0
    %v371 = vmul.f32 %v331, 10.0
    %v372 = vmul.f32 %v332, 10.0
    %v373 = vmul.f32 %v333, 10.0
    %v374 = vmul.f32 %v334, 10.0
    %v375 = vmul.f32 %v335, 10.0
    %v376 = vmul.f32 %v336, 10.0
    %v377 = vmul.f32 %v337, 10.0
    %v378 = vsub.f32 %v137, %v338
    %v379 = vsub.f32 %v138, %v339
    %v380 = vsub.f32 %v139, %v340
    %v381 = vsub.f32 %v140, %v341
    %v382 = vsub.f32 %v141, %v342
    %v383 = vsub.f32 %v142, %v343
    %v384 = vsub.f32 %v143, %v344
    %v385 = vsub.f32 %v144, %v345
    %v386 = vsub.f32 %v145, %v346
    %v387 = vsub.f32 %v146, %v347
    %v388 = vsub.f32 %v147, %v348
    %v389 = vsub.f32 %v148, %v349
    %v390 = vsub.f32 %v149, %v350
    %v391 = vsub.f32 %v150, %v351
    %v392 = vsub.f32 %v151, %v352
    %v393 = vsub.f32 %v152, %v353
    %v394 = vsub.f32 %v153, %v354
    %v395 = vsub.f32 %v154, %v355
    %v396 = vsub.f32 %v155, %v356
    %v397 = vsub.f32 %v156, %v357
    %v398 = vsub.f32 %v157, %v358
    %v399 = vsub.f32 %v158, %v359
    %v400 = vsub.f32 %v159, %v360
    %v401 = vsub.f32 %v160, %v361
    %v402 = vsub.f32 %v161, %v362
    %v403 = vsub.f32 %v162, %v363
    %v404 = vsub.f32 %v163, %v364
    %v405 = vsub.f32 %v164, %v365
    %v406 = vsub.f32 %v165, %v366
    %v407 = vsub.f32 %v166, %v367
    %v408 = vsub.f32 %v167, %v368
    %v409 = vsub.f32 %v168, %v369
    %v410 = vsub.f32 %v169, %v370
    %v411 = vsub.f32 %v170, %v371
    %v412 = vsub.f32 %v171, %v372
    %v413 = vsub.f32 %v172, %v373
    %v414 = vsub.f32 %v173, %v374
    %v415 = vsub.f32 %v174, %v375
    %v416 = vsub.f32 %v175, %v376
    %v417 = vsub.f32 %v176, %v377
    %vm418 = vcmp.ge.f32.partialorder %v378, 1.0
    %vm419 = vcmp.ge.f32.partialorder %v379, 1.0
    %vm420 = vcmp.ge.f32.partialorder %v380, 1.0
    %vm421 = vcmp.ge.f32.partialorder %v381, 1.0
    %vm422 = vcmp.ge.f32.partialorder %v382, 1.0
    %vm423 = vcmp.ge.f32.partialorder %v383, 1.0
    %vm424 = vcmp.ge.f32.partialorder %v384, 1.0
    %vm425 = vcmp.ge.f32.partialorder %v385, 1.0
    %vm426 = vcmp.ge.f32.partialorder %v386, 1.0
    %vm427 = vcmp.ge.f32.partialorder %v387, 1.0
    %vm428 = vcmp.ge.f32.partialorder %v388, 1.0
    %vm429 = vcmp.ge.f32.partialorder %v389, 1.0
    %vm430 = vcmp.ge.f32.partialorder %v390, 1.0
    %vm431 = vcmp.ge.f32.partialorder %v391, 1.0
    %vm432 = vcmp.ge.f32.partialorder %v392, 1.0
    %vm433 = vcmp.ge.f32.partialorder %v393, 1.0
    %vm434 = vcmp.ge.f32.partialorder %v394, 1.0
    %vm435 = vcmp.ge.f32.partialorder %v395, 1.0
    %vm436 = vcmp.ge.f32.partialorder %v396, 1.0
    %vm437 = vcmp.ge.f32.partialorder %v397, 1.0
    %vm438 = vcmp.ge.f32.partialorder %v398, 1.0
    %vm439 = vcmp.ge.f32.partialorder %v399, 1.0
    %vm440 = vcmp.ge.f32.partialorder %v400, 1.0
    %vm441 = vcmp.ge.f32.partialorder %v401, 1.0
    %vm442 = vcmp.ge.f32.partialorder %v402, 1.0
    %vm443 = vcmp.ge.f32.partialorder %v403, 1.0
    %vm444 = vcmp.ge.f32.partialorder %v404, 1.0
    %vm445 = vcmp.ge.f32.partialorder %v405, 1.0
    %vm446 = vcmp.ge.f32.partialorder %v406, 1.0
    %vm447 = vcmp.ge.f32.partialorder %v407, 1.0
    %vm448 = vcmp.ge.f32.partialorder %v408, 1.0
    %vm449 = vcmp.ge.f32.partialorder %v409, 1.0
    %vm450 = vcmp.ge.f32.partialorder %v410, 1.0
    %vm451 = vcmp.ge.f32.partialorder %v411, 1.0
    %vm452 = vcmp.ge.f32.partialorder %v412, 1.0
    %vm453 = vcmp.ge.f32.partialorder %v413, 1.0
    %vm454 = vcmp.ge.f32.partialorder %v414, 1.0
    %vm455 = vcmp.ge.f32.partialorder %v415, 1.0
    %vm456 = vcmp.ge.f32.partialorder %v416, 1.0
    %vm457 = vcmp.ge.f32.partialorder %v417, 1.0
    %vm458 = vcmp.le.f32.partialorder %v378, 8.0
    %vm459 = vcmp.le.f32.partialorder %v379, 8.0
    %vm460 = vcmp.le.f32.partialorder %v380, 8.0
    %vm461 = vcmp.le.f32.partialorder %v381, 8.0
    %vm462 = vcmp.le.f32.partialorder %v382, 8.0
    %vm463 = vcmp.le.f32.partialorder %v383, 8.0
    %vm464 = vcmp.le.f32.partialorder %v384, 8.0
    %vm465 = vcmp.le.f32.partialorder %v385, 8.0
    %vm466 = vcmp.le.f32.partialorder %v386, 8.0
    %vm467 = vcmp.le.f32.partialorder %v387, 8.0
    %vm468 = vcmp.le.f32.partialorder %v388, 8.0
    %vm469 = vcmp.le.f32.partialorder %v389, 8.0
    %vm470 = vcmp.le.f32.partialorder %v390, 8.0
    %vm471 = vcmp.le.f32.partialorder %v391, 8.0
    %vm472 = vcmp.le.f32.partialorder %v392, 8.0
    %vm473 = vcmp.le.f32.partialorder %v393, 8.0
    %vm474 = vcmp.le.f32.partialorder %v394, 8.0
    %vm475 = vcmp.le.f32.partialorder %v395, 8.0
    %vm476 = vcmp.le.f32.partialorder %v396, 8.0
    %vm477 = vcmp.le.f32.partialorder %v397, 8.0
    %vm478 = vcmp.le.f32.partialorder %v398, 8.0
    %vm479 = vcmp.le.f32.partialorder %v399, 8.0
    %vm480 = vcmp.le.f32.partialorder %v400, 8.0
    %vm481 = vcmp.le.f32.partialorder %v401, 8.0
    %vm482 = vcmp.le.f32.partialorder %v402, 8.0
    %vm483 = vcmp.le.f32.partialorder %v403, 8.0
    %vm484 = vcmp.le.f32.partialorder %v404, 8.0
    %vm485 = vcmp.le.f32.partialorder %v405, 8.0
    %vm486 = vcmp.le.f32.partialorder %v406, 8.0
    %vm487 = vcmp.le.f32.partialorder %v407, 8.0
    %vm488 = vcmp.le.f32.partialorder %v408, 8.0
    %vm489 = vcmp.le.f32.partialorder %v409, 8.0
    %vm490 = vcmp.le.f32.partialorder %v410, 8.0
    %vm491 = vcmp.le.f32.partialorder %v411, 8.0
    %vm492 = vcmp.le.f32.partialorder %v412, 8.0
    %vm493 = vcmp.le.f32.partialorder %v413, 8.0
    %vm494 = vcmp.le.f32.partialorder %v414, 8.0
    %vm495 = vcmp.le.f32.partialorder %v415, 8.0
    %vm496 = vcmp.le.f32.partialorder %v416, 8.0
    %vm497 = vcmp.le.f32.partialorder %v417, 8.0
    %vm498 = vmand %vm418, %vm458
    %vm499 = vmand %vm419, %vm459
    %vm500 = vmand %vm420, %vm460
    %vm501 = vmand %vm421, %vm461
    %vm502 = vmand %vm422, %vm462
    %vm503 = vmand %vm423, %vm463
    %vm504 = vmand %vm424, %vm464
    %vm505 = vmand %vm425, %vm465
    %vm506 = vmand %vm426, %vm466
    %vm507 = vmand %vm427, %vm467
    %vm508 = vmand %vm428, %vm468
    %vm509 = vmand %vm429, %vm469
    %vm510 = vmand %vm430, %vm470
    %vm511 = vmand %vm431, %vm471
    %vm512 = vmand %vm432, %vm472
    %vm513 = vmand %vm433, %vm473
    %vm514 = vmand %vm434, %vm474
    %vm515 = vmand %vm435, %vm475
    %vm516 = vmand %vm436, %vm476
    %vm517 = vmand %vm437, %vm477
    %vm518 = vmand %vm438, %vm478
    %vm519 = vmand %vm439, %vm479
    %vm520 = vmand %vm440, %vm480
    %vm521 = vmand %vm441, %vm481
    %vm522 = vmand %vm442, %vm482
    %vm523 = vmand %vm443, %vm483
    %vm524 = vmand %vm444, %vm484
    %vm525 = vmand %vm445, %vm485
    %vm526 = vmand %vm446, %vm486
    %vm527 = vmand %vm447, %vm487
    %vm528 = vmand %vm448, %vm488
    %vm529 = vmand %vm449, %vm489
    %vm530 = vmand %vm450, %vm490
    %vm531 = vmand %vm451, %vm491
    %vm532 = vmand %vm452, %vm492
    %vm533 = vmand %vm453, %vm493
    %vm534 = vmand %vm454, %vm494
    %vm535 = vmand %vm455, %vm495
    %vm536 = vmand %vm456, %vm496
    %vm537 = vmand %vm457, %vm497
    %vm538 = vcmp.ge.f32.partialorder %v217, 1.0
    %vm539 = vcmp.ge.f32.partialorder %v218, 1.0
    %vm540 = vcmp.ge.f32.partialorder %v219, 1.0
    %vm541 = vcmp.ge.f32.partialorder %v220, 1.0
    %vm542 = vcmp.ge.f32.partialorder %v221, 1.0
    %vm543 = vcmp.ge.f32.partialorder %v222, 1.0
    %vm544 = vcmp.ge.f32.partialorder %v223, 1.0
    %vm545 = vcmp.ge.f32.partialorder %v224, 1.0
    %vm546 = vcmp.ge.f32.partialorder %v225, 1.0
    %vm547 = vcmp.ge.f32.partialorder %v226, 1.0
    %vm548 = vcmp.ge.f32.partialorder %v227, 1.0
    %vm549 = vcmp.ge.f32.partialorder %v228, 1.0
    %vm550 = vcmp.ge.f32.partialorder %v229, 1.0
    %vm551 = vcmp.ge.f32.partialorder %v230, 1.0
    %vm552 = vcmp.ge.f32.partialorder %v231, 1.0
    %vm553 = vcmp.ge.f32.partialorder %v232, 1.0
    %vm554 = vcmp.ge.f32.partialorder %v233, 1.0
    %vm555 = vcmp.ge.f32.partialorder %v234, 1.0
    %vm556 = vcmp.ge.f32.partialorder %v235, 1.0
    %vm557 = vcmp.ge.f32.partialorder %v236, 1.0
    %vm558 = vcmp.ge.f32.partialorder %v237, 1.0
    %vm559 = vcmp.ge.f32.partialorder %v238, 1.0
    %vm560 = vcmp.ge.f32.partialorder %v239, 1.0
    %vm561 = vcmp.ge.f32.partialorder %v240, 1.0
    %vm562 = vcmp.ge.f32.partialorder %v241, 1.0
    %vm563 = vcmp.ge.f32.partialorder %v242, 1.0
    %vm564 = vcmp.ge.f32.partialorder %v243, 1.0
    %vm565 = vcmp.ge.f32.partialorder %v244, 1.0
    %vm566 = vcmp.ge.f32.partialorder %v245, 1.0
    %vm567 = vcmp.ge.f32.partialorder %v246, 1.0
    %vm568 = vcmp.ge.f32.partialorder %v247, 1.0
    %vm569 = vcmp.ge.f32.partialorder %v248, 1.0
    %vm570 = vcmp.ge.f32.partialorder %v249, 1.0
    %vm571 = vcmp.ge.f32.partialorder %v250, 1.0
    %vm572 = vcmp.ge.f32.partialorder %v251, 1.0
    %vm573 = vcmp.ge.f32.partialorder %v252, 1.0
    %vm574 = vcmp.ge.f32.partialorder %v253, 1.0
    %vm575 = vcmp.ge.f32.partialorder %v254, 1.0
    %vm576 = vcmp.ge.f32.partialorder %v255, 1.0
    %vm577 = vcmp.ge.f32.partialorder %v256, 1.0
    %vm578 = vmand %vm498, %vm538
    %vm579 = vmand %vm499, %vm539
    %vm580 = vmand %vm500, %vm540
    %vm581 = vmand %vm501, %vm541
    %vm582 = vmand %vm502, %vm542
    %vm583 = vmand %vm503, %vm543
    %vm584 = vmand %vm504, %vm544
    %vm585 = vmand %vm505, %vm545
    %vm586 = vmand %vm506, %vm546
    %vm587 = vmand %vm507, %vm547
    %vm588 = vmand %vm508, %vm548
    %vm589 = vmand %vm509, %vm549
    %vm590 = vmand %vm510, %vm550
    %vm591 = vmand %vm511, %vm551
    %vm592 = vmand %vm512, %vm552
    %vm593 = vmand %vm513, %vm553
    %vm594 = vmand %vm514, %vm554
    %vm595 = vmand %vm515, %vm555
    %vm596 = vmand %vm516, %vm556
    %vm597 = vmand %vm517, %vm557
    %vm598 = vmand %vm518, %vm558
    %vm599 = vmand %vm519, %vm559
    %vm600 = vmand %vm520, %vm560
    %vm601 = vmand %vm521, %vm561
    %vm602 = vmand %vm522, %vm562
    %vm603 = vmand %vm523, %vm563
    %vm604 = vmand %vm524, %vm564
    %vm605 = vmand %vm525, %vm565
    %vm606 = vmand %vm526, %vm566
    %vm607 = vmand %vm527, %vm567
    %vm608 = vmand %vm528, %vm568
    %vm609 = vmand %vm529, %vm569
    %vm610 = vmand %vm530, %vm570
    %vm611 = vmand %vm531, %vm571
    %vm612 = vmand %vm532, %vm572
    %vm613 = vmand %vm533, %vm573
    %vm614 = vmand %vm534, %vm574
    %vm615 = vmand %vm535, %vm575
    %vm616 = vmand %vm536, %vm576
    %vm617 = vmand %vm537, %vm577
    %vm618 = vcmp.le.f32.partialorder %v217, 8.0
    %vm619 = vcmp.le.f32.partialorder %v218, 8.0
    %vm620 = vcmp.le.f32.partialorder %v219, 8.0
    %vm621 = vcmp.le.f32.partialorder %v220, 8.0
    %vm622 = vcmp.le.f32.partialorder %v221, 8.0
    %vm623 = vcmp.le.f32.partialorder %v222, 8.0
    %vm624 = vcmp.le.f32.partialorder %v223, 8.0
    %vm625 = vcmp.le.f32.partialorder %v224, 8.0
    %vm626 = vcmp.le.f32.partialorder %v225, 8.0
    %vm627 = vcmp.le.f32.partialorder %v226, 8.0
    %vm628 = vcmp.le.f32.partialorder %v227, 8.0
    %vm629 = vcmp.le.f32.partialorder %v228, 8.0
    %vm630 = vcmp.le.f32.partialorder %v229, 8.0
    %vm631 = vcmp.le.f32.partialorder %v230, 8.0
    %vm632 = vcmp.le.f32.partialorder %v231, 8.0
    %vm633 = vcmp.le.f32.partialorder %v232, 8.0
    %vm634 = vcmp.le.f32.partialorder %v233, 8.0
    %vm635 = vcmp.le.f32.partialorder %v234, 8.0
    %vm636 = vcmp.le.f32.partialorder %v235, 8.0
    %vm637 = vcmp.le.f32.partialorder %v236, 8.0
    %vm638 = vcmp.le.f32.partialorder %v237, 8.0
    %vm639 = vcmp.le.f32.partialorder %v238, 8.0
    %vm640 = vcmp.le.f32.partialorder %v239, 8.0
    %vm641 = vcmp.le.f32.partialorder %v240, 8.0
    %vm642 = vcmp.le.f32.partialorder %v241, 8.0
    %vm643 = vcmp.le.f32.partialorder %v242, 8.0
    %vm644 = vcmp.le.f32.partialorder %v243, 8.0
    %vm645 = vcmp.le.f32.partialorder %v244, 8.0
    %vm646 = vcmp.le.f32.partialorder %v245, 8.0
    %vm647 = vcmp.le.f32.partialorder %v246, 8.0
    %vm648 = vcmp.le.f32.partialorder %v247, 8.0
    %vm649 = vcmp.le.f32.partialorder %v248, 8.0
    %vm650 = vcmp.le.f32.partialorder %v249, 8.0
    %vm651 = vcmp.le.f32.partialorder %v250, 8.0
    %vm652 = vcmp.le.f32.partialorder %v251, 8.0
    %vm653 = vcmp.le.f32.partialorder %v252, 8.0
    %vm654 = vcmp.le.f32.partialorder %v253, 8.0
    %vm655 = vcmp.le.f32.partialorder %v254, 8.0
    %vm656 = vcmp.le.f32.partialorder %v255, 8.0
    %vm657 = vcmp.le.f32.partialorder %v256, 8.0
    %vm658 = vmand %vm578, %vm618
    %vm659 = vmand %vm579, %vm619
    %vm660 = vmand %vm580, %vm620
    %vm661 = vmand %vm581, %vm621
    %vm662 = vmand %vm582, %vm622
    %vm663 = vmand %vm583, %vm623
    %vm664 = vmand %vm584, %vm624
    %vm665 = vmand %vm585, %vm625
    %vm666 = vmand %vm586, %vm626
    %vm667 = vmand %vm587, %vm627
    %vm668 = vmand %vm588, %vm628
    %vm669 = vmand %vm589, %vm629
    %vm670 = vmand %vm590, %vm630
    %vm671 = vmand %vm591, %vm631
    %vm672 = vmand %vm592, %vm632
    %vm673 = vmand %vm593, %vm633
    %vm674 = vmand %vm594, %vm634
    %vm675 = vmand %vm595, %vm635
    %vm676 = vmand %vm596, %vm636
    %vm677 = vmand %vm597, %vm637
    %vm678 = vmand %vm598, %vm638
    %vm679 = vmand %vm599, %vm639
    %vm680 = vmand %vm600, %vm640
    %vm681 = vmand %vm601, %vm641
    %vm682 = vmand %vm602, %vm642
    %vm683 = vmand %vm603, %vm643
    %vm684 = vmand %vm604, %vm644
    %vm685 = vmand %vm605, %vm645
    %vm686 = vmand %vm606, %vm646
    %vm687 = vmand %vm607, %vm647
    %vm688 = vmand %vm608, %vm648
    %vm689 = vmand %vm609, %vm649
    %vm690 = vmand %vm610, %vm650
    %vm691 = vmand %vm611, %vm651
    %vm692 = vmand %vm612, %vm652
    %vm693 = vmand %vm613, %vm653
    %vm694 = vmand %vm614, %vm654
    %vm695 = vmand %vm615, %vm655
    %vm696 = vmand %vm616, %vm656
    %vm697 = vmand %vm617, %vm657
    %v698 = vsel %vm658, 1.0, 0.0
    %v699 = vsel %vm659, 1.0, 0.0
    %v700 = vsel %vm660, 1.0, 0.0
    %v701 = vsel %vm661, 1.0, 0.0
    %v702 = vsel %vm662, 1.0, 0.0
    %v703 = vsel %vm663, 1.0, 0.0
    %v704 = vsel %vm664, 1.0, 0.0
    %v705 = vsel %vm665, 1.0, 0.0
    %v706 = vsel %vm666, 1.0, 0.0
    %v707 = vsel %vm667, 1.0, 0.0
    %v708 = vsel %vm668, 1.0, 0.0
    %v709 = vsel %vm669, 1.0, 0.0
    %v710 = vsel %vm670, 1.0, 0.0
    %v711 = vsel %vm671, 1.0, 0.0
    %v712 = vsel %vm672, 1.0, 0.0
    %v713 = vsel %vm673, 1.0, 0.0
    %v714 = vsel %vm674, 1.0, 0.0
    %v715 = vsel %vm675, 1.0, 0.0
    %v716 = vsel %vm676, 1.0, 0.0
    %v717 = vsel %vm677, 1.0, 0.0
    %v718 = vsel %vm678, 1.0, 0.0
    %v719 = vsel %vm679, 1.0, 0.0
    %v720 = vsel %vm680, 1.0, 0.0
    %v721 = vsel %vm681, 1.0, 0.0
    %v722 = vsel %vm682, 1.0, 0.0
    %v723 = vsel %vm683, 1.0, 0.0
    %v724 = vsel %vm684, 1.0, 0.0
    %v725 = vsel %vm685, 1.0, 0.0
    %v726 = vsel %vm686, 1.0, 0.0
    %v727 = vsel %vm687, 1.0, 0.0
    %v728 = vsel %vm688, 1.0, 0.0
    %v729 = vsel %vm689, 1.0, 0.0
    %v730 = vsel %vm690, 1.0, 0.0
    %v731 = vsel %vm691, 1.0, 0.0
    %v732 = vsel %vm692, 1.0, 0.0
    %v733 = vsel %vm693, 1.0, 0.0
    %v734 = vsel %vm694, 1.0, 0.0
    %v735 = vsel %vm695, 1.0, 0.0
    %v736 = vsel %vm696, 1.0, 0.0
    %v737 = vsel %vm697, 1.0, 0.0
    %v738 = vld [vmem:[%s2] sm:$0xf]
    %v739 = vld [vmem:[%s0] sm:$0xff]
    %v740 = vld [vmem:[%s0 + $0x8] sm:$0xff]
    %v741 = vld [vmem:[%s0 + $0x18] sm:$0xff]
    %v742 = vld [vmem:[%s0 + $0x20] sm:$0xff]
    %v743 = vld [vmem:[%s0 + $0x30] sm:$0xff]
    %v744 = vld [vmem:[%s0 + $0x38] sm:$0xff]
    %v745 = vld [vmem:[%s0 + $0x48] sm:$0xff]
    %v746 = vld [vmem:[%s0 + $0x50] sm:$0xff]
    %v747 = vld [vmem:[%s0 + $0x60] sm:$0xff]
    %v748 = vld [vmem:[%s0 + $0x68] sm:$0xff]
    %v749 = vld [vmem:[%s0 + $0x78] sm:$0xff]
    %v750 = vld [vmem:[%s0 + $0x80] sm:$0xff]
    %v751 = vld [vmem:[%s0 + $0x90] sm:$0xff]
    %v752 = vld [vmem:[%s0 + $0x98] sm:$0xff]
    %v753 = vld [vmem:[%s0 + $0xa8] sm:$0xff]
    %v754 = vld [vmem:[%s0 + $0xb0] sm:$0xff]
    %v755 = vld [vmem:[%s0 + $0xc0] sm:$0xff]
    %v756 = vld [vmem:[%s0 + $0xc8] sm:$0xff]
    %v757 = vld [vmem:[%s0 + $0xd8] sm:$0xff]
    %v758 = vld [vmem:[%s0 + $0xe0] sm:$0xff]
    %v759 = vld [vmem:[%s0 + $0x120] sm:$0xff]
    %v760 = vld [vmem:[%s0 + $0x128] sm:$0xff]
    %v761 = vld [vmem:[%s0 + $0x138] sm:$0xff]
    %v762 = vld [vmem:[%s0 + $0x140] sm:$0xff]
    %v763 = vld [vmem:[%s0 + $0x150] sm:$0xff]
    %v764 = vld [vmem:[%s0 + $0x158] sm:$0xff]
    %v765 = vld [vmem:[%s0 + $0x168] sm:$0xff]
    %v766 = vld [vmem:[%s0 + $0x170] sm:$0xff]
    %v767 = vld [vmem:[%s0 + $0x180] sm:$0xff]
    %v768 = vld [vmem:[%s0 + $0x188] sm:$0xff]
    %v769 = vld [vmem:[%s0 + $0x198] sm:$0xff]
    %v770 = vld [vmem:[%s0 + $0x1a0] sm:$0xff]
    %v771 = vld [vmem:[%s0 + $0x1b0] sm:$0xff]
    %v772 = vld [vmem:[%s0 + $0x1b8] sm:$0xff]
    %v773 = vld [vmem:[%s0 + $0x1c8] sm:$0xff]
    %v774 = vld [vmem:[%s0 + $0x1d0] sm:$0xff]
    %v775 = vld [vmem:[%s0 + $0x1e0] sm:$0xff]
    %v776 = vld [vmem:[%s0 + $0x1e8] sm:$0xff]
    %v777 = vld [vmem:[%s0 + $0x1f8] sm:$0xff]
    %v778 = vld [vmem:[%s0 + $0x200] sm:$0xff]
    %v779 = vld [vmem:[%s1] sm:$0xff]
    %v780 = vld [vmem:[%s1 + $0x8] sm:$0xff]
    %v781 = vld [vmem:[%s1 + $0x10] sm:$0xff]
    %v782 = vld [vmem:[%s1 + $0x18] sm:$0xff]
    %v783 = vld [vmem:[%s0 + $0x1] sm:$0xff]
    %v784 = vld [vmem:[%s0 + $0x9] sm:$0xff]
    %v785 = vld [vmem:[%s0 + $0x19] sm:$0xff]
    %v786 = vld [vmem:[%s0 + $0x21] sm:$0xff]
    %v787 = vld [vmem:[%s0 + $0x31] sm:$0xff]
    %v788 = vld [vmem:[%s0 + $0x39] sm:$0xff]
    %v789 = vld [vmem:[%s0 + $0x49] sm:$0xff]
    %v790 = vld [vmem:[%s0 + $0x51] sm:$0xff]
    %v791 = vld [vmem:[%s0 + $0x61] sm:$0xff]
    %v792 = vld [vmem:[%s0 + $0x69] sm:$0xff]
    %v793 = vld [vmem:[%s0 + $0x79] sm:$0xff]
    %v794 = vld [vmem:[%s0 + $0x81] sm:$0xff]
    %v795 = vld [vmem:[%s0 + $0x91] sm:$0xff]
    %v796 = vld [vmem:[%s0 + $0x99] sm:$0xff]
    %v797 = vld [vmem:[%s0 + $0xa9] sm:$0xff]
    %v798 = vld [vmem:[%s0 + $0xb1] sm:$0xff]
    %v799 = vld [vmem:[%s0 + $0xc1] sm:$0xff]
    %v800 = vld [vmem:[%s0 + $0xc9] sm:$0xff]
    %v801 = vld [vmem:[%s0 + $0xd9] sm:$0xff]
    %v802 = vld [vmem:[%s0 + $0xe1] sm:$0xff]
    %v803 = vld [vmem:[%s0 + $0x121] sm:$0xff]
    %v804 = vld [vmem:[%s0 + $0x129] sm:$0xff]
    %v805 = vld [vmem:[%s0 + $0x139] sm:$0xff]
    %v806 = vld [vmem:[%s0 + $0x141] sm:$0xff]
    %v807 = vld [vmem:[%s0 + $0x151] sm:$0xff]
    %v808 = vld [vmem:[%s0 + $0x159] sm:$0xff]
    %v809 = vld [vmem:[%s0 + $0x169] sm:$0xff]
    %v810 = vld [vmem:[%s0 + $0x171] sm:$0xff]
    %v811 = vld [vmem:[%s0 + $0x181] sm:$0xff]
    %v812 = vld [vmem:[%s0 + $0x189] sm:$0xff]
    %v813 = vld [vmem:[%s0 + $0x199] sm:$0xff]
    %v814 = vld [vmem:[%s0 + $0x1a1] sm:$0xff]
    %v815 = vld [vmem:[%s0 + $0x1b1] sm:$0xff]
    %v816 = vld [vmem:[%s0 + $0x1b9] sm:$0xff]
    %v817 = vld [vmem:[%s0 + $0x1c9] sm:$0xff]
    %v818 = vld [vmem:[%s0 + $0x1d1] sm:$0xff]
    %v819 = vld [vmem:[%s0 + $0x1e1] sm:$0xff]
    %v820 = vld [vmem:[%s0 + $0x1e9] sm:$0xff]
    %v821 = vld [vmem:[%s0 + $0x1f9] sm:$0xff]
    %v822 = vld [vmem:[%s0 + $0x201] sm:$0xff]
    %s823 = scalar_lea.vmem %s1, 32
    %v824 = vld [vmem:[%s823] sm:$0xff]
    %v825 = vld [vmem:[%s823 + $0x8] sm:$0xff]
    %v826 = vld [vmem:[%s823 + $0x10] sm:$0xff]
    %v827 = vld [vmem:[%s823 + $0x18] sm:$0xff]
    %vm828 = vcmask 261120
    %v830 = vsel %vm828, %v783, 0
    %v833 = vsel %vm828, %v784, 0
    %v836 = vsel %vm828, %v785, 0
    %v839 = vsel %vm828, %v786, 0
    %v842 = vsel %vm828, %v787, 0
    %v845 = vsel %vm828, %v788, 0
    %v848 = vsel %vm828, %v789, 0
    %v851 = vsel %vm828, %v790, 0
    %v854 = vsel %vm828, %v791, 0
    %v857 = vsel %vm828, %v792, 0
    %v860 = vsel %vm828, %v793, 0
    %v863 = vsel %vm828, %v794, 0
    %v866 = vsel %vm828, %v795, 0
    %v869 = vsel %vm828, %v796, 0
    %v872 = vsel %vm828, %v797, 0
    %v875 = vsel %vm828, %v798, 0
    %v878 = vsel %vm828, %v799, 0
    %v881 = vsel %vm828, %v800, 0
    %v884 = vsel %vm828, %v801, 0
    %v887 = vsel %vm828, %v802, 0
    %v890 = vsel %vm828, %v803, 0
    %v893 = vsel %vm828, %v804, 0
    %v896 = vsel %vm828, %v805, 0
    %v899 = vsel %vm828, %v806, 0
    %v902 = vsel %vm828, %v807, 0
    %v905 = vsel %vm828, %v808, 0
    %v908 = vsel %vm828, %v809, 0
    %v911 = vsel %vm828, %v810, 0
    %v914 = vsel %vm828, %v811, 0
    %v917 = vsel %vm828, %v812, 0
    %v920 = vsel %vm828, %v813, 0
    %v923 = vsel %vm828, %v814, 0
    %v926 = vsel %vm828, %v815, 0
    %v929 = vsel %vm828, %v816, 0
    %v932 = vsel %vm828, %v817, 0
    %v935 = vsel %vm828, %v818, 0
    %v938 = vsel %vm828, %v819, 0
    %v941 = vsel %vm828, %v820, 0
    %v944 = vsel %vm828, %v821, 0
    %v947 = vsel %vm828, %v822, 0
    %949 = vmatprep.subr.mxu0 0.0
    %950 = vmatpush1.msra.mxu0 %v824
    %951 = vmatprep.subr.mxu0 0.0
    %952 = vmatpush1.msra.mxu0 %v825
    %953 = vmatprep.subr.mxu0 0.0
    %954 = vmatpush1.msra.mxu0 %v826
    %955 = vmatprep.subr.mxu0 0.0
    %956 = vmatpush1.msra.mxu0 %v827
    %957 = vmatprep.subr.mxu0 0.0
    %958 = vmatpush1.msra.mxu0 0.0
    %959 = vmatprep.subr.mxu0 0.0
    %960 = vmatpush1.msra.mxu0 0.0
    %961 = vmatprep.subr.mxu0 0.0
    %962 = vmatpush1.msra.mxu0 0.0
    %963 = vmatprep.subr.mxu0 0.0
    %964 = vmatpush1.msra.mxu0 0.0
    %965 = vmatprep.subr.mxu0 0.0
    %966 = vmatpush1.msra.mxu0 0.0
    %967 = vmatprep.subr.mxu0 0.0
    %968 = vmatpush1.msra.mxu0 0.0
    %969 = vmatprep.subr.mxu0 0.0
    %970 = vmatpush1.msra.mxu0 0.0
    %971 = vmatprep.subr.mxu0 0.0
    %972 = vmatpush1.msra.mxu0 0.0
    %973 = vmatprep.subr.mxu0 0.0
    %974 = vmatpush1.msra.mxu0 0.0
    %975 = vmatprep.subr.mxu0 0.0
    %976 = vmatpush1.msra.mxu0 0.0
    %977 = vmatprep.subr.mxu0 0.0
    %978 = vmatpush1.msra.mxu0 0.0
    %979 = vmatprep.subr.mxu0 0.0
    %980 = vmatpush1.msra.mxu0 0.0
    %981 = vmatprep.subr.mxu0 0.0
    %982 = vmatpush1.msra.mxu0 0.0
    %983 = vmatprep.subr.mxu0 0.0
    %984 = vmatpush1.msra.mxu0 0.0
    %985 = vmatprep.subr.mxu0 0.0
    %986 = vmatpush1.msra.mxu0 0.0
    %987 = vmatprep.subr.mxu0 0.0
    %988 = vmatpush1.msra.mxu0 0.0
    %989 = vmatprep.subr.mxu0 0.0
    %990 = vmatpush1.msra.mxu0 0.0
    %991 = vmatprep.subr.mxu0 0.0
    %992 = vmatpush1.msra.mxu0 0.0
    %993 = vmatprep.subr.mxu0 0.0
    %994 = vmatpush1.msra.mxu0 0.0
    %995 = vmatprep.subr.mxu0 0.0
    %996 = vmatpush1.msra.mxu0 0.0
    %997 = vmatprep.subr.mxu0 0.0
    %998 = vmatpush1.msra.mxu0 0.0
    %999 = vmatprep.subr.mxu0 0.0
    %1000 = vmatpush1.msra.mxu0 0.0
    %1001 = vmatprep.subr.mxu0 0.0
    %1002 = vmatpush1.msra.mxu0 0.0
    %1003 = vmatprep.subr.mxu0 0.0
    %1004 = vmatpush1.msra.mxu0 0.0
    %1005 = vmatprep.subr.mxu0 0.0
    %1006 = vmatpush1.msra.mxu0 0.0
    %1007 = vmatprep.subr.mxu0 0.0
    %1008 = vmatpush1.msra.mxu0 0.0
    %1009 = vmatprep.subr.mxu0 0.0
    %1010 = vmatpush1.msra.mxu0 0.0
    %1011 = vmatprep.subr.mxu0 0.0
    %1012 = vmatpush1.msra.mxu0 0.0
    %1013 = vmatprep.mubr.f32.mxu0 0.0
    %1014 = vmatmul.mubr.f32.gmra.mrb[0].mxu0 %v830
    %v1015 = vpop.f32.mrb[0].mxu0
    %v1016 = vadd.f32 0.0, %v1015
    %v1017 = vpop.f32.mrb[0].mxu0
    %1018 = vmatprep.mubr.f32.mxu0 0.0
    %1019 = vmatmul.mubr.f32.gmra.mrb[0].mxu0 %v833
    %v1020 = vpop.f32.mrb[0].mxu0
    %v1021 = vadd.f32 0.0, %v1020
    %v1022 = vpop.f32.mrb[0].mxu0
    %1023 = vmatprep.mubr.f32.mxu0 0.0
    %1024 = vmatmul.mubr.f32.gmra.mrb[0].mxu0 %v836
    %v1025 = vpop.f32.mrb[0].mxu0
    %v1026 = vadd.f32 0.0, %v1025
    %v1027 = vpop.f32.mrb[0].mxu0
    %1028 = vmatprep.mubr.f32.mxu0 0.0
    %1029 = vmatmul.mubr.f32.gmra.mrb[0].mxu0 %v839
    %v1030 = vpop.f32.mrb[0].mxu0
    %v1031 = vadd.f32 0.0, %v1030
    %v1032 = vpop.f32.mrb[0].mxu0
    %1033 = vmatprep.mubr.f32.mxu0 0.0
    %1034 = vmatmul.mubr.f32.gmra.mrb[0].mxu0 %v842
    %v1035 = vpop.f32.mrb[0].mxu0
    %v1036 = vadd.f32 0.0, %v1035
    %v1037 = vpop.f32.mrb[0].mxu0
    %1038 = vmatprep.mubr.f32.mxu0 0.0
    %1039 = vmatmul.mubr.f32.gmra.mrb[0].mxu0 %v845
    %v1040 = vpop.f32.mrb[0].mxu0
    %v1041 = vadd.f32 0.0, %v1040
    %v1042 = vpop.f32.mrb[0].mxu0
    %1043 = vmatprep.mubr.f32.mxu0 0.0
    %1044 = vmatmul.mubr.f32.gmra.mrb[0].mxu0 %v848
    %v1045 = vpop.f32.mrb[0].mxu0
    %v1046 = vadd.f32 0.0, %v1045
    %v1047 = vpop.f32.mrb[0].mxu0
    %1048 = vmatprep.mubr.f32.mxu0 0.0
    %1049 = vmatmul.mubr.f32.gmra.mrb[0].mxu0 %v851
    %v1050 = vpop.f32.mrb[0].mxu0
    %v1051 = vadd.f32 0.0, %v1050
    %v1052 = vpop.f32.mrb[0].mxu0
    %1053 = vmatprep.mubr.f32.mxu0 0.0
    %1054 = vmatmul.mubr.f32.gmra.mrb[0].mxu0 %v854
    %v1055 = vpop.f32.mrb[0].mxu0
    %v1056 = vadd.f32 0.0, %v1055
    %v1057 = vpop.f32.mrb[0].mxu0
    %1058 = vmatprep.mubr.f32.mxu0 0.0
    %1059 = vmatmul.mubr.f32.gmra.mrb[0].mxu0 %v857
    %v1060 = vpop.f32.mrb[0].mxu0
    %v1061 = vadd.f32 0.0, %v1060
    %v1062 = vpop.f32.mrb[0].mxu0
    %1063 = vmatprep.mubr.f32.mxu0 0.0
    %1064 = vmatmul.mubr.f32.gmra.mrb[0].mxu0 %v860
    %v1065 = vpop.f32.mrb[0].mxu0
    %v1066 = vadd.f32 0.0, %v1065
    %v1067 = vpop.f32.mrb[0].mxu0
    %1068 = vmatprep.mubr.f32.mxu0 0.0
    %1069 = vmatmul.mubr.f32.gmra.mrb[0].mxu0 %v863
    %v1070 = vpop.f32.mrb[0].mxu0
    %v1071 = vadd.f32 0.0, %v1070
    %v1072 = vpop.f32.mrb[0].mxu0
    %1073 = vmatprep.mubr.f32.mxu0 0.0
    %1074 = vmatmul.mubr.f32.gmra.mrb[0].mxu0 %v866
    %v1075 = vpop.f32.mrb[0].mxu0
    %v1076 = vadd.f32 0.0, %v1075
    %v1077 = vpop.f32.mrb[0].mxu0
    %1078 = vmatprep.mubr.f32.mxu0 0.0
    %1079 = vmatmul.mubr.f32.gmra.mrb[0].mxu0 %v869
    %v1080 = vpop.f32.mrb[0].mxu0
    %v1081 = vadd.f32 0.0, %v1080
    %v1082 = vpop.f32.mrb[0].mxu0
    %1083 = vmatprep.mubr.f32.mxu0 0.0
    %1084 = vmatmul.mubr.f32.gmra.mrb[0].mxu0 %v872
    %v1085 = vpop.f32.mrb[0].mxu0
    %v1086 = vadd.f32 0.0, %v1085
    %v1087 = vpop.f32.mrb[0].mxu0
    %1088 = vmatprep.mubr.f32.mxu0 0.0
    %1089 = vmatmul.mubr.f32.gmra.mrb[0].mxu0 %v875
    %v1090 = vpop.f32.mrb[0].mxu0
    %v1091 = vadd.f32 0.0, %v1090
    %v1092 = vpop.f32.mrb[0].mxu0
    %1093 = vmatprep.mubr.f32.mxu0 0.0
    %1094 = vmatmul.mubr.f32.gmra.mrb[0].mxu0 %v878
    %v1095 = vpop.f32.mrb[0].mxu0
    %v1096 = vadd.f32 0.0, %v1095
    %v1097 = vpop.f32.mrb[0].mxu0
    %1098 = vmatprep.mubr.f32.mxu0 0.0
    %1099 = vmatmul.mubr.f32.gmra.mrb[0].mxu0 %v881
    %v1100 = vpop.f32.mrb[0].mxu0
    %v1101 = vadd.f32 0.0, %v1100
    %v1102 = vpop.f32.mrb[0].mxu0
    %1103 = vmatprep.mubr.f32.mxu0 0.0
    %1104 = vmatmul.mubr.f32.gmra.mrb[0].mxu0 %v884
    %v1105 = vpop.f32.mrb[0].mxu0
    %v1106 = vadd.f32 0.0, %v1105
    %v1107 = vpop.f32.mrb[0].mxu0
    %1108 = vmatprep.mubr.f32.mxu0 0.0
    %1109 = vmatmul.mubr.f32.gmra.mrb[0].mxu0 %v887
    %v1110 = vpop.f32.mrb[0].mxu0
    %v1111 = vadd.f32 0.0, %v1110
    %v1112 = vpop.f32.mrb[0].mxu0
    %1113 = vmatprep.mubr.f32.mxu0 0.0
    %1114 = vmatmul.mubr.f32.gmra.mrb[0].mxu0 %v890
    %v1115 = vpop.f32.mrb[0].mxu0
    %v1116 = vadd.f32 0.0, %v1115
    %v1117 = vpop.f32.mrb[0].mxu0
    %1118 = vmatprep.mubr.f32.mxu0 0.0
    %1119 = vmatmul.mubr.f32.gmra.mrb[0].mxu0 %v893
    %v1120 = vpop.f32.mrb[0].mxu0
    %v1121 = vadd.f32 0.0, %v1120
    %v1122 = vpop.f32.mrb[0].mxu0
    %1123 = vmatprep.mubr.f32.mxu0 0.0
    %1124 = vmatmul.mubr.f32.gmra.mrb[0].mxu0 %v896
    %v1125 = vpop.f32.mrb[0].mxu0
    %v1126 = vadd.f32 0.0, %v1125
    %v1127 = vpop.f32.mrb[0].mxu0
    %1128 = vmatprep.mubr.f32.mxu0 0.0
    %1129 = vmatmul.mubr.f32.gmra.mrb[0].mxu0 %v899
    %v1130 = vpop.f32.mrb[0].mxu0
    %v1131 = vadd.f32 0.0, %v1130
    %v1132 = vpop.f32.mrb[0].mxu0
    %1133 = vmatprep.mubr.f32.mxu0 0.0
    %1134 = vmatmul.mubr.f32.gmra.mrb[0].mxu0 %v902
    %v1135 = vpop.f32.mrb[0].mxu0
    %v1136 = vadd.f32 0.0, %v1135
    %v1137 = vpop.f32.mrb[0].mxu0
    %1138 = vmatprep.mubr.f32.mxu0 0.0
    %1139 = vmatmul.mubr.f32.gmra.mrb[0].mxu0 %v905
    %v1140 = vpop.f32.mrb[0].mxu0
    %v1141 = vadd.f32 0.0, %v1140
    %v1142 = vpop.f32.mrb[0].mxu0
    %1143 = vmatprep.mubr.f32.mxu0 0.0
    %1144 = vmatmul.mubr.f32.gmra.mrb[0].mxu0 %v908
    %v1145 = vpop.f32.mrb[0].mxu0
    %v1146 = vadd.f32 0.0, %v1145
    %v1147 = vpop.f32.mrb[0].mxu0
    %1148 = vmatprep.mubr.f32.mxu0 0.0
    %1149 = vmatmul.mubr.f32.gmra.mrb[0].mxu0 %v911
    %v1150 = vpop.f32.mrb[0].mxu0
    %v1151 = vadd.f32 0.0, %v1150
    %v1152 = vpop.f32.mrb[0].mxu0
    %1153 = vmatprep.mubr.f32.mxu0 0.0
    %1154 = vmatmul.mubr.f32.gmra.mrb[0].mxu0 %v914
    %v1155 = vpop.f32.mrb[0].mxu0
    %v1156 = vadd.f32 0.0, %v1155
    %v1157 = vpop.f32.mrb[0].mxu0
    %1158 = vmatprep.mubr.f32.mxu0 0.0
    %1159 = vmatmul.mubr.f32.gmra.mrb[0].mxu0 %v917
    %v1160 = vpop.f32.mrb[0].mxu0
    %v1161 = vadd.f32 0.0, %v1160
    %v1162 = vpop.f32.mrb[0].mxu0
    %1163 = vmatprep.mubr.f32.mxu0 0.0
    %1164 = vmatmul.mubr.f32.gmra.mrb[0].mxu0 %v920
    %v1165 = vpop.f32.mrb[0].mxu0
    %v1166 = vadd.f32 0.0, %v1165
    %v1167 = vpop.f32.mrb[0].mxu0
    %1168 = vmatprep.mubr.f32.mxu0 0.0
    %1169 = vmatmul.mubr.f32.gmra.mrb[0].mxu0 %v923
    %v1170 = vpop.f32.mrb[0].mxu0
    %v1171 = vadd.f32 0.0, %v1170
    %v1172 = vpop.f32.mrb[0].mxu0
    %1173 = vmatprep.mubr.f32.mxu0 0.0
    %1174 = vmatmul.mubr.f32.gmra.mrb[0].mxu0 %v926
    %v1175 = vpop.f32.mrb[0].mxu0
    %v1176 = vadd.f32 0.0, %v1175
    %v1177 = vpop.f32.mrb[0].mxu0
    %1178 = vmatprep.mubr.f32.mxu0 0.0
    %1179 = vmatmul.mubr.f32.gmra.mrb[0].mxu0 %v929
    %v1180 = vpop.f32.mrb[0].mxu0
    %v1181 = vadd.f32 0.0, %v1180
    %v1182 = vpop.f32.mrb[0].mxu0
    %1183 = vmatprep.mubr.f32.mxu0 0.0
    %1184 = vmatmul.mubr.f32.gmra.mrb[0].mxu0 %v932
    %v1185 = vpop.f32.mrb[0].mxu0
    %v1186 = vadd.f32 0.0, %v1185
    %v1187 = vpop.f32.mrb[0].mxu0
    %1188 = vmatprep.mubr.f32.mxu0 0.0
    %1189 = vmatmul.mubr.f32.gmra.mrb[0].mxu0 %v935
    %v1190 = vpop.f32.mrb[0].mxu0
    %v1191 = vadd.f32 0.0, %v1190
    %v1192 = vpop.f32.mrb[0].mxu0
    %1193 = vmatprep.mubr.f32.mxu0 0.0
    %1194 = vmatmul.mubr.f32.gmra.mrb[0].mxu0 %v938
    %v1195 = vpop.f32.mrb[0].mxu0
    %v1196 = vadd.f32 0.0, %v1195
    %v1197 = vpop.f32.mrb[0].mxu0
    %1198 = vmatprep.mubr.f32.mxu0 0.0
    %1199 = vmatmul.mubr.f32.gmra.mrb[0].mxu0 %v941
    %v1200 = vpop.f32.mrb[0].mxu0
    %v1201 = vadd.f32 0.0, %v1200
    %v1202 = vpop.f32.mrb[0].mxu0
    %1203 = vmatprep.mubr.f32.mxu0 0.0
    %1204 = vmatmul.mubr.f32.gmra.mrb[0].mxu0 %v944
    %v1205 = vpop.f32.mrb[0].mxu0
    %v1206 = vadd.f32 0.0, %v1205
    %v1207 = vpop.f32.mrb[0].mxu0
    %1208 = vmatprep.mubr.f32.mxu0 0.0
    %1209 = vmatmul.mubr.f32.gmra.mrb[0].mxu0 %v947
    %v1210 = vpop.f32.mrb[0].mxu0
    %v1211 = vadd.f32 0.0, %v1210
    %v1212 = vpop.f32.mrb[0].mxu0
    %1213 = vdwg.mxu0
    %v1215 = vsel %vm828, %v739, 0
    %v1218 = vsel %vm828, %v740, 0
    %v1221 = vsel %vm828, %v741, 0
    %v1224 = vsel %vm828, %v742, 0
    %v1227 = vsel %vm828, %v743, 0
    %v1230 = vsel %vm828, %v744, 0
    %v1233 = vsel %vm828, %v745, 0
    %v1236 = vsel %vm828, %v746, 0
    %v1239 = vsel %vm828, %v747, 0
    %v1242 = vsel %vm828, %v748, 0
    %v1245 = vsel %vm828, %v749, 0
    %v1248 = vsel %vm828, %v750, 0
    %v1251 = vsel %vm828, %v751, 0
    %v1254 = vsel %vm828, %v752, 0
    %v1257 = vsel %vm828, %v753, 0
    %v1260 = vsel %vm828, %v754, 0
    %v1263 = vsel %vm828, %v755, 0
    %v1266 = vsel %vm828, %v756, 0
    %v1269 = vsel %vm828, %v757, 0
    %v1272 = vsel %vm828, %v758, 0
    %v1275 = vsel %vm828, %v759, 0
    %v1278 = vsel %vm828, %v760, 0
    %v1281 = vsel %vm828, %v761, 0
    %v1284 = vsel %vm828, %v762, 0
    %v1287 = vsel %vm828, %v763, 0
    %v1290 = vsel %vm828, %v764, 0
    %v1293 = vsel %vm828, %v765, 0
    %v1296 = vsel %vm828, %v766, 0
    %v1299 = vsel %vm828, %v767, 0
    %v1302 = vsel %vm828, %v768, 0
    %v1305 = vsel %vm828, %v769, 0
    %v1308 = vsel %vm828, %v770, 0
    %v1311 = vsel %vm828, %v771, 0
    %v1314 = vsel %vm828, %v772, 0
    %v1317 = vsel %vm828, %v773, 0
    %v1320 = vsel %vm828, %v774, 0
    %v1323 = vsel %vm828, %v775, 0
    %v1326 = vsel %vm828, %v776, 0
    %v1329 = vsel %vm828, %v777, 0
    %v1332 = vsel %vm828, %v778, 0
    %1334 = vmatprep.subr.mxu0 0.0
    %1335 = vmatpush1.msra.mxu0 %v779
    %1336 = vmatprep.subr.mxu0 0.0
    %1337 = vmatpush1.msra.mxu0 %v780
    %1338 = vmatprep.subr.mxu0 0.0
    %1339 = vmatpush1.msra.mxu0 %v781
    %1340 = vmatprep.subr.mxu0 0.0
    %1341 = vmatpush1.msra.mxu0 %v782
    %1342 = vmatprep.subr.mxu0 0.0
    %1343 = vmatpush1.msra.mxu0 0.0
    %1344 = vmatprep.subr.mxu0 0.0
    %1345 = vmatpush1.msra.mxu0 0.0
    %1346 = vmatprep.subr.mxu0 0.0
    %1347 = vmatpush1.msra.mxu0 0.0
    %1348 = vmatprep.subr.mxu0 0.0
    %1349 = vmatpush1.msra.mxu0 0.0
    %1350 = vmatprep.subr.mxu0 0.0
    %1351 = vmatpush1.msra.mxu0 0.0
    %1352 = vmatprep.subr.mxu0 0.0
    %1353 = vmatpush1.msra.mxu0 0.0
    %1354 = vmatprep.subr.mxu0 0.0
    %1355 = vmatpush1.msra.mxu0 0.0
    %1356 = vmatprep.subr.mxu0 0.0
    %1357 = vmatpush1.msra.mxu0 0.0
    %1358 = vmatprep.subr.mxu0 0.0
    %1359 = vmatpush1.msra.mxu0 0.0
    %1360 = vmatprep.subr.mxu0 0.0
    %1361 = vmatpush1.msra.mxu0 0.0
    %1362 = vmatprep.subr.mxu0 0.0
    %1363 = vmatpush1.msra.mxu0 0.0
    %1364 = vmatprep.subr.mxu0 0.0
    %1365 = vmatpush1.msra.mxu0 0.0
    %1366 = vmatprep.subr.mxu0 0.0
    %1367 = vmatpush1.msra.mxu0 0.0
    %1368 = vmatprep.subr.mxu0 0.0
    %1369 = vmatpush1.msra.mxu0 0.0
    %1370 = vmatprep.subr.mxu0 0.0
    %1371 = vmatpush1.msra.mxu0 0.0
    %1372 = vmatprep.subr.mxu0 0.0
    %1373 = vmatpush1.msra.mxu0 0.0
    %1374 = vmatprep.subr.mxu0 0.0
    %1375 = vmatpush1.msra.mxu0 0.0
    %1376 = vmatprep.subr.mxu0 0.0
    %1377 = vmatpush1.msra.mxu0 0.0
    %1378 = vmatprep.subr.mxu0 0.0
    %1379 = vmatpush1.msra.mxu0 0.0
    %1380 = vmatprep.subr.mxu0 0.0
    %1381 = vmatpush1.msra.mxu0 0.0
    %1382 = vmatprep.subr.mxu0 0.0
    %1383 = vmatpush1.msra.mxu0 0.0
    %1384 = vmatprep.subr.mxu0 0.0
    %1385 = vmatpush1.msra.mxu0 0.0
    %1386 = vmatprep.subr.mxu0 0.0
    %1387 = vmatpush1.msra.mxu0 0.0
    %1388 = vmatprep.subr.mxu0 0.0
    %1389 = vmatpush1.msra.mxu0 0.0
    %1390 = vmatprep.subr.mxu0 0.0
    %1391 = vmatpush1.msra.mxu0 0.0
    %1392 = vmatprep.subr.mxu0 0.0
    %1393 = vmatpush1.msra.mxu0 0.0
    %1394 = vmatprep.subr.mxu0 0.0
    %1395 = vmatpush1.msra.mxu0 0.0
    %1396 = vmatprep.subr.mxu0 0.0
    %1397 = vmatpush1.msra.mxu0 0.0
    %1398 = vmatprep.mubr.f32.mxu0 0.0
    %1399 = vmatmul.mubr.f32.gmra.mrb[0].mxu0 %v1215
    %v1400 = vpop.f32.mrb[0].mxu0
    %v1401 = vadd.f32 %v1016, %v1400
    %v1402 = vpop.f32.mrb[0].mxu0
    %1403 = vmatprep.mubr.f32.mxu0 0.0
    %1404 = vmatmul.mubr.f32.gmra.mrb[0].mxu0 %v1218
    %v1405 = vpop.f32.mrb[0].mxu0
    %v1406 = vadd.f32 %v1021, %v1405
    %v1407 = vpop.f32.mrb[0].mxu0
    %1408 = vmatprep.mubr.f32.mxu0 0.0
    %1409 = vmatmul.mubr.f32.gmra.mrb[0].mxu0 %v1221
    %v1410 = vpop.f32.mrb[0].mxu0
    %v1411 = vadd.f32 %v1026, %v1410
    %v1412 = vpop.f32.mrb[0].mxu0
    %1413 = vmatprep.mubr.f32.mxu0 0.0
    %1414 = vmatmul.mubr.f32.gmra.mrb[0].mxu0 %v1224
    %v1415 = vpop.f32.mrb[0].mxu0
    %v1416 = vadd.f32 %v1031, %v1415
    %v1417 = vpop.f32.mrb[0].mxu0
    %1418 = vmatprep.mubr.f32.mxu0 0.0
    %1419 = vmatmul.mubr.f32.gmra.mrb[0].mxu0 %v1227
    %v1420 = vpop.f32.mrb[0].mxu0
    %v1421 = vadd.f32 %v1036, %v1420
    %v1422 = vpop.f32.mrb[0].mxu0
    %1423 = vmatprep.mubr.f32.mxu0 0.0
    %1424 = vmatmul.mubr.f32.gmra.mrb[0].mxu0 %v1230
    %v1425 = vpop.f32.mrb[0].mxu0
    %v1426 = vadd.f32 %v1041, %v1425
    %v1427 = vpop.f32.mrb[0].mxu0
    %1428 = vmatprep.mubr.f32.mxu0 0.0
    %1429 = vmatmul.mubr.f32.gmra.mrb[0].mxu0 %v1233
    %v1430 = vpop.f32.mrb[0].mxu0
    %v1431 = vadd.f32 %v1046, %v1430
    %v1432 = vpop.f32.mrb[0].mxu0
    %1433 = vmatprep.mubr.f32.mxu0 0.0
    %1434 = vmatmul.mubr.f32.gmra.mrb[0].mxu0 %v1236
    %v1435 = vpop.f32.mrb[0].mxu0
    %v1436 = vadd.f32 %v1051, %v1435
    %v1437 = vpop.f32.mrb[0].mxu0
    %1438 = vmatprep.mubr.f32.mxu0 0.0
    %1439 = vmatmul.mubr.f32.gmra.mrb[0].mxu0 %v1239
    %v1440 = vpop.f32.mrb[0].mxu0
    %v1441 = vadd.f32 %v1056, %v1440
    %v1442 = vpop.f32.mrb[0].mxu0
    %1443 = vmatprep.mubr.f32.mxu0 0.0
    %1444 = vmatmul.mubr.f32.gmra.mrb[0].mxu0 %v1242
    %v1445 = vpop.f32.mrb[0].mxu0
    %v1446 = vadd.f32 %v1061, %v1445
    %v1447 = vpop.f32.mrb[0].mxu0
    %1448 = vmatprep.mubr.f32.mxu0 0.0
    %1449 = vmatmul.mubr.f32.gmra.mrb[0].mxu0 %v1245
    %v1450 = vpop.f32.mrb[0].mxu0
    %v1451 = vadd.f32 %v1066, %v1450
    %v1452 = vpop.f32.mrb[0].mxu0
    %1453 = vmatprep.mubr.f32.mxu0 0.0
    %1454 = vmatmul.mubr.f32.gmra.mrb[0].mxu0 %v1248
    %v1455 = vpop.f32.mrb[0].mxu0
    %v1456 = vadd.f32 %v1071, %v1455
    %v1457 = vpop.f32.mrb[0].mxu0
    %1458 = vmatprep.mubr.f32.mxu0 0.0
    %1459 = vmatmul.mubr.f32.gmra.mrb[0].mxu0 %v1251
    %v1460 = vpop.f32.mrb[0].mxu0
    %v1461 = vadd.f32 %v1076, %v1460
    %v1462 = vpop.f32.mrb[0].mxu0
    %1463 = vmatprep.mubr.f32.mxu0 0.0
    %1464 = vmatmul.mubr.f32.gmra.mrb[0].mxu0 %v1254
    %v1465 = vpop.f32.mrb[0].mxu0
    %v1466 = vadd.f32 %v1081, %v1465
    %v1467 = vpop.f32.mrb[0].mxu0
    %1468 = vmatprep.mubr.f32.mxu0 0.0
    %1469 = vmatmul.mubr.f32.gmra.mrb[0].mxu0 %v1257
    %v1470 = vpop.f32.mrb[0].mxu0
    %v1471 = vadd.f32 %v1086, %v1470
    %v1472 = vpop.f32.mrb[0].mxu0
    %1473 = vmatprep.mubr.f32.mxu0 0.0
    %1474 = vmatmul.mubr.f32.gmra.mrb[0].mxu0 %v1260
    %v1475 = vpop.f32.mrb[0].mxu0
    %v1476 = vadd.f32 %v1091, %v1475
    %v1477 = vpop.f32.mrb[0].mxu0
    %1478 = vmatprep.mubr.f32.mxu0 0.0
    %1479 = vmatmul.mubr.f32.gmra.mrb[0].mxu0 %v1263
    %v1480 = vpop.f32.mrb[0].mxu0
    %v1481 = vadd.f32 %v1096, %v1480
    %v1482 = vpop.f32.mrb[0].mxu0
    %1483 = vmatprep.mubr.f32.mxu0 0.0
    %1484 = vmatmul.mubr.f32.gmra.mrb[0].mxu0 %v1266
    %v1485 = vpop.f32.mrb[0].mxu0
    %v1486 = vadd.f32 %v1101, %v1485
    %v1487 = vpop.f32.mrb[0].mxu0
    %1488 = vmatprep.mubr.f32.mxu0 0.0
    %1489 = vmatmul.mubr.f32.gmra.mrb[0].mxu0 %v1269
    %v1490 = vpop.f32.mrb[0].mxu0
    %v1491 = vadd.f32 %v1106, %v1490
    %v1492 = vpop.f32.mrb[0].mxu0
    %1493 = vmatprep.mubr.f32.mxu0 0.0
    %1494 = vmatmul.mubr.f32.gmra.mrb[0].mxu0 %v1272
    %v1495 = vpop.f32.mrb[0].mxu0
    %v1496 = vadd.f32 %v1111, %v1495
    %v1497 = vpop.f32.mrb[0].mxu0
    %1498 = vmatprep.mubr.f32.mxu0 0.0
    %1499 = vmatmul.mubr.f32.gmra.mrb[0].mxu0 %v1275
    %v1500 = vpop.f32.mrb[0].mxu0
    %v1501 = vadd.f32 %v1116, %v1500
    %v1502 = vpop.f32.mrb[0].mxu0
    %1503 = vmatprep.mubr.f32.mxu0 0.0
    %1504 = vmatmul.mubr.f32.gmra.mrb[0].mxu0 %v1278
    %v1505 = vpop.f32.mrb[0].mxu0
    %v1506 = vadd.f32 %v1121, %v1505
    %v1507 = vpop.f32.mrb[0].mxu0
    %1508 = vmatprep.mubr.f32.mxu0 0.0
    %1509 = vmatmul.mubr.f32.gmra.mrb[0].mxu0 %v1281
    %v1510 = vpop.f32.mrb[0].mxu0
    %v1511 = vadd.f32 %v1126, %v1510
    %v1512 = vpop.f32.mrb[0].mxu0
    %1513 = vmatprep.mubr.f32.mxu0 0.0
    %1514 = vmatmul.mubr.f32.gmra.mrb[0].mxu0 %v1284
    %v1515 = vpop.f32.mrb[0].mxu0
    %v1516 = vadd.f32 %v1131, %v1515
    %v1517 = vpop.f32.mrb[0].mxu0
    %1518 = vmatprep.mubr.f32.mxu0 0.0
    %1519 = vmatmul.mubr.f32.gmra.mrb[0].mxu0 %v1287
    %v1520 = vpop.f32.mrb[0].mxu0
    %v1521 = vadd.f32 %v1136, %v1520
    %v1522 = vpop.f32.mrb[0].mxu0
    %1523 = vmatprep.mubr.f32.mxu0 0.0
    %1524 = vmatmul.mubr.f32.gmra.mrb[0].mxu0 %v1290
    %v1525 = vpop.f32.mrb[0].mxu0
    %v1526 = vadd.f32 %v1141, %v1525
    %v1527 = vpop.f32.mrb[0].mxu0
    %1528 = vmatprep.mubr.f32.mxu0 0.0
    %1529 = vmatmul.mubr.f32.gmra.mrb[0].mxu0 %v1293
    %v1530 = vpop.f32.mrb[0].mxu0
    %v1531 = vadd.f32 %v1146, %v1530
    %v1532 = vpop.f32.mrb[0].mxu0
    %1533 = vmatprep.mubr.f32.mxu0 0.0
    %1534 = vmatmul.mubr.f32.gmra.mrb[0].mxu0 %v1296
    %v1535 = vpop.f32.mrb[0].mxu0
    %v1536 = vadd.f32 %v1151, %v1535
    %v1537 = vpop.f32.mrb[0].mxu0
    %1538 = vmatprep.mubr.f32.mxu0 0.0
    %1539 = vmatmul.mubr.f32.gmra.mrb[0].mxu0 %v1299
    %v1540 = vpop.f32.mrb[0].mxu0
    %v1541 = vadd.f32 %v1156, %v1540
    %v1542 = vpop.f32.mrb[0].mxu0
    %1543 = vmatprep.mubr.f32.mxu0 0.0
    %1544 = vmatmul.mubr.f32.gmra.mrb[0].mxu0 %v1302
    %v1545 = vpop.f32.mrb[0].mxu0
    %v1546 = vadd.f32 %v1161, %v1545
    %v1547 = vpop.f32.mrb[0].mxu0
    %1548 = vmatprep.mubr.f32.mxu0 0.0
    %1549 = vmatmul.mubr.f32.gmra.mrb[0].mxu0 %v1305
    %v1550 = vpop.f32.mrb[0].mxu0
    %v1551 = vadd.f32 %v1166, %v1550
    %v1552 = vpop.f32.mrb[0].mxu0
    %1553 = vmatprep.mubr.f32.mxu0 0.0
    %1554 = vmatmul.mubr.f32.gmra.mrb[0].mxu0 %v1308
    %v1555 = vpop.f32.mrb[0].mxu0
    %v1556 = vadd.f32 %v1171, %v1555
    %v1557 = vpop.f32.mrb[0].mxu0
    %1558 = vmatprep.mubr.f32.mxu0 0.0
    %1559 = vmatmul.mubr.f32.gmra.mrb[0].mxu0 %v1311
    %v1560 = vpop.f32.mrb[0].mxu0
    %v1561 = vadd.f32 %v1176, %v1560
    %v1562 = vpop.f32.mrb[0].mxu0
    %1563 = vmatprep.mubr.f32.mxu0 0.0
    %1564 = vmatmul.mubr.f32.gmra.mrb[0].mxu0 %v1314
    %v1565 = vpop.f32.mrb[0].mxu0
    %v1566 = vadd.f32 %v1181, %v1565
    %v1567 = vpop.f32.mrb[0].mxu0
    %1568 = vmatprep.mubr.f32.mxu0 0.0
    %1569 = vmatmul.mubr.f32.gmra.mrb[0].mxu0 %v1317
    %v1570 = vpop.f32.mrb[0].mxu0
    %v1571 = vadd.f32 %v1186, %v1570
    %v1572 = vpop.f32.mrb[0].mxu0
    %1573 = vmatprep.mubr.f32.mxu0 0.0
    %1574 = vmatmul.mubr.f32.gmra.mrb[0].mxu0 %v1320
    %v1575 = vpop.f32.mrb[0].mxu0
    %v1576 = vadd.f32 %v1191, %v1575
    %v1577 = vpop.f32.mrb[0].mxu0
    %1578 = vmatprep.mubr.f32.mxu0 0.0
    %1579 = vmatmul.mubr.f32.gmra.mrb[0].mxu0 %v1323
    %v1580 = vpop.f32.mrb[0].mxu0
    %v1581 = vadd.f32 %v1196, %v1580
    %v1582 = vpop.f32.mrb[0].mxu0
    %1583 = vmatprep.mubr.f32.mxu0 0.0
    %1584 = vmatmul.mubr.f32.gmra.mrb[0].mxu0 %v1326
    %v1585 = vpop.f32.mrb[0].mxu0
    %v1586 = vadd.f32 %v1201, %v1585
    %v1587 = vpop.f32.mrb[0].mxu0
    %1588 = vmatprep.mubr.f32.mxu0 0.0
    %1589 = vmatmul.mubr.f32.gmra.mrb[0].mxu0 %v1329
    %v1590 = vpop.f32.mrb[0].mxu0
    %v1591 = vadd.f32 %v1206, %v1590
    %v1592 = vpop.f32.mrb[0].mxu0
    %1593 = vmatprep.mubr.f32.mxu0 0.0
    %1594 = vmatmul.mubr.f32.gmra.mrb[0].mxu0 %v1332
    %v1595 = vpop.f32.mrb[0].mxu0
    %v1596 = vadd.f32 %v1211, %v1595
    %v1597 = vpop.f32.mrb[0].mxu0
    %1598 = vdwg.mxu0
    %v1599 = vld [vmem:[%s0 + $0x2] sm:$0xff]
    %v1600 = vld [vmem:[%s0 + $0xa] sm:$0xff]
    %v1601 = vld [vmem:[%s0 + $0x1a] sm:$0xff]
    %v1602 = vld [vmem:[%s0 + $0x22] sm:$0xff]
    %v1603 = vld [vmem:[%s0 + $0x32] sm:$0xff]
    %v1604 = vld [vmem:[%s0 + $0x3a] sm:$0xff]
    %v1605 = vld [vmem:[%s0 + $0x4a] sm:$0xff]
    %v1606 = vld [vmem:[%s0 + $0x52] sm:$0xff]
    %v1607 = vld [vmem:[%s0 + $0x62] sm:$0xff]
    %v1608 = vld [vmem:[%s0 + $0x6a] sm:$0xff]
    %v1609 = vld [vmem:[%s0 + $0x7a] sm:$0xff]
    %v1610 = vld [vmem:[%s0 + $0x82] sm:$0xff]
    %v1611 = vld [vmem:[%s0 + $0x92] sm:$0xff]
    %v1612 = vld [vmem:[%s0 + $0x9a] sm:$0xff]
    %v1613 = vld [vmem:[%s0 + $0xaa] sm:$0xff]
    %v1614 = vld [vmem:[%s0 + $0xb2] sm:$0xff]
    %v1615 = vld [vmem:[%s0 + $0xc2] sm:$0xff]
    %v1616 = vld [vmem:[%s0 + $0xca] sm:$0xff]
    %v1617 = vld [vmem:[%s0 + $0xda] sm:$0xff]
    %v1618 = vld [vmem:[%s0 + $0xe2] sm:$0xff]
    %v1619 = vld [vmem:[%s0 + $0x122] sm:$0xff]
    %v1620 = vld [vmem:[%s0 + $0x12a] sm:$0xff]
    %v1621 = vld [vmem:[%s0 + $0x13a] sm:$0xff]
    %v1622 = vld [vmem:[%s0 + $0x142] sm:$0xff]
    %v1623 = vld [vmem:[%s0 + $0x152] sm:$0xff]
    %v1624 = vld [vmem:[%s0 + $0x15a] sm:$0xff]
    %v1625 = vld [vmem:[%s0 + $0x16a] sm:$0xff]
    %v1626 = vld [vmem:[%s0 + $0x172] sm:$0xff]
    %v1627 = vld [vmem:[%s0 + $0x182] sm:$0xff]
    %v1628 = vld [vmem:[%s0 + $0x18a] sm:$0xff]
    %v1629 = vld [vmem:[%s0 + $0x19a] sm:$0xff]
    %v1630 = vld [vmem:[%s0 + $0x1a2] sm:$0xff]
    %v1631 = vld [vmem:[%s0 + $0x1b2] sm:$0xff]
    %v1632 = vld [vmem:[%s0 + $0x1ba] sm:$0xff]
    %v1633 = vld [vmem:[%s0 + $0x1ca] sm:$0xff]
    %v1634 = vld [vmem:[%s0 + $0x1d2] sm:$0xff]
    %v1635 = vld [vmem:[%s0 + $0x1e2] sm:$0xff]
    %v1636 = vld [vmem:[%s0 + $0x1ea] sm:$0xff]
    %v1637 = vld [vmem:[%s0 + $0x1fa] sm:$0xff]
    %v1638 = vld [vmem:[%s0 + $0x202] sm:$0xff]
    %s1639 = scalar_lea.vmem %s1, 64
    %v1640 = vld [vmem:[%s1639] sm:$0xff]
    %v1641 = vld [vmem:[%s1639 + $0x8] sm:$0xff]
    %v1642 = vld [vmem:[%s1639 + $0x10] sm:$0xff]
    %v1643 = vld [vmem:[%s1639 + $0x18] sm:$0xff]
    %v1645 = vsel %vm828, %v1599, 0
    %v1648 = vsel %vm828, %v1600, 0
    %v1651 = vsel %vm828, %v1601, 0
    %v1654 = vsel %vm828, %v1602, 0
    %v1657 = vsel %vm828, %v1603, 0
    %v1660 = vsel %vm828, %v1604, 0
    %v1663 = vsel %vm828, %v1605, 0
    %v1666 = vsel %vm828, %v1606, 0
    %v1669 = vsel %vm828, %v1607, 0
    %v1672 = vsel %vm828, %v1608, 0
    %v1675 = vsel %vm828, %v1609, 0
    %v1678 = vsel %vm828, %v1610, 0
    %v1681 = vsel %vm828, %v1611, 0
    %v1684 = vsel %vm828, %v1612, 0
    %v1687 = vsel %vm828, %v1613, 0
    %v1690 = vsel %vm828, %v1614, 0
    %v1693 = vsel %vm828, %v1615, 0
    %v1696 = vsel %vm828, %v1616, 0
    %v1699 = vsel %vm828, %v1617, 0
    %v1702 = vsel %vm828, %v1618, 0
    %v1705 = vsel %vm828, %v1619, 0
    %v1708 = vsel %vm828, %v1620, 0
    %v1711 = vsel %vm828, %v1621, 0
    %v1714 = vsel %vm828, %v1622, 0
    %v1717 = vsel %vm828, %v1623, 0
    %v1720 = vsel %vm828, %v1624, 0
    %v1723 = vsel %vm828, %v1625, 0
    %v1726 = vsel %vm828, %v1626, 0
    %v1729 = vsel %vm828, %v1627, 0
    %v1732 = vsel %vm828, %v1628, 0
    %v1735 = vsel %vm828, %v1629, 0
    %v1738 = vsel %vm828, %v1630, 0
    %v1741 = vsel %vm828, %v1631, 0
    %v1744 = vsel %vm828, %v1632, 0
    %v1747 = vsel %vm828, %v1633, 0
    %v1750 = vsel %vm828, %v1634, 0
    %v1753 = vsel %vm828, %v1635, 0
    %v1756 = vsel %vm828, %v1636, 0
    %v1759 = vsel %vm828, %v1637, 0
    %v1762 = vsel %vm828, %v1638, 0
    %1764 = vmatprep.subr.mxu0 0.0
    %1765 = vmatpush1.msra.mxu0 %v1640
    %1766 = vmatprep.subr.mxu0 0.0
    %1767 = vmatpush1.msra.mxu0 %v1641
    %1768 = vmatprep.subr.mxu0 0.0
    %1769 = vmatpush1.msra.mxu0 %v1642
    %1770 = vmatprep.subr.mxu0 0.0
    %1771 = vmatpush1.msra.mxu0 %v1643
    %1772 = vmatprep.subr.mxu0 0.0
    %1773 = vmatpush1.msra.mxu0 0.0
    %1774 = vmatprep.subr.mxu0 0.0
    %1775 = vmatpush1.msra.mxu0 0.0
    %1776 = vmatprep.subr.mxu0 0.0
    %1777 = vmatpush1.msra.mxu0 0.0
    %1778 = vmatprep.subr.mxu0 0.0
    %1779 = vmatpush1.msra.mxu0 0.0
    %1780 = vmatprep.subr.mxu0 0.0
    %1781 = vmatpush1.msra.mxu0 0.0
    %1782 = vmatprep.subr.mxu0 0.0
    %1783 = vmatpush1.msra.mxu0 0.0
    %1784 = vmatprep.subr.mxu0 0.0
    %1785 = vmatpush1.msra.mxu0 0.0
    %1786 = vmatprep.subr.mxu0 0.0
    %1787 = vmatpush1.msra.mxu0 0.0
    %1788 = vmatprep.subr.mxu0 0.0
    %1789 = vmatpush1.msra.mxu0 0.0
    %1790 = vmatprep.subr.mxu0 0.0
    %1791 = vmatpush1.msra.mxu0 0.0
    %1792 = vmatprep.subr.mxu0 0.0
    %1793 = vmatpush1.msra.mxu0 0.0
    %1794 = vmatprep.subr.mxu0 0.0
    %1795 = vmatpush1.msra.mxu0 0.0
    %1796 = vmatprep.subr.mxu0 0.0
    %1797 = vmatpush1.msra.mxu0 0.0
    %1798 = vmatprep.subr.mxu0 0.0
    %1799 = vmatpush1.msra.mxu0 0.0
    %1800 = vmatprep.subr.mxu0 0.0
    %1801 = vmatpush1.msra.mxu0 0.0
    %1802 = vmatprep.subr.mxu0 0.0
    %1803 = vmatpush1.msra.mxu0 0.0
    %1804 = vmatprep.subr.mxu0 0.0
    %1805 = vmatpush1.msra.mxu0 0.0
    %1806 = vmatprep.subr.mxu0 0.0
    %1807 = vmatpush1.msra.mxu0 0.0
    %1808 = vmatprep.subr.mxu0 0.0
    %1809 = vmatpush1.msra.mxu0 0.0
    %1810 = vmatprep.subr.mxu0 0.0
    %1811 = vmatpush1.msra.mxu0 0.0
    %1812 = vmatprep.subr.mxu0 0.0
    %1813 = vmatpush1.msra.mxu0 0.0
    %1814 = vmatprep.subr.mxu0 0.0
    %1815 = vmatpush1.msra.mxu0 0.0
    %1816 = vmatprep.subr.mxu0 0.0
    %1817 = vmatpush1.msra.mxu0 0.0
    %1818 = vmatprep.subr.mxu0 0.0
    %1819 = vmatpush1.msra.mxu0 0.0
    %1820 = vmatprep.subr.mxu0 0.0
    %1821 = vmatpush1.msra.mxu0 0.0
    %1822 = vmatprep.subr.mxu0 0.0
    %1823 = vmatpush1.msra.mxu0 0.0
    %1824 = vmatprep.subr.mxu0 0.0
    %1825 = vmatpush1.msra.mxu0 0.0
    %1826 = vmatprep.subr.mxu0 0.0
    %1827 = vmatpush1.msra.mxu0 0.0
    %1828 = vmatprep.mubr.f32.mxu0 0.0
    %1829 = vmatmul.mubr.f32.gmra.mrb[0].mxu0 %v1645
    %v1830 = vpop.f32.mrb[0].mxu0
    %v1831 = vadd.f32 0.0, %v1830
    %v1832 = vpop.f32.mrb[0].mxu0
    %1833 = vmatprep.mubr.f32.mxu0 0.0
    %1834 = vmatmul.mubr.f32.gmra.mrb[0].mxu0 %v1648
    %v1835 = vpop.f32.mrb[0].mxu0
    %v1836 = vadd.f32 0.0, %v1835
    %v1837 = vpop.f32.mrb[0].mxu0
    %1838 = vmatprep.mubr.f32.mxu0 0.0
    %1839 = vmatmul.mubr.f32.gmra.mrb[0].mxu0 %v1651
    %v1840 = vpop.f32.mrb[0].mxu0
    %v1841 = vadd.f32 0.0, %v1840
    %v1842 = vpop.f32.mrb[0].mxu0
    %1843 = vmatprep.mubr.f32.mxu0 0.0
    %1844 = vmatmul.mubr.f32.gmra.mrb[0].mxu0 %v1654
    %v1845 = vpop.f32.mrb[0].mxu0
    %v1846 = vadd.f32 0.0, %v1845
    %v1847 = vpop.f32.mrb[0].mxu0
    %1848 = vmatprep.mubr.f32.mxu0 0.0
    %1849 = vmatmul.mubr.f32.gmra.mrb[0].mxu0 %v1657
    %v1850 = vpop.f32.mrb[0].mxu0
    %v1851 = vadd.f32 0.0, %v1850
    %v1852 = vpop.f32.mrb[0].mxu0
    %1853 = vmatprep.mubr.f32.mxu0 0.0
    %1854 = vmatmul.mubr.f32.gmra.mrb[0].mxu0 %v1660
    %v1855 = vpop.f32.mrb[0].mxu0
    %v1856 = vadd.f32 0.0, %v1855
    %v1857 = vpop.f32.mrb[0].mxu0
    %1858 = vmatprep.mubr.f32.mxu0 0.0
    %1859 = vmatmul.mubr.f32.gmra.mrb[0].mxu0 %v1663
    %v1860 = vpop.f32.mrb[0].mxu0
    %v1861 = vadd.f32 0.0, %v1860
    %v1862 = vpop.f32.mrb[0].mxu0
    %1863 = vmatprep.mubr.f32.mxu0 0.0
    %1864 = vmatmul.mubr.f32.gmra.mrb[0].mxu0 %v1666
    %v1865 = vpop.f32.mrb[0].mxu0
    %v1866 = vadd.f32 0.0, %v1865
    %v1867 = vpop.f32.mrb[0].mxu0
    %1868 = vmatprep.mubr.f32.mxu0 0.0
    %1869 = vmatmul.mubr.f32.gmra.mrb[0].mxu0 %v1669
    %v1870 = vpop.f32.mrb[0].mxu0
    %v1871 = vadd.f32 0.0, %v1870
    %v1872 = vpop.f32.mrb[0].mxu0
    %1873 = vmatprep.mubr.f32.mxu0 0.0
    %1874 = vmatmul.mubr.f32.gmra.mrb[0].mxu0 %v1672
    %v1875 = vpop.f32.mrb[0].mxu0
    %v1876 = vadd.f32 0.0, %v1875
    %v1877 = vpop.f32.mrb[0].mxu0
    %1878 = vmatprep.mubr.f32.mxu0 0.0
    %1879 = vmatmul.mubr.f32.gmra.mrb[0].mxu0 %v1675
    %v1880 = vpop.f32.mrb[0].mxu0
    %v1881 = vadd.f32 0.0, %v1880
    %v1882 = vpop.f32.mrb[0].mxu0
    %1883 = vmatprep.mubr.f32.mxu0 0.0
    %1884 = vmatmul.mubr.f32.gmra.mrb[0].mxu0 %v1678
    %v1885 = vpop.f32.mrb[0].mxu0
    %v1886 = vadd.f32 0.0, %v1885
    %v1887 = vpop.f32.mrb[0].mxu0
    %1888 = vmatprep.mubr.f32.mxu0 0.0
    %1889 = vmatmul.mubr.f32.gmra.mrb[0].mxu0 %v1681
    %v1890 = vpop.f32.mrb[0].mxu0
    %v1891 = vadd.f32 0.0, %v1890
    %v1892 = vpop.f32.mrb[0].mxu0
    %1893 = vmatprep.mubr.f32.mxu0 0.0
    %1894 = vmatmul.mubr.f32.gmra.mrb[0].mxu0 %v1684
    %v1895 = vpop.f32.mrb[0].mxu0
    %v1896 = vadd.f32 0.0, %v1895
    %v1897 = vpop.f32.mrb[0].mxu0
    %1898 = vmatprep.mubr.f32.mxu0 0.0
    %1899 = vmatmul.mubr.f32.gmra.mrb[0].mxu0 %v1687
    %v1900 = vpop.f32.mrb[0].mxu0
    %v1901 = vadd.f32 0.0, %v1900
    %v1902 = vpop.f32.mrb[0].mxu0
    %1903 = vmatprep.mubr.f32.mxu0 0.0
    %1904 = vmatmul.mubr.f32.gmra.mrb[0].mxu0 %v1690
    %v1905 = vpop.f32.mrb[0].mxu0
    %v1906 = vadd.f32 0.0, %v1905
    %v1907 = vpop.f32.mrb[0].mxu0
    %1908 = vmatprep.mubr.f32.mxu0 0.0
    %1909 = vmatmul.mubr.f32.gmra.mrb[0].mxu0 %v1693
    %v1910 = vpop.f32.mrb[0].mxu0
    %v1911 = vadd.f32 0.0, %v1910
    %v1912 = vpop.f32.mrb[0].mxu0
    %1913 = vmatprep.mubr.f32.mxu0 0.0
    %1914 = vmatmul.mubr.f32.gmra.mrb[0].mxu0 %v1696
    %v1915 = vpop.f32.mrb[0].mxu0
    %v1916 = vadd.f32 0.0, %v1915
    %v1917 = vpop.f32.mrb[0].mxu0
    %1918 = vmatprep.mubr.f32.mxu0 0.0
    %1919 = vmatmul.mubr.f32.gmra.mrb[0].mxu0 %v1699
    %v1920 = vpop.f32.mrb[0].mxu0
    %v1921 = vadd.f32 0.0, %v1920
    %v1922 = vpop.f32.mrb[0].mxu0
    %1923 = vmatprep.mubr.f32.mxu0 0.0
    %1924 = vmatmul.mubr.f32.gmra.mrb[0].mxu0 %v1702
    %v1925 = vpop.f32.mrb[0].mxu0
    %v1926 = vadd.f32 0.0, %v1925
    %v1927 = vpop.f32.mrb[0].mxu0
    %1928 = vmatprep.mubr.f32.mxu0 0.0
    %1929 = vmatmul.mubr.f32.gmra.mrb[0].mxu0 %v1705
    %v1930 = vpop.f32.mrb[0].mxu0
    %v1931 = vadd.f32 0.0, %v1930
    %v1932 = vpop.f32.mrb[0].mxu0
    %1933 = vmatprep.mubr.f32.mxu0 0.0
    %1934 = vmatmul.mubr.f32.gmra.mrb[0].mxu0 %v1708
    %v1935 = vpop.f32.mrb[0].mxu0
    %v1936 = vadd.f32 0.0, %v1935
    %v1937 = vpop.f32.mrb[0].mxu0
    %1938 = vmatprep.mubr.f32.mxu0 0.0
    %1939 = vmatmul.mubr.f32.gmra.mrb[0].mxu0 %v1711
    %v1940 = vpop.f32.mrb[0].mxu0
    %v1941 = vadd.f32 0.0, %v1940
    %v1942 = vpop.f32.mrb[0].mxu0
    %1943 = vmatprep.mubr.f32.mxu0 0.0
    %1944 = vmatmul.mubr.f32.gmra.mrb[0].mxu0 %v1714
    %v1945 = vpop.f32.mrb[0].mxu0
    %v1946 = vadd.f32 0.0, %v1945
    %v1947 = vpop.f32.mrb[0].mxu0
    %1948 = vmatprep.mubr.f32.mxu0 0.0
    %1949 = vmatmul.mubr.f32.gmra.mrb[0].mxu0 %v1717
    %v1950 = vpop.f32.mrb[0].mxu0
    %v1951 = vadd.f32 0.0, %v1950
    %v1952 = vpop.f32.mrb[0].mxu0
    %1953 = vmatprep.mubr.f32.mxu0 0.0
    %1954 = vmatmul.mubr.f32.gmra.mrb[0].mxu0 %v1720
    %v1955 = vpop.f32.mrb[0].mxu0
    %v1956 = vadd.f32 0.0, %v1955
    %v1957 = vpop.f32.mrb[0].mxu0
    %1958 = vmatprep.mubr.f32.mxu0 0.0
    %1959 = vmatmul.mubr.f32.gmra.mrb[0].mxu0 %v1723
    %v1960 = vpop.f32.mrb[0].mxu0
    %v1961 = vadd.f32 0.0, %v1960
    %v1962 = vpop.f32.mrb[0].mxu0
    %1963 = vmatprep.mubr.f32.mxu0 0.0
    %1964 = vmatmul.mubr.f32.gmra.mrb[0].mxu0 %v1726
    %v1965 = vpop.f32.mrb[0].mxu0
    %v1966 = vadd.f32 0.0, %v1965
    %v1967 = vpop.f32.mrb[0].mxu0
    %1968 = vmatprep.mubr.f32.mxu0 0.0
    %1969 = vmatmul.mubr.f32.gmra.mrb[0].mxu0 %v1729
    %v1970 = vpop.f32.mrb[0].mxu0
    %v1971 = vadd.f32 0.0, %v1970
    %v1972 = vpop.f32.mrb[0].mxu0
    %1973 = vmatprep.mubr.f32.mxu0 0.0
    %1974 = vmatmul.mubr.f32.gmra.mrb[0].mxu0 %v1732
    %v1975 = vpop.f32.mrb[0].mxu0
    %v1976 = vadd.f32 0.0, %v1975
    %v1977 = vpop.f32.mrb[0].mxu0
    %1978 = vmatprep.mubr.f32.mxu0 0.0
    %1979 = vmatmul.mubr.f32.gmra.mrb[0].mxu0 %v1735
    %v1980 = vpop.f32.mrb[0].mxu0
    %v1981 = vadd.f32 0.0, %v1980
    %v1982 = vpop.f32.mrb[0].mxu0
    %1983 = vmatprep.mubr.f32.mxu0 0.0
    %1984 = vmatmul.mubr.f32.gmra.mrb[0].mxu0 %v1738
    %v1985 = vpop.f32.mrb[0].mxu0
    %v1986 = vadd.f32 0.0, %v1985
    %v1987 = vpop.f32.mrb[0].mxu0
    %1988 = vmatprep.mubr.f32.mxu0 0.0
    %1989 = vmatmul.mubr.f32.gmra.mrb[0].mxu0 %v1741
    %v1990 = vpop.f32.mrb[0].mxu0
    %v1991 = vadd.f32 0.0, %v1990
    %v1992 = vpop.f32.mrb[0].mxu0
    %1993 = vmatprep.mubr.f32.mxu0 0.0
    %1994 = vmatmul.mubr.f32.gmra.mrb[0].mxu0 %v1744
    %v1995 = vpop.f32.mrb[0].mxu0
    %v1996 = vadd.f32 0.0, %v1995
    %v1997 = vpop.f32.mrb[0].mxu0
    %1998 = vmatprep.mubr.f32.mxu0 0.0
    %1999 = vmatmul.mubr.f32.gmra.mrb[0].mxu0 %v1747
    %v2000 = vpop.f32.mrb[0].mxu0
    %v2001 = vadd.f32 0.0, %v2000
    %v2002 = vpop.f32.mrb[0].mxu0
    %2003 = vmatprep.mubr.f32.mxu0 0.0
    %2004 = vmatmul.mubr.f32.gmra.mrb[0].mxu0 %v1750
    %v2005 = vpop.f32.mrb[0].mxu0
    %v2006 = vadd.f32 0.0, %v2005
    %v2007 = vpop.f32.mrb[0].mxu0
    %2008 = vmatprep.mubr.f32.mxu0 0.0
    %2009 = vmatmul.mubr.f32.gmra.mrb[0].mxu0 %v1753
    %v2010 = vpop.f32.mrb[0].mxu0
    %v2011 = vadd.f32 0.0, %v2010
    %v2012 = vpop.f32.mrb[0].mxu0
    %2013 = vmatprep.mubr.f32.mxu0 0.0
    %2014 = vmatmul.mubr.f32.gmra.mrb[0].mxu0 %v1756
    %v2015 = vpop.f32.mrb[0].mxu0
    %v2016 = vadd.f32 0.0, %v2015
    %v2017 = vpop.f32.mrb[0].mxu0
    %2018 = vmatprep.mubr.f32.mxu0 0.0
    %2019 = vmatmul.mubr.f32.gmra.mrb[0].mxu0 %v1759
    %v2020 = vpop.f32.mrb[0].mxu0
    %v2021 = vadd.f32 0.0, %v2020
    %v2022 = vpop.f32.mrb[0].mxu0
    %2023 = vmatprep.mubr.f32.mxu0 0.0
    %2024 = vmatmul.mubr.f32.gmra.mrb[0].mxu0 %v1762
    %v2025 = vpop.f32.mrb[0].mxu0
    %v2026 = vadd.f32 0.0, %v2025
    %v2027 = vpop.f32.mrb[0].mxu0
    %2028 = vdwg.mxu0
    %v2029 = vadd.f32 %v1401, %v1831
    %v2030 = vadd.f32 %v1406, %v1836
    %v2031 = vadd.f32 %v1411, %v1841
    %v2032 = vadd.f32 %v1416, %v1846
    %v2033 = vadd.f32 %v1421, %v1851
    %v2034 = vadd.f32 %v1426, %v1856
    %v2035 = vadd.f32 %v1431, %v1861
    %v2036 = vadd.f32 %v1436, %v1866
    %v2037 = vadd.f32 %v1441, %v1871
    %v2038 = vadd.f32 %v1446, %v1876
    %v2039 = vadd.f32 %v1451, %v1881
    %v2040 = vadd.f32 %v1456, %v1886
    %v2041 = vadd.f32 %v1461, %v1891
    %v2042 = vadd.f32 %v1466, %v1896
    %v2043 = vadd.f32 %v1471, %v1901
    %v2044 = vadd.f32 %v1476, %v1906
    %v2045 = vadd.f32 %v1481, %v1911
    %v2046 = vadd.f32 %v1486, %v1916
    %v2047 = vadd.f32 %v1491, %v1921
    %v2048 = vadd.f32 %v1496, %v1926
    %v2049 = vadd.f32 %v1501, %v1931
    %v2050 = vadd.f32 %v1506, %v1936
    %v2051 = vadd.f32 %v1511, %v1941
    %v2052 = vadd.f32 %v1516, %v1946
    %v2053 = vadd.f32 %v1521, %v1951
    %v2054 = vadd.f32 %v1526, %v1956
    %v2055 = vadd.f32 %v1531, %v1961
    %v2056 = vadd.f32 %v1536, %v1966
    %v2057 = vadd.f32 %v1541, %v1971
    %v2058 = vadd.f32 %v1546, %v1976
    %v2059 = vadd.f32 %v1551, %v1981
    %v2060 = vadd.f32 %v1556, %v1986
    %v2061 = vadd.f32 %v1561, %v1991
    %v2062 = vadd.f32 %v1566, %v1996
    %v2063 = vadd.f32 %v1571, %v2001
    %v2064 = vadd.f32 %v1576, %v2006
    %v2065 = vadd.f32 %v1581, %v2011
    %v2066 = vadd.f32 %v1586, %v2016
    %v2067 = vadd.f32 %v1591, %v2021
    %v2068 = vadd.f32 %v1596, %v2026
    %s2069 = scalar_lea.vmem %s0, 24
    %v2070 = vld [vmem:[%s2069] sm:$0xff]
    %v2071 = vld [vmem:[%s2069 + $0x8] sm:$0xff]
    %v2072 = vld [vmem:[%s2069 + $0x18] sm:$0xff]
    %v2073 = vld [vmem:[%s2069 + $0x20] sm:$0xff]
    %v2074 = vld [vmem:[%s2069 + $0x30] sm:$0xff]
    %v2075 = vld [vmem:[%s2069 + $0x38] sm:$0xff]
    %v2076 = vld [vmem:[%s2069 + $0x48] sm:$0xff]
    %v2077 = vld [vmem:[%s2069 + $0x50] sm:$0xff]
    %v2078 = vld [vmem:[%s2069 + $0x60] sm:$0xff]
    %v2079 = vld [vmem:[%s2069 + $0x68] sm:$0xff]
    %v2080 = vld [vmem:[%s2069 + $0x78] sm:$0xff]
    %v2081 = vld [vmem:[%s2069 + $0x80] sm:$0xff]
    %v2082 = vld [vmem:[%s2069 + $0x90] sm:$0xff]
    %v2083 = vld [vmem:[%s2069 + $0x98] sm:$0xff]
    %v2084 = vld [vmem:[%s2069 + $0xa8] sm:$0xff]
    %v2085 = vld [vmem:[%s2069 + $0xb0] sm:$0xff]
    %v2086 = vld [vmem:[%s2069 + $0xc0] sm:$0xff]
    %v2087 = vld [vmem:[%s2069 + $0xc8] sm:$0xff]
    %v2088 = vld [vmem:[%s2069 + $0xd8] sm:$0xff]
    %v2089 = vld [vmem:[%s2069 + $0xe0] sm:$0xff]
    %v2090 = vld [vmem:[%s2069 + $0x120] sm:$0xff]
    %v2091 = vld [vmem:[%s2069 + $0x128] sm:$0xff]
    %v2092 = vld [vmem:[%s2069 + $0x138] sm:$0xff]
    %v2093 = vld [vmem:[%s2069 + $0x140] sm:$0xff]
    %v2094 = vld [vmem:[%s2069 + $0x150] sm:$0xff]
    %v2095 = vld [vmem:[%s2069 + $0x158] sm:$0xff]
    %v2096 = vld [vmem:[%s2069 + $0x168] sm:$0xff]
    %v2097 = vld [vmem:[%s2069 + $0x170] sm:$0xff]
    %v2098 = vld [vmem:[%s2069 + $0x180] sm:$0xff]
    %v2099 = vld [vmem:[%s2069 + $0x188] sm:$0xff]
    %v2100 = vld [vmem:[%s2069 + $0x198] sm:$0xff]
    %v2101 = vld [vmem:[%s2069 + $0x1a0] sm:$0xff]
    %v2102 = vld [vmem:[%s2069 + $0x1b0] sm:$0xff]
    %v2103 = vld [vmem:[%s2069 + $0x1b8] sm:$0xff]
    %v2104 = vld [vmem:[%s2069 + $0x1c8] sm:$0xff]
    %v2105 = vld [vmem:[%s2069 + $0x1d0] sm:$0xff]
    %v2106 = vld [vmem:[%s2069 + $0x1e0] sm:$0xff]
    %v2107 = vld [vmem:[%s2069 + $0x1e8] sm:$0xff]
    %v2108 = vld [vmem:[%s2069 + $0x1f8] sm:$0xff]
    %v2109 = vld [vmem:[%s2069 + $0x200] sm:$0xff]
    %s2110 = scalar_lea.vmem %s1, 96
    %v2111 = vld [vmem:[%s2110] sm:$0xff]
    %v2112 = vld [vmem:[%s2110 + $0x8] sm:$0xff]
    %v2113 = vld [vmem:[%s2110 + $0x10] sm:$0xff]
    %v2114 = vld [vmem:[%s2110 + $0x18] sm:$0xff]
    %v2116 = vsel %vm828, %v2070, 0
    %v2119 = vsel %vm828, %v2071, 0
    %v2122 = vsel %vm828, %v2072, 0
    %v2125 = vsel %vm828, %v2073, 0
    %v2128 = vsel %vm828, %v2074, 0
    %v2131 = vsel %vm828, %v2075, 0
    %v2134 = vsel %vm828, %v2076, 0
    %v2137 = vsel %vm828, %v2077, 0
    %v2140 = vsel %vm828, %v2078, 0
    %v2143 = vsel %vm828, %v2079, 0
    %v2146 = vsel %vm828, %v2080, 0
    %v2149 = vsel %vm828, %v2081, 0
    %v2152 = vsel %vm828, %v2082, 0
    %v2155 = vsel %vm828, %v2083, 0
    %v2158 = vsel %vm828, %v2084, 0
    %v2161 = vsel %vm828, %v2085, 0
    %v2164 = vsel %vm828, %v2086, 0
    %v2167 = vsel %vm828, %v2087, 0
    %v2170 = vsel %vm828, %v2088, 0
    %v2173 = vsel %vm828, %v2089, 0
    %v2176 = vsel %vm828, %v2090, 0
    %v2179 = vsel %vm828, %v2091, 0
    %v2182 = vsel %vm828, %v2092, 0
    %v2185 = vsel %vm828, %v2093, 0
    %v2188 = vsel %vm828, %v2094, 0
    %v2191 = vsel %vm828, %v2095, 0
    %v2194 = vsel %vm828, %v2096, 0
    %v2197 = vsel %vm828, %v2097, 0
    %v2200 = vsel %vm828, %v2098, 0
    %v2203 = vsel %vm828, %v2099, 0
    %v2206 = vsel %vm828, %v2100, 0
    %v2209 = vsel %vm828, %v2101, 0
    %v2212 = vsel %vm828, %v2102, 0
    %v2215 = vsel %vm828, %v2103, 0
    %v2218 = vsel %vm828, %v2104, 0
    %v2221 = vsel %vm828, %v2105, 0
    %v2224 = vsel %vm828, %v2106, 0
    %v2227 = vsel %vm828, %v2107, 0
    %v2230 = vsel %vm828, %v2108, 0
    %v2233 = vsel %vm828, %v2109, 0
    %2235 = vmatprep.subr.mxu0 0.0
    %2236 = vmatpush1.msra.mxu0 %v2111
    %2237 = vmatprep.subr.mxu0 0.0
    %2238 = vmatpush1.msra.mxu0 %v2112
    %2239 = vmatprep.subr.mxu0 0.0
    %2240 = vmatpush1.msra.mxu0 %v2113
    %2241 = vmatprep.subr.mxu0 0.0
    %2242 = vmatpush1.msra.mxu0 %v2114
    %2243 = vmatprep.subr.mxu0 0.0
    %2244 = vmatpush1.msra.mxu0 0.0
    %2245 = vmatprep.subr.mxu0 0.0
    %2246 = vmatpush1.msra.mxu0 0.0
    %2247 = vmatprep.subr.mxu0 0.0
    %2248 = vmatpush1.msra.mxu0 0.0
    %2249 = vmatprep.subr.mxu0 0.0
    %2250 = vmatpush1.msra.mxu0 0.0
    %2251 = vmatprep.subr.mxu0 0.0
    %2252 = vmatpush1.msra.mxu0 0.0
    %2253 = vmatprep.subr.mxu0 0.0
    %2254 = vmatpush1.msra.mxu0 0.0
    %2255 = vmatprep.subr.mxu0 0.0
    %2256 = vmatpush1.msra.mxu0 0.0
    %2257 = vmatprep.subr.mxu0 0.0
    %2258 = vmatpush1.msra.mxu0 0.0
    %2259 = vmatprep.subr.mxu0 0.0
    %2260 = vmatpush1.msra.mxu0 0.0
    %2261 = vmatprep.subr.mxu0 0.0
    %2262 = vmatpush1.msra.mxu0 0.0
    %2263 = vmatprep.subr.mxu0 0.0
    %2264 = vmatpush1.msra.mxu0 0.0
    %2265 = vmatprep.subr.mxu0 0.0
    %2266 = vmatpush1.msra.mxu0 0.0
    %2267 = vmatprep.subr.mxu0 0.0
    %2268 = vmatpush1.msra.mxu0 0.0
    %2269 = vmatprep.subr.mxu0 0.0
    %2270 = vmatpush1.msra.mxu0 0.0
    %2271 = vmatprep.subr.mxu0 0.0
    %2272 = vmatpush1.msra.mxu0 0.0
    %2273 = vmatprep.subr.mxu0 0.0
    %2274 = vmatpush1.msra.mxu0 0.0
    %2275 = vmatprep.subr.mxu0 0.0
    %2276 = vmatpush1.msra.mxu0 0.0
    %2277 = vmatprep.subr.mxu0 0.0
    %2278 = vmatpush1.msra.mxu0 0.0
    %2279 = vmatprep.subr.mxu0 0.0
    %2280 = vmatpush1.msra.mxu0 0.0
    %2281 = vmatprep.subr.mxu0 0.0
    %2282 = vmatpush1.msra.mxu0 0.0
    %2283 = vmatprep.subr.mxu0 0.0
    %2284 = vmatpush1.msra.mxu0 0.0
    %2285 = vmatprep.subr.mxu0 0.0
    %2286 = vmatpush1.msra.mxu0 0.0
    %2287 = vmatprep.subr.mxu0 0.0
    %2288 = vmatpush1.msra.mxu0 0.0
    %2289 = vmatprep.subr.mxu0 0.0
    %2290 = vmatpush1.msra.mxu0 0.0
    %2291 = vmatprep.subr.mxu0 0.0
    %2292 = vmatpush1.msra.mxu0 0.0
    %2293 = vmatprep.subr.mxu0 0.0
    %2294 = vmatpush1.msra.mxu0 0.0
    %2295 = vmatprep.subr.mxu0 0.0
    %2296 = vmatpush1.msra.mxu0 0.0
    %2297 = vmatprep.subr.mxu0 0.0
    %2298 = vmatpush1.msra.mxu0 0.0
    %2299 = vmatprep.mubr.f32.mxu0 0.0
    %2300 = vmatmul.mubr.f32.gmra.mrb[0].mxu0 %v2116
    %v2301 = vpop.f32.mrb[0].mxu0
    %v2302 = vadd.f32 0.0, %v2301
    %v2303 = vpop.f32.mrb[0].mxu0
    %2304 = vmatprep.mubr.f32.mxu0 0.0
    %2305 = vmatmul.mubr.f32.gmra.mrb[0].mxu0 %v2119
    %v2306 = vpop.f32.mrb[0].mxu0
    %v2307 = vadd.f32 0.0, %v2306
    %v2308 = vpop.f32.mrb[0].mxu0
    %2309 = vmatprep.mubr.f32.mxu0 0.0
    %2310 = vmatmul.mubr.f32.gmra.mrb[0].mxu0 %v2122
    %v2311 = vpop.f32.mrb[0].mxu0
    %v2312 = vadd.f32 0.0, %v2311
    %v2313 = vpop.f32.mrb[0].mxu0
    %2314 = vmatprep.mubr.f32.mxu0 0.0
    %2315 = vmatmul.mubr.f32.gmra.mrb[0].mxu0 %v2125
    %v2316 = vpop.f32.mrb[0].mxu0
    %v2317 = vadd.f32 0.0, %v2316
    %v2318 = vpop.f32.mrb[0].mxu0
    %2319 = vmatprep.mubr.f32.mxu0 0.0
    %2320 = vmatmul.mubr.f32.gmra.mrb[0].mxu0 %v2128
    %v2321 = vpop.f32.mrb[0].mxu0
    %v2322 = vadd.f32 0.0, %v2321
    %v2323 = vpop.f32.mrb[0].mxu0
    %2324 = vmatprep.mubr.f32.mxu0 0.0
    %2325 = vmatmul.mubr.f32.gmra.mrb[0].mxu0 %v2131
    %v2326 = vpop.f32.mrb[0].mxu0
    %v2327 = vadd.f32 0.0, %v2326
    %v2328 = vpop.f32.mrb[0].mxu0
    %2329 = vmatprep.mubr.f32.mxu0 0.0
    %2330 = vmatmul.mubr.f32.gmra.mrb[0].mxu0 %v2134
    %v2331 = vpop.f32.mrb[0].mxu0
    %v2332 = vadd.f32 0.0, %v2331
    %v2333 = vpop.f32.mrb[0].mxu0
    %2334 = vmatprep.mubr.f32.mxu0 0.0
    %2335 = vmatmul.mubr.f32.gmra.mrb[0].mxu0 %v2137
    %v2336 = vpop.f32.mrb[0].mxu0
    %v2337 = vadd.f32 0.0, %v2336
    %v2338 = vpop.f32.mrb[0].mxu0
    %2339 = vmatprep.mubr.f32.mxu0 0.0
    %2340 = vmatmul.mubr.f32.gmra.mrb[0].mxu0 %v2140
    %v2341 = vpop.f32.mrb[0].mxu0
    %v2342 = vadd.f32 0.0, %v2341
    %v2343 = vpop.f32.mrb[0].mxu0
    %2344 = vmatprep.mubr.f32.mxu0 0.0
    %2345 = vmatmul.mubr.f32.gmra.mrb[0].mxu0 %v2143
    %v2346 = vpop.f32.mrb[0].mxu0
    %v2347 = vadd.f32 0.0, %v2346
    %v2348 = vpop.f32.mrb[0].mxu0
    %2349 = vmatprep.mubr.f32.mxu0 0.0
    %2350 = vmatmul.mubr.f32.gmra.mrb[0].mxu0 %v2146
    %v2351 = vpop.f32.mrb[0].mxu0
    %v2352 = vadd.f32 0.0, %v2351
    %v2353 = vpop.f32.mrb[0].mxu0
    %2354 = vmatprep.mubr.f32.mxu0 0.0
    %2355 = vmatmul.mubr.f32.gmra.mrb[0].mxu0 %v2149
    %v2356 = vpop.f32.mrb[0].mxu0
    %v2357 = vadd.f32 0.0, %v2356
    %v2358 = vpop.f32.mrb[0].mxu0
    %2359 = vmatprep.mubr.f32.mxu0 0.0
    %2360 = vmatmul.mubr.f32.gmra.mrb[0].mxu0 %v2152
    %v2361 = vpop.f32.mrb[0].mxu0
    %v2362 = vadd.f32 0.0, %v2361
    %v2363 = vpop.f32.mrb[0].mxu0
    %2364 = vmatprep.mubr.f32.mxu0 0.0
    %2365 = vmatmul.mubr.f32.gmra.mrb[0].mxu0 %v2155
    %v2366 = vpop.f32.mrb[0].mxu0
    %v2367 = vadd.f32 0.0, %v2366
    %v2368 = vpop.f32.mrb[0].mxu0
    %2369 = vmatprep.mubr.f32.mxu0 0.0
    %2370 = vmatmul.mubr.f32.gmra.mrb[0].mxu0 %v2158
    %v2371 = vpop.f32.mrb[0].mxu0
    %v2372 = vadd.f32 0.0, %v2371
    %v2373 = vpop.f32.mrb[0].mxu0
    %2374 = vmatprep.mubr.f32.mxu0 0.0
    %2375 = vmatmul.mubr.f32.gmra.mrb[0].mxu0 %v2161
    %v2376 = vpop.f32.mrb[0].mxu0
    %v2377 = vadd.f32 0.0, %v2376
    %v2378 = vpop.f32.mrb[0].mxu0
    %2379 = vmatprep.mubr.f32.mxu0 0.0
    %2380 = vmatmul.mubr.f32.gmra.mrb[0].mxu0 %v2164
    %v2381 = vpop.f32.mrb[0].mxu0
    %v2382 = vadd.f32 0.0, %v2381
    %v2383 = vpop.f32.mrb[0].mxu0
    %2384 = vmatprep.mubr.f32.mxu0 0.0
    %2385 = vmatmul.mubr.f32.gmra.mrb[0].mxu0 %v2167
    %v2386 = vpop.f32.mrb[0].mxu0
    %v2387 = vadd.f32 0.0, %v2386
    %v2388 = vpop.f32.mrb[0].mxu0
    %2389 = vmatprep.mubr.f32.mxu0 0.0
    %2390 = vmatmul.mubr.f32.gmra.mrb[0].mxu0 %v2170
    %v2391 = vpop.f32.mrb[0].mxu0
    %v2392 = vadd.f32 0.0, %v2391
    %v2393 = vpop.f32.mrb[0].mxu0
    %2394 = vmatprep.mubr.f32.mxu0 0.0
    %2395 = vmatmul.mubr.f32.gmra.mrb[0].mxu0 %v2173
    %v2396 = vpop.f32.mrb[0].mxu0
    %v2397 = vadd.f32 0.0, %v2396
    %v2398 = vpop.f32.mrb[0].mxu0
    %2399 = vmatprep.mubr.f32.mxu0 0.0
    %2400 = vmatmul.mubr.f32.gmra.mrb[0].mxu0 %v2176
    %v2401 = vpop.f32.mrb[0].mxu0
    %v2402 = vadd.f32 0.0, %v2401
    %v2403 = vpop.f32.mrb[0].mxu0
    %2404 = vmatprep.mubr.f32.mxu0 0.0
    %2405 = vmatmul.mubr.f32.gmra.mrb[0].mxu0 %v2179
    %v2406 = vpop.f32.mrb[0].mxu0
    %v2407 = vadd.f32 0.0, %v2406
    %v2408 = vpop.f32.mrb[0].mxu0
    %2409 = vmatprep.mubr.f32.mxu0 0.0
    %2410 = vmatmul.mubr.f32.gmra.mrb[0].mxu0 %v2182
    %v2411 = vpop.f32.mrb[0].mxu0
    %v2412 = vadd.f32 0.0, %v2411
    %v2413 = vpop.f32.mrb[0].mxu0
    %2414 = vmatprep.mubr.f32.mxu0 0.0
    %2415 = vmatmul.mubr.f32.gmra.mrb[0].mxu0 %v2185
    %v2416 = vpop.f32.mrb[0].mxu0
    %v2417 = vadd.f32 0.0, %v2416
    %v2418 = vpop.f32.mrb[0].mxu0
    %2419 = vmatprep.mubr.f32.mxu0 0.0
    %2420 = vmatmul.mubr.f32.gmra.mrb[0].mxu0 %v2188
    %v2421 = vpop.f32.mrb[0].mxu0
    %v2422 = vadd.f32 0.0, %v2421
    %v2423 = vpop.f32.mrb[0].mxu0
    %2424 = vmatprep.mubr.f32.mxu0 0.0
    %2425 = vmatmul.mubr.f32.gmra.mrb[0].mxu0 %v2191
    %v2426 = vpop.f32.mrb[0].mxu0
    %v2427 = vadd.f32 0.0, %v2426
    %v2428 = vpop.f32.mrb[0].mxu0
    %2429 = vmatprep.mubr.f32.mxu0 0.0
    %2430 = vmatmul.mubr.f32.gmra.mrb[0].mxu0 %v2194
    %v2431 = vpop.f32.mrb[0].mxu0
    %v2432 = vadd.f32 0.0, %v2431
    %v2433 = vpop.f32.mrb[0].mxu0
    %2434 = vmatprep.mubr.f32.mxu0 0.0
    %2435 = vmatmul.mubr.f32.gmra.mrb[0].mxu0 %v2197
    %v2436 = vpop.f32.mrb[0].mxu0
    %v2437 = vadd.f32 0.0, %v2436
    %v2438 = vpop.f32.mrb[0].mxu0
    %2439 = vmatprep.mubr.f32.mxu0 0.0
    %2440 = vmatmul.mubr.f32.gmra.mrb[0].mxu0 %v2200
    %v2441 = vpop.f32.mrb[0].mxu0
    %v2442 = vadd.f32 0.0, %v2441
    %v2443 = vpop.f32.mrb[0].mxu0
    %2444 = vmatprep.mubr.f32.mxu0 0.0
    %2445 = vmatmul.mubr.f32.gmra.mrb[0].mxu0 %v2203
    %v2446 = vpop.f32.mrb[0].mxu0
    %v2447 = vadd.f32 0.0, %v2446
    %v2448 = vpop.f32.mrb[0].mxu0
    %2449 = vmatprep.mubr.f32.mxu0 0.0
    %2450 = vmatmul.mubr.f32.gmra.mrb[0].mxu0 %v2206
    %v2451 = vpop.f32.mrb[0].mxu0
    %v2452 = vadd.f32 0.0, %v2451
    %v2453 = vpop.f32.mrb[0].mxu0
    %2454 = vmatprep.mubr.f32.mxu0 0.0
    %2455 = vmatmul.mubr.f32.gmra.mrb[0].mxu0 %v2209
    %v2456 = vpop.f32.mrb[0].mxu0
    %v2457 = vadd.f32 0.0, %v2456
    %v2458 = vpop.f32.mrb[0].mxu0
    %2459 = vmatprep.mubr.f32.mxu0 0.0
    %2460 = vmatmul.mubr.f32.gmra.mrb[0].mxu0 %v2212
    %v2461 = vpop.f32.mrb[0].mxu0
    %v2462 = vadd.f32 0.0, %v2461
    %v2463 = vpop.f32.mrb[0].mxu0
    %2464 = vmatprep.mubr.f32.mxu0 0.0
    %2465 = vmatmul.mubr.f32.gmra.mrb[0].mxu0 %v2215
    %v2466 = vpop.f32.mrb[0].mxu0
    %v2467 = vadd.f32 0.0, %v2466
    %v2468 = vpop.f32.mrb[0].mxu0
    %2469 = vmatprep.mubr.f32.mxu0 0.0
    %2470 = vmatmul.mubr.f32.gmra.mrb[0].mxu0 %v2218
    %v2471 = vpop.f32.mrb[0].mxu0
    %v2472 = vadd.f32 0.0, %v2471
    %v2473 = vpop.f32.mrb[0].mxu0
    %2474 = vmatprep.mubr.f32.mxu0 0.0
    %2475 = vmatmul.mubr.f32.gmra.mrb[0].mxu0 %v2221
    %v2476 = vpop.f32.mrb[0].mxu0
    %v2477 = vadd.f32 0.0, %v2476
    %v2478 = vpop.f32.mrb[0].mxu0
    %2479 = vmatprep.mubr.f32.mxu0 0.0
    %2480 = vmatmul.mubr.f32.gmra.mrb[0].mxu0 %v2224
    %v2481 = vpop.f32.mrb[0].mxu0
    %v2482 = vadd.f32 0.0, %v2481
    %v2483 = vpop.f32.mrb[0].mxu0
    %2484 = vmatprep.mubr.f32.mxu0 0.0
    %2485 = vmatmul.mubr.f32.gmra.mrb[0].mxu0 %v2227
    %v2486 = vpop.f32.mrb[0].mxu0
    %v2487 = vadd.f32 0.0, %v2486
    %v2488 = vpop.f32.mrb[0].mxu0
    %2489 = vmatprep.mubr.f32.mxu0 0.0
    %2490 = vmatmul.mubr.f32.gmra.mrb[0].mxu0 %v2230
    %v2491 = vpop.f32.mrb[0].mxu0
    %v2492 = vadd.f32 0.0, %v2491
    %v2493 = vpop.f32.mrb[0].mxu0
    %2494 = vmatprep.mubr.f32.mxu0 0.0
    %2495 = vmatmul.mubr.f32.gmra.mrb[0].mxu0 %v2233
    %v2496 = vpop.f32.mrb[0].mxu0
    %v2497 = vadd.f32 0.0, %v2496
    %v2498 = vpop.f32.mrb[0].mxu0
    %2499 = vdwg.mxu0
    %v2500 = vadd.f32 %v2029, %v2302
    %v2501 = vadd.f32 %v2030, %v2307
    %v2502 = vadd.f32 %v2031, %v2312
    %v2503 = vadd.f32 %v2032, %v2317
    %v2504 = vadd.f32 %v2033, %v2322
    %v2505 = vadd.f32 %v2034, %v2327
    %v2506 = vadd.f32 %v2035, %v2332
    %v2507 = vadd.f32 %v2036, %v2337
    %v2508 = vadd.f32 %v2037, %v2342
    %v2509 = vadd.f32 %v2038, %v2347
    %v2510 = vadd.f32 %v2039, %v2352
    %v2511 = vadd.f32 %v2040, %v2357
    %v2512 = vadd.f32 %v2041, %v2362
    %v2513 = vadd.f32 %v2042, %v2367
    %v2514 = vadd.f32 %v2043, %v2372
    %v2515 = vadd.f32 %v2044, %v2377
    %v2516 = vadd.f32 %v2045, %v2382
    %v2517 = vadd.f32 %v2046, %v2387
    %v2518 = vadd.f32 %v2047, %v2392
    %v2519 = vadd.f32 %v2048, %v2397
    %v2520 = vadd.f32 %v2049, %v2402
    %v2521 = vadd.f32 %v2050, %v2407
    %v2522 = vadd.f32 %v2051, %v2412
    %v2523 = vadd.f32 %v2052, %v2417
    %v2524 = vadd.f32 %v2053, %v2422
    %v2525 = vadd.f32 %v2054, %v2427
    %v2526 = vadd.f32 %v2055, %v2432
    %v2527 = vadd.f32 %v2056, %v2437
    %v2528 = vadd.f32 %v2057, %v2442
    %v2529 = vadd.f32 %v2058, %v2447
    %v2530 = vadd.f32 %v2059, %v2452
    %v2531 = vadd.f32 %v2060, %v2457
    %v2532 = vadd.f32 %v2061, %v2462
    %v2533 = vadd.f32 %v2062, %v2467
    %v2534 = vadd.f32 %v2063, %v2472
    %v2535 = vadd.f32 %v2064, %v2477
    %v2536 = vadd.f32 %v2065, %v2482
    %v2537 = vadd.f32 %v2066, %v2487
    %v2538 = vadd.f32 %v2067, %v2492
    %v2539 = vadd.f32 %v2068, %v2497
    %v2540 = vld [vmem:[%s2069 + $0x1] sm:$0xff]
    %v2541 = vld [vmem:[%s2069 + $0x9] sm:$0xff]
    %v2542 = vld [vmem:[%s2069 + $0x19] sm:$0xff]
    %v2543 = vld [vmem:[%s2069 + $0x21] sm:$0xff]
    %v2544 = vld [vmem:[%s2069 + $0x31] sm:$0xff]
    %v2545 = vld [vmem:[%s2069 + $0x39] sm:$0xff]
    %v2546 = vld [vmem:[%s2069 + $0x49] sm:$0xff]
    %v2547 = vld [vmem:[%s2069 + $0x51] sm:$0xff]
    %v2548 = vld [vmem:[%s2069 + $0x61] sm:$0xff]
    %v2549 = vld [vmem:[%s2069 + $0x69] sm:$0xff]
    %v2550 = vld [vmem:[%s2069 + $0x79] sm:$0xff]
    %v2551 = vld [vmem:[%s2069 + $0x81] sm:$0xff]
    %v2552 = vld [vmem:[%s2069 + $0x91] sm:$0xff]
    %v2553 = vld [vmem:[%s2069 + $0x99] sm:$0xff]
    %v2554 = vld [vmem:[%s2069 + $0xa9] sm:$0xff]
    %v2555 = vld [vmem:[%s2069 + $0xb1] sm:$0xff]
    %v2556 = vld [vmem:[%s2069 + $0xc1] sm:$0xff]
    %v2557 = vld [vmem:[%s2069 + $0xc9] sm:$0xff]
    %v2558 = vld [vmem:[%s2069 + $0xd9] sm:$0xff]
    %v2559 = vld [vmem:[%s2069 + $0xe1] sm:$0xff]
    %v2560 = vld [vmem:[%s2069 + $0x121] sm:$0xff]
    %v2561 = vld [vmem:[%s2069 + $0x129] sm:$0xff]
    %v2562 = vld [vmem:[%s2069 + $0x139] sm:$0xff]
    %v2563 = vld [vmem:[%s2069 + $0x141] sm:$0xff]
    %v2564 = vld [vmem:[%s2069 + $0x151] sm:$0xff]
    %v2565 = vld [vmem:[%s2069 + $0x159] sm:$0xff]
    %v2566 = vld [vmem:[%s2069 + $0x169] sm:$0xff]
    %v2567 = vld [vmem:[%s2069 + $0x171] sm:$0xff]
    %v2568 = vld [vmem:[%s2069 + $0x181] sm:$0xff]
    %v2569 = vld [vmem:[%s2069 + $0x189] sm:$0xff]
    %v2570 = vld [vmem:[%s2069 + $0x199] sm:$0xff]
    %v2571 = vld [vmem:[%s2069 + $0x1a1] sm:$0xff]
    %v2572 = vld [vmem:[%s2069 + $0x1b1] sm:$0xff]
    %v2573 = vld [vmem:[%s2069 + $0x1b9] sm:$0xff]
    %v2574 = vld [vmem:[%s2069 + $0x1c9] sm:$0xff]
    %v2575 = vld [vmem:[%s2069 + $0x1d1] sm:$0xff]
    %v2576 = vld [vmem:[%s2069 + $0x1e1] sm:$0xff]
    %v2577 = vld [vmem:[%s2069 + $0x1e9] sm:$0xff]
    %v2578 = vld [vmem:[%s2069 + $0x1f9] sm:$0xff]
    %v2579 = vld [vmem:[%s2069 + $0x201] sm:$0xff]
    %s2580 = scalar_lea.vmem %s1, 128
    %v2581 = vld [vmem:[%s2580] sm:$0xff]
    %v2582 = vld [vmem:[%s2580 + $0x8] sm:$0xff]
    %v2583 = vld [vmem:[%s2580 + $0x10] sm:$0xff]
    %v2584 = vld [vmem:[%s2580 + $0x18] sm:$0xff]
    %v2586 = vsel %vm828, %v2540, 0
    %v2589 = vsel %vm828, %v2541, 0
    %v2592 = vsel %vm828, %v2542, 0
    %v2595 = vsel %vm828, %v2543, 0
    %v2598 = vsel %vm828, %v2544, 0
    %v2601 = vsel %vm828, %v2545, 0
    %v2604 = vsel %vm828, %v2546, 0
    %v2607 = vsel %vm828, %v2547, 0
    %v2610 = vsel %vm828, %v2548, 0
    %v2613 = vsel %vm828, %v2549, 0
    %v2616 = vsel %vm828, %v2550, 0
    %v2619 = vsel %vm828, %v2551, 0
    %v2622 = vsel %vm828, %v2552, 0
    %v2625 = vsel %vm828, %v2553, 0
    %v2628 = vsel %vm828, %v2554, 0
    %v2631 = vsel %vm828, %v2555, 0
    %v2634 = vsel %vm828, %v2556, 0
    %v2637 = vsel %vm828, %v2557, 0
    %v2640 = vsel %vm828, %v2558, 0
    %v2643 = vsel %vm828, %v2559, 0
    %v2646 = vsel %vm828, %v2560, 0
    %v2649 = vsel %vm828, %v2561, 0
    %v2652 = vsel %vm828, %v2562, 0
    %v2655 = vsel %vm828, %v2563, 0
    %v2658 = vsel %vm828, %v2564, 0
    %v2661 = vsel %vm828, %v2565, 0
    %v2664 = vsel %vm828, %v2566, 0
    %v2667 = vsel %vm828, %v2567, 0
    %v2670 = vsel %vm828, %v2568, 0
    %v2673 = vsel %vm828, %v2569, 0
    %v2676 = vsel %vm828, %v2570, 0
    %v2679 = vsel %vm828, %v2571, 0
    %v2682 = vsel %vm828, %v2572, 0
    %v2685 = vsel %vm828, %v2573, 0
    %v2688 = vsel %vm828, %v2574, 0
    %v2691 = vsel %vm828, %v2575, 0
    %v2694 = vsel %vm828, %v2576, 0
    %v2697 = vsel %vm828, %v2577, 0
    %v2700 = vsel %vm828, %v2578, 0
    %v2703 = vsel %vm828, %v2579, 0
    %2705 = vmatprep.subr.mxu0 0.0
    %2706 = vmatpush1.msra.mxu0 %v2581
    %2707 = vmatprep.subr.mxu0 0.0
    %2708 = vmatpush1.msra.mxu0 %v2582
    %2709 = vmatprep.subr.mxu0 0.0
    %2710 = vmatpush1.msra.mxu0 %v2583
    %2711 = vmatprep.subr.mxu0 0.0
    %2712 = vmatpush1.msra.mxu0 %v2584
    %2713 = vmatprep.subr.mxu0 0.0
    %2714 = vmatpush1.msra.mxu0 0.0
    %2715 = vmatprep.subr.mxu0 0.0
    %2716 = vmatpush1.msra.mxu0 0.0
    %2717 = vmatprep.subr.mxu0 0.0
    %2718 = vmatpush1.msra.mxu0 0.0
    %2719 = vmatprep.subr.mxu0 0.0
    %2720 = vmatpush1.msra.mxu0 0.0
    %2721 = vmatprep.subr.mxu0 0.0
    %2722 = vmatpush1.msra.mxu0 0.0
    %2723 = vmatprep.subr.mxu0 0.0
    %2724 = vmatpush1.msra.mxu0 0.0
    %2725 = vmatprep.subr.mxu0 0.0
    %2726 = vmatpush1.msra.mxu0 0.0
    %2727 = vmatprep.subr.mxu0 0.0
    %2728 = vmatpush1.msra.mxu0 0.0
    %2729 = vmatprep.subr.mxu0 0.0
    %2730 = vmatpush1.msra.mxu0 0.0
    %2731 = vmatprep.subr.mxu0 0.0
    %2732 = vmatpush1.msra.mxu0 0.0
    %2733 = vmatprep.subr.mxu0 0.0
    %2734 = vmatpush1.msra.mxu0 0.0
    %2735 = vmatprep.subr.mxu0 0.0
    %2736 = vmatpush1.msra.mxu0 0.0
    %2737 = vmatprep.subr.mxu0 0.0
    %2738 = vmatpush1.msra.mxu0 0.0
    %2739 = vmatprep.subr.mxu0 0.0
    %2740 = vmatpush1.msra.mxu0 0.0
    %2741 = vmatprep.subr.mxu0 0.0
    %2742 = vmatpush1.msra.mxu0 0.0
    %2743 = vmatprep.subr.mxu0 0.0
    %2744 = vmatpush1.msra.mxu0 0.0
    %2745 = vmatprep.subr.mxu0 0.0
    %2746 = vmatpush1.msra.mxu0 0.0
    %2747 = vmatprep.subr.mxu0 0.0
    %2748 = vmatpush1.msra.mxu0 0.0
    %2749 = vmatprep.subr.mxu0 0.0
    %2750 = vmatpush1.msra.mxu0 0.0
    %2751 = vmatprep.subr.mxu0 0.0
    %2752 = vmatpush1.msra.mxu0 0.0
    %2753 = vmatprep.subr.mxu0 0.0
    %2754 = vmatpush1.msra.mxu0 0.0
    %2755 = vmatprep.subr.mxu0 0.0
    %2756 = vmatpush1.msra.mxu0 0.0
    %2757 = vmatprep.subr.mxu0 0.0
    %2758 = vmatpush1.msra.mxu0 0.0
    %2759 = vmatprep.subr.mxu0 0.0
    %2760 = vmatpush1.msra.mxu0 0.0
    %2761 = vmatprep.subr.mxu0 0.0
    %2762 = vmatpush1.msra.mxu0 0.0
    %2763 = vmatprep.subr.mxu0 0.0
    %2764 = vmatpush1.msra.mxu0 0.0
    %2765 = vmatprep.subr.mxu0 0.0
    %2766 = vmatpush1.msra.mxu0 0.0
    %2767 = vmatprep.subr.mxu0 0.0
    %2768 = vmatpush1.msra.mxu0 0.0
    %2769 = vmatprep.mubr.f32.mxu0 0.0
    %2770 = vmatmul.mubr.f32.gmra.mrb[0].mxu0 %v2586
    %v2771 = vpop.f32.mrb[0].mxu0
    %v2772 = vadd.f32 0.0, %v2771
    %v2773 = vpop.f32.mrb[0].mxu0
    %2774 = vmatprep.mubr.f32.mxu0 0.0
    %2775 = vmatmul.mubr.f32.gmra.mrb[0].mxu0 %v2589
    %v2776 = vpop.f32.mrb[0].mxu0
    %v2777 = vadd.f32 0.0, %v2776
    %v2778 = vpop.f32.mrb[0].mxu0
    %2779 = vmatprep.mubr.f32.mxu0 0.0
    %2780 = vmatmul.mubr.f32.gmra.mrb[0].mxu0 %v2592
    %v2781 = vpop.f32.mrb[0].mxu0
    %v2782 = vadd.f32 0.0, %v2781
    %v2783 = vpop.f32.mrb[0].mxu0
    %2784 = vmatprep.mubr.f32.mxu0 0.0
    %2785 = vmatmul.mubr.f32.gmra.mrb[0].mxu0 %v2595
    %v2786 = vpop.f32.mrb[0].mxu0
    %v2787 = vadd.f32 0.0, %v2786
    %v2788 = vpop.f32.mrb[0].mxu0
    %2789 = vmatprep.mubr.f32.mxu0 0.0
    %2790 = vmatmul.mubr.f32.gmra.mrb[0].mxu0 %v2598
    %v2791 = vpop.f32.mrb[0].mxu0
    %v2792 = vadd.f32 0.0, %v2791
    %v2793 = vpop.f32.mrb[0].mxu0
    %2794 = vmatprep.mubr.f32.mxu0 0.0
    %2795 = vmatmul.mubr.f32.gmra.mrb[0].mxu0 %v2601
    %v2796 = vpop.f32.mrb[0].mxu0
    %v2797 = vadd.f32 0.0, %v2796
    %v2798 = vpop.f32.mrb[0].mxu0
    %2799 = vmatprep.mubr.f32.mxu0 0.0
    %2800 = vmatmul.mubr.f32.gmra.mrb[0].mxu0 %v2604
    %v2801 = vpop.f32.mrb[0].mxu0
    %v2802 = vadd.f32 0.0, %v2801
    %v2803 = vpop.f32.mrb[0].mxu0
    %2804 = vmatprep.mubr.f32.mxu0 0.0
    %2805 = vmatmul.mubr.f32.gmra.mrb[0].mxu0 %v2607
    %v2806 = vpop.f32.mrb[0].mxu0
    %v2807 = vadd.f32 0.0, %v2806
    %v2808 = vpop.f32.mrb[0].mxu0
    %2809 = vmatprep.mubr.f32.mxu0 0.0
    %2810 = vmatmul.mubr.f32.gmra.mrb[0].mxu0 %v2610
    %v2811 = vpop.f32.mrb[0].mxu0
    %v2812 = vadd.f32 0.0, %v2811
    %v2813 = vpop.f32.mrb[0].mxu0
    %2814 = vmatprep.mubr.f32.mxu0 0.0
    %2815 = vmatmul.mubr.f32.gmra.mrb[0].mxu0 %v2613
    %v2816 = vpop.f32.mrb[0].mxu0
    %v2817 = vadd.f32 0.0, %v2816
    %v2818 = vpop.f32.mrb[0].mxu0
    %2819 = vmatprep.mubr.f32.mxu0 0.0
    %2820 = vmatmul.mubr.f32.gmra.mrb[0].mxu0 %v2616
    %v2821 = vpop.f32.mrb[0].mxu0
    %v2822 = vadd.f32 0.0, %v2821
    %v2823 = vpop.f32.mrb[0].mxu0
    %2824 = vmatprep.mubr.f32.mxu0 0.0
    %2825 = vmatmul.mubr.f32.gmra.mrb[0].mxu0 %v2619
    %v2826 = vpop.f32.mrb[0].mxu0
    %v2827 = vadd.f32 0.0, %v2826
    %v2828 = vpop.f32.mrb[0].mxu0
    %2829 = vmatprep.mubr.f32.mxu0 0.0
    %2830 = vmatmul.mubr.f32.gmra.mrb[0].mxu0 %v2622
    %v2831 = vpop.f32.mrb[0].mxu0
    %v2832 = vadd.f32 0.0, %v2831
    %v2833 = vpop.f32.mrb[0].mxu0
    %2834 = vmatprep.mubr.f32.mxu0 0.0
    %2835 = vmatmul.mubr.f32.gmra.mrb[0].mxu0 %v2625
    %v2836 = vpop.f32.mrb[0].mxu0
    %v2837 = vadd.f32 0.0, %v2836
    %v2838 = vpop.f32.mrb[0].mxu0
    %2839 = vmatprep.mubr.f32.mxu0 0.0
    %2840 = vmatmul.mubr.f32.gmra.mrb[0].mxu0 %v2628
    %v2841 = vpop.f32.mrb[0].mxu0
    %v2842 = vadd.f32 0.0, %v2841
    %v2843 = vpop.f32.mrb[0].mxu0
    %2844 = vmatprep.mubr.f32.mxu0 0.0
    %2845 = vmatmul.mubr.f32.gmra.mrb[0].mxu0 %v2631
    %v2846 = vpop.f32.mrb[0].mxu0
    %v2847 = vadd.f32 0.0, %v2846
    %v2848 = vpop.f32.mrb[0].mxu0
    %2849 = vmatprep.mubr.f32.mxu0 0.0
    %2850 = vmatmul.mubr.f32.gmra.mrb[0].mxu0 %v2634
    %v2851 = vpop.f32.mrb[0].mxu0
    %v2852 = vadd.f32 0.0, %v2851
    %v2853 = vpop.f32.mrb[0].mxu0
    %2854 = vmatprep.mubr.f32.mxu0 0.0
    %2855 = vmatmul.mubr.f32.gmra.mrb[0].mxu0 %v2637
    %v2856 = vpop.f32.mrb[0].mxu0
    %v2857 = vadd.f32 0.0, %v2856
    %v2858 = vpop.f32.mrb[0].mxu0
    %2859 = vmatprep.mubr.f32.mxu0 0.0
    %2860 = vmatmul.mubr.f32.gmra.mrb[0].mxu0 %v2640
    %v2861 = vpop.f32.mrb[0].mxu0
    %v2862 = vadd.f32 0.0, %v2861
    %v2863 = vpop.f32.mrb[0].mxu0
    %2864 = vmatprep.mubr.f32.mxu0 0.0
    %2865 = vmatmul.mubr.f32.gmra.mrb[0].mxu0 %v2643
    %v2866 = vpop.f32.mrb[0].mxu0
    %v2867 = vadd.f32 0.0, %v2866
    %v2868 = vpop.f32.mrb[0].mxu0
    %2869 = vmatprep.mubr.f32.mxu0 0.0
    %2870 = vmatmul.mubr.f32.gmra.mrb[0].mxu0 %v2646
    %v2871 = vpop.f32.mrb[0].mxu0
    %v2872 = vadd.f32 0.0, %v2871
    %v2873 = vpop.f32.mrb[0].mxu0
    %2874 = vmatprep.mubr.f32.mxu0 0.0
    %2875 = vmatmul.mubr.f32.gmra.mrb[0].mxu0 %v2649
    %v2876 = vpop.f32.mrb[0].mxu0
    %v2877 = vadd.f32 0.0, %v2876
    %v2878 = vpop.f32.mrb[0].mxu0
    %2879 = vmatprep.mubr.f32.mxu0 0.0
    %2880 = vmatmul.mubr.f32.gmra.mrb[0].mxu0 %v2652
    %v2881 = vpop.f32.mrb[0].mxu0
    %v2882 = vadd.f32 0.0, %v2881
    %v2883 = vpop.f32.mrb[0].mxu0
    %2884 = vmatprep.mubr.f32.mxu0 0.0
    %2885 = vmatmul.mubr.f32.gmra.mrb[0].mxu0 %v2655
    %v2886 = vpop.f32.mrb[0].mxu0
    %v2887 = vadd.f32 0.0, %v2886
    %v2888 = vpop.f32.mrb[0].mxu0
    %2889 = vmatprep.mubr.f32.mxu0 0.0
    %2890 = vmatmul.mubr.f32.gmra.mrb[0].mxu0 %v2658
    %v2891 = vpop.f32.mrb[0].mxu0
    %v2892 = vadd.f32 0.0, %v2891
    %v2893 = vpop.f32.mrb[0].mxu0
    %2894 = vmatprep.mubr.f32.mxu0 0.0
    %2895 = vmatmul.mubr.f32.gmra.mrb[0].mxu0 %v2661
    %v2896 = vpop.f32.mrb[0].mxu0
    %v2897 = vadd.f32 0.0, %v2896
    %v2898 = vpop.f32.mrb[0].mxu0
    %2899 = vmatprep.mubr.f32.mxu0 0.0
    %2900 = vmatmul.mubr.f32.gmra.mrb[0].mxu0 %v2664
    %v2901 = vpop.f32.mrb[0].mxu0
    %v2902 = vadd.f32 0.0, %v2901
    %v2903 = vpop.f32.mrb[0].mxu0
    %2904 = vmatprep.mubr.f32.mxu0 0.0
    %2905 = vmatmul.mubr.f32.gmra.mrb[0].mxu0 %v2667
    %v2906 = vpop.f32.mrb[0].mxu0
    %v2907 = vadd.f32 0.0, %v2906
    %v2908 = vpop.f32.mrb[0].mxu0
    %2909 = vmatprep.mubr.f32.mxu0 0.0
    %2910 = vmatmul.mubr.f32.gmra.mrb[0].mxu0 %v2670
    %v2911 = vpop.f32.mrb[0].mxu0
    %v2912 = vadd.f32 0.0, %v2911
    %v2913 = vpop.f32.mrb[0].mxu0
    %2914 = vmatprep.mubr.f32.mxu0 0.0
    %2915 = vmatmul.mubr.f32.gmra.mrb[0].mxu0 %v2673
    %v2916 = vpop.f32.mrb[0].mxu0
    %v2917 = vadd.f32 0.0, %v2916
    %v2918 = vpop.f32.mrb[0].mxu0
    %2919 = vmatprep.mubr.f32.mxu0 0.0
    %2920 = vmatmul.mubr.f32.gmra.mrb[0].mxu0 %v2676
    %v2921 = vpop.f32.mrb[0].mxu0
    %v2922 = vadd.f32 0.0, %v2921
    %v2923 = vpop.f32.mrb[0].mxu0
    %2924 = vmatprep.mubr.f32.mxu0 0.0
    %2925 = vmatmul.mubr.f32.gmra.mrb[0].mxu0 %v2679
    %v2926 = vpop.f32.mrb[0].mxu0
    %v2927 = vadd.f32 0.0, %v2926
    %v2928 = vpop.f32.mrb[0].mxu0
    %2929 = vmatprep.mubr.f32.mxu0 0.0
    %2930 = vmatmul.mubr.f32.gmra.mrb[0].mxu0 %v2682
    %v2931 = vpop.f32.mrb[0].mxu0
    %v2932 = vadd.f32 0.0, %v2931
    %v2933 = vpop.f32.mrb[0].mxu0
    %2934 = vmatprep.mubr.f32.mxu0 0.0
    %2935 = vmatmul.mubr.f32.gmra.mrb[0].mxu0 %v2685
    %v2936 = vpop.f32.mrb[0].mxu0
    %v2937 = vadd.f32 0.0, %v2936
    %v2938 = vpop.f32.mrb[0].mxu0
    %2939 = vmatprep.mubr.f32.mxu0 0.0
    %2940 = vmatmul.mubr.f32.gmra.mrb[0].mxu0 %v2688
    %v2941 = vpop.f32.mrb[0].mxu0
    %v2942 = vadd.f32 0.0, %v2941
    %v2943 = vpop.f32.mrb[0].mxu0
    %2944 = vmatprep.mubr.f32.mxu0 0.0
    %2945 = vmatmul.mubr.f32.gmra.mrb[0].mxu0 %v2691
    %v2946 = vpop.f32.mrb[0].mxu0
    %v2947 = vadd.f32 0.0, %v2946
    %v2948 = vpop.f32.mrb[0].mxu0
    %2949 = vmatprep.mubr.f32.mxu0 0.0
    %2950 = vmatmul.mubr.f32.gmra.mrb[0].mxu0 %v2694
    %v2951 = vpop.f32.mrb[0].mxu0
    %v2952 = vadd.f32 0.0, %v2951
    %v2953 = vpop.f32.mrb[0].mxu0
    %2954 = vmatprep.mubr.f32.mxu0 0.0
    %2955 = vmatmul.mubr.f32.gmra.mrb[0].mxu0 %v2697
    %v2956 = vpop.f32.mrb[0].mxu0
    %v2957 = vadd.f32 0.0, %v2956
    %v2958 = vpop.f32.mrb[0].mxu0
    %2959 = vmatprep.mubr.f32.mxu0 0.0
    %2960 = vmatmul.mubr.f32.gmra.mrb[0].mxu0 %v2700
    %v2961 = vpop.f32.mrb[0].mxu0
    %v2962 = vadd.f32 0.0, %v2961
    %v2963 = vpop.f32.mrb[0].mxu0
    %2964 = vmatprep.mubr.f32.mxu0 0.0
    %2965 = vmatmul.mubr.f32.gmra.mrb[0].mxu0 %v2703
    %v2966 = vpop.f32.mrb[0].mxu0
    %v2967 = vadd.f32 0.0, %v2966
    %v2968 = vpop.f32.mrb[0].mxu0
    %2969 = vdwg.mxu0
    %v2970 = vadd.f32 %v2500, %v2772
    %v2971 = vadd.f32 %v2501, %v2777
    %v2972 = vadd.f32 %v2502, %v2782
    %v2973 = vadd.f32 %v2503, %v2787
    %v2974 = vadd.f32 %v2504, %v2792
    %v2975 = vadd.f32 %v2505, %v2797
    %v2976 = vadd.f32 %v2506, %v2802
    %v2977 = vadd.f32 %v2507, %v2807
    %v2978 = vadd.f32 %v2508, %v2812
    %v2979 = vadd.f32 %v2509, %v2817
    %v2980 = vadd.f32 %v2510, %v2822
    %v2981 = vadd.f32 %v2511, %v2827
    %v2982 = vadd.f32 %v2512, %v2832
    %v2983 = vadd.f32 %v2513, %v2837
    %v2984 = vadd.f32 %v2514, %v2842
    %v2985 = vadd.f32 %v2515, %v2847
    %v2986 = vadd.f32 %v2516, %v2852
    %v2987 = vadd.f32 %v2517, %v2857
    %v2988 = vadd.f32 %v2518, %v2862
    %v2989 = vadd.f32 %v2519, %v2867
    %v2990 = vadd.f32 %v2520, %v2872
    %v2991 = vadd.f32 %v2521, %v2877
    %v2992 = vadd.f32 %v2522, %v2882
    %v2993 = vadd.f32 %v2523, %v2887
    %v2994 = vadd.f32 %v2524, %v2892
    %v2995 = vadd.f32 %v2525, %v2897
    %v2996 = vadd.f32 %v2526, %v2902
    %v2997 = vadd.f32 %v2527, %v2907
    %v2998 = vadd.f32 %v2528, %v2912
    %v2999 = vadd.f32 %v2529, %v2917
    %v3000 = vadd.f32 %v2530, %v2922
    %v3001 = vadd.f32 %v2531, %v2927
    %v3002 = vadd.f32 %v2532, %v2932
    %v3003 = vadd.f32 %v2533, %v2937
    %v3004 = vadd.f32 %v2534, %v2942
    %v3005 = vadd.f32 %v2535, %v2947
    %v3006 = vadd.f32 %v2536, %v2952
    %v3007 = vadd.f32 %v2537, %v2957
    %v3008 = vadd.f32 %v2538, %v2962
    %v3009 = vadd.f32 %v2539, %v2967
    %v3010 = vld [vmem:[%s2069 + $0x2] sm:$0xff]
    %v3011 = vld [vmem:[%s2069 + $0xa] sm:$0xff]
    %v3012 = vld [vmem:[%s2069 + $0x1a] sm:$0xff]
    %v3013 = vld [vmem:[%s2069 + $0x22] sm:$0xff]
    %v3014 = vld [vmem:[%s2069 + $0x32] sm:$0xff]
    %v3015 = vld [vmem:[%s2069 + $0x3a] sm:$0xff]
    %v3016 = vld [vmem:[%s2069 + $0x4a] sm:$0xff]
    %v3017 = vld [vmem:[%s2069 + $0x52] sm:$0xff]
    %v3018 = vld [vmem:[%s2069 + $0x62] sm:$0xff]
    %v3019 = vld [vmem:[%s2069 + $0x6a] sm:$0xff]
    %v3020 = vld [vmem:[%s2069 + $0x7a] sm:$0xff]
    %v3021 = vld [vmem:[%s2069 + $0x82] sm:$0xff]
    %v3022 = vld [vmem:[%s2069 + $0x92] sm:$0xff]
    %v3023 = vld [vmem:[%s2069 + $0x9a] sm:$0xff]
    %v3024 = vld [vmem:[%s2069 + $0xaa] sm:$0xff]
    %v3025 = vld [vmem:[%s2069 + $0xb2] sm:$0xff]
    %v3026 = vld [vmem:[%s2069 + $0xc2] sm:$0xff]
    %v3027 = vld [vmem:[%s2069 + $0xca] sm:$0xff]
    %v3028 = vld [vmem:[%s2069 + $0xda] sm:$0xff]
    %v3029 = vld [vmem:[%s2069 + $0xe2] sm:$0xff]
    %v3030 = vld [vmem:[%s2069 + $0x122] sm:$0xff]
    %v3031 = vld [vmem:[%s2069 + $0x12a] sm:$0xff]
    %v3032 = vld [vmem:[%s2069 + $0x13a] sm:$0xff]
    %v3033 = vld [vmem:[%s2069 + $0x142] sm:$0xff]
    %v3034 = vld [vmem:[%s2069 + $0x152] sm:$0xff]
    %v3035 = vld [vmem:[%s2069 + $0x15a] sm:$0xff]
    %v3036 = vld [vmem:[%s2069 + $0x16a] sm:$0xff]
    %v3037 = vld [vmem:[%s2069 + $0x172] sm:$0xff]
    %v3038 = vld [vmem:[%s2069 + $0x182] sm:$0xff]
    %v3039 = vld [vmem:[%s2069 + $0x18a] sm:$0xff]
    %v3040 = vld [vmem:[%s2069 + $0x19a] sm:$0xff]
    %v3041 = vld [vmem:[%s2069 + $0x1a2] sm:$0xff]
    %v3042 = vld [vmem:[%s2069 + $0x1b2] sm:$0xff]
    %v3043 = vld [vmem:[%s2069 + $0x1ba] sm:$0xff]
    %v3044 = vld [vmem:[%s2069 + $0x1ca] sm:$0xff]
    %v3045 = vld [vmem:[%s2069 + $0x1d2] sm:$0xff]
    %v3046 = vld [vmem:[%s2069 + $0x1e2] sm:$0xff]
    %v3047 = vld [vmem:[%s2069 + $0x1ea] sm:$0xff]
    %v3048 = vld [vmem:[%s2069 + $0x1fa] sm:$0xff]
    %v3049 = vld [vmem:[%s2069 + $0x202] sm:$0xff]
    %s3050 = scalar_lea.vmem %s1, 160
    %v3051 = vld [vmem:[%s3050] sm:$0xff]
    %v3052 = vld [vmem:[%s3050 + $0x8] sm:$0xff]
    %v3053 = vld [vmem:[%s3050 + $0x10] sm:$0xff]
    %v3054 = vld [vmem:[%s3050 + $0x18] sm:$0xff]
    %v3056 = vsel %vm828, %v3010, 0
    %v3059 = vsel %vm828, %v3011, 0
    %v3062 = vsel %vm828, %v3012, 0
    %v3065 = vsel %vm828, %v3013, 0
    %v3068 = vsel %vm828, %v3014, 0
    %v3071 = vsel %vm828, %v3015, 0
    %v3074 = vsel %vm828, %v3016, 0
    %v3077 = vsel %vm828, %v3017, 0
    %v3080 = vsel %vm828, %v3018, 0
    %v3083 = vsel %vm828, %v3019, 0
    %v3086 = vsel %vm828, %v3020, 0
    %v3089 = vsel %vm828, %v3021, 0
    %v3092 = vsel %vm828, %v3022, 0
    %v3095 = vsel %vm828, %v3023, 0
    %v3098 = vsel %vm828, %v3024, 0
    %v3101 = vsel %vm828, %v3025, 0
    %v3104 = vsel %vm828, %v3026, 0
    %v3107 = vsel %vm828, %v3027, 0
    %v3110 = vsel %vm828, %v3028, 0
    %v3113 = vsel %vm828, %v3029, 0
    %v3116 = vsel %vm828, %v3030, 0
    %v3119 = vsel %vm828, %v3031, 0
    %v3122 = vsel %vm828, %v3032, 0
    %v3125 = vsel %vm828, %v3033, 0
    %v3128 = vsel %vm828, %v3034, 0
    %v3131 = vsel %vm828, %v3035, 0
    %v3134 = vsel %vm828, %v3036, 0
    %v3137 = vsel %vm828, %v3037, 0
    %v3140 = vsel %vm828, %v3038, 0
    %v3143 = vsel %vm828, %v3039, 0
    %v3146 = vsel %vm828, %v3040, 0
    %v3149 = vsel %vm828, %v3041, 0
    %v3152 = vsel %vm828, %v3042, 0
    %v3155 = vsel %vm828, %v3043, 0
    %v3158 = vsel %vm828, %v3044, 0
    %v3161 = vsel %vm828, %v3045, 0
    %v3164 = vsel %vm828, %v3046, 0
    %v3167 = vsel %vm828, %v3047, 0
    %v3170 = vsel %vm828, %v3048, 0
    %v3173 = vsel %vm828, %v3049, 0
    %3175 = vmatprep.subr.mxu0 0.0
    %3176 = vmatpush1.msra.mxu0 %v3051
    %3177 = vmatprep.subr.mxu0 0.0
    %3178 = vmatpush1.msra.mxu0 %v3052
    %3179 = vmatprep.subr.mxu0 0.0
    %3180 = vmatpush1.msra.mxu0 %v3053
    %3181 = vmatprep.subr.mxu0 0.0
    %3182 = vmatpush1.msra.mxu0 %v3054
    %3183 = vmatprep.subr.mxu0 0.0
    %3184 = vmatpush1.msra.mxu0 0.0
    %3185 = vmatprep.subr.mxu0 0.0
    %3186 = vmatpush1.msra.mxu0 0.0
    %3187 = vmatprep.subr.mxu0 0.0
    %3188 = vmatpush1.msra.mxu0 0.0
    %3189 = vmatprep.subr.mxu0 0.0
    %3190 = vmatpush1.msra.mxu0 0.0
    %3191 = vmatprep.subr.mxu0 0.0
    %3192 = vmatpush1.msra.mxu0 0.0
    %3193 = vmatprep.subr.mxu0 0.0
    %3194 = vmatpush1.msra.mxu0 0.0
    %3195 = vmatprep.subr.mxu0 0.0
    %3196 = vmatpush1.msra.mxu0 0.0
    %3197 = vmatprep.subr.mxu0 0.0
    %3198 = vmatpush1.msra.mxu0 0.0
    %3199 = vmatprep.subr.mxu0 0.0
    %3200 = vmatpush1.msra.mxu0 0.0
    %3201 = vmatprep.subr.mxu0 0.0
    %3202 = vmatpush1.msra.mxu0 0.0
    %3203 = vmatprep.subr.mxu0 0.0
    %3204 = vmatpush1.msra.mxu0 0.0
    %3205 = vmatprep.subr.mxu0 0.0
    %3206 = vmatpush1.msra.mxu0 0.0
    %3207 = vmatprep.subr.mxu0 0.0
    %3208 = vmatpush1.msra.mxu0 0.0
    %3209 = vmatprep.subr.mxu0 0.0
    %3210 = vmatpush1.msra.mxu0 0.0
    %3211 = vmatprep.subr.mxu0 0.0
    %3212 = vmatpush1.msra.mxu0 0.0
    %3213 = vmatprep.subr.mxu0 0.0
    %3214 = vmatpush1.msra.mxu0 0.0
    %3215 = vmatprep.subr.mxu0 0.0
    %3216 = vmatpush1.msra.mxu0 0.0
    %3217 = vmatprep.subr.mxu0 0.0
    %3218 = vmatpush1.msra.mxu0 0.0
    %3219 = vmatprep.subr.mxu0 0.0
    %3220 = vmatpush1.msra.mxu0 0.0
    %3221 = vmatprep.subr.mxu0 0.0
    %3222 = vmatpush1.msra.mxu0 0.0
    %3223 = vmatprep.subr.mxu0 0.0
    %3224 = vmatpush1.msra.mxu0 0.0
    %3225 = vmatprep.subr.mxu0 0.0
    %3226 = vmatpush1.msra.mxu0 0.0
    %3227 = vmatprep.subr.mxu0 0.0
    %3228 = vmatpush1.msra.mxu0 0.0
    %3229 = vmatprep.subr.mxu0 0.0
    %3230 = vmatpush1.msra.mxu0 0.0
    %3231 = vmatprep.subr.mxu0 0.0
    %3232 = vmatpush1.msra.mxu0 0.0
    %3233 = vmatprep.subr.mxu0 0.0
    %3234 = vmatpush1.msra.mxu0 0.0
    %3235 = vmatprep.subr.mxu0 0.0
    %3236 = vmatpush1.msra.mxu0 0.0
    %3237 = vmatprep.subr.mxu0 0.0
    %3238 = vmatpush1.msra.mxu0 0.0
    %3239 = vmatprep.mubr.f32.mxu0 0.0
    %3240 = vmatmul.mubr.f32.gmra.mrb[0].mxu0 %v3056
    %v3241 = vpop.f32.mrb[0].mxu0
    %v3242 = vadd.f32 0.0, %v3241
    %v3243 = vpop.f32.mrb[0].mxu0
    %3244 = vmatprep.mubr.f32.mxu0 0.0
    %3245 = vmatmul.mubr.f32.gmra.mrb[0].mxu0 %v3059
    %v3246 = vpop.f32.mrb[0].mxu0
    %v3247 = vadd.f32 0.0, %v3246
    %v3248 = vpop.f32.mrb[0].mxu0
    %3249 = vmatprep.mubr.f32.mxu0 0.0
    %3250 = vmatmul.mubr.f32.gmra.mrb[0].mxu0 %v3062
    %v3251 = vpop.f32.mrb[0].mxu0
    %v3252 = vadd.f32 0.0, %v3251
    %v3253 = vpop.f32.mrb[0].mxu0
    %3254 = vmatprep.mubr.f32.mxu0 0.0
    %3255 = vmatmul.mubr.f32.gmra.mrb[0].mxu0 %v3065
    %v3256 = vpop.f32.mrb[0].mxu0
    %v3257 = vadd.f32 0.0, %v3256
    %v3258 = vpop.f32.mrb[0].mxu0
    %3259 = vmatprep.mubr.f32.mxu0 0.0
    %3260 = vmatmul.mubr.f32.gmra.mrb[0].mxu0 %v3068
    %v3261 = vpop.f32.mrb[0].mxu0
    %v3262 = vadd.f32 0.0, %v3261
    %v3263 = vpop.f32.mrb[0].mxu0
    %3264 = vmatprep.mubr.f32.mxu0 0.0
    %3265 = vmatmul.mubr.f32.gmra.mrb[0].mxu0 %v3071
    %v3266 = vpop.f32.mrb[0].mxu0
    %v3267 = vadd.f32 0.0, %v3266
    %v3268 = vpop.f32.mrb[0].mxu0
    %3269 = vmatprep.mubr.f32.mxu0 0.0
    %3270 = vmatmul.mubr.f32.gmra.mrb[0].mxu0 %v3074
    %v3271 = vpop.f32.mrb[0].mxu0
    %v3272 = vadd.f32 0.0, %v3271
    %v3273 = vpop.f32.mrb[0].mxu0
    %3274 = vmatprep.mubr.f32.mxu0 0.0
    %3275 = vmatmul.mubr.f32.gmra.mrb[0].mxu0 %v3077
    %v3276 = vpop.f32.mrb[0].mxu0
    %v3277 = vadd.f32 0.0, %v3276
    %v3278 = vpop.f32.mrb[0].mxu0
    %3279 = vmatprep.mubr.f32.mxu0 0.0
    %3280 = vmatmul.mubr.f32.gmra.mrb[0].mxu0 %v3080
    %v3281 = vpop.f32.mrb[0].mxu0
    %v3282 = vadd.f32 0.0, %v3281
    %v3283 = vpop.f32.mrb[0].mxu0
    %3284 = vmatprep.mubr.f32.mxu0 0.0
    %3285 = vmatmul.mubr.f32.gmra.mrb[0].mxu0 %v3083
    %v3286 = vpop.f32.mrb[0].mxu0
    %v3287 = vadd.f32 0.0, %v3286
    %v3288 = vpop.f32.mrb[0].mxu0
    %3289 = vmatprep.mubr.f32.mxu0 0.0
    %3290 = vmatmul.mubr.f32.gmra.mrb[0].mxu0 %v3086
    %v3291 = vpop.f32.mrb[0].mxu0
    %v3292 = vadd.f32 0.0, %v3291
    %v3293 = vpop.f32.mrb[0].mxu0
    %3294 = vmatprep.mubr.f32.mxu0 0.0
    %3295 = vmatmul.mubr.f32.gmra.mrb[0].mxu0 %v3089
    %v3296 = vpop.f32.mrb[0].mxu0
    %v3297 = vadd.f32 0.0, %v3296
    %v3298 = vpop.f32.mrb[0].mxu0
    %3299 = vmatprep.mubr.f32.mxu0 0.0
    %3300 = vmatmul.mubr.f32.gmra.mrb[0].mxu0 %v3092
    %v3301 = vpop.f32.mrb[0].mxu0
    %v3302 = vadd.f32 0.0, %v3301
    %v3303 = vpop.f32.mrb[0].mxu0
    %3304 = vmatprep.mubr.f32.mxu0 0.0
    %3305 = vmatmul.mubr.f32.gmra.mrb[0].mxu0 %v3095
    %v3306 = vpop.f32.mrb[0].mxu0
    %v3307 = vadd.f32 0.0, %v3306
    %v3308 = vpop.f32.mrb[0].mxu0
    %3309 = vmatprep.mubr.f32.mxu0 0.0
    %3310 = vmatmul.mubr.f32.gmra.mrb[0].mxu0 %v3098
    %v3311 = vpop.f32.mrb[0].mxu0
    %v3312 = vadd.f32 0.0, %v3311
    %v3313 = vpop.f32.mrb[0].mxu0
    %3314 = vmatprep.mubr.f32.mxu0 0.0
    %3315 = vmatmul.mubr.f32.gmra.mrb[0].mxu0 %v3101
    %v3316 = vpop.f32.mrb[0].mxu0
    %v3317 = vadd.f32 0.0, %v3316
    %v3318 = vpop.f32.mrb[0].mxu0
    %3319 = vmatprep.mubr.f32.mxu0 0.0
    %3320 = vmatmul.mubr.f32.gmra.mrb[0].mxu0 %v3104
    %v3321 = vpop.f32.mrb[0].mxu0
    %v3322 = vadd.f32 0.0, %v3321
    %v3323 = vpop.f32.mrb[0].mxu0
    %3324 = vmatprep.mubr.f32.mxu0 0.0
    %3325 = vmatmul.mubr.f32.gmra.mrb[0].mxu0 %v3107
    %v3326 = vpop.f32.mrb[0].mxu0
    %v3327 = vadd.f32 0.0, %v3326
    %v3328 = vpop.f32.mrb[0].mxu0
    %3329 = vmatprep.mubr.f32.mxu0 0.0
    %3330 = vmatmul.mubr.f32.gmra.mrb[0].mxu0 %v3110
    %v3331 = vpop.f32.mrb[0].mxu0
    %v3332 = vadd.f32 0.0, %v3331
    %v3333 = vpop.f32.mrb[0].mxu0
    %3334 = vmatprep.mubr.f32.mxu0 0.0
    %3335 = vmatmul.mubr.f32.gmra.mrb[0].mxu0 %v3113
    %v3336 = vpop.f32.mrb[0].mxu0
    %v3337 = vadd.f32 0.0, %v3336
    %v3338 = vpop.f32.mrb[0].mxu0
    %3339 = vmatprep.mubr.f32.mxu0 0.0
    %3340 = vmatmul.mubr.f32.gmra.mrb[0].mxu0 %v3116
    %v3341 = vpop.f32.mrb[0].mxu0
    %v3342 = vadd.f32 0.0, %v3341
    %v3343 = vpop.f32.mrb[0].mxu0
    %3344 = vmatprep.mubr.f32.mxu0 0.0
    %3345 = vmatmul.mubr.f32.gmra.mrb[0].mxu0 %v3119
    %v3346 = vpop.f32.mrb[0].mxu0
    %v3347 = vadd.f32 0.0, %v3346
    %v3348 = vpop.f32.mrb[0].mxu0
    %3349 = vmatprep.mubr.f32.mxu0 0.0
    %3350 = vmatmul.mubr.f32.gmra.mrb[0].mxu0 %v3122
    %v3351 = vpop.f32.mrb[0].mxu0
    %v3352 = vadd.f32 0.0, %v3351
    %v3353 = vpop.f32.mrb[0].mxu0
    %3354 = vmatprep.mubr.f32.mxu0 0.0
    %3355 = vmatmul.mubr.f32.gmra.mrb[0].mxu0 %v3125
    %v3356 = vpop.f32.mrb[0].mxu0
    %v3357 = vadd.f32 0.0, %v3356
    %v3358 = vpop.f32.mrb[0].mxu0
    %3359 = vmatprep.mubr.f32.mxu0 0.0
    %3360 = vmatmul.mubr.f32.gmra.mrb[0].mxu0 %v3128
    %v3361 = vpop.f32.mrb[0].mxu0
    %v3362 = vadd.f32 0.0, %v3361
    %v3363 = vpop.f32.mrb[0].mxu0
    %3364 = vmatprep.mubr.f32.mxu0 0.0
    %3365 = vmatmul.mubr.f32.gmra.mrb[0].mxu0 %v3131
    %v3366 = vpop.f32.mrb[0].mxu0
    %v3367 = vadd.f32 0.0, %v3366
    %v3368 = vpop.f32.mrb[0].mxu0
    %3369 = vmatprep.mubr.f32.mxu0 0.0
    %3370 = vmatmul.mubr.f32.gmra.mrb[0].mxu0 %v3134
    %v3371 = vpop.f32.mrb[0].mxu0
    %v3372 = vadd.f32 0.0, %v3371
    %v3373 = vpop.f32.mrb[0].mxu0
    %3374 = vmatprep.mubr.f32.mxu0 0.0
    %3375 = vmatmul.mubr.f32.gmra.mrb[0].mxu0 %v3137
    %v3376 = vpop.f32.mrb[0].mxu0
    %v3377 = vadd.f32 0.0, %v3376
    %v3378 = vpop.f32.mrb[0].mxu0
    %3379 = vmatprep.mubr.f32.mxu0 0.0
    %3380 = vmatmul.mubr.f32.gmra.mrb[0].mxu0 %v3140
    %v3381 = vpop.f32.mrb[0].mxu0
    %v3382 = vadd.f32 0.0, %v3381
    %v3383 = vpop.f32.mrb[0].mxu0
    %3384 = vmatprep.mubr.f32.mxu0 0.0
    %3385 = vmatmul.mubr.f32.gmra.mrb[0].mxu0 %v3143
    %v3386 = vpop.f32.mrb[0].mxu0
    %v3387 = vadd.f32 0.0, %v3386
    %v3388 = vpop.f32.mrb[0].mxu0
    %3389 = vmatprep.mubr.f32.mxu0 0.0
    %3390 = vmatmul.mubr.f32.gmra.mrb[0].mxu0 %v3146
    %v3391 = vpop.f32.mrb[0].mxu0
    %v3392 = vadd.f32 0.0, %v3391
    %v3393 = vpop.f32.mrb[0].mxu0
    %3394 = vmatprep.mubr.f32.mxu0 0.0
    %3395 = vmatmul.mubr.f32.gmra.mrb[0].mxu0 %v3149
    %v3396 = vpop.f32.mrb[0].mxu0
    %v3397 = vadd.f32 0.0, %v3396
    %v3398 = vpop.f32.mrb[0].mxu0
    %3399 = vmatprep.mubr.f32.mxu0 0.0
    %3400 = vmatmul.mubr.f32.gmra.mrb[0].mxu0 %v3152
    %v3401 = vpop.f32.mrb[0].mxu0
    %v3402 = vadd.f32 0.0, %v3401
    %v3403 = vpop.f32.mrb[0].mxu0
    %3404 = vmatprep.mubr.f32.mxu0 0.0
    %3405 = vmatmul.mubr.f32.gmra.mrb[0].mxu0 %v3155
    %v3406 = vpop.f32.mrb[0].mxu0
    %v3407 = vadd.f32 0.0, %v3406
    %v3408 = vpop.f32.mrb[0].mxu0
    %3409 = vmatprep.mubr.f32.mxu0 0.0
    %3410 = vmatmul.mubr.f32.gmra.mrb[0].mxu0 %v3158
    %v3411 = vpop.f32.mrb[0].mxu0
    %v3412 = vadd.f32 0.0, %v3411
    %v3413 = vpop.f32.mrb[0].mxu0
    %3414 = vmatprep.mubr.f32.mxu0 0.0
    %3415 = vmatmul.mubr.f32.gmra.mrb[0].mxu0 %v3161
    %v3416 = vpop.f32.mrb[0].mxu0
    %v3417 = vadd.f32 0.0, %v3416
    %v3418 = vpop.f32.mrb[0].mxu0
    %3419 = vmatprep.mubr.f32.mxu0 0.0
    %3420 = vmatmul.mubr.f32.gmra.mrb[0].mxu0 %v3164
    %v3421 = vpop.f32.mrb[0].mxu0
    %v3422 = vadd.f32 0.0, %v3421
    %v3423 = vpop.f32.mrb[0].mxu0
    %3424 = vmatprep.mubr.f32.mxu0 0.0
    %3425 = vmatmul.mubr.f32.gmra.mrb[0].mxu0 %v3167
    %v3426 = vpop.f32.mrb[0].mxu0
    %v3427 = vadd.f32 0.0, %v3426
    %v3428 = vpop.f32.mrb[0].mxu0
    %3429 = vmatprep.mubr.f32.mxu0 0.0
    %3430 = vmatmul.mubr.f32.gmra.mrb[0].mxu0 %v3170
    %v3431 = vpop.f32.mrb[0].mxu0
    %v3432 = vadd.f32 0.0, %v3431
    %v3433 = vpop.f32.mrb[0].mxu0
    %3434 = vmatprep.mubr.f32.mxu0 0.0
    %3435 = vmatmul.mubr.f32.gmra.mrb[0].mxu0 %v3173
    %v3436 = vpop.f32.mrb[0].mxu0
    %v3437 = vadd.f32 0.0, %v3436
    %v3438 = vpop.f32.mrb[0].mxu0
    %3439 = vdwg.mxu0
    %v3440 = vadd.f32 %v2970, %v3242
    %v3441 = vadd.f32 %v2971, %v3247
    %v3442 = vadd.f32 %v2972, %v3252
    %v3443 = vadd.f32 %v2973, %v3257
    %v3444 = vadd.f32 %v2974, %v3262
    %v3445 = vadd.f32 %v2975, %v3267
    %v3446 = vadd.f32 %v2976, %v3272
    %v3447 = vadd.f32 %v2977, %v3277
    %v3448 = vadd.f32 %v2978, %v3282
    %v3449 = vadd.f32 %v2979, %v3287
    %v3450 = vadd.f32 %v2980, %v3292
    %v3451 = vadd.f32 %v2981, %v3297
    %v3452 = vadd.f32 %v2982, %v3302
    %v3453 = vadd.f32 %v2983, %v3307
    %v3454 = vadd.f32 %v2984, %v3312
    %v3455 = vadd.f32 %v2985, %v3317
    %v3456 = vadd.f32 %v2986, %v3322
    %v3457 = vadd.f32 %v2987, %v3327
    %v3458 = vadd.f32 %v2988, %v3332
    %v3459 = vadd.f32 %v2989, %v3337
    %v3460 = vadd.f32 %v2990, %v3342
    %v3461 = vadd.f32 %v2991, %v3347
    %v3462 = vadd.f32 %v2992, %v3352
    %v3463 = vadd.f32 %v2993, %v3357
    %v3464 = vadd.f32 %v2994, %v3362
    %v3465 = vadd.f32 %v2995, %v3367
    %v3466 = vadd.f32 %v2996, %v3372
    %v3467 = vadd.f32 %v2997, %v3377
    %v3468 = vadd.f32 %v2998, %v3382
    %v3469 = vadd.f32 %v2999, %v3387
    %v3470 = vadd.f32 %v3000, %v3392
    %v3471 = vadd.f32 %v3001, %v3397
    %v3472 = vadd.f32 %v3002, %v3402
    %v3473 = vadd.f32 %v3003, %v3407
    %v3474 = vadd.f32 %v3004, %v3412
    %v3475 = vadd.f32 %v3005, %v3417
    %v3476 = vadd.f32 %v3006, %v3422
    %v3477 = vadd.f32 %v3007, %v3427
    %v3478 = vadd.f32 %v3008, %v3432
    %v3479 = vadd.f32 %v3009, %v3437
    %s3480 = scalar_lea.vmem %s0, 48
    %v3481 = vld [vmem:[%s3480] sm:$0xff]
    %v3482 = vld [vmem:[%s3480 + $0x8] sm:$0xff]
    %v3483 = vld [vmem:[%s3480 + $0x18] sm:$0xff]
    %v3484 = vld [vmem:[%s3480 + $0x20] sm:$0xff]
    %v3485 = vld [vmem:[%s3480 + $0x30] sm:$0xff]
    %v3486 = vld [vmem:[%s3480 + $0x38] sm:$0xff]
    %v3487 = vld [vmem:[%s3480 + $0x48] sm:$0xff]
    %v3488 = vld [vmem:[%s3480 + $0x50] sm:$0xff]
    %v3489 = vld [vmem:[%s3480 + $0x60] sm:$0xff]
    %v3490 = vld [vmem:[%s3480 + $0x68] sm:$0xff]
    %v3491 = vld [vmem:[%s3480 + $0x78] sm:$0xff]
    %v3492 = vld [vmem:[%s3480 + $0x80] sm:$0xff]
    %v3493 = vld [vmem:[%s3480 + $0x90] sm:$0xff]
    %v3494 = vld [vmem:[%s3480 + $0x98] sm:$0xff]
    %v3495 = vld [vmem:[%s3480 + $0xa8] sm:$0xff]
    %v3496 = vld [vmem:[%s3480 + $0xb0] sm:$0xff]
    %v3497 = vld [vmem:[%s3480 + $0xc0] sm:$0xff]
    %v3498 = vld [vmem:[%s3480 + $0xc8] sm:$0xff]
    %v3499 = vld [vmem:[%s3480 + $0xd8] sm:$0xff]
    %v3500 = vld [vmem:[%s3480 + $0xe0] sm:$0xff]
    %v3501 = vld [vmem:[%s3480 + $0x120] sm:$0xff]
    %v3502 = vld [vmem:[%s3480 + $0x128] sm:$0xff]
    %v3503 = vld [vmem:[%s3480 + $0x138] sm:$0xff]
    %v3504 = vld [vmem:[%s3480 + $0x140] sm:$0xff]
    %v3505 = vld [vmem:[%s3480 + $0x150] sm:$0xff]
    %v3506 = vld [vmem:[%s3480 + $0x158] sm:$0xff]
    %v3507 = vld [vmem:[%s3480 + $0x168] sm:$0xff]
    %v3508 = vld [vmem:[%s3480 + $0x170] sm:$0xff]
    %v3509 = vld [vmem:[%s3480 + $0x180] sm:$0xff]
    %v3510 = vld [vmem:[%s3480 + $0x188] sm:$0xff]
    %v3511 = vld [vmem:[%s3480 + $0x198] sm:$0xff]
    %v3512 = vld [vmem:[%s3480 + $0x1a0] sm:$0xff]
    %v3513 = vld [vmem:[%s3480 + $0x1b0] sm:$0xff]
    %v3514 = vld [vmem:[%s3480 + $0x1b8] sm:$0xff]
    %v3515 = vld [vmem:[%s3480 + $0x1c8] sm:$0xff]
    %v3516 = vld [vmem:[%s3480 + $0x1d0] sm:$0xff]
    %v3517 = vld [vmem:[%s3480 + $0x1e0] sm:$0xff]
    %v3518 = vld [vmem:[%s3480 + $0x1e8] sm:$0xff]
    %v3519 = vld [vmem:[%s3480 + $0x1f8] sm:$0xff]
    %v3520 = vld [vmem:[%s3480 + $0x200] sm:$0xff]
    %s3521 = scalar_lea.vmem %s1, 192
    %v3522 = vld [vmem:[%s3521] sm:$0xff]
    %v3523 = vld [vmem:[%s3521 + $0x8] sm:$0xff]
    %v3524 = vld [vmem:[%s3521 + $0x10] sm:$0xff]
    %v3525 = vld [vmem:[%s3521 + $0x18] sm:$0xff]
    %v3527 = vsel %vm828, %v3481, 0
    %v3530 = vsel %vm828, %v3482, 0
    %v3533 = vsel %vm828, %v3483, 0
    %v3536 = vsel %vm828, %v3484, 0
    %v3539 = vsel %vm828, %v3485, 0
    %v3542 = vsel %vm828, %v3486, 0
    %v3545 = vsel %vm828, %v3487, 0
    %v3548 = vsel %vm828, %v3488, 0
    %v3551 = vsel %vm828, %v3489, 0
    %v3554 = vsel %vm828, %v3490, 0
    %v3557 = vsel %vm828, %v3491, 0
    %v3560 = vsel %vm828, %v3492, 0
    %v3563 = vsel %vm828, %v3493, 0
    %v3566 = vsel %vm828, %v3494, 0
    %v3569 = vsel %vm828, %v3495, 0
    %v3572 = vsel %vm828, %v3496, 0
    %v3575 = vsel %vm828, %v3497, 0
    %v3578 = vsel %vm828, %v3498, 0
    %v3581 = vsel %vm828, %v3499, 0
    %v3584 = vsel %vm828, %v3500, 0
    %v3587 = vsel %vm828, %v3501, 0
    %v3590 = vsel %vm828, %v3502, 0
    %v3593 = vsel %vm828, %v3503, 0
    %v3596 = vsel %vm828, %v3504, 0
    %v3599 = vsel %vm828, %v3505, 0
    %v3602 = vsel %vm828, %v3506, 0
    %v3605 = vsel %vm828, %v3507, 0
    %v3608 = vsel %vm828, %v3508, 0
    %v3611 = vsel %vm828, %v3509, 0
    %v3614 = vsel %vm828, %v3510, 0
    %v3617 = vsel %vm828, %v3511, 0
    %v3620 = vsel %vm828, %v3512, 0
    %v3623 = vsel %vm828, %v3513, 0
    %v3626 = vsel %vm828, %v3514, 0
    %v3629 = vsel %vm828, %v3515, 0
    %v3632 = vsel %vm828, %v3516, 0
    %v3635 = vsel %vm828, %v3517, 0
    %v3638 = vsel %vm828, %v3518, 0
    %v3641 = vsel %vm828, %v3519, 0
    %v3644 = vsel %vm828, %v3520, 0
    %3646 = vmatprep.subr.mxu0 0.0
    %3647 = vmatpush1.msra.mxu0 %v3522
    %3648 = vmatprep.subr.mxu0 0.0
    %3649 = vmatpush1.msra.mxu0 %v3523
    %3650 = vmatprep.subr.mxu0 0.0
    %3651 = vmatpush1.msra.mxu0 %v3524
    %3652 = vmatprep.subr.mxu0 0.0
    %3653 = vmatpush1.msra.mxu0 %v3525
    %3654 = vmatprep.subr.mxu0 0.0
    %3655 = vmatpush1.msra.mxu0 0.0
    %3656 = vmatprep.subr.mxu0 0.0
    %3657 = vmatpush1.msra.mxu0 0.0
    %3658 = vmatprep.subr.mxu0 0.0
    %3659 = vmatpush1.msra.mxu0 0.0
    %3660 = vmatprep.subr.mxu0 0.0
    %3661 = vmatpush1.msra.mxu0 0.0
    %3662 = vmatprep.subr.mxu0 0.0
    %3663 = vmatpush1.msra.mxu0 0.0
    %3664 = vmatprep.subr.mxu0 0.0
    %3665 = vmatpush1.msra.mxu0 0.0
    %3666 = vmatprep.subr.mxu0 0.0
    %3667 = vmatpush1.msra.mxu0 0.0
    %3668 = vmatprep.subr.mxu0 0.0
    %3669 = vmatpush1.msra.mxu0 0.0
    %3670 = vmatprep.subr.mxu0 0.0
    %3671 = vmatpush1.msra.mxu0 0.0
    %3672 = vmatprep.subr.mxu0 0.0
    %3673 = vmatpush1.msra.mxu0 0.0
    %3674 = vmatprep.subr.mxu0 0.0
    %3675 = vmatpush1.msra.mxu0 0.0
    %3676 = vmatprep.subr.mxu0 0.0
    %3677 = vmatpush1.msra.mxu0 0.0
    %3678 = vmatprep.subr.mxu0 0.0
    %3679 = vmatpush1.msra.mxu0 0.0
    %3680 = vmatprep.subr.mxu0 0.0
    %3681 = vmatpush1.msra.mxu0 0.0
    %3682 = vmatprep.subr.mxu0 0.0
    %3683 = vmatpush1.msra.mxu0 0.0
    %3684 = vmatprep.subr.mxu0 0.0
    %3685 = vmatpush1.msra.mxu0 0.0
    %3686 = vmatprep.subr.mxu0 0.0
    %3687 = vmatpush1.msra.mxu0 0.0
    %3688 = vmatprep.subr.mxu0 0.0
    %3689 = vmatpush1.msra.mxu0 0.0
    %3690 = vmatprep.subr.mxu0 0.0
    %3691 = vmatpush1.msra.mxu0 0.0
    %3692 = vmatprep.subr.mxu0 0.0
    %3693 = vmatpush1.msra.mxu0 0.0
    %3694 = vmatprep.subr.mxu0 0.0
    %3695 = vmatpush1.msra.mxu0 0.0
    %3696 = vmatprep.subr.mxu0 0.0
    %3697 = vmatpush1.msra.mxu0 0.0
    %3698 = vmatprep.subr.mxu0 0.0
    %3699 = vmatpush1.msra.mxu0 0.0
    %3700 = vmatprep.subr.mxu0 0.0
    %3701 = vmatpush1.msra.mxu0 0.0
    %3702 = vmatprep.subr.mxu0 0.0
    %3703 = vmatpush1.msra.mxu0 0.0
    %3704 = vmatprep.subr.mxu0 0.0
    %3705 = vmatpush1.msra.mxu0 0.0
    %3706 = vmatprep.subr.mxu0 0.0
    %3707 = vmatpush1.msra.mxu0 0.0
    %3708 = vmatprep.subr.mxu0 0.0
    %3709 = vmatpush1.msra.mxu0 0.0
    %3710 = vmatprep.mubr.f32.mxu0 0.0
    %3711 = vmatmul.mubr.f32.gmra.mrb[0].mxu0 %v3527
    %v3712 = vpop.f32.mrb[0].mxu0
    %v3713 = vadd.f32 0.0, %v3712
    %v3714 = vpop.f32.mrb[0].mxu0
    %3715 = vmatprep.mubr.f32.mxu0 0.0
    %3716 = vmatmul.mubr.f32.gmra.mrb[0].mxu0 %v3530
    %v3717 = vpop.f32.mrb[0].mxu0
    %v3718 = vadd.f32 0.0, %v3717
    %v3719 = vpop.f32.mrb[0].mxu0
    %3720 = vmatprep.mubr.f32.mxu0 0.0
    %3721 = vmatmul.mubr.f32.gmra.mrb[0].mxu0 %v3533
    %v3722 = vpop.f32.mrb[0].mxu0
    %v3723 = vadd.f32 0.0, %v3722
    %v3724 = vpop.f32.mrb[0].mxu0
    %3725 = vmatprep.mubr.f32.mxu0 0.0
    %3726 = vmatmul.mubr.f32.gmra.mrb[0].mxu0 %v3536
    %v3727 = vpop.f32.mrb[0].mxu0
    %v3728 = vadd.f32 0.0, %v3727
    %v3729 = vpop.f32.mrb[0].mxu0
    %3730 = vmatprep.mubr.f32.mxu0 0.0
    %3731 = vmatmul.mubr.f32.gmra.mrb[0].mxu0 %v3539
    %v3732 = vpop.f32.mrb[0].mxu0
    %v3733 = vadd.f32 0.0, %v3732
    %v3734 = vpop.f32.mrb[0].mxu0
    %3735 = vmatprep.mubr.f32.mxu0 0.0
    %3736 = vmatmul.mubr.f32.gmra.mrb[0].mxu0 %v3542
    %v3737 = vpop.f32.mrb[0].mxu0
    %v3738 = vadd.f32 0.0, %v3737
    %v3739 = vpop.f32.mrb[0].mxu0
    %3740 = vmatprep.mubr.f32.mxu0 0.0
    %3741 = vmatmul.mubr.f32.gmra.mrb[0].mxu0 %v3545
    %v3742 = vpop.f32.mrb[0].mxu0
    %v3743 = vadd.f32 0.0, %v3742
    %v3744 = vpop.f32.mrb[0].mxu0
    %3745 = vmatprep.mubr.f32.mxu0 0.0
    %3746 = vmatmul.mubr.f32.gmra.mrb[0].mxu0 %v3548
    %v3747 = vpop.f32.mrb[0].mxu0
    %v3748 = vadd.f32 0.0, %v3747
    %v3749 = vpop.f32.mrb[0].mxu0
    %3750 = vmatprep.mubr.f32.mxu0 0.0
    %3751 = vmatmul.mubr.f32.gmra.mrb[0].mxu0 %v3551
    %v3752 = vpop.f32.mrb[0].mxu0
    %v3753 = vadd.f32 0.0, %v3752
    %v3754 = vpop.f32.mrb[0].mxu0
    %3755 = vmatprep.mubr.f32.mxu0 0.0
    %3756 = vmatmul.mubr.f32.gmra.mrb[0].mxu0 %v3554
    %v3757 = vpop.f32.mrb[0].mxu0
    %v3758 = vadd.f32 0.0, %v3757
    %v3759 = vpop.f32.mrb[0].mxu0
    %3760 = vmatprep.mubr.f32.mxu0 0.0
    %3761 = vmatmul.mubr.f32.gmra.mrb[0].mxu0 %v3557
    %v3762 = vpop.f32.mrb[0].mxu0
    %v3763 = vadd.f32 0.0, %v3762
    %v3764 = vpop.f32.mrb[0].mxu0
    %3765 = vmatprep.mubr.f32.mxu0 0.0
    %3766 = vmatmul.mubr.f32.gmra.mrb[0].mxu0 %v3560
    %v3767 = vpop.f32.mrb[0].mxu0
    %v3768 = vadd.f32 0.0, %v3767
    %v3769 = vpop.f32.mrb[0].mxu0
    %3770 = vmatprep.mubr.f32.mxu0 0.0
    %3771 = vmatmul.mubr.f32.gmra.mrb[0].mxu0 %v3563
    %v3772 = vpop.f32.mrb[0].mxu0
    %v3773 = vadd.f32 0.0, %v3772
    %v3774 = vpop.f32.mrb[0].mxu0
    %3775 = vmatprep.mubr.f32.mxu0 0.0
    %3776 = vmatmul.mubr.f32.gmra.mrb[0].mxu0 %v3566
    %v3777 = vpop.f32.mrb[0].mxu0
    %v3778 = vadd.f32 0.0, %v3777
    %v3779 = vpop.f32.mrb[0].mxu0
    %3780 = vmatprep.mubr.f32.mxu0 0.0
    %3781 = vmatmul.mubr.f32.gmra.mrb[0].mxu0 %v3569
    %v3782 = vpop.f32.mrb[0].mxu0
    %v3783 = vadd.f32 0.0, %v3782
    %v3784 = vpop.f32.mrb[0].mxu0
    %3785 = vmatprep.mubr.f32.mxu0 0.0
    %3786 = vmatmul.mubr.f32.gmra.mrb[0].mxu0 %v3572
    %v3787 = vpop.f32.mrb[0].mxu0
    %v3788 = vadd.f32 0.0, %v3787
    %v3789 = vpop.f32.mrb[0].mxu0
    %3790 = vmatprep.mubr.f32.mxu0 0.0
    %3791 = vmatmul.mubr.f32.gmra.mrb[0].mxu0 %v3575
    %v3792 = vpop.f32.mrb[0].mxu0
    %v3793 = vadd.f32 0.0, %v3792
    %v3794 = vpop.f32.mrb[0].mxu0
    %3795 = vmatprep.mubr.f32.mxu0 0.0
    %3796 = vmatmul.mubr.f32.gmra.mrb[0].mxu0 %v3578
    %v3797 = vpop.f32.mrb[0].mxu0
    %v3798 = vadd.f32 0.0, %v3797
    %v3799 = vpop.f32.mrb[0].mxu0
    %3800 = vmatprep.mubr.f32.mxu0 0.0
    %3801 = vmatmul.mubr.f32.gmra.mrb[0].mxu0 %v3581
    %v3802 = vpop.f32.mrb[0].mxu0
    %v3803 = vadd.f32 0.0, %v3802
    %v3804 = vpop.f32.mrb[0].mxu0
    %3805 = vmatprep.mubr.f32.mxu0 0.0
    %3806 = vmatmul.mubr.f32.gmra.mrb[0].mxu0 %v3584
    %v3807 = vpop.f32.mrb[0].mxu0
    %v3808 = vadd.f32 0.0, %v3807
    %v3809 = vpop.f32.mrb[0].mxu0
    %3810 = vmatprep.mubr.f32.mxu0 0.0
    %3811 = vmatmul.mubr.f32.gmra.mrb[0].mxu0 %v3587
    %v3812 = vpop.f32.mrb[0].mxu0
    %v3813 = vadd.f32 0.0, %v3812
    %v3814 = vpop.f32.mrb[0].mxu0
    %3815 = vmatprep.mubr.f32.mxu0 0.0
    %3816 = vmatmul.mubr.f32.gmra.mrb[0].mxu0 %v3590
    %v3817 = vpop.f32.mrb[0].mxu0
    %v3818 = vadd.f32 0.0, %v3817
    %v3819 = vpop.f32.mrb[0].mxu0
    %3820 = vmatprep.mubr.f32.mxu0 0.0
    %3821 = vmatmul.mubr.f32.gmra.mrb[0].mxu0 %v3593
    %v3822 = vpop.f32.mrb[0].mxu0
    %v3823 = vadd.f32 0.0, %v3822
    %v3824 = vpop.f32.mrb[0].mxu0
    %3825 = vmatprep.mubr.f32.mxu0 0.0
    %3826 = vmatmul.mubr.f32.gmra.mrb[0].mxu0 %v3596
    %v3827 = vpop.f32.mrb[0].mxu0
    %v3828 = vadd.f32 0.0, %v3827
    %v3829 = vpop.f32.mrb[0].mxu0
    %3830 = vmatprep.mubr.f32.mxu0 0.0
    %3831 = vmatmul.mubr.f32.gmra.mrb[0].mxu0 %v3599
    %v3832 = vpop.f32.mrb[0].mxu0
    %v3833 = vadd.f32 0.0, %v3832
    %v3834 = vpop.f32.mrb[0].mxu0
    %3835 = vmatprep.mubr.f32.mxu0 0.0
    %3836 = vmatmul.mubr.f32.gmra.mrb[0].mxu0 %v3602
    %v3837 = vpop.f32.mrb[0].mxu0
    %v3838 = vadd.f32 0.0, %v3837
    %v3839 = vpop.f32.mrb[0].mxu0
    %3840 = vmatprep.mubr.f32.mxu0 0.0
    %3841 = vmatmul.mubr.f32.gmra.mrb[0].mxu0 %v3605
    %v3842 = vpop.f32.mrb[0].mxu0
    %v3843 = vadd.f32 0.0, %v3842
    %v3844 = vpop.f32.mrb[0].mxu0
    %3845 = vmatprep.mubr.f32.mxu0 0.0
    %3846 = vmatmul.mubr.f32.gmra.mrb[0].mxu0 %v3608
    %v3847 = vpop.f32.mrb[0].mxu0
    %v3848 = vadd.f32 0.0, %v3847
    %v3849 = vpop.f32.mrb[0].mxu0
    %3850 = vmatprep.mubr.f32.mxu0 0.0
    %3851 = vmatmul.mubr.f32.gmra.mrb[0].mxu0 %v3611
    %v3852 = vpop.f32.mrb[0].mxu0
    %v3853 = vadd.f32 0.0, %v3852
    %v3854 = vpop.f32.mrb[0].mxu0
    %3855 = vmatprep.mubr.f32.mxu0 0.0
    %3856 = vmatmul.mubr.f32.gmra.mrb[0].mxu0 %v3614
    %v3857 = vpop.f32.mrb[0].mxu0
    %v3858 = vadd.f32 0.0, %v3857
    %v3859 = vpop.f32.mrb[0].mxu0
    %3860 = vmatprep.mubr.f32.mxu0 0.0
    %3861 = vmatmul.mubr.f32.gmra.mrb[0].mxu0 %v3617
    %v3862 = vpop.f32.mrb[0].mxu0
    %v3863 = vadd.f32 0.0, %v3862
    %v3864 = vpop.f32.mrb[0].mxu0
    %3865 = vmatprep.mubr.f32.mxu0 0.0
    %3866 = vmatmul.mubr.f32.gmra.mrb[0].mxu0 %v3620
    %v3867 = vpop.f32.mrb[0].mxu0
    %v3868 = vadd.f32 0.0, %v3867
    %v3869 = vpop.f32.mrb[0].mxu0
    %3870 = vmatprep.mubr.f32.mxu0 0.0
    %3871 = vmatmul.mubr.f32.gmra.mrb[0].mxu0 %v3623
    %v3872 = vpop.f32.mrb[0].mxu0
    %v3873 = vadd.f32 0.0, %v3872
    %v3874 = vpop.f32.mrb[0].mxu0
    %3875 = vmatprep.mubr.f32.mxu0 0.0
    %3876 = vmatmul.mubr.f32.gmra.mrb[0].mxu0 %v3626
    %v3877 = vpop.f32.mrb[0].mxu0
    %v3878 = vadd.f32 0.0, %v3877
    %v3879 = vpop.f32.mrb[0].mxu0
    %3880 = vmatprep.mubr.f32.mxu0 0.0
    %3881 = vmatmul.mubr.f32.gmra.mrb[0].mxu0 %v3629
    %v3882 = vpop.f32.mrb[0].mxu0
    %v3883 = vadd.f32 0.0, %v3882
    %v3884 = vpop.f32.mrb[0].mxu0
    %3885 = vmatprep.mubr.f32.mxu0 0.0
    %3886 = vmatmul.mubr.f32.gmra.mrb[0].mxu0 %v3632
    %v3887 = vpop.f32.mrb[0].mxu0
    %v3888 = vadd.f32 0.0, %v3887
    %v3889 = vpop.f32.mrb[0].mxu0
    %3890 = vmatprep.mubr.f32.mxu0 0.0
    %3891 = vmatmul.mubr.f32.gmra.mrb[0].mxu0 %v3635
    %v3892 = vpop.f32.mrb[0].mxu0
    %v3893 = vadd.f32 0.0, %v3892
    %v3894 = vpop.f32.mrb[0].mxu0
    %3895 = vmatprep.mubr.f32.mxu0 0.0
    %3896 = vmatmul.mubr.f32.gmra.mrb[0].mxu0 %v3638
    %v3897 = vpop.f32.mrb[0].mxu0
    %v3898 = vadd.f32 0.0, %v3897
    %v3899 = vpop.f32.mrb[0].mxu0
    %3900 = vmatprep.mubr.f32.mxu0 0.0
    %3901 = vmatmul.mubr.f32.gmra.mrb[0].mxu0 %v3641
    %v3902 = vpop.f32.mrb[0].mxu0
    %v3903 = vadd.f32 0.0, %v3902
    %v3904 = vpop.f32.mrb[0].mxu0
    %3905 = vmatprep.mubr.f32.mxu0 0.0
    %3906 = vmatmul.mubr.f32.gmra.mrb[0].mxu0 %v3644
    %v3907 = vpop.f32.mrb[0].mxu0
    %v3908 = vadd.f32 0.0, %v3907
    %v3909 = vpop.f32.mrb[0].mxu0
    %3910 = vdwg.mxu0
    %v3911 = vadd.f32 %v3440, %v3713
    %v3912 = vadd.f32 %v3441, %v3718
    %v3913 = vadd.f32 %v3442, %v3723
    %v3914 = vadd.f32 %v3443, %v3728
    %v3915 = vadd.f32 %v3444, %v3733
    %v3916 = vadd.f32 %v3445, %v3738
    %v3917 = vadd.f32 %v3446, %v3743
    %v3918 = vadd.f32 %v3447, %v3748
    %v3919 = vadd.f32 %v3448, %v3753
    %v3920 = vadd.f32 %v3449, %v3758
    %v3921 = vadd.f32 %v3450, %v3763
    %v3922 = vadd.f32 %v3451, %v3768
    %v3923 = vadd.f32 %v3452, %v3773
    %v3924 = vadd.f32 %v3453, %v3778
    %v3925 = vadd.f32 %v3454, %v3783
    %v3926 = vadd.f32 %v3455, %v3788
    %v3927 = vadd.f32 %v3456, %v3793
    %v3928 = vadd.f32 %v3457, %v3798
    %v3929 = vadd.f32 %v3458, %v3803
    %v3930 = vadd.f32 %v3459, %v3808
    %v3931 = vadd.f32 %v3460, %v3813
    %v3932 = vadd.f32 %v3461, %v3818
    %v3933 = vadd.f32 %v3462, %v3823
    %v3934 = vadd.f32 %v3463, %v3828
    %v3935 = vadd.f32 %v3464, %v3833
    %v3936 = vadd.f32 %v3465, %v3838
    %v3937 = vadd.f32 %v3466, %v3843
    %v3938 = vadd.f32 %v3467, %v3848
    %v3939 = vadd.f32 %v3468, %v3853
    %v3940 = vadd.f32 %v3469, %v3858
    %v3941 = vadd.f32 %v3470, %v3863
    %v3942 = vadd.f32 %v3471, %v3868
    %v3943 = vadd.f32 %v3472, %v3873
    %v3944 = vadd.f32 %v3473, %v3878
    %v3945 = vadd.f32 %v3474, %v3883
    %v3946 = vadd.f32 %v3475, %v3888
    %v3947 = vadd.f32 %v3476, %v3893
    %v3948 = vadd.f32 %v3477, %v3898
    %v3949 = vadd.f32 %v3478, %v3903
    %v3950 = vadd.f32 %v3479, %v3908
    %v3951 = vld [vmem:[%s3480 + $0x1] sm:$0xff]
    %v3952 = vld [vmem:[%s3480 + $0x9] sm:$0xff]
    %v3953 = vld [vmem:[%s3480 + $0x19] sm:$0xff]
    %v3954 = vld [vmem:[%s3480 + $0x21] sm:$0xff]
    %v3955 = vld [vmem:[%s3480 + $0x31] sm:$0xff]
    %v3956 = vld [vmem:[%s3480 + $0x39] sm:$0xff]
    %v3957 = vld [vmem:[%s3480 + $0x49] sm:$0xff]
    %v3958 = vld [vmem:[%s3480 + $0x51] sm:$0xff]
    %v3959 = vld [vmem:[%s3480 + $0x61] sm:$0xff]
    %v3960 = vld [vmem:[%s3480 + $0x69] sm:$0xff]
    %v3961 = vld [vmem:[%s3480 + $0x79] sm:$0xff]
    %v3962 = vld [vmem:[%s3480 + $0x81] sm:$0xff]
    %v3963 = vld [vmem:[%s3480 + $0x91] sm:$0xff]
    %v3964 = vld [vmem:[%s3480 + $0x99] sm:$0xff]
    %v3965 = vld [vmem:[%s3480 + $0xa9] sm:$0xff]
    %v3966 = vld [vmem:[%s3480 + $0xb1] sm:$0xff]
    %v3967 = vld [vmem:[%s3480 + $0xc1] sm:$0xff]
    %v3968 = vld [vmem:[%s3480 + $0xc9] sm:$0xff]
    %v3969 = vld [vmem:[%s3480 + $0xd9] sm:$0xff]
    %v3970 = vld [vmem:[%s3480 + $0xe1] sm:$0xff]
    %v3971 = vld [vmem:[%s3480 + $0x121] sm:$0xff]
    %v3972 = vld [vmem:[%s3480 + $0x129] sm:$0xff]
    %v3973 = vld [vmem:[%s3480 + $0x139] sm:$0xff]
    %v3974 = vld [vmem:[%s3480 + $0x141] sm:$0xff]
    %v3975 = vld [vmem:[%s3480 + $0x151] sm:$0xff]
    %v3976 = vld [vmem:[%s3480 + $0x159] sm:$0xff]
    %v3977 = vld [vmem:[%s3480 + $0x169] sm:$0xff]
    %v3978 = vld [vmem:[%s3480 + $0x171] sm:$0xff]
    %v3979 = vld [vmem:[%s3480 + $0x181] sm:$0xff]
    %v3980 = vld [vmem:[%s3480 + $0x189] sm:$0xff]
    %v3981 = vld [vmem:[%s3480 + $0x199] sm:$0xff]
    %v3982 = vld [vmem:[%s3480 + $0x1a1] sm:$0xff]
    %v3983 = vld [vmem:[%s3480 + $0x1b1] sm:$0xff]
    %v3984 = vld [vmem:[%s3480 + $0x1b9] sm:$0xff]
    %v3985 = vld [vmem:[%s3480 + $0x1c9] sm:$0xff]
    %v3986 = vld [vmem:[%s3480 + $0x1d1] sm:$0xff]
    %v3987 = vld [vmem:[%s3480 + $0x1e1] sm:$0xff]
    %v3988 = vld [vmem:[%s3480 + $0x1e9] sm:$0xff]
    %v3989 = vld [vmem:[%s3480 + $0x1f9] sm:$0xff]
    %v3990 = vld [vmem:[%s3480 + $0x201] sm:$0xff]
    %s3991 = scalar_lea.vmem %s1, 224
    %v3992 = vld [vmem:[%s3991] sm:$0xff]
    %v3993 = vld [vmem:[%s3991 + $0x8] sm:$0xff]
    %v3994 = vld [vmem:[%s3991 + $0x10] sm:$0xff]
    %v3995 = vld [vmem:[%s3991 + $0x18] sm:$0xff]
    %v3997 = vsel %vm828, %v3951, 0
    %v4000 = vsel %vm828, %v3952, 0
    %v4003 = vsel %vm828, %v3953, 0
    %v4006 = vsel %vm828, %v3954, 0
    %v4009 = vsel %vm828, %v3955, 0
    %v4012 = vsel %vm828, %v3956, 0
    %v4015 = vsel %vm828, %v3957, 0
    %v4018 = vsel %vm828, %v3958, 0
    %v4021 = vsel %vm828, %v3959, 0
    %v4024 = vsel %vm828, %v3960, 0
    %v4027 = vsel %vm828, %v3961, 0
    %v4030 = vsel %vm828, %v3962, 0
    %v4033 = vsel %vm828, %v3963, 0
    %v4036 = vsel %vm828, %v3964, 0
    %v4039 = vsel %vm828, %v3965, 0
    %v4042 = vsel %vm828, %v3966, 0
    %v4045 = vsel %vm828, %v3967, 0
    %v4048 = vsel %vm828, %v3968, 0
    %v4051 = vsel %vm828, %v3969, 0
    %v4054 = vsel %vm828, %v3970, 0
    %v4057 = vsel %vm828, %v3971, 0
    %v4060 = vsel %vm828, %v3972, 0
    %v4063 = vsel %vm828, %v3973, 0
    %v4066 = vsel %vm828, %v3974, 0
    %v4069 = vsel %vm828, %v3975, 0
    %v4072 = vsel %vm828, %v3976, 0
    %v4075 = vsel %vm828, %v3977, 0
    %v4078 = vsel %vm828, %v3978, 0
    %v4081 = vsel %vm828, %v3979, 0
    %v4084 = vsel %vm828, %v3980, 0
    %v4087 = vsel %vm828, %v3981, 0
    %v4090 = vsel %vm828, %v3982, 0
    %v4093 = vsel %vm828, %v3983, 0
    %v4096 = vsel %vm828, %v3984, 0
    %v4099 = vsel %vm828, %v3985, 0
    %v4102 = vsel %vm828, %v3986, 0
    %v4105 = vsel %vm828, %v3987, 0
    %v4108 = vsel %vm828, %v3988, 0
    %v4111 = vsel %vm828, %v3989, 0
    %v4114 = vsel %vm828, %v3990, 0
    %4116 = vmatprep.subr.mxu0 0.0
    %4117 = vmatpush1.msra.mxu0 %v3992
    %4118 = vmatprep.subr.mxu0 0.0
    %4119 = vmatpush1.msra.mxu0 %v3993
    %4120 = vmatprep.subr.mxu0 0.0
    %4121 = vmatpush1.msra.mxu0 %v3994
    %4122 = vmatprep.subr.mxu0 0.0
    %4123 = vmatpush1.msra.mxu0 %v3995
    %4124 = vmatprep.subr.mxu0 0.0
    %4125 = vmatpush1.msra.mxu0 0.0
    %4126 = vmatprep.subr.mxu0 0.0
    %4127 = vmatpush1.msra.mxu0 0.0
    %4128 = vmatprep.subr.mxu0 0.0
    %4129 = vmatpush1.msra.mxu0 0.0
    %4130 = vmatprep.subr.mxu0 0.0
    %4131 = vmatpush1.msra.mxu0 0.0
    %4132 = vmatprep.subr.mxu0 0.0
    %4133 = vmatpush1.msra.mxu0 0.0
    %4134 = vmatprep.subr.mxu0 0.0
    %4135 = vmatpush1.msra.mxu0 0.0
    %4136 = vmatprep.subr.mxu0 0.0
    %4137 = vmatpush1.msra.mxu0 0.0
    %4138 = vmatprep.subr.mxu0 0.0
    %4139 = vmatpush1.msra.mxu0 0.0
    %4140 = vmatprep.subr.mxu0 0.0
    %4141 = vmatpush1.msra.mxu0 0.0
    %4142 = vmatprep.subr.mxu0 0.0
    %4143 = vmatpush1.msra.mxu0 0.0
    %4144 = vmatprep.subr.mxu0 0.0
    %4145 = vmatpush1.msra.mxu0 0.0
    %4146 = vmatprep.subr.mxu0 0.0
    %4147 = vmatpush1.msra.mxu0 0.0
    %4148 = vmatprep.subr.mxu0 0.0
    %4149 = vmatpush1.msra.mxu0 0.0
    %4150 = vmatprep.subr.mxu0 0.0
    %4151 = vmatpush1.msra.mxu0 0.0
    %4152 = vmatprep.subr.mxu0 0.0
    %4153 = vmatpush1.msra.mxu0 0.0
    %4154 = vmatprep.subr.mxu0 0.0
    %4155 = vmatpush1.msra.mxu0 0.0
    %4156 = vmatprep.subr.mxu0 0.0
    %4157 = vmatpush1.msra.mxu0 0.0
    %4158 = vmatprep.subr.mxu0 0.0
    %4159 = vmatpush1.msra.mxu0 0.0
    %4160 = vmatprep.subr.mxu0 0.0
    %4161 = vmatpush1.msra.mxu0 0.0
    %4162 = vmatprep.subr.mxu0 0.0
    %4163 = vmatpush1.msra.mxu0 0.0
    %4164 = vmatprep.subr.mxu0 0.0
    %4165 = vmatpush1.msra.mxu0 0.0
    %4166 = vmatprep.subr.mxu0 0.0
    %4167 = vmatpush1.msra.mxu0 0.0
    %4168 = vmatprep.subr.mxu0 0.0
    %4169 = vmatpush1.msra.mxu0 0.0
    %4170 = vmatprep.subr.mxu0 0.0
    %4171 = vmatpush1.msra.mxu0 0.0
    %4172 = vmatprep.subr.mxu0 0.0
    %4173 = vmatpush1.msra.mxu0 0.0
    %4174 = vmatprep.subr.mxu0 0.0
    %4175 = vmatpush1.msra.mxu0 0.0
    %4176 = vmatprep.subr.mxu0 0.0
    %4177 = vmatpush1.msra.mxu0 0.0
    %4178 = vmatprep.subr.mxu0 0.0
    %4179 = vmatpush1.msra.mxu0 0.0
    %4180 = vmatprep.mubr.f32.mxu0 0.0
    %4181 = vmatmul.mubr.f32.gmra.mrb[0].mxu0 %v3997
    %v4182 = vpop.f32.mrb[0].mxu0
    %v4183 = vadd.f32 0.0, %v4182
    %v4184 = vpop.f32.mrb[0].mxu0
    %4185 = vmatprep.mubr.f32.mxu0 0.0
    %4186 = vmatmul.mubr.f32.gmra.mrb[0].mxu0 %v4000
    %v4187 = vpop.f32.mrb[0].mxu0
    %v4188 = vadd.f32 0.0, %v4187
    %v4189 = vpop.f32.mrb[0].mxu0
    %4190 = vmatprep.mubr.f32.mxu0 0.0
    %4191 = vmatmul.mubr.f32.gmra.mrb[0].mxu0 %v4003
    %v4192 = vpop.f32.mrb[0].mxu0
    %v4193 = vadd.f32 0.0, %v4192
    %v4194 = vpop.f32.mrb[0].mxu0
    %4195 = vmatprep.mubr.f32.mxu0 0.0
    %4196 = vmatmul.mubr.f32.gmra.mrb[0].mxu0 %v4006
    %v4197 = vpop.f32.mrb[0].mxu0
    %v4198 = vadd.f32 0.0, %v4197
    %v4199 = vpop.f32.mrb[0].mxu0
    %4200 = vmatprep.mubr.f32.mxu0 0.0
    %4201 = vmatmul.mubr.f32.gmra.mrb[0].mxu0 %v4009
    %v4202 = vpop.f32.mrb[0].mxu0
    %v4203 = vadd.f32 0.0, %v4202
    %v4204 = vpop.f32.mrb[0].mxu0
    %4205 = vmatprep.mubr.f32.mxu0 0.0
    %4206 = vmatmul.mubr.f32.gmra.mrb[0].mxu0 %v4012
    %v4207 = vpop.f32.mrb[0].mxu0
    %v4208 = vadd.f32 0.0, %v4207
    %v4209 = vpop.f32.mrb[0].mxu0
    %4210 = vmatprep.mubr.f32.mxu0 0.0
    %4211 = vmatmul.mubr.f32.gmra.mrb[0].mxu0 %v4015
    %v4212 = vpop.f32.mrb[0].mxu0
    %v4213 = vadd.f32 0.0, %v4212
    %v4214 = vpop.f32.mrb[0].mxu0
    %4215 = vmatprep.mubr.f32.mxu0 0.0
    %4216 = vmatmul.mubr.f32.gmra.mrb[0].mxu0 %v4018
    %v4217 = vpop.f32.mrb[0].mxu0
    %v4218 = vadd.f32 0.0, %v4217
    %v4219 = vpop.f32.mrb[0].mxu0
    %4220 = vmatprep.mubr.f32.mxu0 0.0
    %4221 = vmatmul.mubr.f32.gmra.mrb[0].mxu0 %v4021
    %v4222 = vpop.f32.mrb[0].mxu0
    %v4223 = vadd.f32 0.0, %v4222
    %v4224 = vpop.f32.mrb[0].mxu0
    %4225 = vmatprep.mubr.f32.mxu0 0.0
    %4226 = vmatmul.mubr.f32.gmra.mrb[0].mxu0 %v4024
    %v4227 = vpop.f32.mrb[0].mxu0
    %v4228 = vadd.f32 0.0, %v4227
    %v4229 = vpop.f32.mrb[0].mxu0
    %4230 = vmatprep.mubr.f32.mxu0 0.0
    %4231 = vmatmul.mubr.f32.gmra.mrb[0].mxu0 %v4027
    %v4232 = vpop.f32.mrb[0].mxu0
    %v4233 = vadd.f32 0.0, %v4232
    %v4234 = vpop.f32.mrb[0].mxu0
    %4235 = vmatprep.mubr.f32.mxu0 0.0
    %4236 = vmatmul.mubr.f32.gmra.mrb[0].mxu0 %v4030
    %v4237 = vpop.f32.mrb[0].mxu0
    %v4238 = vadd.f32 0.0, %v4237
    %v4239 = vpop.f32.mrb[0].mxu0
    %4240 = vmatprep.mubr.f32.mxu0 0.0
    %4241 = vmatmul.mubr.f32.gmra.mrb[0].mxu0 %v4033
    %v4242 = vpop.f32.mrb[0].mxu0
    %v4243 = vadd.f32 0.0, %v4242
    %v4244 = vpop.f32.mrb[0].mxu0
    %4245 = vmatprep.mubr.f32.mxu0 0.0
    %4246 = vmatmul.mubr.f32.gmra.mrb[0].mxu0 %v4036
    %v4247 = vpop.f32.mrb[0].mxu0
    %v4248 = vadd.f32 0.0, %v4247
    %v4249 = vpop.f32.mrb[0].mxu0
    %4250 = vmatprep.mubr.f32.mxu0 0.0
    %4251 = vmatmul.mubr.f32.gmra.mrb[0].mxu0 %v4039
    %v4252 = vpop.f32.mrb[0].mxu0
    %v4253 = vadd.f32 0.0, %v4252
    %v4254 = vpop.f32.mrb[0].mxu0
    %4255 = vmatprep.mubr.f32.mxu0 0.0
    %4256 = vmatmul.mubr.f32.gmra.mrb[0].mxu0 %v4042
    %v4257 = vpop.f32.mrb[0].mxu0
    %v4258 = vadd.f32 0.0, %v4257
    %v4259 = vpop.f32.mrb[0].mxu0
    %4260 = vmatprep.mubr.f32.mxu0 0.0
    %4261 = vmatmul.mubr.f32.gmra.mrb[0].mxu0 %v4045
    %v4262 = vpop.f32.mrb[0].mxu0
    %v4263 = vadd.f32 0.0, %v4262
    %v4264 = vpop.f32.mrb[0].mxu0
    %4265 = vmatprep.mubr.f32.mxu0 0.0
    %4266 = vmatmul.mubr.f32.gmra.mrb[0].mxu0 %v4048
    %v4267 = vpop.f32.mrb[0].mxu0
    %v4268 = vadd.f32 0.0, %v4267
    %v4269 = vpop.f32.mrb[0].mxu0
    %4270 = vmatprep.mubr.f32.mxu0 0.0
    %4271 = vmatmul.mubr.f32.gmra.mrb[0].mxu0 %v4051
    %v4272 = vpop.f32.mrb[0].mxu0
    %v4273 = vadd.f32 0.0, %v4272
    %v4274 = vpop.f32.mrb[0].mxu0
    %4275 = vmatprep.mubr.f32.mxu0 0.0
    %4276 = vmatmul.mubr.f32.gmra.mrb[0].mxu0 %v4054
    %v4277 = vpop.f32.mrb[0].mxu0
    %v4278 = vadd.f32 0.0, %v4277
    %v4279 = vpop.f32.mrb[0].mxu0
    %4280 = vmatprep.mubr.f32.mxu0 0.0
    %4281 = vmatmul.mubr.f32.gmra.mrb[0].mxu0 %v4057
    %v4282 = vpop.f32.mrb[0].mxu0
    %v4283 = vadd.f32 0.0, %v4282
    %v4284 = vpop.f32.mrb[0].mxu0
    %4285 = vmatprep.mubr.f32.mxu0 0.0
    %4286 = vmatmul.mubr.f32.gmra.mrb[0].mxu0 %v4060
    %v4287 = vpop.f32.mrb[0].mxu0
    %v4288 = vadd.f32 0.0, %v4287
    %v4289 = vpop.f32.mrb[0].mxu0
    %4290 = vmatprep.mubr.f32.mxu0 0.0
    %4291 = vmatmul.mubr.f32.gmra.mrb[0].mxu0 %v4063
    %v4292 = vpop.f32.mrb[0].mxu0
    %v4293 = vadd.f32 0.0, %v4292
    %v4294 = vpop.f32.mrb[0].mxu0
    %4295 = vmatprep.mubr.f32.mxu0 0.0
    %4296 = vmatmul.mubr.f32.gmra.mrb[0].mxu0 %v4066
    %v4297 = vpop.f32.mrb[0].mxu0
    %v4298 = vadd.f32 0.0, %v4297
    %v4299 = vpop.f32.mrb[0].mxu0
    %4300 = vmatprep.mubr.f32.mxu0 0.0
    %4301 = vmatmul.mubr.f32.gmra.mrb[0].mxu0 %v4069
    %v4302 = vpop.f32.mrb[0].mxu0
    %v4303 = vadd.f32 0.0, %v4302
    %v4304 = vpop.f32.mrb[0].mxu0
    %4305 = vmatprep.mubr.f32.mxu0 0.0
    %4306 = vmatmul.mubr.f32.gmra.mrb[0].mxu0 %v4072
    %v4307 = vpop.f32.mrb[0].mxu0
    %v4308 = vadd.f32 0.0, %v4307
    %v4309 = vpop.f32.mrb[0].mxu0
    %4310 = vmatprep.mubr.f32.mxu0 0.0
    %4311 = vmatmul.mubr.f32.gmra.mrb[0].mxu0 %v4075
    %v4312 = vpop.f32.mrb[0].mxu0
    %v4313 = vadd.f32 0.0, %v4312
    %v4314 = vpop.f32.mrb[0].mxu0
    %4315 = vmatprep.mubr.f32.mxu0 0.0
    %4316 = vmatmul.mubr.f32.gmra.mrb[0].mxu0 %v4078
    %v4317 = vpop.f32.mrb[0].mxu0
    %v4318 = vadd.f32 0.0, %v4317
    %v4319 = vpop.f32.mrb[0].mxu0
    %4320 = vmatprep.mubr.f32.mxu0 0.0
    %4321 = vmatmul.mubr.f32.gmra.mrb[0].mxu0 %v4081
    %v4322 = vpop.f32.mrb[0].mxu0
    %v4323 = vadd.f32 0.0, %v4322
    %v4324 = vpop.f32.mrb[0].mxu0
    %4325 = vmatprep.mubr.f32.mxu0 0.0
    %4326 = vmatmul.mubr.f32.gmra.mrb[0].mxu0 %v4084
    %v4327 = vpop.f32.mrb[0].mxu0
    %v4328 = vadd.f32 0.0, %v4327
    %v4329 = vpop.f32.mrb[0].mxu0
    %4330 = vmatprep.mubr.f32.mxu0 0.0
    %4331 = vmatmul.mubr.f32.gmra.mrb[0].mxu0 %v4087
    %v4332 = vpop.f32.mrb[0].mxu0
    %v4333 = vadd.f32 0.0, %v4332
    %v4334 = vpop.f32.mrb[0].mxu0
    %4335 = vmatprep.mubr.f32.mxu0 0.0
    %4336 = vmatmul.mubr.f32.gmra.mrb[0].mxu0 %v4090
    %v4337 = vpop.f32.mrb[0].mxu0
    %v4338 = vadd.f32 0.0, %v4337
    %v4339 = vpop.f32.mrb[0].mxu0
    %4340 = vmatprep.mubr.f32.mxu0 0.0
    %4341 = vmatmul.mubr.f32.gmra.mrb[0].mxu0 %v4093
    %v4342 = vpop.f32.mrb[0].mxu0
    %v4343 = vadd.f32 0.0, %v4342
    %v4344 = vpop.f32.mrb[0].mxu0
    %4345 = vmatprep.mubr.f32.mxu0 0.0
    %4346 = vmatmul.mubr.f32.gmra.mrb[0].mxu0 %v4096
    %v4347 = vpop.f32.mrb[0].mxu0
    %v4348 = vadd.f32 0.0, %v4347
    %v4349 = vpop.f32.mrb[0].mxu0
    %4350 = vmatprep.mubr.f32.mxu0 0.0
    %4351 = vmatmul.mubr.f32.gmra.mrb[0].mxu0 %v4099
    %v4352 = vpop.f32.mrb[0].mxu0
    %v4353 = vadd.f32 0.0, %v4352
    %v4354 = vpop.f32.mrb[0].mxu0
    %4355 = vmatprep.mubr.f32.mxu0 0.0
    %4356 = vmatmul.mubr.f32.gmra.mrb[0].mxu0 %v4102
    %v4357 = vpop.f32.mrb[0].mxu0
    %v4358 = vadd.f32 0.0, %v4357
    %v4359 = vpop.f32.mrb[0].mxu0
    %4360 = vmatprep.mubr.f32.mxu0 0.0
    %4361 = vmatmul.mubr.f32.gmra.mrb[0].mxu0 %v4105
    %v4362 = vpop.f32.mrb[0].mxu0
    %v4363 = vadd.f32 0.0, %v4362
    %v4364 = vpop.f32.mrb[0].mxu0
    %4365 = vmatprep.mubr.f32.mxu0 0.0
    %4366 = vmatmul.mubr.f32.gmra.mrb[0].mxu0 %v4108
    %v4367 = vpop.f32.mrb[0].mxu0
    %v4368 = vadd.f32 0.0, %v4367
    %v4369 = vpop.f32.mrb[0].mxu0
    %4370 = vmatprep.mubr.f32.mxu0 0.0
    %4371 = vmatmul.mubr.f32.gmra.mrb[0].mxu0 %v4111
    %v4372 = vpop.f32.mrb[0].mxu0
    %v4373 = vadd.f32 0.0, %v4372
    %v4374 = vpop.f32.mrb[0].mxu0
    %4375 = vmatprep.mubr.f32.mxu0 0.0
    %4376 = vmatmul.mubr.f32.gmra.mrb[0].mxu0 %v4114
    %v4377 = vpop.f32.mrb[0].mxu0
    %v4378 = vadd.f32 0.0, %v4377
    %v4379 = vpop.f32.mrb[0].mxu0
    %4380 = vdwg.mxu0
    %v4381 = vadd.f32 %v3911, %v4183
    %v4382 = vadd.f32 %v3912, %v4188
    %v4383 = vadd.f32 %v3913, %v4193
    %v4384 = vadd.f32 %v3914, %v4198
    %v4385 = vadd.f32 %v3915, %v4203
    %v4386 = vadd.f32 %v3916, %v4208
    %v4387 = vadd.f32 %v3917, %v4213
    %v4388 = vadd.f32 %v3918, %v4218
    %v4389 = vadd.f32 %v3919, %v4223
    %v4390 = vadd.f32 %v3920, %v4228
    %v4391 = vadd.f32 %v3921, %v4233
    %v4392 = vadd.f32 %v3922, %v4238
    %v4393 = vadd.f32 %v3923, %v4243
    %v4394 = vadd.f32 %v3924, %v4248
    %v4395 = vadd.f32 %v3925, %v4253
    %v4396 = vadd.f32 %v3926, %v4258
    %v4397 = vadd.f32 %v3927, %v4263
    %v4398 = vadd.f32 %v3928, %v4268
    %v4399 = vadd.f32 %v3929, %v4273
    %v4400 = vadd.f32 %v3930, %v4278
    %v4401 = vadd.f32 %v3931, %v4283
    %v4402 = vadd.f32 %v3932, %v4288
    %v4403 = vadd.f32 %v3933, %v4293
    %v4404 = vadd.f32 %v3934, %v4298
    %v4405 = vadd.f32 %v3935, %v4303
    %v4406 = vadd.f32 %v3936, %v4308
    %v4407 = vadd.f32 %v3937, %v4313
    %v4408 = vadd.f32 %v3938, %v4318
    %v4409 = vadd.f32 %v3939, %v4323
    %v4410 = vadd.f32 %v3940, %v4328
    %v4411 = vadd.f32 %v3941, %v4333
    %v4412 = vadd.f32 %v3942, %v4338
    %v4413 = vadd.f32 %v3943, %v4343
    %v4414 = vadd.f32 %v3944, %v4348
    %v4415 = vadd.f32 %v3945, %v4353
    %v4416 = vadd.f32 %v3946, %v4358
    %v4417 = vadd.f32 %v3947, %v4363
    %v4418 = vadd.f32 %v3948, %v4368
    %v4419 = vadd.f32 %v3949, %v4373
    %v4420 = vadd.f32 %v3950, %v4378
    %v4421 = vld [vmem:[%s3480 + $0x2] sm:$0xff]
    %v4422 = vld [vmem:[%s3480 + $0xa] sm:$0xff]
    %v4423 = vld [vmem:[%s3480 + $0x1a] sm:$0xff]
    %v4424 = vld [vmem:[%s3480 + $0x22] sm:$0xff]
    %v4425 = vld [vmem:[%s3480 + $0x32] sm:$0xff]
    %v4426 = vld [vmem:[%s3480 + $0x3a] sm:$0xff]
    %v4427 = vld [vmem:[%s3480 + $0x4a] sm:$0xff]
    %v4428 = vld [vmem:[%s3480 + $0x52] sm:$0xff]
    %v4429 = vld [vmem:[%s3480 + $0x62] sm:$0xff]
    %v4430 = vld [vmem:[%s3480 + $0x6a] sm:$0xff]
    %v4431 = vld [vmem:[%s3480 + $0x7a] sm:$0xff]
    %v4432 = vld [vmem:[%s3480 + $0x82] sm:$0xff]
    %v4433 = vld [vmem:[%s3480 + $0x92] sm:$0xff]
    %v4434 = vld [vmem:[%s3480 + $0x9a] sm:$0xff]
    %v4435 = vld [vmem:[%s3480 + $0xaa] sm:$0xff]
    %v4436 = vld [vmem:[%s3480 + $0xb2] sm:$0xff]
    %v4437 = vld [vmem:[%s3480 + $0xc2] sm:$0xff]
    %v4438 = vld [vmem:[%s3480 + $0xca] sm:$0xff]
    %v4439 = vld [vmem:[%s3480 + $0xda] sm:$0xff]
    %v4440 = vld [vmem:[%s3480 + $0xe2] sm:$0xff]
    %v4441 = vld [vmem:[%s3480 + $0x122] sm:$0xff]
    %v4442 = vld [vmem:[%s3480 + $0x12a] sm:$0xff]
    %v4443 = vld [vmem:[%s3480 + $0x13a] sm:$0xff]
    %v4444 = vld [vmem:[%s3480 + $0x142] sm:$0xff]
    %v4445 = vld [vmem:[%s3480 + $0x152] sm:$0xff]
    %v4446 = vld [vmem:[%s3480 + $0x15a] sm:$0xff]
    %v4447 = vld [vmem:[%s3480 + $0x16a] sm:$0xff]
    %v4448 = vld [vmem:[%s3480 + $0x172] sm:$0xff]
    %v4449 = vld [vmem:[%s3480 + $0x182] sm:$0xff]
    %v4450 = vld [vmem:[%s3480 + $0x18a] sm:$0xff]
    %v4451 = vld [vmem:[%s3480 + $0x19a] sm:$0xff]
    %v4452 = vld [vmem:[%s3480 + $0x1a2] sm:$0xff]
    %v4453 = vld [vmem:[%s3480 + $0x1b2] sm:$0xff]
    %v4454 = vld [vmem:[%s3480 + $0x1ba] sm:$0xff]
    %v4455 = vld [vmem:[%s3480 + $0x1ca] sm:$0xff]
    %v4456 = vld [vmem:[%s3480 + $0x1d2] sm:$0xff]
    %v4457 = vld [vmem:[%s3480 + $0x1e2] sm:$0xff]
    %v4458 = vld [vmem:[%s3480 + $0x1ea] sm:$0xff]
    %v4459 = vld [vmem:[%s3480 + $0x1fa] sm:$0xff]
    %v4460 = vld [vmem:[%s3480 + $0x202] sm:$0xff]
    %s4461 = scalar_lea.vmem %s1, 256
    %v4462 = vld [vmem:[%s4461] sm:$0xff]
    %v4463 = vld [vmem:[%s4461 + $0x8] sm:$0xff]
    %v4464 = vld [vmem:[%s4461 + $0x10] sm:$0xff]
    %v4465 = vld [vmem:[%s4461 + $0x18] sm:$0xff]
    %v4467 = vsel %vm828, %v4421, 0
    %v4470 = vsel %vm828, %v4422, 0
    %v4473 = vsel %vm828, %v4423, 0
    %v4476 = vsel %vm828, %v4424, 0
    %v4479 = vsel %vm828, %v4425, 0
    %v4482 = vsel %vm828, %v4426, 0
    %v4485 = vsel %vm828, %v4427, 0
    %v4488 = vsel %vm828, %v4428, 0
    %v4491 = vsel %vm828, %v4429, 0
    %v4494 = vsel %vm828, %v4430, 0
    %v4497 = vsel %vm828, %v4431, 0
    %v4500 = vsel %vm828, %v4432, 0
    %v4503 = vsel %vm828, %v4433, 0
    %v4506 = vsel %vm828, %v4434, 0
    %v4509 = vsel %vm828, %v4435, 0
    %v4512 = vsel %vm828, %v4436, 0
    %v4515 = vsel %vm828, %v4437, 0
    %v4518 = vsel %vm828, %v4438, 0
    %v4521 = vsel %vm828, %v4439, 0
    %v4524 = vsel %vm828, %v4440, 0
    %v4527 = vsel %vm828, %v4441, 0
    %v4530 = vsel %vm828, %v4442, 0
    %v4533 = vsel %vm828, %v4443, 0
    %v4536 = vsel %vm828, %v4444, 0
    %v4539 = vsel %vm828, %v4445, 0
    %v4542 = vsel %vm828, %v4446, 0
    %v4545 = vsel %vm828, %v4447, 0
    %v4548 = vsel %vm828, %v4448, 0
    %v4551 = vsel %vm828, %v4449, 0
    %v4554 = vsel %vm828, %v4450, 0
    %v4557 = vsel %vm828, %v4451, 0
    %v4560 = vsel %vm828, %v4452, 0
    %v4563 = vsel %vm828, %v4453, 0
    %v4566 = vsel %vm828, %v4454, 0
    %v4569 = vsel %vm828, %v4455, 0
    %v4572 = vsel %vm828, %v4456, 0
    %v4575 = vsel %vm828, %v4457, 0
    %v4578 = vsel %vm828, %v4458, 0
    %v4581 = vsel %vm828, %v4459, 0
    %v4584 = vsel %vm828, %v4460, 0
    %4586 = vmatprep.subr.mxu0 0.0
    %4587 = vmatpush1.msra.mxu0 %v4462
    %4588 = vmatprep.subr.mxu0 0.0
    %4589 = vmatpush1.msra.mxu0 %v4463
    %4590 = vmatprep.subr.mxu0 0.0
    %4591 = vmatpush1.msra.mxu0 %v4464
    %4592 = vmatprep.subr.mxu0 0.0
    %4593 = vmatpush1.msra.mxu0 %v4465
    %4594 = vmatprep.subr.mxu0 0.0
    %4595 = vmatpush1.msra.mxu0 0.0
    %4596 = vmatprep.subr.mxu0 0.0
    %4597 = vmatpush1.msra.mxu0 0.0
    %4598 = vmatprep.subr.mxu0 0.0
    %4599 = vmatpush1.msra.mxu0 0.0
    %4600 = vmatprep.subr.mxu0 0.0
    %4601 = vmatpush1.msra.mxu0 0.0
    %4602 = vmatprep.subr.mxu0 0.0
    %4603 = vmatpush1.msra.mxu0 0.0
    %4604 = vmatprep.subr.mxu0 0.0
    %4605 = vmatpush1.msra.mxu0 0.0
    %4606 = vmatprep.subr.mxu0 0.0
    %4607 = vmatpush1.msra.mxu0 0.0
    %4608 = vmatprep.subr.mxu0 0.0
    %4609 = vmatpush1.msra.mxu0 0.0
    %4610 = vmatprep.subr.mxu0 0.0
    %4611 = vmatpush1.msra.mxu0 0.0
    %4612 = vmatprep.subr.mxu0 0.0
    %4613 = vmatpush1.msra.mxu0 0.0
    %4614 = vmatprep.subr.mxu0 0.0
    %4615 = vmatpush1.msra.mxu0 0.0
    %4616 = vmatprep.subr.mxu0 0.0
    %4617 = vmatpush1.msra.mxu0 0.0
    %4618 = vmatprep.subr.mxu0 0.0
    %4619 = vmatpush1.msra.mxu0 0.0
    %4620 = vmatprep.subr.mxu0 0.0
    %4621 = vmatpush1.msra.mxu0 0.0
    %4622 = vmatprep.subr.mxu0 0.0
    %4623 = vmatpush1.msra.mxu0 0.0
    %4624 = vmatprep.subr.mxu0 0.0
    %4625 = vmatpush1.msra.mxu0 0.0
    %4626 = vmatprep.subr.mxu0 0.0
    %4627 = vmatpush1.msra.mxu0 0.0
    %4628 = vmatprep.subr.mxu0 0.0
    %4629 = vmatpush1.msra.mxu0 0.0
    %4630 = vmatprep.subr.mxu0 0.0
    %4631 = vmatpush1.msra.mxu0 0.0
    %4632 = vmatprep.subr.mxu0 0.0
    %4633 = vmatpush1.msra.mxu0 0.0
    %4634 = vmatprep.subr.mxu0 0.0
    %4635 = vmatpush1.msra.mxu0 0.0
    %4636 = vmatprep.subr.mxu0 0.0
    %4637 = vmatpush1.msra.mxu0 0.0
    %4638 = vmatprep.subr.mxu0 0.0
    %4639 = vmatpush1.msra.mxu0 0.0
    %4640 = vmatprep.subr.mxu0 0.0
    %4641 = vmatpush1.msra.mxu0 0.0
    %4642 = vmatprep.subr.mxu0 0.0
    %4643 = vmatpush1.msra.mxu0 0.0
    %4644 = vmatprep.subr.mxu0 0.0
    %4645 = vmatpush1.msra.mxu0 0.0
    %4646 = vmatprep.subr.mxu0 0.0
    %4647 = vmatpush1.msra.mxu0 0.0
    %4648 = vmatprep.subr.mxu0 0.0
    %4649 = vmatpush1.msra.mxu0 0.0
    %4650 = vmatprep.mubr.f32.mxu0 0.0
    %4651 = vmatmul.mubr.f32.gmra.mrb[0].mxu0 %v4467
    %v4652 = vpop.f32.mrb[0].mxu0
    %v4653 = vadd.f32 0.0, %v4652
    %v4654 = vpop.f32.mrb[0].mxu0
    %4655 = vmatprep.mubr.f32.mxu0 0.0
    %4656 = vmatmul.mubr.f32.gmra.mrb[0].mxu0 %v4470
    %v4657 = vpop.f32.mrb[0].mxu0
    %v4658 = vadd.f32 0.0, %v4657
    %v4659 = vpop.f32.mrb[0].mxu0
    %4660 = vmatprep.mubr.f32.mxu0 0.0
    %4661 = vmatmul.mubr.f32.gmra.mrb[0].mxu0 %v4473
    %v4662 = vpop.f32.mrb[0].mxu0
    %v4663 = vadd.f32 0.0, %v4662
    %v4664 = vpop.f32.mrb[0].mxu0
    %4665 = vmatprep.mubr.f32.mxu0 0.0
    %4666 = vmatmul.mubr.f32.gmra.mrb[0].mxu0 %v4476
    %v4667 = vpop.f32.mrb[0].mxu0
    %v4668 = vadd.f32 0.0, %v4667
    %v4669 = vpop.f32.mrb[0].mxu0
    %4670 = vmatprep.mubr.f32.mxu0 0.0
    %4671 = vmatmul.mubr.f32.gmra.mrb[0].mxu0 %v4479
    %v4672 = vpop.f32.mrb[0].mxu0
    %v4673 = vadd.f32 0.0, %v4672
    %v4674 = vpop.f32.mrb[0].mxu0
    %4675 = vmatprep.mubr.f32.mxu0 0.0
    %4676 = vmatmul.mubr.f32.gmra.mrb[0].mxu0 %v4482
    %v4677 = vpop.f32.mrb[0].mxu0
    %v4678 = vadd.f32 0.0, %v4677
    %v4679 = vpop.f32.mrb[0].mxu0
    %4680 = vmatprep.mubr.f32.mxu0 0.0
    %4681 = vmatmul.mubr.f32.gmra.mrb[0].mxu0 %v4485
    %v4682 = vpop.f32.mrb[0].mxu0
    %v4683 = vadd.f32 0.0, %v4682
    %v4684 = vpop.f32.mrb[0].mxu0
    %4685 = vmatprep.mubr.f32.mxu0 0.0
    %4686 = vmatmul.mubr.f32.gmra.mrb[0].mxu0 %v4488
    %v4687 = vpop.f32.mrb[0].mxu0
    %v4688 = vadd.f32 0.0, %v4687
    %v4689 = vpop.f32.mrb[0].mxu0
    %4690 = vmatprep.mubr.f32.mxu0 0.0
    %4691 = vmatmul.mubr.f32.gmra.mrb[0].mxu0 %v4491
    %v4692 = vpop.f32.mrb[0].mxu0
    %v4693 = vadd.f32 0.0, %v4692
    %v4694 = vpop.f32.mrb[0].mxu0
    %4695 = vmatprep.mubr.f32.mxu0 0.0
    %4696 = vmatmul.mubr.f32.gmra.mrb[0].mxu0 %v4494
    %v4697 = vpop.f32.mrb[0].mxu0
    %v4698 = vadd.f32 0.0, %v4697
    %v4699 = vpop.f32.mrb[0].mxu0
    %4700 = vmatprep.mubr.f32.mxu0 0.0
    %4701 = vmatmul.mubr.f32.gmra.mrb[0].mxu0 %v4497
    %v4702 = vpop.f32.mrb[0].mxu0
    %v4703 = vadd.f32 0.0, %v4702
    %v4704 = vpop.f32.mrb[0].mxu0
    %4705 = vmatprep.mubr.f32.mxu0 0.0
    %4706 = vmatmul.mubr.f32.gmra.mrb[0].mxu0 %v4500
    %v4707 = vpop.f32.mrb[0].mxu0
    %v4708 = vadd.f32 0.0, %v4707
    %v4709 = vpop.f32.mrb[0].mxu0
    %4710 = vmatprep.mubr.f32.mxu0 0.0
    %4711 = vmatmul.mubr.f32.gmra.mrb[0].mxu0 %v4503
    %v4712 = vpop.f32.mrb[0].mxu0
    %v4713 = vadd.f32 0.0, %v4712
    %v4714 = vpop.f32.mrb[0].mxu0
    %4715 = vmatprep.mubr.f32.mxu0 0.0
    %4716 = vmatmul.mubr.f32.gmra.mrb[0].mxu0 %v4506
    %v4717 = vpop.f32.mrb[0].mxu0
    %v4718 = vadd.f32 0.0, %v4717
    %v4719 = vpop.f32.mrb[0].mxu0
    %4720 = vmatprep.mubr.f32.mxu0 0.0
    %4721 = vmatmul.mubr.f32.gmra.mrb[0].mxu0 %v4509
    %v4722 = vpop.f32.mrb[0].mxu0
    %v4723 = vadd.f32 0.0, %v4722
    %v4724 = vpop.f32.mrb[0].mxu0
    %4725 = vmatprep.mubr.f32.mxu0 0.0
    %4726 = vmatmul.mubr.f32.gmra.mrb[0].mxu0 %v4512
    %v4727 = vpop.f32.mrb[0].mxu0
    %v4728 = vadd.f32 0.0, %v4727
    %v4729 = vpop.f32.mrb[0].mxu0
    %4730 = vmatprep.mubr.f32.mxu0 0.0
    %4731 = vmatmul.mubr.f32.gmra.mrb[0].mxu0 %v4515
    %v4732 = vpop.f32.mrb[0].mxu0
    %v4733 = vadd.f32 0.0, %v4732
    %v4734 = vpop.f32.mrb[0].mxu0
    %4735 = vmatprep.mubr.f32.mxu0 0.0
    %4736 = vmatmul.mubr.f32.gmra.mrb[0].mxu0 %v4518
    %v4737 = vpop.f32.mrb[0].mxu0
    %v4738 = vadd.f32 0.0, %v4737
    %v4739 = vpop.f32.mrb[0].mxu0
    %4740 = vmatprep.mubr.f32.mxu0 0.0
    %4741 = vmatmul.mubr.f32.gmra.mrb[0].mxu0 %v4521
    %v4742 = vpop.f32.mrb[0].mxu0
    %v4743 = vadd.f32 0.0, %v4742
    %v4744 = vpop.f32.mrb[0].mxu0
    %4745 = vmatprep.mubr.f32.mxu0 0.0
    %4746 = vmatmul.mubr.f32.gmra.mrb[0].mxu0 %v4524
    %v4747 = vpop.f32.mrb[0].mxu0
    %v4748 = vadd.f32 0.0, %v4747
    %v4749 = vpop.f32.mrb[0].mxu0
    %4750 = vmatprep.mubr.f32.mxu0 0.0
    %4751 = vmatmul.mubr.f32.gmra.mrb[0].mxu0 %v4527
    %v4752 = vpop.f32.mrb[0].mxu0
    %v4753 = vadd.f32 0.0, %v4752
    %v4754 = vpop.f32.mrb[0].mxu0
    %4755 = vmatprep.mubr.f32.mxu0 0.0
    %4756 = vmatmul.mubr.f32.gmra.mrb[0].mxu0 %v4530
    %v4757 = vpop.f32.mrb[0].mxu0
    %v4758 = vadd.f32 0.0, %v4757
    %v4759 = vpop.f32.mrb[0].mxu0
    %4760 = vmatprep.mubr.f32.mxu0 0.0
    %4761 = vmatmul.mubr.f32.gmra.mrb[0].mxu0 %v4533
    %v4762 = vpop.f32.mrb[0].mxu0
    %v4763 = vadd.f32 0.0, %v4762
    %v4764 = vpop.f32.mrb[0].mxu0
    %4765 = vmatprep.mubr.f32.mxu0 0.0
    %4766 = vmatmul.mubr.f32.gmra.mrb[0].mxu0 %v4536
    %v4767 = vpop.f32.mrb[0].mxu0
    %v4768 = vadd.f32 0.0, %v4767
    %v4769 = vpop.f32.mrb[0].mxu0
    %4770 = vmatprep.mubr.f32.mxu0 0.0
    %4771 = vmatmul.mubr.f32.gmra.mrb[0].mxu0 %v4539
    %v4772 = vpop.f32.mrb[0].mxu0
    %v4773 = vadd.f32 0.0, %v4772
    %v4774 = vpop.f32.mrb[0].mxu0
    %4775 = vmatprep.mubr.f32.mxu0 0.0
    %4776 = vmatmul.mubr.f32.gmra.mrb[0].mxu0 %v4542
    %v4777 = vpop.f32.mrb[0].mxu0
    %v4778 = vadd.f32 0.0, %v4777
    %v4779 = vpop.f32.mrb[0].mxu0
    %4780 = vmatprep.mubr.f32.mxu0 0.0
    %4781 = vmatmul.mubr.f32.gmra.mrb[0].mxu0 %v4545
    %v4782 = vpop.f32.mrb[0].mxu0
    %v4783 = vadd.f32 0.0, %v4782
    %v4784 = vpop.f32.mrb[0].mxu0
    %4785 = vmatprep.mubr.f32.mxu0 0.0
    %4786 = vmatmul.mubr.f32.gmra.mrb[0].mxu0 %v4548
    %v4787 = vpop.f32.mrb[0].mxu0
    %v4788 = vadd.f32 0.0, %v4787
    %v4789 = vpop.f32.mrb[0].mxu0
    %4790 = vmatprep.mubr.f32.mxu0 0.0
    %4791 = vmatmul.mubr.f32.gmra.mrb[0].mxu0 %v4551
    %v4792 = vpop.f32.mrb[0].mxu0
    %v4793 = vadd.f32 0.0, %v4792
    %v4794 = vpop.f32.mrb[0].mxu0
    %4795 = vmatprep.mubr.f32.mxu0 0.0
    %4796 = vmatmul.mubr.f32.gmra.mrb[0].mxu0 %v4554
    %v4797 = vpop.f32.mrb[0].mxu0
    %v4798 = vadd.f32 0.0, %v4797
    %v4799 = vpop.f32.mrb[0].mxu0
    %4800 = vmatprep.mubr.f32.mxu0 0.0
    %4801 = vmatmul.mubr.f32.gmra.mrb[0].mxu0 %v4557
    %v4802 = vpop.f32.mrb[0].mxu0
    %v4803 = vadd.f32 0.0, %v4802
    %v4804 = vpop.f32.mrb[0].mxu0
    %4805 = vmatprep.mubr.f32.mxu0 0.0
    %4806 = vmatmul.mubr.f32.gmra.mrb[0].mxu0 %v4560
    %v4807 = vpop.f32.mrb[0].mxu0
    %v4808 = vadd.f32 0.0, %v4807
    %v4809 = vpop.f32.mrb[0].mxu0
    %4810 = vmatprep.mubr.f32.mxu0 0.0
    %4811 = vmatmul.mubr.f32.gmra.mrb[0].mxu0 %v4563
    %v4812 = vpop.f32.mrb[0].mxu0
    %v4813 = vadd.f32 0.0, %v4812
    %v4814 = vpop.f32.mrb[0].mxu0
    %4815 = vmatprep.mubr.f32.mxu0 0.0
    %4816 = vmatmul.mubr.f32.gmra.mrb[0].mxu0 %v4566
    %v4817 = vpop.f32.mrb[0].mxu0
    %v4818 = vadd.f32 0.0, %v4817
    %v4819 = vpop.f32.mrb[0].mxu0
    %4820 = vmatprep.mubr.f32.mxu0 0.0
    %4821 = vmatmul.mubr.f32.gmra.mrb[0].mxu0 %v4569
    %v4822 = vpop.f32.mrb[0].mxu0
    %v4823 = vadd.f32 0.0, %v4822
    %v4824 = vpop.f32.mrb[0].mxu0
    %4825 = vmatprep.mubr.f32.mxu0 0.0
    %4826 = vmatmul.mubr.f32.gmra.mrb[0].mxu0 %v4572
    %v4827 = vpop.f32.mrb[0].mxu0
    %v4828 = vadd.f32 0.0, %v4827
    %v4829 = vpop.f32.mrb[0].mxu0
    %4830 = vmatprep.mubr.f32.mxu0 0.0
    %4831 = vmatmul.mubr.f32.gmra.mrb[0].mxu0 %v4575
    %v4832 = vpop.f32.mrb[0].mxu0
    %v4833 = vadd.f32 0.0, %v4832
    %v4834 = vpop.f32.mrb[0].mxu0
    %4835 = vmatprep.mubr.f32.mxu0 0.0
    %4836 = vmatmul.mubr.f32.gmra.mrb[0].mxu0 %v4578
    %v4837 = vpop.f32.mrb[0].mxu0
    %v4838 = vadd.f32 0.0, %v4837
    %v4839 = vpop.f32.mrb[0].mxu0
    %4840 = vmatprep.mubr.f32.mxu0 0.0
    %4841 = vmatmul.mubr.f32.gmra.mrb[0].mxu0 %v4581
    %v4842 = vpop.f32.mrb[0].mxu0
    %v4843 = vadd.f32 0.0, %v4842
    %v4844 = vpop.f32.mrb[0].mxu0
    %4845 = vmatprep.mubr.f32.mxu0 0.0
    %4846 = vmatmul.mubr.f32.gmra.mrb[0].mxu0 %v4584
    %v4847 = vpop.f32.mrb[0].mxu0
    %v4848 = vadd.f32 0.0, %v4847
    %v4849 = vpop.f32.mrb[0].mxu0
    %4850 = vdwg.mxu0
    %v4851 = vadd.f32 %v4381, %v4653
    %v4852 = vadd.f32 %v4382, %v4658
    %v4853 = vadd.f32 %v4383, %v4663
    %v4854 = vadd.f32 %v4384, %v4668
    %v4855 = vadd.f32 %v4385, %v4673
    %v4856 = vadd.f32 %v4386, %v4678
    %v4857 = vadd.f32 %v4387, %v4683
    %v4858 = vadd.f32 %v4388, %v4688
    %v4859 = vadd.f32 %v4389, %v4693
    %v4860 = vadd.f32 %v4390, %v4698
    %v4861 = vadd.f32 %v4391, %v4703
    %v4862 = vadd.f32 %v4392, %v4708
    %v4863 = vadd.f32 %v4393, %v4713
    %v4864 = vadd.f32 %v4394, %v4718
    %v4865 = vadd.f32 %v4395, %v4723
    %v4866 = vadd.f32 %v4396, %v4728
    %v4867 = vadd.f32 %v4397, %v4733
    %v4868 = vadd.f32 %v4398, %v4738
    %v4869 = vadd.f32 %v4399, %v4743
    %v4870 = vadd.f32 %v4400, %v4748
    %v4871 = vadd.f32 %v4401, %v4753
    %v4872 = vadd.f32 %v4402, %v4758
    %v4873 = vadd.f32 %v4403, %v4763
    %v4874 = vadd.f32 %v4404, %v4768
    %v4875 = vadd.f32 %v4405, %v4773
    %v4876 = vadd.f32 %v4406, %v4778
    %v4877 = vadd.f32 %v4407, %v4783
    %v4878 = vadd.f32 %v4408, %v4788
    %v4879 = vadd.f32 %v4409, %v4793
    %v4880 = vadd.f32 %v4410, %v4798
    %v4881 = vadd.f32 %v4411, %v4803
    %v4882 = vadd.f32 %v4412, %v4808
    %v4883 = vadd.f32 %v4413, %v4813
    %v4884 = vadd.f32 %v4414, %v4818
    %v4885 = vadd.f32 %v4415, %v4823
    %v4886 = vadd.f32 %v4416, %v4828
    %v4887 = vadd.f32 %v4417, %v4833
    %v4888 = vadd.f32 %v4418, %v4838
    %v4889 = vadd.f32 %v4419, %v4843
    %v4890 = vadd.f32 %v4420, %v4848
    %v4891 = vmul.f32 %v4851, %v698
    %v4892 = vmul.f32 %v4852, %v699
    %v4893 = vmul.f32 %v4853, %v700
    %v4894 = vmul.f32 %v4854, %v701
    %v4895 = vmul.f32 %v4855, %v702
    %v4896 = vmul.f32 %v4856, %v703
    %v4897 = vmul.f32 %v4857, %v704
    %v4898 = vmul.f32 %v4858, %v705
    %v4899 = vmul.f32 %v4859, %v706
    %v4900 = vmul.f32 %v4860, %v707
    %v4901 = vmul.f32 %v4861, %v708
    %v4902 = vmul.f32 %v4862, %v709
    %v4903 = vmul.f32 %v4863, %v710
    %v4904 = vmul.f32 %v4864, %v711
    %v4905 = vmul.f32 %v4865, %v712
    %v4906 = vmul.f32 %v4866, %v713
    %v4907 = vmul.f32 %v4867, %v714
    %v4908 = vmul.f32 %v4868, %v715
    %v4909 = vmul.f32 %v4869, %v716
    %v4910 = vmul.f32 %v4870, %v717
    %v4911 = vmul.f32 %v4871, %v718
    %v4912 = vmul.f32 %v4872, %v719
    %v4913 = vmul.f32 %v4873, %v720
    %v4914 = vmul.f32 %v4874, %v721
    %v4915 = vmul.f32 %v4875, %v722
    %v4916 = vmul.f32 %v4876, %v723
    %v4917 = vmul.f32 %v4877, %v724
    %v4918 = vmul.f32 %v4878, %v725
    %v4919 = vmul.f32 %v4879, %v726
    %v4920 = vmul.f32 %v4880, %v727
    %v4921 = vmul.f32 %v4881, %v728
    %v4922 = vmul.f32 %v4882, %v729
    %v4923 = vmul.f32 %v4883, %v730
    %v4924 = vmul.f32 %v4884, %v731
    %v4925 = vmul.f32 %v4885, %v732
    %v4926 = vmul.f32 %v4886, %v733
    %v4927 = vmul.f32 %v4887, %v734
    %v4928 = vmul.f32 %v4888, %v735
    %v4929 = vmul.f32 %v4889, %v736
    %v4930 = vmul.f32 %v4890, %v737
    %v4931 = vsel %vm828, %v4891, 0.0
    %v4932 = vsel %vm828, %v4892, 0.0
    %v4933 = vadd.f32 %v4931, %v4932
    %v4934 = vsel %vm828, %v4893, 0.0
    %v4935 = vadd.f32 %v4933, %v4934
    %v4936 = vsel %vm828, %v4894, 0.0
    %v4937 = vadd.f32 %v4935, %v4936
    %v4938 = vsel %vm828, %v4895, 0.0
    %v4939 = vadd.f32 %v4937, %v4938
    %v4940 = vsel %vm828, %v4896, 0.0
    %v4941 = vadd.f32 %v4939, %v4940
    %v4942 = vsel %vm828, %v4897, 0.0
    %v4943 = vadd.f32 %v4941, %v4942
    %v4944 = vsel %vm828, %v4898, 0.0
    %v4945 = vadd.f32 %v4943, %v4944
    %v4946 = vsel %vm828, %v4899, 0.0
    %v4947 = vadd.f32 %v4945, %v4946
    %v4948 = vsel %vm828, %v4900, 0.0
    %v4949 = vadd.f32 %v4947, %v4948
    %v4950 = vsel %vm828, %v4901, 0.0
    %v4951 = vadd.f32 %v4949, %v4950
    %v4952 = vsel %vm828, %v4902, 0.0
    %v4953 = vadd.f32 %v4951, %v4952
    %v4954 = vsel %vm828, %v4903, 0.0
    %v4955 = vadd.f32 %v4953, %v4954
    %v4956 = vsel %vm828, %v4904, 0.0
    %v4957 = vadd.f32 %v4955, %v4956
    %v4958 = vsel %vm828, %v4905, 0.0
    %v4959 = vadd.f32 %v4957, %v4958
    %v4960 = vsel %vm828, %v4906, 0.0
    %v4961 = vadd.f32 %v4959, %v4960
    %v4962 = vsel %vm828, %v4907, 0.0
    %v4963 = vadd.f32 %v4961, %v4962
    %v4964 = vsel %vm828, %v4908, 0.0
    %v4965 = vadd.f32 %v4963, %v4964
    %v4966 = vsel %vm828, %v4909, 0.0
    %v4967 = vadd.f32 %v4965, %v4966
    %v4968 = vsel %vm828, %v4910, 0.0
    %v4969 = vadd.f32 %v4967, %v4968
    %v4970 = vsel %vm828, %v4911, 0.0
    %v4971 = vadd.f32 %v4969, %v4970
    %v4972 = vsel %vm828, %v4912, 0.0
    %v4973 = vadd.f32 %v4971, %v4972
    %v4974 = vsel %vm828, %v4913, 0.0
    %v4975 = vadd.f32 %v4973, %v4974
    %v4976 = vsel %vm828, %v4914, 0.0
    %v4977 = vadd.f32 %v4975, %v4976
    %v4978 = vsel %vm828, %v4915, 0.0
    %v4979 = vadd.f32 %v4977, %v4978
    %v4980 = vsel %vm828, %v4916, 0.0
    %v4981 = vadd.f32 %v4979, %v4980
    %v4982 = vsel %vm828, %v4917, 0.0
    %v4983 = vadd.f32 %v4981, %v4982
    %v4984 = vsel %vm828, %v4918, 0.0
    %v4985 = vadd.f32 %v4983, %v4984
    %v4986 = vsel %vm828, %v4919, 0.0
    %v4987 = vadd.f32 %v4985, %v4986
    %v4988 = vsel %vm828, %v4920, 0.0
    %v4989 = vadd.f32 %v4987, %v4988
    %v4990 = vsel %vm828, %v4921, 0.0
    %v4991 = vadd.f32 %v4989, %v4990
    %v4992 = vsel %vm828, %v4922, 0.0
    %v4993 = vadd.f32 %v4991, %v4992
    %v4994 = vsel %vm828, %v4923, 0.0
    %v4995 = vadd.f32 %v4993, %v4994
    %v4996 = vsel %vm828, %v4924, 0.0
    %v4997 = vadd.f32 %v4995, %v4996
    %v4998 = vsel %vm828, %v4925, 0.0
    %v4999 = vadd.f32 %v4997, %v4998
    %v5000 = vsel %vm828, %v4926, 0.0
    %v5001 = vadd.f32 %v4999, %v5000
    %v5002 = vsel %vm828, %v4927, 0.0
    %v5003 = vadd.f32 %v5001, %v5002
    %v5004 = vsel %vm828, %v4928, 0.0
    %v5005 = vadd.f32 %v5003, %v5004
    %v5006 = vsel %vm828, %v4929, 0.0
    %v5007 = vadd.f32 %v5005, %v5006
    %v5008 = vsel %vm828, %v4930, 0.0
    %v5009 = vadd.f32 %v5007, %v5008
    %v5010 = vrot.slane %v5009, 4
    %v5011 = vadd.f32 %v5009, %v5010
    %v5012 = vrot.slane %v5011, 2
    %v5013 = vadd.f32 %v5011, %v5012
    %v5014 = vrot.slane %v5013, 1
    %v5015 = vadd.f32 %v5013, %v5014
    %v5016 = vmul.f32 %v5015, 0.0078125
    %v5017 = vmul.f32 %v4891, %v4851
    %v5018 = vmul.f32 %v4892, %v4852
    %v5019 = vmul.f32 %v4893, %v4853
    %v5020 = vmul.f32 %v4894, %v4854
    %v5021 = vmul.f32 %v4895, %v4855
    %v5022 = vmul.f32 %v4896, %v4856
    %v5023 = vmul.f32 %v4897, %v4857
    %v5024 = vmul.f32 %v4898, %v4858
    %v5025 = vmul.f32 %v4899, %v4859
    %v5026 = vmul.f32 %v4900, %v4860
    %v5027 = vmul.f32 %v4901, %v4861
    %v5028 = vmul.f32 %v4902, %v4862
    %v5029 = vmul.f32 %v4903, %v4863
    %v5030 = vmul.f32 %v4904, %v4864
    %v5031 = vmul.f32 %v4905, %v4865
    %v5032 = vmul.f32 %v4906, %v4866
    %v5033 = vmul.f32 %v4907, %v4867
    %v5034 = vmul.f32 %v4908, %v4868
    %v5035 = vmul.f32 %v4909, %v4869
    %v5036 = vmul.f32 %v4910, %v4870
    %v5037 = vmul.f32 %v4911, %v4871
    %v5038 = vmul.f32 %v4912, %v4872
    %v5039 = vmul.f32 %v4913, %v4873
    %v5040 = vmul.f32 %v4914, %v4874
    %v5041 = vmul.f32 %v4915, %v4875
    %v5042 = vmul.f32 %v4916, %v4876
    %v5043 = vmul.f32 %v4917, %v4877
    %v5044 = vmul.f32 %v4918, %v4878
    %v5045 = vmul.f32 %v4919, %v4879
    %v5046 = vmul.f32 %v4920, %v4880
    %v5047 = vmul.f32 %v4921, %v4881
    %v5048 = vmul.f32 %v4922, %v4882
    %v5049 = vmul.f32 %v4923, %v4883
    %v5050 = vmul.f32 %v4924, %v4884
    %v5051 = vmul.f32 %v4925, %v4885
    %v5052 = vmul.f32 %v4926, %v4886
    %v5053 = vmul.f32 %v4927, %v4887
    %v5054 = vmul.f32 %v4928, %v4888
    %v5055 = vmul.f32 %v4929, %v4889
    %v5056 = vmul.f32 %v4930, %v4890
    %v5057 = vsel %vm828, %v5017, 0.0
    %v5058 = vsel %vm828, %v5018, 0.0
    %v5059 = vadd.f32 %v5057, %v5058
    %v5060 = vsel %vm828, %v5019, 0.0
    %v5061 = vadd.f32 %v5059, %v5060
    %v5062 = vsel %vm828, %v5020, 0.0
    %v5063 = vadd.f32 %v5061, %v5062
    %v5064 = vsel %vm828, %v5021, 0.0
    %v5065 = vadd.f32 %v5063, %v5064
    %v5066 = vsel %vm828, %v5022, 0.0
    %v5067 = vadd.f32 %v5065, %v5066
    %v5068 = vsel %vm828, %v5023, 0.0
    %v5069 = vadd.f32 %v5067, %v5068
    %v5070 = vsel %vm828, %v5024, 0.0
    %v5071 = vadd.f32 %v5069, %v5070
    %v5072 = vsel %vm828, %v5025, 0.0
    %v5073 = vadd.f32 %v5071, %v5072
    %v5074 = vsel %vm828, %v5026, 0.0
    %v5075 = vadd.f32 %v5073, %v5074
    %v5076 = vsel %vm828, %v5027, 0.0
    %v5077 = vadd.f32 %v5075, %v5076
    %v5078 = vsel %vm828, %v5028, 0.0
    %v5079 = vadd.f32 %v5077, %v5078
    %v5080 = vsel %vm828, %v5029, 0.0
    %v5081 = vadd.f32 %v5079, %v5080
    %v5082 = vsel %vm828, %v5030, 0.0
    %v5083 = vadd.f32 %v5081, %v5082
    %v5084 = vsel %vm828, %v5031, 0.0
    %v5085 = vadd.f32 %v5083, %v5084
    %v5086 = vsel %vm828, %v5032, 0.0
    %v5087 = vadd.f32 %v5085, %v5086
    %v5088 = vsel %vm828, %v5033, 0.0
    %v5089 = vadd.f32 %v5087, %v5088
    %v5090 = vsel %vm828, %v5034, 0.0
    %v5091 = vadd.f32 %v5089, %v5090
    %v5092 = vsel %vm828, %v5035, 0.0
    %v5093 = vadd.f32 %v5091, %v5092
    %v5094 = vsel %vm828, %v5036, 0.0
    %v5095 = vadd.f32 %v5093, %v5094
    %v5096 = vsel %vm828, %v5037, 0.0
    %v5097 = vadd.f32 %v5095, %v5096
    %v5098 = vsel %vm828, %v5038, 0.0
    %v5099 = vadd.f32 %v5097, %v5098
    %v5100 = vsel %vm828, %v5039, 0.0
    %v5101 = vadd.f32 %v5099, %v5100
    %v5102 = vsel %vm828, %v5040, 0.0
    %v5103 = vadd.f32 %v5101, %v5102
    %v5104 = vsel %vm828, %v5041, 0.0
    %v5105 = vadd.f32 %v5103, %v5104
    %v5106 = vsel %vm828, %v5042, 0.0
    %v5107 = vadd.f32 %v5105, %v5106
    %v5108 = vsel %vm828, %v5043, 0.0
    %v5109 = vadd.f32 %v5107, %v5108
    %v5110 = vsel %vm828, %v5044, 0.0
    %v5111 = vadd.f32 %v5109, %v5110
    %v5112 = vsel %vm828, %v5045, 0.0
    %v5113 = vadd.f32 %v5111, %v5112
    %v5114 = vsel %vm828, %v5046, 0.0
    %v5115 = vadd.f32 %v5113, %v5114
    %v5116 = vsel %vm828, %v5047, 0.0
    %v5117 = vadd.f32 %v5115, %v5116
    %v5118 = vsel %vm828, %v5048, 0.0
    %v5119 = vadd.f32 %v5117, %v5118
    %v5120 = vsel %vm828, %v5049, 0.0
    %v5121 = vadd.f32 %v5119, %v5120
    %v5122 = vsel %vm828, %v5050, 0.0
    %v5123 = vadd.f32 %v5121, %v5122
    %v5124 = vsel %vm828, %v5051, 0.0
    %v5125 = vadd.f32 %v5123, %v5124
    %v5126 = vsel %vm828, %v5052, 0.0
    %v5127 = vadd.f32 %v5125, %v5126
    %v5128 = vsel %vm828, %v5053, 0.0
    %v5129 = vadd.f32 %v5127, %v5128
    %v5130 = vsel %vm828, %v5054, 0.0
    %v5131 = vadd.f32 %v5129, %v5130
    %v5132 = vsel %vm828, %v5055, 0.0
    %v5133 = vadd.f32 %v5131, %v5132
    %v5134 = vsel %vm828, %v5056, 0.0
    %v5135 = vadd.f32 %v5133, %v5134
    %v5136 = vrot.slane %v5135, 4
    %v5137 = vadd.f32 %v5135, %v5136
    %v5138 = vrot.slane %v5137, 2
    %v5139 = vadd.f32 %v5137, %v5138
    %v5140 = vrot.slane %v5139, 1
    %v5141 = vadd.f32 %v5139, %v5140
    %v5142 = vmul.f32 %v5141, 0.0078125
    %v5143 = vmul.f32 %v5016, %v5016
    %v5144 = vsub.f32 %v5142, %v5143
    %v5145 = vadd.f32 %v5144, 1e-05
    %v5146 = vrsqrt.pop %v5145
    %v5147 = vmul.f32 %v5146, %v738
    %v5148 = vmul.f32 %v5016, %v5147
    %v5150 = vrot.slane %v5148, 7
    %v5152 = vsub.f32 %v738, %v5150
    %v5153 = vlaneseq
    %v5154 = vshrl.u32 %v5153, 7
    %v5155 = vsub.s32 0, %v5154
    %v5156 = vrot.slane %v5147, %v5155
    %v5157 = vmul.f32 %v4851, %v5156
    %v5158 = vmul.f32 %v4852, %v5156
    %v5159 = vmul.f32 %v4853, %v5156
    %v5160 = vmul.f32 %v4854, %v5156
    %v5161 = vmul.f32 %v4855, %v5156
    %v5162 = vmul.f32 %v4856, %v5156
    %v5163 = vmul.f32 %v4857, %v5156
    %v5164 = vmul.f32 %v4858, %v5156
    %v5165 = vmul.f32 %v4859, %v5156
    %v5166 = vmul.f32 %v4860, %v5156
    %v5167 = vmul.f32 %v4861, %v5156
    %v5168 = vmul.f32 %v4862, %v5156
    %v5169 = vmul.f32 %v4863, %v5156
    %v5170 = vmul.f32 %v4864, %v5156
    %v5171 = vmul.f32 %v4865, %v5156
    %v5172 = vmul.f32 %v4866, %v5156
    %v5173 = vmul.f32 %v4867, %v5156
    %v5174 = vmul.f32 %v4868, %v5156
    %v5175 = vmul.f32 %v4869, %v5156
    %v5176 = vmul.f32 %v4870, %v5156
    %v5177 = vmul.f32 %v4871, %v5156
    %v5178 = vmul.f32 %v4872, %v5156
    %v5179 = vmul.f32 %v4873, %v5156
    %v5180 = vmul.f32 %v4874, %v5156
    %v5181 = vmul.f32 %v4875, %v5156
    %v5182 = vmul.f32 %v4876, %v5156
    %v5183 = vmul.f32 %v4877, %v5156
    %v5184 = vmul.f32 %v4878, %v5156
    %v5185 = vmul.f32 %v4879, %v5156
    %v5186 = vmul.f32 %v4880, %v5156
    %v5187 = vmul.f32 %v4881, %v5156
    %v5188 = vmul.f32 %v4882, %v5156
    %v5189 = vmul.f32 %v4883, %v5156
    %v5190 = vmul.f32 %v4884, %v5156
    %v5191 = vmul.f32 %v4885, %v5156
    %v5192 = vmul.f32 %v4886, %v5156
    %v5193 = vmul.f32 %v4887, %v5156
    %v5194 = vmul.f32 %v4888, %v5156
    %v5195 = vmul.f32 %v4889, %v5156
    %v5196 = vmul.f32 %v4890, %v5156
    %v5197 = vlaneseq
    %v5198 = vshrl.u32 %v5197, 7
    %v5199 = vsub.s32 1, %v5198
    %v5200 = vrot.slane %v5152, %v5199
    %v5201 = vadd.f32 %v5157, %v5200
    %v5202 = vadd.f32 %v5158, %v5200
    %v5203 = vadd.f32 %v5159, %v5200
    %v5204 = vadd.f32 %v5160, %v5200
    %v5205 = vadd.f32 %v5161, %v5200
    %v5206 = vadd.f32 %v5162, %v5200
    %v5207 = vadd.f32 %v5163, %v5200
    %v5208 = vadd.f32 %v5164, %v5200
    %v5209 = vadd.f32 %v5165, %v5200
    %v5210 = vadd.f32 %v5166, %v5200
    %v5211 = vadd.f32 %v5167, %v5200
    %v5212 = vadd.f32 %v5168, %v5200
    %v5213 = vadd.f32 %v5169, %v5200
    %v5214 = vadd.f32 %v5170, %v5200
    %v5215 = vadd.f32 %v5171, %v5200
    %v5216 = vadd.f32 %v5172, %v5200
    %v5217 = vadd.f32 %v5173, %v5200
    %v5218 = vadd.f32 %v5174, %v5200
    %v5219 = vadd.f32 %v5175, %v5200
    %v5220 = vadd.f32 %v5176, %v5200
    %v5221 = vadd.f32 %v5177, %v5200
    %v5222 = vadd.f32 %v5178, %v5200
    %v5223 = vadd.f32 %v5179, %v5200
    %v5224 = vadd.f32 %v5180, %v5200
    %v5225 = vadd.f32 %v5181, %v5200
    %v5226 = vadd.f32 %v5182, %v5200
    %v5227 = vadd.f32 %v5183, %v5200
    %v5228 = vadd.f32 %v5184, %v5200
    %v5229 = vadd.f32 %v5185, %v5200
    %v5230 = vadd.f32 %v5186, %v5200
    %v5231 = vadd.f32 %v5187, %v5200
    %v5232 = vadd.f32 %v5188, %v5200
    %v5233 = vadd.f32 %v5189, %v5200
    %v5234 = vadd.f32 %v5190, %v5200
    %v5235 = vadd.f32 %v5191, %v5200
    %v5236 = vadd.f32 %v5192, %v5200
    %v5237 = vadd.f32 %v5193, %v5200
    %v5238 = vadd.f32 %v5194, %v5200
    %v5239 = vadd.f32 %v5195, %v5200
    %v5240 = vadd.f32 %v5196, %v5200
    %v5241 = vmax.f32 %v5201, 0.0
    %v5242 = vmax.f32 %v5202, 0.0
    %v5243 = vmax.f32 %v5203, 0.0
    %v5244 = vmax.f32 %v5204, 0.0
    %v5245 = vmax.f32 %v5205, 0.0
    %v5246 = vmax.f32 %v5206, 0.0
    %v5247 = vmax.f32 %v5207, 0.0
    %v5248 = vmax.f32 %v5208, 0.0
    %v5249 = vmax.f32 %v5209, 0.0
    %v5250 = vmax.f32 %v5210, 0.0
    %v5251 = vmax.f32 %v5211, 0.0
    %v5252 = vmax.f32 %v5212, 0.0
    %v5253 = vmax.f32 %v5213, 0.0
    %v5254 = vmax.f32 %v5214, 0.0
    %v5255 = vmax.f32 %v5215, 0.0
    %v5256 = vmax.f32 %v5216, 0.0
    %v5257 = vmax.f32 %v5217, 0.0
    %v5258 = vmax.f32 %v5218, 0.0
    %v5259 = vmax.f32 %v5219, 0.0
    %v5260 = vmax.f32 %v5220, 0.0
    %v5261 = vmax.f32 %v5221, 0.0
    %v5262 = vmax.f32 %v5222, 0.0
    %v5263 = vmax.f32 %v5223, 0.0
    %v5264 = vmax.f32 %v5224, 0.0
    %v5265 = vmax.f32 %v5225, 0.0
    %v5266 = vmax.f32 %v5226, 0.0
    %v5267 = vmax.f32 %v5227, 0.0
    %v5268 = vmax.f32 %v5228, 0.0
    %v5269 = vmax.f32 %v5229, 0.0
    %v5270 = vmax.f32 %v5230, 0.0
    %v5271 = vmax.f32 %v5231, 0.0
    %v5272 = vmax.f32 %v5232, 0.0
    %v5273 = vmax.f32 %v5233, 0.0
    %v5274 = vmax.f32 %v5234, 0.0
    %v5275 = vmax.f32 %v5235, 0.0
    %v5276 = vmax.f32 %v5236, 0.0
    %v5277 = vmax.f32 %v5237, 0.0
    %v5278 = vmax.f32 %v5238, 0.0
    %v5279 = vmax.f32 %v5239, 0.0
    %v5280 = vmax.f32 %v5240, 0.0
    %v5281 = vmul.f32 %v5241, %v698
    %v5282 = vmul.f32 %v5242, %v699
    %v5283 = vmul.f32 %v5243, %v700
    %v5284 = vmul.f32 %v5244, %v701
    %v5285 = vmul.f32 %v5245, %v702
    %v5286 = vmul.f32 %v5246, %v703
    %v5287 = vmul.f32 %v5247, %v704
    %v5288 = vmul.f32 %v5248, %v705
    %v5289 = vmul.f32 %v5249, %v706
    %v5290 = vmul.f32 %v5250, %v707
    %v5291 = vmul.f32 %v5251, %v708
    %v5292 = vmul.f32 %v5252, %v709
    %v5293 = vmul.f32 %v5253, %v710
    %v5294 = vmul.f32 %v5254, %v711
    %v5295 = vmul.f32 %v5255, %v712
    %v5296 = vmul.f32 %v5256, %v713
    %v5297 = vmul.f32 %v5257, %v714
    %v5298 = vmul.f32 %v5258, %v715
    %v5299 = vmul.f32 %v5259, %v716
    %v5300 = vmul.f32 %v5260, %v717
    %v5301 = vmul.f32 %v5261, %v718
    %v5302 = vmul.f32 %v5262, %v719
    %v5303 = vmul.f32 %v5263, %v720
    %v5304 = vmul.f32 %v5264, %v721
    %v5305 = vmul.f32 %v5265, %v722
    %v5306 = vmul.f32 %v5266, %v723
    %v5307 = vmul.f32 %v5267, %v724
    %v5308 = vmul.f32 %v5268, %v725
    %v5309 = vmul.f32 %v5269, %v726
    %v5310 = vmul.f32 %v5270, %v727
    %v5311 = vmul.f32 %v5271, %v728
    %v5312 = vmul.f32 %v5272, %v729
    %v5313 = vmul.f32 %v5273, %v730
    %v5314 = vmul.f32 %v5274, %v731
    %v5315 = vmul.f32 %v5275, %v732
    %v5316 = vmul.f32 %v5276, %v733
    %v5317 = vmul.f32 %v5277, %v734
    %v5318 = vmul.f32 %v5278, %v735
    %v5319 = vmul.f32 %v5279, %v736
    %v5320 = vmul.f32 %v5280, %v737
    %s5321 = scalar_lea.vmem %s1, 288
    %v5322 = vld [vmem:[%s5321] sm:$0xff]
    %v5323 = vld [vmem:[%s5321 + $0x8] sm:$0xff]
    %v5324 = vld [vmem:[%s5321 + $0x10] sm:$0xff]
    %v5325 = vld [vmem:[%s5321 + $0x18] sm:$0xff]
    %vm5358 = vcmask 1046528
    %v5359 = vrot.slane %v5281, 1
    %v5360 = vrot.slane %v5282, 1
    %v5361 = vsel %vm5358, %v5359, %v5360
    %v5362 = vrot.slane %v5283, 1
    %v5363 = vrot.slane %v5284, 1
    %v5364 = vsel %vm5358, %v5362, %v5363
    %v5365 = vrot.slane %v5285, 1
    %v5366 = vrot.slane %v5286, 1
    %v5367 = vsel %vm5358, %v5365, %v5366
    %v5368 = vrot.slane %v5287, 1
    %v5369 = vrot.slane %v5288, 1
    %v5370 = vsel %vm5358, %v5368, %v5369
    %v5371 = vrot.slane %v5289, 1
    %v5372 = vrot.slane %v5290, 1
    %v5373 = vsel %vm5358, %v5371, %v5372
    %v5374 = vrot.slane %v5291, 1
    %v5375 = vrot.slane %v5292, 1
    %v5376 = vsel %vm5358, %v5374, %v5375
    %v5377 = vrot.slane %v5293, 1
    %v5378 = vrot.slane %v5294, 1
    %v5379 = vsel %vm5358, %v5377, %v5378
    %v5380 = vrot.slane %v5295, 1
    %v5381 = vrot.slane %v5296, 1
    %v5382 = vsel %vm5358, %v5380, %v5381
    %v5383 = vrot.slane %v5301, 1
    %v5384 = vrot.slane %v5302, 1
    %v5385 = vsel %vm5358, %v5383, %v5384
    %v5386 = vrot.slane %v5303, 1
    %v5387 = vrot.slane %v5304, 1
    %v5388 = vsel %vm5358, %v5386, %v5387
    %v5389 = vrot.slane %v5305, 1
    %v5390 = vrot.slane %v5306, 1
    %v5391 = vsel %vm5358, %v5389, %v5390
    %v5392 = vrot.slane %v5307, 1
    %v5393 = vrot.slane %v5308, 1
    %v5394 = vsel %vm5358, %v5392, %v5393
    %v5395 = vrot.slane %v5309, 1
    %v5396 = vrot.slane %v5310, 1
    %v5397 = vsel %vm5358, %v5395, %v5396
    %v5398 = vrot.slane %v5311, 1
    %v5399 = vrot.slane %v5312, 1
    %v5400 = vsel %vm5358, %v5398, %v5399
    %v5401 = vrot.slane %v5313, 1
    %v5402 = vrot.slane %v5314, 1
    %v5403 = vsel %vm5358, %v5401, %v5402
    %v5404 = vrot.slane %v5315, 1
    %v5405 = vrot.slane %v5316, 1
    %v5406 = vsel %vm5358, %v5404, %v5405
    %s5407 = scalar_lea.vmem %s1, 320
    %v5408 = vld [vmem:[%s5407] sm:$0xff]
    %v5409 = vld [vmem:[%s5407 + $0x8] sm:$0xff]
    %v5410 = vld [vmem:[%s5407 + $0x10] sm:$0xff]
    %v5411 = vld [vmem:[%s5407 + $0x18] sm:$0xff]
    %v5412 = vsel %vm828, %v5361, 0
    %v5414 = vsel %vm828, %v5364, 0
    %v5416 = vsel %vm828, %v5367, 0
    %v5418 = vsel %vm828, %v5370, 0
    %v5420 = vsel %vm828, %v5373, 0
    %v5422 = vsel %vm828, %v5376, 0
    %v5424 = vsel %vm828, %v5379, 0
    %v5426 = vsel %vm828, %v5382, 0
    %v5428 = vsel %vm828, %v5385, 0
    %v5430 = vsel %vm828, %v5388, 0
    %v5432 = vsel %vm828, %v5391, 0
    %v5434 = vsel %vm828, %v5394, 0
    %v5436 = vsel %vm828, %v5397, 0
    %v5438 = vsel %vm828, %v5400, 0
    %v5440 = vsel %vm828, %v5403, 0
    %v5442 = vsel %vm828, %v5406, 0
    %5444 = vmatprep.subr.mxu0 0.0
    %5445 = vmatpush1.msra.mxu0 %v5408
    %5446 = vmatprep.subr.mxu0 0.0
    %5447 = vmatpush1.msra.mxu0 %v5409
    %5448 = vmatprep.subr.mxu0 0.0
    %5449 = vmatpush1.msra.mxu0 %v5410
    %5450 = vmatprep.subr.mxu0 0.0
    %5451 = vmatpush1.msra.mxu0 %v5411
    %5452 = vmatprep.subr.mxu0 0.0
    %5453 = vmatpush1.msra.mxu0 0.0
    %5454 = vmatprep.subr.mxu0 0.0
    %5455 = vmatpush1.msra.mxu0 0.0
    %5456 = vmatprep.subr.mxu0 0.0
    %5457 = vmatpush1.msra.mxu0 0.0
    %5458 = vmatprep.subr.mxu0 0.0
    %5459 = vmatpush1.msra.mxu0 0.0
    %5460 = vmatprep.subr.mxu0 0.0
    %5461 = vmatpush1.msra.mxu0 0.0
    %5462 = vmatprep.subr.mxu0 0.0
    %5463 = vmatpush1.msra.mxu0 0.0
    %5464 = vmatprep.subr.mxu0 0.0
    %5465 = vmatpush1.msra.mxu0 0.0
    %5466 = vmatprep.subr.mxu0 0.0
    %5467 = vmatpush1.msra.mxu0 0.0
    %5468 = vmatprep.subr.mxu0 0.0
    %5469 = vmatpush1.msra.mxu0 0.0
    %5470 = vmatprep.subr.mxu0 0.0
    %5471 = vmatpush1.msra.mxu0 0.0
    %5472 = vmatprep.subr.mxu0 0.0
    %5473 = vmatpush1.msra.mxu0 0.0
    %5474 = vmatprep.subr.mxu0 0.0
    %5475 = vmatpush1.msra.mxu0 0.0
    %5476 = vmatprep.subr.mxu0 0.0
    %5477 = vmatpush1.msra.mxu0 0.0
    %5478 = vmatprep.subr.mxu0 0.0
    %5479 = vmatpush1.msra.mxu0 0.0
    %5480 = vmatprep.subr.mxu0 0.0
    %5481 = vmatpush1.msra.mxu0 0.0
    %5482 = vmatprep.subr.mxu0 0.0
    %5483 = vmatpush1.msra.mxu0 0.0
    %5484 = vmatprep.subr.mxu0 0.0
    %5485 = vmatpush1.msra.mxu0 0.0
    %5486 = vmatprep.subr.mxu0 0.0
    %5487 = vmatpush1.msra.mxu0 0.0
    %5488 = vmatprep.subr.mxu0 0.0
    %5489 = vmatpush1.msra.mxu0 0.0
    %5490 = vmatprep.subr.mxu0 0.0
    %5491 = vmatpush1.msra.mxu0 0.0
    %5492 = vmatprep.subr.mxu0 0.0
    %5493 = vmatpush1.msra.mxu0 0.0
    %5494 = vmatprep.subr.mxu0 0.0
    %5495 = vmatpush1.msra.mxu0 0.0
    %5496 = vmatprep.subr.mxu0 0.0
    %5497 = vmatpush1.msra.mxu0 0.0
    %5498 = vmatprep.subr.mxu0 0.0
    %5499 = vmatpush1.msra.mxu0 0.0
    %5500 = vmatprep.subr.mxu0 0.0
    %5501 = vmatpush1.msra.mxu0 0.0
    %5502 = vmatprep.subr.mxu0 0.0
    %5503 = vmatpush1.msra.mxu0 0.0
    %5504 = vmatprep.subr.mxu0 0.0
    %5505 = vmatpush1.msra.mxu0 0.0
    %5506 = vmatprep.subr.mxu0 0.0
    %5507 = vmatpush1.msra.mxu0 0.0
    %5508 = vmatprep.mubr.f32.mxu0 0.0
    %5509 = vmatmul.mubr.f32.gmra.mrb[0].mxu0 %v5412
    %v5510 = vpop.f32.mrb[0].mxu0
    %v5511 = vadd.f32 0.0, %v5510
    %v5512 = vpop.f32.mrb[0].mxu0
    %5513 = vmatprep.mubr.f32.mxu0 0.0
    %5514 = vmatmul.mubr.f32.gmra.mrb[0].mxu0 %v5414
    %v5515 = vpop.f32.mrb[0].mxu0
    %v5516 = vadd.f32 0.0, %v5515
    %v5517 = vpop.f32.mrb[0].mxu0
    %5518 = vmatprep.mubr.f32.mxu0 0.0
    %5519 = vmatmul.mubr.f32.gmra.mrb[0].mxu0 %v5416
    %v5520 = vpop.f32.mrb[0].mxu0
    %v5521 = vadd.f32 0.0, %v5520
    %v5522 = vpop.f32.mrb[0].mxu0
    %5523 = vmatprep.mubr.f32.mxu0 0.0
    %5524 = vmatmul.mubr.f32.gmra.mrb[0].mxu0 %v5418
    %v5525 = vpop.f32.mrb[0].mxu0
    %v5526 = vadd.f32 0.0, %v5525
    %v5527 = vpop.f32.mrb[0].mxu0
    %5528 = vmatprep.mubr.f32.mxu0 0.0
    %5529 = vmatmul.mubr.f32.gmra.mrb[0].mxu0 %v5420
    %v5530 = vpop.f32.mrb[0].mxu0
    %v5531 = vadd.f32 0.0, %v5530
    %v5532 = vpop.f32.mrb[0].mxu0
    %5533 = vmatprep.mubr.f32.mxu0 0.0
    %5534 = vmatmul.mubr.f32.gmra.mrb[0].mxu0 %v5422
    %v5535 = vpop.f32.mrb[0].mxu0
    %v5536 = vadd.f32 0.0, %v5535
    %v5537 = vpop.f32.mrb[0].mxu0
    %5538 = vmatprep.mubr.f32.mxu0 0.0
    %5539 = vmatmul.mubr.f32.gmra.mrb[0].mxu0 %v5424
    %v5540 = vpop.f32.mrb[0].mxu0
    %v5541 = vadd.f32 0.0, %v5540
    %v5542 = vpop.f32.mrb[0].mxu0
    %5543 = vmatprep.mubr.f32.mxu0 0.0
    %5544 = vmatmul.mubr.f32.gmra.mrb[0].mxu0 %v5426
    %v5545 = vpop.f32.mrb[0].mxu0
    %v5546 = vadd.f32 0.0, %v5545
    %v5547 = vpop.f32.mrb[0].mxu0
    %5548 = vmatprep.mubr.f32.mxu0 0.0
    %5549 = vmatmul.mubr.f32.gmra.mrb[0].mxu0 %v5428
    %v5550 = vpop.f32.mrb[0].mxu0
    %v5551 = vadd.f32 0.0, %v5550
    %v5552 = vpop.f32.mrb[0].mxu0
    %5553 = vmatprep.mubr.f32.mxu0 0.0
    %5554 = vmatmul.mubr.f32.gmra.mrb[0].mxu0 %v5430
    %v5555 = vpop.f32.mrb[0].mxu0
    %v5556 = vadd.f32 0.0, %v5555
    %v5557 = vpop.f32.mrb[0].mxu0
    %5558 = vmatprep.mubr.f32.mxu0 0.0
    %5559 = vmatmul.mubr.f32.gmra.mrb[0].mxu0 %v5432
    %v5560 = vpop.f32.mrb[0].mxu0
    %v5561 = vadd.f32 0.0, %v5560
    %v5562 = vpop.f32.mrb[0].mxu0
    %5563 = vmatprep.mubr.f32.mxu0 0.0
    %5564 = vmatmul.mubr.f32.gmra.mrb[0].mxu0 %v5434
    %v5565 = vpop.f32.mrb[0].mxu0
    %v5566 = vadd.f32 0.0, %v5565
    %v5567 = vpop.f32.mrb[0].mxu0
    %5568 = vmatprep.mubr.f32.mxu0 0.0
    %5569 = vmatmul.mubr.f32.gmra.mrb[0].mxu0 %v5436
    %v5570 = vpop.f32.mrb[0].mxu0
    %v5571 = vadd.f32 0.0, %v5570
    %v5572 = vpop.f32.mrb[0].mxu0
    %5573 = vmatprep.mubr.f32.mxu0 0.0
    %5574 = vmatmul.mubr.f32.gmra.mrb[0].mxu0 %v5438
    %v5575 = vpop.f32.mrb[0].mxu0
    %v5576 = vadd.f32 0.0, %v5575
    %v5577 = vpop.f32.mrb[0].mxu0
    %5578 = vmatprep.mubr.f32.mxu0 0.0
    %5579 = vmatmul.mubr.f32.gmra.mrb[0].mxu0 %v5440
    %v5580 = vpop.f32.mrb[0].mxu0
    %v5581 = vadd.f32 0.0, %v5580
    %v5582 = vpop.f32.mrb[0].mxu0
    %5583 = vmatprep.mubr.f32.mxu0 0.0
    %5584 = vmatmul.mubr.f32.gmra.mrb[0].mxu0 %v5442
    %v5585 = vpop.f32.mrb[0].mxu0
    %v5586 = vadd.f32 0.0, %v5585
    %v5587 = vpop.f32.mrb[0].mxu0
    %5588 = vdwg.mxu0
    %v5589 = vsel %vm828, %v5281, 0
    %v5591 = vsel %vm828, %v5283, 0
    %v5593 = vsel %vm828, %v5285, 0
    %v5595 = vsel %vm828, %v5287, 0
    %v5597 = vsel %vm828, %v5289, 0
    %v5599 = vsel %vm828, %v5291, 0
    %v5601 = vsel %vm828, %v5293, 0
    %v5603 = vsel %vm828, %v5295, 0
    %v5605 = vsel %vm828, %v5301, 0
    %v5607 = vsel %vm828, %v5303, 0
    %v5609 = vsel %vm828, %v5305, 0
    %v5611 = vsel %vm828, %v5307, 0
    %v5613 = vsel %vm828, %v5309, 0
    %v5615 = vsel %vm828, %v5311, 0
    %v5617 = vsel %vm828, %v5313, 0
    %v5619 = vsel %vm828, %v5315, 0
    %5621 = vmatprep.subr.mxu0 0.0
    %5622 = vmatpush1.msra.mxu0 %v5322
    %5623 = vmatprep.subr.mxu0 0.0
    %5624 = vmatpush1.msra.mxu0 %v5323
    %5625 = vmatprep.subr.mxu0 0.0
    %5626 = vmatpush1.msra.mxu0 %v5324
    %5627 = vmatprep.subr.mxu0 0.0
    %5628 = vmatpush1.msra.mxu0 %v5325
    %5629 = vmatprep.subr.mxu0 0.0
    %5630 = vmatpush1.msra.mxu0 0.0
    %5631 = vmatprep.subr.mxu0 0.0
    %5632 = vmatpush1.msra.mxu0 0.0
    %5633 = vmatprep.subr.mxu0 0.0
    %5634 = vmatpush1.msra.mxu0 0.0
    %5635 = vmatprep.subr.mxu0 0.0
    %5636 = vmatpush1.msra.mxu0 0.0
    %5637 = vmatprep.subr.mxu0 0.0
    %5638 = vmatpush1.msra.mxu0 0.0
    %5639 = vmatprep.subr.mxu0 0.0
    %5640 = vmatpush1.msra.mxu0 0.0
    %5641 = vmatprep.subr.mxu0 0.0
    %5642 = vmatpush1.msra.mxu0 0.0
    %5643 = vmatprep.subr.mxu0 0.0
    %5644 = vmatpush1.msra.mxu0 0.0
    %5645 = vmatprep.subr.mxu0 0.0
    %5646 = vmatpush1.msra.mxu0 0.0
    %5647 = vmatprep.subr.mxu0 0.0
    %5648 = vmatpush1.msra.mxu0 0.0
    %5649 = vmatprep.subr.mxu0 0.0
    %5650 = vmatpush1.msra.mxu0 0.0
    %5651 = vmatprep.subr.mxu0 0.0
    %5652 = vmatpush1.msra.mxu0 0.0
    %5653 = vmatprep.subr.mxu0 0.0
    %5654 = vmatpush1.msra.mxu0 0.0
    %5655 = vmatprep.subr.mxu0 0.0
    %5656 = vmatpush1.msra.mxu0 0.0
    %5657 = vmatprep.subr.mxu0 0.0
    %5658 = vmatpush1.msra.mxu0 0.0
    %5659 = vmatprep.subr.mxu0 0.0
    %5660 = vmatpush1.msra.mxu0 0.0
    %5661 = vmatprep.subr.mxu0 0.0
    %5662 = vmatpush1.msra.mxu0 0.0
    %5663 = vmatprep.subr.mxu0 0.0
    %5664 = vmatpush1.msra.mxu0 0.0
    %5665 = vmatprep.subr.mxu0 0.0
    %5666 = vmatpush1.msra.mxu0 0.0
    %5667 = vmatprep.subr.mxu0 0.0
    %5668 = vmatpush1.msra.mxu0 0.0
    %5669 = vmatprep.subr.mxu0 0.0
    %5670 = vmatpush1.msra.mxu0 0.0
    %5671 = vmatprep.subr.mxu0 0.0
    %5672 = vmatpush1.msra.mxu0 0.0
    %5673 = vmatprep.subr.mxu0 0.0
    %5674 = vmatpush1.msra.mxu0 0.0
    %5675 = vmatprep.subr.mxu0 0.0
    %5676 = vmatpush1.msra.mxu0 0.0
    %5677 = vmatprep.subr.mxu0 0.0
    %5678 = vmatpush1.msra.mxu0 0.0
    %5679 = vmatprep.subr.mxu0 0.0
    %5680 = vmatpush1.msra.mxu0 0.0
    %5681 = vmatprep.subr.mxu0 0.0
    %5682 = vmatpush1.msra.mxu0 0.0
    %5683 = vmatprep.subr.mxu0 0.0
    %5684 = vmatpush1.msra.mxu0 0.0
    %5685 = vmatprep.mubr.f32.mxu0 0.0
    %5686 = vmatmul.mubr.f32.gmra.mrb[0].mxu0 %v5589
    %v5687 = vpop.f32.mrb[0].mxu0
    %v5688 = vadd.f32 %v5511, %v5687
    %v5689 = vpop.f32.mrb[0].mxu0
    %5690 = vmatprep.mubr.f32.mxu0 0.0
    %5691 = vmatmul.mubr.f32.gmra.mrb[0].mxu0 %v5591
    %v5692 = vpop.f32.mrb[0].mxu0
    %v5693 = vadd.f32 %v5516, %v5692
    %v5694 = vpop.f32.mrb[0].mxu0
    %5695 = vmatprep.mubr.f32.mxu0 0.0
    %5696 = vmatmul.mubr.f32.gmra.mrb[0].mxu0 %v5593
    %v5697 = vpop.f32.mrb[0].mxu0
    %v5698 = vadd.f32 %v5521, %v5697
    %v5699 = vpop.f32.mrb[0].mxu0
    %5700 = vmatprep.mubr.f32.mxu0 0.0
    %5701 = vmatmul.mubr.f32.gmra.mrb[0].mxu0 %v5595
    %v5702 = vpop.f32.mrb[0].mxu0
    %v5703 = vadd.f32 %v5526, %v5702
    %v5704 = vpop.f32.mrb[0].mxu0
    %5705 = vmatprep.mubr.f32.mxu0 0.0
    %5706 = vmatmul.mubr.f32.gmra.mrb[0].mxu0 %v5597
    %v5707 = vpop.f32.mrb[0].mxu0
    %v5708 = vadd.f32 %v5531, %v5707
    %v5709 = vpop.f32.mrb[0].mxu0
    %5710 = vmatprep.mubr.f32.mxu0 0.0
    %5711 = vmatmul.mubr.f32.gmra.mrb[0].mxu0 %v5599
    %v5712 = vpop.f32.mrb[0].mxu0
    %v5713 = vadd.f32 %v5536, %v5712
    %v5714 = vpop.f32.mrb[0].mxu0
    %5715 = vmatprep.mubr.f32.mxu0 0.0
    %5716 = vmatmul.mubr.f32.gmra.mrb[0].mxu0 %v5601
    %v5717 = vpop.f32.mrb[0].mxu0
    %v5718 = vadd.f32 %v5541, %v5717
    %v5719 = vpop.f32.mrb[0].mxu0
    %5720 = vmatprep.mubr.f32.mxu0 0.0
    %5721 = vmatmul.mubr.f32.gmra.mrb[0].mxu0 %v5603
    %v5722 = vpop.f32.mrb[0].mxu0
    %v5723 = vadd.f32 %v5546, %v5722
    %v5724 = vpop.f32.mrb[0].mxu0
    %5725 = vmatprep.mubr.f32.mxu0 0.0
    %5726 = vmatmul.mubr.f32.gmra.mrb[0].mxu0 %v5605
    %v5727 = vpop.f32.mrb[0].mxu0
    %v5728 = vadd.f32 %v5551, %v5727
    %v5729 = vpop.f32.mrb[0].mxu0
    %5730 = vmatprep.mubr.f32.mxu0 0.0
    %5731 = vmatmul.mubr.f32.gmra.mrb[0].mxu0 %v5607
    %v5732 = vpop.f32.mrb[0].mxu0
    %v5733 = vadd.f32 %v5556, %v5732
    %v5734 = vpop.f32.mrb[0].mxu0
    %5735 = vmatprep.mubr.f32.mxu0 0.0
    %5736 = vmatmul.mubr.f32.gmra.mrb[0].mxu0 %v5609
    %v5737 = vpop.f32.mrb[0].mxu0
    %v5738 = vadd.f32 %v5561, %v5737
    %v5739 = vpop.f32.mrb[0].mxu0
    %5740 = vmatprep.mubr.f32.mxu0 0.0
    %5741 = vmatmul.mubr.f32.gmra.mrb[0].mxu0 %v5611
    %v5742 = vpop.f32.mrb[0].mxu0
    %v5743 = vadd.f32 %v5566, %v5742
    %v5744 = vpop.f32.mrb[0].mxu0
    %5745 = vmatprep.mubr.f32.mxu0 0.0
    %5746 = vmatmul.mubr.f32.gmra.mrb[0].mxu0 %v5613
    %v5747 = vpop.f32.mrb[0].mxu0
    %v5748 = vadd.f32 %v5571, %v5747
    %v5749 = vpop.f32.mrb[0].mxu0
    %5750 = vmatprep.mubr.f32.mxu0 0.0
    %5751 = vmatmul.mubr.f32.gmra.mrb[0].mxu0 %v5615
    %v5752 = vpop.f32.mrb[0].mxu0
    %v5753 = vadd.f32 %v5576, %v5752
    %v5754 = vpop.f32.mrb[0].mxu0
    %5755 = vmatprep.mubr.f32.mxu0 0.0
    %5756 = vmatmul.mubr.f32.gmra.mrb[0].mxu0 %v5617
    %v5757 = vpop.f32.mrb[0].mxu0
    %v5758 = vadd.f32 %v5581, %v5757
    %v5759 = vpop.f32.mrb[0].mxu0
    %5760 = vmatprep.mubr.f32.mxu0 0.0
    %5761 = vmatmul.mubr.f32.gmra.mrb[0].mxu0 %v5619
    %v5762 = vpop.f32.mrb[0].mxu0
    %v5763 = vadd.f32 %v5586, %v5762
    %v5764 = vpop.f32.mrb[0].mxu0
    %5765 = vdwg.mxu0
    %vm5766 = vcmask 1045504
    %v5767 = vrot.slane %v5281, 2
    %v5768 = vrot.slane %v5282, 2
    %v5769 = vsel %vm5766, %v5767, %v5768
    %v5770 = vrot.slane %v5283, 2
    %v5771 = vrot.slane %v5284, 2
    %v5772 = vsel %vm5766, %v5770, %v5771
    %v5773 = vrot.slane %v5285, 2
    %v5774 = vrot.slane %v5286, 2
    %v5775 = vsel %vm5766, %v5773, %v5774
    %v5776 = vrot.slane %v5287, 2
    %v5777 = vrot.slane %v5288, 2
    %v5778 = vsel %vm5766, %v5776, %v5777
    %v5779 = vrot.slane %v5289, 2
    %v5780 = vrot.slane %v5290, 2
    %v5781 = vsel %vm5766, %v5779, %v5780
    %v5782 = vrot.slane %v5291, 2
    %v5783 = vrot.slane %v5292, 2
    %v5784 = vsel %vm5766, %v5782, %v5783
    %v5785 = vrot.slane %v5293, 2
    %v5786 = vrot.slane %v5294, 2
    %v5787 = vsel %vm5766, %v5785, %v5786
    %v5788 = vrot.slane %v5295, 2
    %v5789 = vrot.slane %v5296, 2
    %v5790 = vsel %vm5766, %v5788, %v5789
    %v5791 = vrot.slane %v5301, 2
    %v5792 = vrot.slane %v5302, 2
    %v5793 = vsel %vm5766, %v5791, %v5792
    %v5794 = vrot.slane %v5303, 2
    %v5795 = vrot.slane %v5304, 2
    %v5796 = vsel %vm5766, %v5794, %v5795
    %v5797 = vrot.slane %v5305, 2
    %v5798 = vrot.slane %v5306, 2
    %v5799 = vsel %vm5766, %v5797, %v5798
    %v5800 = vrot.slane %v5307, 2
    %v5801 = vrot.slane %v5308, 2
    %v5802 = vsel %vm5766, %v5800, %v5801
    %v5803 = vrot.slane %v5309, 2
    %v5804 = vrot.slane %v5310, 2
    %v5805 = vsel %vm5766, %v5803, %v5804
    %v5806 = vrot.slane %v5311, 2
    %v5807 = vrot.slane %v5312, 2
    %v5808 = vsel %vm5766, %v5806, %v5807
    %v5809 = vrot.slane %v5313, 2
    %v5810 = vrot.slane %v5314, 2
    %v5811 = vsel %vm5766, %v5809, %v5810
    %v5812 = vrot.slane %v5315, 2
    %v5813 = vrot.slane %v5316, 2
    %v5814 = vsel %vm5766, %v5812, %v5813
    %s5815 = scalar_lea.vmem %s1, 352
    %v5816 = vld [vmem:[%s5815] sm:$0xff]
    %v5817 = vld [vmem:[%s5815 + $0x8] sm:$0xff]
    %v5818 = vld [vmem:[%s5815 + $0x10] sm:$0xff]
    %v5819 = vld [vmem:[%s5815 + $0x18] sm:$0xff]
    %v5820 = vsel %vm828, %v5769, 0
    %v5822 = vsel %vm828, %v5772, 0
    %v5824 = vsel %vm828, %v5775, 0
    %v5826 = vsel %vm828, %v5778, 0
    %v5828 = vsel %vm828, %v5781, 0
    %v5830 = vsel %vm828, %v5784, 0
    %v5832 = vsel %vm828, %v5787, 0
    %v5834 = vsel %vm828, %v5790, 0
    %v5836 = vsel %vm828, %v5793, 0
    %v5838 = vsel %vm828, %v5796, 0
    %v5840 = vsel %vm828, %v5799, 0
    %v5842 = vsel %vm828, %v5802, 0
    %v5844 = vsel %vm828, %v5805, 0
    %v5846 = vsel %vm828, %v5808, 0
    %v5848 = vsel %vm828, %v5811, 0
    %v5850 = vsel %vm828, %v5814, 0
    %5852 = vmatprep.subr.mxu0 0.0
    %5853 = vmatpush1.msra.mxu0 %v5816
    %5854 = vmatprep.subr.mxu0 0.0
    %5855 = vmatpush1.msra.mxu0 %v5817
    %5856 = vmatprep.subr.mxu0 0.0
    %5857 = vmatpush1.msra.mxu0 %v5818
    %5858 = vmatprep.subr.mxu0 0.0
    %5859 = vmatpush1.msra.mxu0 %v5819
    %5860 = vmatprep.subr.mxu0 0.0
    %5861 = vmatpush1.msra.mxu0 0.0
    %5862 = vmatprep.subr.mxu0 0.0
    %5863 = vmatpush1.msra.mxu0 0.0
    %5864 = vmatprep.subr.mxu0 0.0
    %5865 = vmatpush1.msra.mxu0 0.0
    %5866 = vmatprep.subr.mxu0 0.0
    %5867 = vmatpush1.msra.mxu0 0.0
    %5868 = vmatprep.subr.mxu0 0.0
    %5869 = vmatpush1.msra.mxu0 0.0
    %5870 = vmatprep.subr.mxu0 0.0
    %5871 = vmatpush1.msra.mxu0 0.0
    %5872 = vmatprep.subr.mxu0 0.0
    %5873 = vmatpush1.msra.mxu0 0.0
    %5874 = vmatprep.subr.mxu0 0.0
    %5875 = vmatpush1.msra.mxu0 0.0
    %5876 = vmatprep.subr.mxu0 0.0
    %5877 = vmatpush1.msra.mxu0 0.0
    %5878 = vmatprep.subr.mxu0 0.0
    %5879 = vmatpush1.msra.mxu0 0.0
    %5880 = vmatprep.subr.mxu0 0.0
    %5881 = vmatpush1.msra.mxu0 0.0
    %5882 = vmatprep.subr.mxu0 0.0
    %5883 = vmatpush1.msra.mxu0 0.0
    %5884 = vmatprep.subr.mxu0 0.0
    %5885 = vmatpush1.msra.mxu0 0.0
    %5886 = vmatprep.subr.mxu0 0.0
    %5887 = vmatpush1.msra.mxu0 0.0
    %5888 = vmatprep.subr.mxu0 0.0
    %5889 = vmatpush1.msra.mxu0 0.0
    %5890 = vmatprep.subr.mxu0 0.0
    %5891 = vmatpush1.msra.mxu0 0.0
    %5892 = vmatprep.subr.mxu0 0.0
    %5893 = vmatpush1.msra.mxu0 0.0
    %5894 = vmatprep.subr.mxu0 0.0
    %5895 = vmatpush1.msra.mxu0 0.0
    %5896 = vmatprep.subr.mxu0 0.0
    %5897 = vmatpush1.msra.mxu0 0.0
    %5898 = vmatprep.subr.mxu0 0.0
    %5899 = vmatpush1.msra.mxu0 0.0
    %5900 = vmatprep.subr.mxu0 0.0
    %5901 = vmatpush1.msra.mxu0 0.0
    %5902 = vmatprep.subr.mxu0 0.0
    %5903 = vmatpush1.msra.mxu0 0.0
    %5904 = vmatprep.subr.mxu0 0.0
    %5905 = vmatpush1.msra.mxu0 0.0
    %5906 = vmatprep.subr.mxu0 0.0
    %5907 = vmatpush1.msra.mxu0 0.0
    %5908 = vmatprep.subr.mxu0 0.0
    %5909 = vmatpush1.msra.mxu0 0.0
    %5910 = vmatprep.subr.mxu0 0.0
    %5911 = vmatpush1.msra.mxu0 0.0
    %5912 = vmatprep.subr.mxu0 0.0
    %5913 = vmatpush1.msra.mxu0 0.0
    %5914 = vmatprep.subr.mxu0 0.0
    %5915 = vmatpush1.msra.mxu0 0.0
    %5916 = vmatprep.mubr.f32.mxu0 0.0
    %5917 = vmatmul.mubr.f32.gmra.mrb[0].mxu0 %v5820
    %v5918 = vpop.f32.mrb[0].mxu0
    %v5919 = vadd.f32 0.0, %v5918
    %v5920 = vpop.f32.mrb[0].mxu0
    %5921 = vmatprep.mubr.f32.mxu0 0.0
    %5922 = vmatmul.mubr.f32.gmra.mrb[0].mxu0 %v5822
    %v5923 = vpop.f32.mrb[0].mxu0
    %v5924 = vadd.f32 0.0, %v5923
    %v5925 = vpop.f32.mrb[0].mxu0
    %5926 = vmatprep.mubr.f32.mxu0 0.0
    %5927 = vmatmul.mubr.f32.gmra.mrb[0].mxu0 %v5824
    %v5928 = vpop.f32.mrb[0].mxu0
    %v5929 = vadd.f32 0.0, %v5928
    %v5930 = vpop.f32.mrb[0].mxu0
    %5931 = vmatprep.mubr.f32.mxu0 0.0
    %5932 = vmatmul.mubr.f32.gmra.mrb[0].mxu0 %v5826
    %v5933 = vpop.f32.mrb[0].mxu0
    %v5934 = vadd.f32 0.0, %v5933
    %v5935 = vpop.f32.mrb[0].mxu0
    %5936 = vmatprep.mubr.f32.mxu0 0.0
    %5937 = vmatmul.mubr.f32.gmra.mrb[0].mxu0 %v5828
    %v5938 = vpop.f32.mrb[0].mxu0
    %v5939 = vadd.f32 0.0, %v5938
    %v5940 = vpop.f32.mrb[0].mxu0
    %5941 = vmatprep.mubr.f32.mxu0 0.0
    %5942 = vmatmul.mubr.f32.gmra.mrb[0].mxu0 %v5830
    %v5943 = vpop.f32.mrb[0].mxu0
    %v5944 = vadd.f32 0.0, %v5943
    %v5945 = vpop.f32.mrb[0].mxu0
    %5946 = vmatprep.mubr.f32.mxu0 0.0
    %5947 = vmatmul.mubr.f32.gmra.mrb[0].mxu0 %v5832
    %v5948 = vpop.f32.mrb[0].mxu0
    %v5949 = vadd.f32 0.0, %v5948
    %v5950 = vpop.f32.mrb[0].mxu0
    %5951 = vmatprep.mubr.f32.mxu0 0.0
    %5952 = vmatmul.mubr.f32.gmra.mrb[0].mxu0 %v5834
    %v5953 = vpop.f32.mrb[0].mxu0
    %v5954 = vadd.f32 0.0, %v5953
    %v5955 = vpop.f32.mrb[0].mxu0
    %5956 = vmatprep.mubr.f32.mxu0 0.0
    %5957 = vmatmul.mubr.f32.gmra.mrb[0].mxu0 %v5836
    %v5958 = vpop.f32.mrb[0].mxu0
    %v5959 = vadd.f32 0.0, %v5958
    %v5960 = vpop.f32.mrb[0].mxu0
    %5961 = vmatprep.mubr.f32.mxu0 0.0
    %5962 = vmatmul.mubr.f32.gmra.mrb[0].mxu0 %v5838
    %v5963 = vpop.f32.mrb[0].mxu0
    %v5964 = vadd.f32 0.0, %v5963
    %v5965 = vpop.f32.mrb[0].mxu0
    %5966 = vmatprep.mubr.f32.mxu0 0.0
    %5967 = vmatmul.mubr.f32.gmra.mrb[0].mxu0 %v5840
    %v5968 = vpop.f32.mrb[0].mxu0
    %v5969 = vadd.f32 0.0, %v5968
    %v5970 = vpop.f32.mrb[0].mxu0
    %5971 = vmatprep.mubr.f32.mxu0 0.0
    %5972 = vmatmul.mubr.f32.gmra.mrb[0].mxu0 %v5842
    %v5973 = vpop.f32.mrb[0].mxu0
    %v5974 = vadd.f32 0.0, %v5973
    %v5975 = vpop.f32.mrb[0].mxu0
    %5976 = vmatprep.mubr.f32.mxu0 0.0
    %5977 = vmatmul.mubr.f32.gmra.mrb[0].mxu0 %v5844
    %v5978 = vpop.f32.mrb[0].mxu0
    %v5979 = vadd.f32 0.0, %v5978
    %v5980 = vpop.f32.mrb[0].mxu0
    %5981 = vmatprep.mubr.f32.mxu0 0.0
    %5982 = vmatmul.mubr.f32.gmra.mrb[0].mxu0 %v5846
    %v5983 = vpop.f32.mrb[0].mxu0
    %v5984 = vadd.f32 0.0, %v5983
    %v5985 = vpop.f32.mrb[0].mxu0
    %5986 = vmatprep.mubr.f32.mxu0 0.0
    %5987 = vmatmul.mubr.f32.gmra.mrb[0].mxu0 %v5848
    %v5988 = vpop.f32.mrb[0].mxu0
    %v5989 = vadd.f32 0.0, %v5988
    %v5990 = vpop.f32.mrb[0].mxu0
    %5991 = vmatprep.mubr.f32.mxu0 0.0
    %5992 = vmatmul.mubr.f32.gmra.mrb[0].mxu0 %v5850
    %v5993 = vpop.f32.mrb[0].mxu0
    %v5994 = vadd.f32 0.0, %v5993
    %v5995 = vpop.f32.mrb[0].mxu0
    %5996 = vdwg.mxu0
    %v5997 = vadd.f32 %v5688, %v5919
    %v5998 = vadd.f32 %v5693, %v5924
    %v5999 = vadd.f32 %v5698, %v5929
    %v6000 = vadd.f32 %v5703, %v5934
    %v6001 = vadd.f32 %v5708, %v5939
    %v6002 = vadd.f32 %v5713, %v5944
    %v6003 = vadd.f32 %v5718, %v5949
    %v6004 = vadd.f32 %v5723, %v5954
    %v6005 = vadd.f32 %v5728, %v5959
    %v6006 = vadd.f32 %v5733, %v5964
    %v6007 = vadd.f32 %v5738, %v5969
    %v6008 = vadd.f32 %v5743, %v5974
    %v6009 = vadd.f32 %v5748, %v5979
    %v6010 = vadd.f32 %v5753, %v5984
    %v6011 = vadd.f32 %v5758, %v5989
    %v6012 = vadd.f32 %v5763, %v5994
    %s6013 = scalar_lea.vmem %s1, 384
    %v6014 = vld [vmem:[%s6013] sm:$0xff]
    %v6015 = vld [vmem:[%s6013 + $0x8] sm:$0xff]
    %v6016 = vld [vmem:[%s6013 + $0x10] sm:$0xff]
    %v6017 = vld [vmem:[%s6013 + $0x18] sm:$0xff]
    %v6019 = vsel %vm828, %v5297, 0
    %v6022 = vsel %vm828, %v5317, 0
    %6024 = vmatprep.subr.mxu0 0.0
    %6025 = vmatpush1.msra.mxu0 %v6014
    %6026 = vmatprep.subr.mxu0 0.0
    %6027 = vmatpush1.msra.mxu0 %v6015
    %6028 = vmatprep.subr.mxu0 0.0
    %6029 = vmatpush1.msra.mxu0 %v6016
    %6030 = vmatprep.subr.mxu0 0.0
    %6031 = vmatpush1.msra.mxu0 %v6017
    %6032 = vmatprep.subr.mxu0 0.0
    %6033 = vmatpush1.msra.mxu0 0.0
    %6034 = vmatprep.subr.mxu0 0.0
    %6035 = vmatpush1.msra.mxu0 0.0
    %6036 = vmatprep.subr.mxu0 0.0
    %6037 = vmatpush1.msra.mxu0 0.0
    %6038 = vmatprep.subr.mxu0 0.0
    %6039 = vmatpush1.msra.mxu0 0.0
    %6040 = vmatprep.subr.mxu0 0.0
    %6041 = vmatpush1.msra.mxu0 0.0
    %6042 = vmatprep.subr.mxu0 0.0
    %6043 = vmatpush1.msra.mxu0 0.0
    %6044 = vmatprep.subr.mxu0 0.0
    %6045 = vmatpush1.msra.mxu0 0.0
    %6046 = vmatprep.subr.mxu0 0.0
    %6047 = vmatpush1.msra.mxu0 0.0
    %6048 = vmatprep.subr.mxu0 0.0
    %6049 = vmatpush1.msra.mxu0 0.0
    %6050 = vmatprep.subr.mxu0 0.0
    %6051 = vmatpush1.msra.mxu0 0.0
    %6052 = vmatprep.subr.mxu0 0.0
    %6053 = vmatpush1.msra.mxu0 0.0
    %6054 = vmatprep.subr.mxu0 0.0
    %6055 = vmatpush1.msra.mxu0 0.0
    %6056 = vmatprep.subr.mxu0 0.0
    %6057 = vmatpush1.msra.mxu0 0.0
    %6058 = vmatprep.subr.mxu0 0.0
    %6059 = vmatpush1.msra.mxu0 0.0
    %6060 = vmatprep.subr.mxu0 0.0
    %6061 = vmatpush1.msra.mxu0 0.0
    %6062 = vmatprep.subr.mxu0 0.0
    %6063 = vmatpush1.msra.mxu0 0.0
    %6064 = vmatprep.subr.mxu0 0.0
    %6065 = vmatpush1.msra.mxu0 0.0
    %6066 = vmatprep.subr.mxu0 0.0
    %6067 = vmatpush1.msra.mxu0 0.0
    %6068 = vmatprep.subr.mxu0 0.0
    %6069 = vmatpush1.msra.mxu0 0.0
    %6070 = vmatprep.subr.mxu0 0.0
    %6071 = vmatpush1.msra.mxu0 0.0
    %6072 = vmatprep.subr.mxu0 0.0
    %6073 = vmatpush1.msra.mxu0 0.0
    %6074 = vmatprep.subr.mxu0 0.0
    %6075 = vmatpush1.msra.mxu0 0.0
    %6076 = vmatprep.subr.mxu0 0.0
    %6077 = vmatpush1.msra.mxu0 0.0
    %6078 = vmatprep.subr.mxu0 0.0
    %6079 = vmatpush1.msra.mxu0 0.0
    %6080 = vmatprep.subr.mxu0 0.0
    %6081 = vmatpush1.msra.mxu0 0.0
    %6082 = vmatprep.subr.mxu0 0.0
    %6083 = vmatpush1.msra.mxu0 0.0
    %6084 = vmatprep.subr.mxu0 0.0
    %6085 = vmatpush1.msra.mxu0 0.0
    %6086 = vmatprep.subr.mxu0 0.0
    %6087 = vmatpush1.msra.mxu0 0.0
    %6088 = vmatprep.mubr.f32.mxu0 0.0
    %6089 = vmatmul.mubr.f32.gmra.mrb[0].mxu0 %v5591
    %v6090 = vpop.f32.mrb[0].mxu0
    %v6091 = vadd.f32 0.0, %v6090
    %v6092 = vpop.f32.mrb[0].mxu0
    %6093 = vmatprep.mubr.f32.mxu0 0.0
    %6094 = vmatmul.mubr.f32.gmra.mrb[0].mxu0 %v5593
    %v6095 = vpop.f32.mrb[0].mxu0
    %v6096 = vadd.f32 0.0, %v6095
    %v6097 = vpop.f32.mrb[0].mxu0
    %6098 = vmatprep.mubr.f32.mxu0 0.0
    %6099 = vmatmul.mubr.f32.gmra.mrb[0].mxu0 %v5595
    %v6100 = vpop.f32.mrb[0].mxu0
    %v6101 = vadd.f32 0.0, %v6100
    %v6102 = vpop.f32.mrb[0].mxu0
    %6103 = vmatprep.mubr.f32.mxu0 0.0
    %6104 = vmatmul.mubr.f32.gmra.mrb[0].mxu0 %v5597
    %v6105 = vpop.f32.mrb[0].mxu0
    %v6106 = vadd.f32 0.0, %v6105
    %v6107 = vpop.f32.mrb[0].mxu0
    %6108 = vmatprep.mubr.f32.mxu0 0.0
    %6109 = vmatmul.mubr.f32.gmra.mrb[0].mxu0 %v5599
    %v6110 = vpop.f32.mrb[0].mxu0
    %v6111 = vadd.f32 0.0, %v6110
    %v6112 = vpop.f32.mrb[0].mxu0
    %6113 = vmatprep.mubr.f32.mxu0 0.0
    %6114 = vmatmul.mubr.f32.gmra.mrb[0].mxu0 %v5601
    %v6115 = vpop.f32.mrb[0].mxu0
    %v6116 = vadd.f32 0.0, %v6115
    %v6117 = vpop.f32.mrb[0].mxu0
    %6118 = vmatprep.mubr.f32.mxu0 0.0
    %6119 = vmatmul.mubr.f32.gmra.mrb[0].mxu0 %v5603
    %v6120 = vpop.f32.mrb[0].mxu0
    %v6121 = vadd.f32 0.0, %v6120
    %v6122 = vpop.f32.mrb[0].mxu0
    %6123 = vmatprep.mubr.f32.mxu0 0.0
    %6124 = vmatmul.mubr.f32.gmra.mrb[0].mxu0 %v6019
    %v6125 = vpop.f32.mrb[0].mxu0
    %v6126 = vadd.f32 0.0, %v6125
    %v6127 = vpop.f32.mrb[0].mxu0
    %6128 = vmatprep.mubr.f32.mxu0 0.0
    %6129 = vmatmul.mubr.f32.gmra.mrb[0].mxu0 %v5607
    %v6130 = vpop.f32.mrb[0].mxu0
    %v6131 = vadd.f32 0.0, %v6130
    %v6132 = vpop.f32.mrb[0].mxu0
    %6133 = vmatprep.mubr.f32.mxu0 0.0
    %6134 = vmatmul.mubr.f32.gmra.mrb[0].mxu0 %v5609
    %v6135 = vpop.f32.mrb[0].mxu0
    %v6136 = vadd.f32 0.0, %v6135
    %v6137 = vpop.f32.mrb[0].mxu0
    %6138 = vmatprep.mubr.f32.mxu0 0.0
    %6139 = vmatmul.mubr.f32.gmra.mrb[0].mxu0 %v5611
    %v6140 = vpop.f32.mrb[0].mxu0
    %v6141 = vadd.f32 0.0, %v6140
    %v6142 = vpop.f32.mrb[0].mxu0
    %6143 = vmatprep.mubr.f32.mxu0 0.0
    %6144 = vmatmul.mubr.f32.gmra.mrb[0].mxu0 %v5613
    %v6145 = vpop.f32.mrb[0].mxu0
    %v6146 = vadd.f32 0.0, %v6145
    %v6147 = vpop.f32.mrb[0].mxu0
    %6148 = vmatprep.mubr.f32.mxu0 0.0
    %6149 = vmatmul.mubr.f32.gmra.mrb[0].mxu0 %v5615
    %v6150 = vpop.f32.mrb[0].mxu0
    %v6151 = vadd.f32 0.0, %v6150
    %v6152 = vpop.f32.mrb[0].mxu0
    %6153 = vmatprep.mubr.f32.mxu0 0.0
    %6154 = vmatmul.mubr.f32.gmra.mrb[0].mxu0 %v5617
    %v6155 = vpop.f32.mrb[0].mxu0
    %v6156 = vadd.f32 0.0, %v6155
    %v6157 = vpop.f32.mrb[0].mxu0
    %6158 = vmatprep.mubr.f32.mxu0 0.0
    %6159 = vmatmul.mubr.f32.gmra.mrb[0].mxu0 %v5619
    %v6160 = vpop.f32.mrb[0].mxu0
    %v6161 = vadd.f32 0.0, %v6160
    %v6162 = vpop.f32.mrb[0].mxu0
    %6163 = vmatprep.mubr.f32.mxu0 0.0
    %6164 = vmatmul.mubr.f32.gmra.mrb[0].mxu0 %v6022
    %v6165 = vpop.f32.mrb[0].mxu0
    %v6166 = vadd.f32 0.0, %v6165
    %v6167 = vpop.f32.mrb[0].mxu0
    %6168 = vdwg.mxu0
    %v6169 = vadd.f32 %v5997, %v6091
    %v6170 = vadd.f32 %v5998, %v6096
    %v6171 = vadd.f32 %v5999, %v6101
    %v6172 = vadd.f32 %v6000, %v6106
    %v6173 = vadd.f32 %v6001, %v6111
    %v6174 = vadd.f32 %v6002, %v6116
    %v6175 = vadd.f32 %v6003, %v6121
    %v6176 = vadd.f32 %v6004, %v6126
    %v6177 = vadd.f32 %v6005, %v6131
    %v6178 = vadd.f32 %v6006, %v6136
    %v6179 = vadd.f32 %v6007, %v6141
    %v6180 = vadd.f32 %v6008, %v6146
    %v6181 = vadd.f32 %v6009, %v6151
    %v6182 = vadd.f32 %v6010, %v6156
    %v6183 = vadd.f32 %v6011, %v6161
    %v6184 = vadd.f32 %v6012, %v6166
    %v6187 = vrot.slane %v5297, 1
    %v6188 = vrot.slane %v5298, 1
    %v6189 = vsel %vm5358, %v6187, %v6188
    %v6190 = vrot.slane %v5317, 1
    %v6191 = vrot.slane %v5318, 1
    %v6192 = vsel %vm5358, %v6190, %v6191
    %s6193 = scalar_lea.vmem %s1, 416
    %v6194 = vld [vmem:[%s6193] sm:$0xff]
    %v6195 = vld [vmem:[%s6193 + $0x8] sm:$0xff]
    %v6196 = vld [vmem:[%s6193 + $0x10] sm:$0xff]
    %v6197 = vld [vmem:[%s6193 + $0x18] sm:$0xff]
    %v6198 = vsel %vm828, %v6189, 0
    %v6200 = vsel %vm828, %v6192, 0
    %6202 = vmatprep.subr.mxu0 0.0
    %6203 = vmatpush1.msra.mxu0 %v6194
    %6204 = vmatprep.subr.mxu0 0.0
    %6205 = vmatpush1.msra.mxu0 %v6195
    %6206 = vmatprep.subr.mxu0 0.0
    %6207 = vmatpush1.msra.mxu0 %v6196
    %6208 = vmatprep.subr.mxu0 0.0
    %6209 = vmatpush1.msra.mxu0 %v6197
    %6210 = vmatprep.subr.mxu0 0.0
    %6211 = vmatpush1.msra.mxu0 0.0
    %6212 = vmatprep.subr.mxu0 0.0
    %6213 = vmatpush1.msra.mxu0 0.0
    %6214 = vmatprep.subr.mxu0 0.0
    %6215 = vmatpush1.msra.mxu0 0.0
    %6216 = vmatprep.subr.mxu0 0.0
    %6217 = vmatpush1.msra.mxu0 0.0
    %6218 = vmatprep.subr.mxu0 0.0
    %6219 = vmatpush1.msra.mxu0 0.0
    %6220 = vmatprep.subr.mxu0 0.0
    %6221 = vmatpush1.msra.mxu0 0.0
    %6222 = vmatprep.subr.mxu0 0.0
    %6223 = vmatpush1.msra.mxu0 0.0
    %6224 = vmatprep.subr.mxu0 0.0
    %6225 = vmatpush1.msra.mxu0 0.0
    %6226 = vmatprep.subr.mxu0 0.0
    %6227 = vmatpush1.msra.mxu0 0.0
    %6228 = vmatprep.subr.mxu0 0.0
    %6229 = vmatpush1.msra.mxu0 0.0
    %6230 = vmatprep.subr.mxu0 0.0
    %6231 = vmatpush1.msra.mxu0 0.0
    %6232 = vmatprep.subr.mxu0 0.0
    %6233 = vmatpush1.msra.mxu0 0.0
    %6234 = vmatprep.subr.mxu0 0.0
    %6235 = vmatpush1.msra.mxu0 0.0
    %6236 = vmatprep.subr.mxu0 0.0
    %6237 = vmatpush1.msra.mxu0 0.0
    %6238 = vmatprep.subr.mxu0 0.0
    %6239 = vmatpush1.msra.mxu0 0.0
    %6240 = vmatprep.subr.mxu0 0.0
    %6241 = vmatpush1.msra.mxu0 0.0
    %6242 = vmatprep.subr.mxu0 0.0
    %6243 = vmatpush1.msra.mxu0 0.0
    %6244 = vmatprep.subr.mxu0 0.0
    %6245 = vmatpush1.msra.mxu0 0.0
    %6246 = vmatprep.subr.mxu0 0.0
    %6247 = vmatpush1.msra.mxu0 0.0
    %6248 = vmatprep.subr.mxu0 0.0
    %6249 = vmatpush1.msra.mxu0 0.0
    %6250 = vmatprep.subr.mxu0 0.0
    %6251 = vmatpush1.msra.mxu0 0.0
    %6252 = vmatprep.subr.mxu0 0.0
    %6253 = vmatpush1.msra.mxu0 0.0
    %6254 = vmatprep.subr.mxu0 0.0
    %6255 = vmatpush1.msra.mxu0 0.0
    %6256 = vmatprep.subr.mxu0 0.0
    %6257 = vmatpush1.msra.mxu0 0.0
    %6258 = vmatprep.subr.mxu0 0.0
    %6259 = vmatpush1.msra.mxu0 0.0
    %6260 = vmatprep.subr.mxu0 0.0
    %6261 = vmatpush1.msra.mxu0 0.0
    %6262 = vmatprep.subr.mxu0 0.0
    %6263 = vmatpush1.msra.mxu0 0.0
    %6264 = vmatprep.subr.mxu0 0.0
    %6265 = vmatpush1.msra.mxu0 0.0
    %6266 = vmatprep.mubr.f32.mxu0 0.0
    %6267 = vmatmul.mubr.f32.gmra.mrb[0].mxu0 %v5414
    %v6268 = vpop.f32.mrb[0].mxu0
    %v6269 = vadd.f32 0.0, %v6268
    %v6270 = vpop.f32.mrb[0].mxu0
    %6271 = vmatprep.mubr.f32.mxu0 0.0
    %6272 = vmatmul.mubr.f32.gmra.mrb[0].mxu0 %v5416
    %v6273 = vpop.f32.mrb[0].mxu0
    %v6274 = vadd.f32 0.0, %v6273
    %v6275 = vpop.f32.mrb[0].mxu0
    %6276 = vmatprep.mubr.f32.mxu0 0.0
    %6277 = vmatmul.mubr.f32.gmra.mrb[0].mxu0 %v5418
    %v6278 = vpop.f32.mrb[0].mxu0
    %v6279 = vadd.f32 0.0, %v6278
    %v6280 = vpop.f32.mrb[0].mxu0
    %6281 = vmatprep.mubr.f32.mxu0 0.0
    %6282 = vmatmul.mubr.f32.gmra.mrb[0].mxu0 %v5420
    %v6283 = vpop.f32.mrb[0].mxu0
    %v6284 = vadd.f32 0.0, %v6283
    %v6285 = vpop.f32.mrb[0].mxu0
    %6286 = vmatprep.mubr.f32.mxu0 0.0
    %6287 = vmatmul.mubr.f32.gmra.mrb[0].mxu0 %v5422
    %v6288 = vpop.f32.mrb[0].mxu0
    %v6289 = vadd.f32 0.0, %v6288
    %v6290 = vpop.f32.mrb[0].mxu0
    %6291 = vmatprep.mubr.f32.mxu0 0.0
    %6292 = vmatmul.mubr.f32.gmra.mrb[0].mxu0 %v5424
    %v6293 = vpop.f32.mrb[0].mxu0
    %v6294 = vadd.f32 0.0, %v6293
    %v6295 = vpop.f32.mrb[0].mxu0
    %6296 = vmatprep.mubr.f32.mxu0 0.0
    %6297 = vmatmul.mubr.f32.gmra.mrb[0].mxu0 %v5426
    %v6298 = vpop.f32.mrb[0].mxu0
    %v6299 = vadd.f32 0.0, %v6298
    %v6300 = vpop.f32.mrb[0].mxu0
    %6301 = vmatprep.mubr.f32.mxu0 0.0
    %6302 = vmatmul.mubr.f32.gmra.mrb[0].mxu0 %v6198
    %v6303 = vpop.f32.mrb[0].mxu0
    %v6304 = vadd.f32 0.0, %v6303
    %v6305 = vpop.f32.mrb[0].mxu0
    %6306 = vmatprep.mubr.f32.mxu0 0.0
    %6307 = vmatmul.mubr.f32.gmra.mrb[0].mxu0 %v5430
    %v6308 = vpop.f32.mrb[0].mxu0
    %v6309 = vadd.f32 0.0, %v6308
    %v6310 = vpop.f32.mrb[0].mxu0
    %6311 = vmatprep.mubr.f32.mxu0 0.0
    %6312 = vmatmul.mubr.f32.gmra.mrb[0].mxu0 %v5432
    %v6313 = vpop.f32.mrb[0].mxu0
    %v6314 = vadd.f32 0.0, %v6313
    %v6315 = vpop.f32.mrb[0].mxu0
    %6316 = vmatprep.mubr.f32.mxu0 0.0
    %6317 = vmatmul.mubr.f32.gmra.mrb[0].mxu0 %v5434
    %v6318 = vpop.f32.mrb[0].mxu0
    %v6319 = vadd.f32 0.0, %v6318
    %v6320 = vpop.f32.mrb[0].mxu0
    %6321 = vmatprep.mubr.f32.mxu0 0.0
    %6322 = vmatmul.mubr.f32.gmra.mrb[0].mxu0 %v5436
    %v6323 = vpop.f32.mrb[0].mxu0
    %v6324 = vadd.f32 0.0, %v6323
    %v6325 = vpop.f32.mrb[0].mxu0
    %6326 = vmatprep.mubr.f32.mxu0 0.0
    %6327 = vmatmul.mubr.f32.gmra.mrb[0].mxu0 %v5438
    %v6328 = vpop.f32.mrb[0].mxu0
    %v6329 = vadd.f32 0.0, %v6328
    %v6330 = vpop.f32.mrb[0].mxu0
    %6331 = vmatprep.mubr.f32.mxu0 0.0
    %6332 = vmatmul.mubr.f32.gmra.mrb[0].mxu0 %v5440
    %v6333 = vpop.f32.mrb[0].mxu0
    %v6334 = vadd.f32 0.0, %v6333
    %v6335 = vpop.f32.mrb[0].mxu0
    %6336 = vmatprep.mubr.f32.mxu0 0.0
    %6337 = vmatmul.mubr.f32.gmra.mrb[0].mxu0 %v5442
    %v6338 = vpop.f32.mrb[0].mxu0
    %v6339 = vadd.f32 0.0, %v6338
    %v6340 = vpop.f32.mrb[0].mxu0
    %6341 = vmatprep.mubr.f32.mxu0 0.0
    %6342 = vmatmul.mubr.f32.gmra.mrb[0].mxu0 %v6200
    %v6343 = vpop.f32.mrb[0].mxu0
    %v6344 = vadd.f32 0.0, %v6343
    %v6345 = vpop.f32.mrb[0].mxu0
    %6346 = vdwg.mxu0
    %v6347 = vadd.f32 %v6169, %v6269
    %v6348 = vadd.f32 %v6170, %v6274
    %v6349 = vadd.f32 %v6171, %v6279
    %v6350 = vadd.f32 %v6172, %v6284
    %v6351 = vadd.f32 %v6173, %v6289
    %v6352 = vadd.f32 %v6174, %v6294
    %v6353 = vadd.f32 %v6175, %v6299
    %v6354 = vadd.f32 %v6176, %v6304
    %v6355 = vadd.f32 %v6177, %v6309
    %v6356 = vadd.f32 %v6178, %v6314
    %v6357 = vadd.f32 %v6179, %v6319
    %v6358 = vadd.f32 %v6180, %v6324
    %v6359 = vadd.f32 %v6181, %v6329
    %v6360 = vadd.f32 %v6182, %v6334
    %v6361 = vadd.f32 %v6183, %v6339
    %v6362 = vadd.f32 %v6184, %v6344
    %v6363 = vrot.slane %v5297, 2
    %v6364 = vrot.slane %v5298, 2
    %v6365 = vsel %vm5766, %v6363, %v6364
    %v6366 = vrot.slane %v5317, 2
    %v6367 = vrot.slane %v5318, 2
    %v6368 = vsel %vm5766, %v6366, %v6367
    %s6369 = scalar_lea.vmem %s1, 448
    %v6370 = vld [vmem:[%s6369] sm:$0xff]
    %v6371 = vld [vmem:[%s6369 + $0x8] sm:$0xff]
    %v6372 = vld [vmem:[%s6369 + $0x10] sm:$0xff]
    %v6373 = vld [vmem:[%s6369 + $0x18] sm:$0xff]
    %v6374 = vsel %vm828, %v6365, 0
    %v6376 = vsel %vm828, %v6368, 0
    %6378 = vmatprep.subr.mxu0 0.0
    %6379 = vmatpush1.msra.mxu0 %v6370
    %6380 = vmatprep.subr.mxu0 0.0
    %6381 = vmatpush1.msra.mxu0 %v6371
    %6382 = vmatprep.subr.mxu0 0.0
    %6383 = vmatpush1.msra.mxu0 %v6372
    %6384 = vmatprep.subr.mxu0 0.0
    %6385 = vmatpush1.msra.mxu0 %v6373
    %6386 = vmatprep.subr.mxu0 0.0
    %6387 = vmatpush1.msra.mxu0 0.0
    %6388 = vmatprep.subr.mxu0 0.0
    %6389 = vmatpush1.msra.mxu0 0.0
    %6390 = vmatprep.subr.mxu0 0.0
    %6391 = vmatpush1.msra.mxu0 0.0
    %6392 = vmatprep.subr.mxu0 0.0
    %6393 = vmatpush1.msra.mxu0 0.0
    %6394 = vmatprep.subr.mxu0 0.0
    %6395 = vmatpush1.msra.mxu0 0.0
    %6396 = vmatprep.subr.mxu0 0.0
    %6397 = vmatpush1.msra.mxu0 0.0
    %6398 = vmatprep.subr.mxu0 0.0
    %6399 = vmatpush1.msra.mxu0 0.0
    %6400 = vmatprep.subr.mxu0 0.0
    %6401 = vmatpush1.msra.mxu0 0.0
    %6402 = vmatprep.subr.mxu0 0.0
    %6403 = vmatpush1.msra.mxu0 0.0
    %6404 = vmatprep.subr.mxu0 0.0
    %6405 = vmatpush1.msra.mxu0 0.0
    %6406 = vmatprep.subr.mxu0 0.0
    %6407 = vmatpush1.msra.mxu0 0.0
    %6408 = vmatprep.subr.mxu0 0.0
    %6409 = vmatpush1.msra.mxu0 0.0
    %6410 = vmatprep.subr.mxu0 0.0
    %6411 = vmatpush1.msra.mxu0 0.0
    %6412 = vmatprep.subr.mxu0 0.0
    %6413 = vmatpush1.msra.mxu0 0.0
    %6414 = vmatprep.subr.mxu0 0.0
    %6415 = vmatpush1.msra.mxu0 0.0
    %6416 = vmatprep.subr.mxu0 0.0
    %6417 = vmatpush1.msra.mxu0 0.0
    %6418 = vmatprep.subr.mxu0 0.0
    %6419 = vmatpush1.msra.mxu0 0.0
    %6420 = vmatprep.subr.mxu0 0.0
    %6421 = vmatpush1.msra.mxu0 0.0
    %6422 = vmatprep.subr.mxu0 0.0
    %6423 = vmatpush1.msra.mxu0 0.0
    %6424 = vmatprep.subr.mxu0 0.0
    %6425 = vmatpush1.msra.mxu0 0.0
    %6426 = vmatprep.subr.mxu0 0.0
    %6427 = vmatpush1.msra.mxu0 0.0
    %6428 = vmatprep.subr.mxu0 0.0
    %6429 = vmatpush1.msra.mxu0 0.0
    %6430 = vmatprep.subr.mxu0 0.0
    %6431 = vmatpush1.msra.mxu0 0.0
    %6432 = vmatprep.subr.mxu0 0.0
    %6433 = vmatpush1.msra.mxu0 0.0
    %6434 = vmatprep.subr.mxu0 0.0
    %6435 = vmatpush1.msra.mxu0 0.0
    %6436 = vmatprep.subr.mxu0 0.0
    %6437 = vmatpush1.msra.mxu0 0.0
    %6438 = vmatprep.subr.mxu0 0.0
    %6439 = vmatpush1.msra.mxu0 0.0
    %6440 = vmatprep.subr.mxu0 0.0
    %6441 = vmatpush1.msra.mxu0 0.0
    %6442 = vmatprep.mubr.f32.mxu0 0.0
    %6443 = vmatmul.mubr.f32.gmra.mrb[0].mxu0 %v5822
    %v6444 = vpop.f32.mrb[0].mxu0
    %v6445 = vadd.f32 0.0, %v6444
    %v6446 = vpop.f32.mrb[0].mxu0
    %6447 = vmatprep.mubr.f32.mxu0 0.0
    %6448 = vmatmul.mubr.f32.gmra.mrb[0].mxu0 %v5824
    %v6449 = vpop.f32.mrb[0].mxu0
    %v6450 = vadd.f32 0.0, %v6449
    %v6451 = vpop.f32.mrb[0].mxu0
    %6452 = vmatprep.mubr.f32.mxu0 0.0
    %6453 = vmatmul.mubr.f32.gmra.mrb[0].mxu0 %v5826
    %v6454 = vpop.f32.mrb[0].mxu0
    %v6455 = vadd.f32 0.0, %v6454
    %v6456 = vpop.f32.mrb[0].mxu0
    %6457 = vmatprep.mubr.f32.mxu0 0.0
    %6458 = vmatmul.mubr.f32.gmra.mrb[0].mxu0 %v5828
    %v6459 = vpop.f32.mrb[0].mxu0
    %v6460 = vadd.f32 0.0, %v6459
    %v6461 = vpop.f32.mrb[0].mxu0
    %6462 = vmatprep.mubr.f32.mxu0 0.0
    %6463 = vmatmul.mubr.f32.gmra.mrb[0].mxu0 %v5830
    %v6464 = vpop.f32.mrb[0].mxu0
    %v6465 = vadd.f32 0.0, %v6464
    %v6466 = vpop.f32.mrb[0].mxu0
    %6467 = vmatprep.mubr.f32.mxu0 0.0
    %6468 = vmatmul.mubr.f32.gmra.mrb[0].mxu0 %v5832
    %v6469 = vpop.f32.mrb[0].mxu0
    %v6470 = vadd.f32 0.0, %v6469
    %v6471 = vpop.f32.mrb[0].mxu0
    %6472 = vmatprep.mubr.f32.mxu0 0.0
    %6473 = vmatmul.mubr.f32.gmra.mrb[0].mxu0 %v5834
    %v6474 = vpop.f32.mrb[0].mxu0
    %v6475 = vadd.f32 0.0, %v6474
    %v6476 = vpop.f32.mrb[0].mxu0
    %6477 = vmatprep.mubr.f32.mxu0 0.0
    %6478 = vmatmul.mubr.f32.gmra.mrb[0].mxu0 %v6374
    %v6479 = vpop.f32.mrb[0].mxu0
    %v6480 = vadd.f32 0.0, %v6479
    %v6481 = vpop.f32.mrb[0].mxu0
    %6482 = vmatprep.mubr.f32.mxu0 0.0
    %6483 = vmatmul.mubr.f32.gmra.mrb[0].mxu0 %v5838
    %v6484 = vpop.f32.mrb[0].mxu0
    %v6485 = vadd.f32 0.0, %v6484
    %v6486 = vpop.f32.mrb[0].mxu0
    %6487 = vmatprep.mubr.f32.mxu0 0.0
    %6488 = vmatmul.mubr.f32.gmra.mrb[0].mxu0 %v5840
    %v6489 = vpop.f32.mrb[0].mxu0
    %v6490 = vadd.f32 0.0, %v6489
    %v6491 = vpop.f32.mrb[0].mxu0
    %6492 = vmatprep.mubr.f32.mxu0 0.0
    %6493 = vmatmul.mubr.f32.gmra.mrb[0].mxu0 %v5842
    %v6494 = vpop.f32.mrb[0].mxu0
    %v6495 = vadd.f32 0.0, %v6494
    %v6496 = vpop.f32.mrb[0].mxu0
    %6497 = vmatprep.mubr.f32.mxu0 0.0
    %6498 = vmatmul.mubr.f32.gmra.mrb[0].mxu0 %v5844
    %v6499 = vpop.f32.mrb[0].mxu0
    %v6500 = vadd.f32 0.0, %v6499
    %v6501 = vpop.f32.mrb[0].mxu0
    %6502 = vmatprep.mubr.f32.mxu0 0.0
    %6503 = vmatmul.mubr.f32.gmra.mrb[0].mxu0 %v5846
    %v6504 = vpop.f32.mrb[0].mxu0
    %v6505 = vadd.f32 0.0, %v6504
    %v6506 = vpop.f32.mrb[0].mxu0
    %6507 = vmatprep.mubr.f32.mxu0 0.0
    %6508 = vmatmul.mubr.f32.gmra.mrb[0].mxu0 %v5848
    %v6509 = vpop.f32.mrb[0].mxu0
    %v6510 = vadd.f32 0.0, %v6509
    %v6511 = vpop.f32.mrb[0].mxu0
    %6512 = vmatprep.mubr.f32.mxu0 0.0
    %6513 = vmatmul.mubr.f32.gmra.mrb[0].mxu0 %v5850
    %v6514 = vpop.f32.mrb[0].mxu0
    %v6515 = vadd.f32 0.0, %v6514
    %v6516 = vpop.f32.mrb[0].mxu0
    %6517 = vmatprep.mubr.f32.mxu0 0.0
    %6518 = vmatmul.mubr.f32.gmra.mrb[0].mxu0 %v6376
    %v6519 = vpop.f32.mrb[0].mxu0
    %v6520 = vadd.f32 0.0, %v6519
    %v6521 = vpop.f32.mrb[0].mxu0
    %6522 = vdwg.mxu0
    %v6523 = vadd.f32 %v6347, %v6445
    %v6524 = vadd.f32 %v6348, %v6450
    %v6525 = vadd.f32 %v6349, %v6455
    %v6526 = vadd.f32 %v6350, %v6460
    %v6527 = vadd.f32 %v6351, %v6465
    %v6528 = vadd.f32 %v6352, %v6470
    %v6529 = vadd.f32 %v6353, %v6475
    %v6530 = vadd.f32 %v6354, %v6480
    %v6531 = vadd.f32 %v6355, %v6485
    %v6532 = vadd.f32 %v6356, %v6490
    %v6533 = vadd.f32 %v6357, %v6495
    %v6534 = vadd.f32 %v6358, %v6500
    %v6535 = vadd.f32 %v6359, %v6505
    %v6536 = vadd.f32 %v6360, %v6510
    %v6537 = vadd.f32 %v6361, %v6515
    %v6538 = vadd.f32 %v6362, %v6520
    %s6539 = scalar_lea.vmem %s1, 480
    %v6540 = vld [vmem:[%s6539] sm:$0xff]
    %v6541 = vld [vmem:[%s6539 + $0x8] sm:$0xff]
    %v6542 = vld [vmem:[%s6539 + $0x10] sm:$0xff]
    %v6543 = vld [vmem:[%s6539 + $0x18] sm:$0xff]
    %v6545 = vsel %vm828, %v5299, 0
    %v6548 = vsel %vm828, %v5319, 0
    %6550 = vmatprep.subr.mxu0 0.0
    %6551 = vmatpush1.msra.mxu0 %v6540
    %6552 = vmatprep.subr.mxu0 0.0
    %6553 = vmatpush1.msra.mxu0 %v6541
    %6554 = vmatprep.subr.mxu0 0.0
    %6555 = vmatpush1.msra.mxu0 %v6542
    %6556 = vmatprep.subr.mxu0 0.0
    %6557 = vmatpush1.msra.mxu0 %v6543
    %6558 = vmatprep.subr.mxu0 0.0
    %6559 = vmatpush1.msra.mxu0 0.0
    %6560 = vmatprep.subr.mxu0 0.0
    %6561 = vmatpush1.msra.mxu0 0.0
    %6562 = vmatprep.subr.mxu0 0.0
    %6563 = vmatpush1.msra.mxu0 0.0
    %6564 = vmatprep.subr.mxu0 0.0
    %6565 = vmatpush1.msra.mxu0 0.0
    %6566 = vmatprep.subr.mxu0 0.0
    %6567 = vmatpush1.msra.mxu0 0.0
    %6568 = vmatprep.subr.mxu0 0.0
    %6569 = vmatpush1.msra.mxu0 0.0
    %6570 = vmatprep.subr.mxu0 0.0
    %6571 = vmatpush1.msra.mxu0 0.0
    %6572 = vmatprep.subr.mxu0 0.0
    %6573 = vmatpush1.msra.mxu0 0.0
    %6574 = vmatprep.subr.mxu0 0.0
    %6575 = vmatpush1.msra.mxu0 0.0
    %6576 = vmatprep.subr.mxu0 0.0
    %6577 = vmatpush1.msra.mxu0 0.0
    %6578 = vmatprep.subr.mxu0 0.0
    %6579 = vmatpush1.msra.mxu0 0.0
    %6580 = vmatprep.subr.mxu0 0.0
    %6581 = vmatpush1.msra.mxu0 0.0
    %6582 = vmatprep.subr.mxu0 0.0
    %6583 = vmatpush1.msra.mxu0 0.0
    %6584 = vmatprep.subr.mxu0 0.0
    %6585 = vmatpush1.msra.mxu0 0.0
    %6586 = vmatprep.subr.mxu0 0.0
    %6587 = vmatpush1.msra.mxu0 0.0
    %6588 = vmatprep.subr.mxu0 0.0
    %6589 = vmatpush1.msra.mxu0 0.0
    %6590 = vmatprep.subr.mxu0 0.0
    %6591 = vmatpush1.msra.mxu0 0.0
    %6592 = vmatprep.subr.mxu0 0.0
    %6593 = vmatpush1.msra.mxu0 0.0
    %6594 = vmatprep.subr.mxu0 0.0
    %6595 = vmatpush1.msra.mxu0 0.0
    %6596 = vmatprep.subr.mxu0 0.0
    %6597 = vmatpush1.msra.mxu0 0.0
    %6598 = vmatprep.subr.mxu0 0.0
    %6599 = vmatpush1.msra.mxu0 0.0
    %6600 = vmatprep.subr.mxu0 0.0
    %6601 = vmatpush1.msra.mxu0 0.0
    %6602 = vmatprep.subr.mxu0 0.0
    %6603 = vmatpush1.msra.mxu0 0.0
    %6604 = vmatprep.subr.mxu0 0.0
    %6605 = vmatpush1.msra.mxu0 0.0
    %6606 = vmatprep.subr.mxu0 0.0
    %6607 = vmatpush1.msra.mxu0 0.0
    %6608 = vmatprep.subr.mxu0 0.0
    %6609 = vmatpush1.msra.mxu0 0.0
    %6610 = vmatprep.subr.mxu0 0.0
    %6611 = vmatpush1.msra.mxu0 0.0
    %6612 = vmatprep.subr.mxu0 0.0
    %6613 = vmatpush1.msra.mxu0 0.0
    %6614 = vmatprep.mubr.f32.mxu0 0.0
    %6615 = vmatmul.mubr.f32.gmra.mrb[0].mxu0 %v5593
    %v6616 = vpop.f32.mrb[0].mxu0
    %v6617 = vadd.f32 0.0, %v6616
    %v6618 = vpop.f32.mrb[0].mxu0
    %6619 = vmatprep.mubr.f32.mxu0 0.0
    %6620 = vmatmul.mubr.f32.gmra.mrb[0].mxu0 %v5595
    %v6621 = vpop.f32.mrb[0].mxu0
    %v6622 = vadd.f32 0.0, %v6621
    %v6623 = vpop.f32.mrb[0].mxu0
    %6624 = vmatprep.mubr.f32.mxu0 0.0
    %6625 = vmatmul.mubr.f32.gmra.mrb[0].mxu0 %v5597
    %v6626 = vpop.f32.mrb[0].mxu0
    %v6627 = vadd.f32 0.0, %v6626
    %v6628 = vpop.f32.mrb[0].mxu0
    %6629 = vmatprep.mubr.f32.mxu0 0.0
    %6630 = vmatmul.mubr.f32.gmra.mrb[0].mxu0 %v5599
    %v6631 = vpop.f32.mrb[0].mxu0
    %v6632 = vadd.f32 0.0, %v6631
    %v6633 = vpop.f32.mrb[0].mxu0
    %6634 = vmatprep.mubr.f32.mxu0 0.0
    %6635 = vmatmul.mubr.f32.gmra.mrb[0].mxu0 %v5601
    %v6636 = vpop.f32.mrb[0].mxu0
    %v6637 = vadd.f32 0.0, %v6636
    %v6638 = vpop.f32.mrb[0].mxu0
    %6639 = vmatprep.mubr.f32.mxu0 0.0
    %6640 = vmatmul.mubr.f32.gmra.mrb[0].mxu0 %v5603
    %v6641 = vpop.f32.mrb[0].mxu0
    %v6642 = vadd.f32 0.0, %v6641
    %v6643 = vpop.f32.mrb[0].mxu0
    %6644 = vmatprep.mubr.f32.mxu0 0.0
    %6645 = vmatmul.mubr.f32.gmra.mrb[0].mxu0 %v6019
    %v6646 = vpop.f32.mrb[0].mxu0
    %v6647 = vadd.f32 0.0, %v6646
    %v6648 = vpop.f32.mrb[0].mxu0
    %6649 = vmatprep.mubr.f32.mxu0 0.0
    %6650 = vmatmul.mubr.f32.gmra.mrb[0].mxu0 %v6545
    %v6651 = vpop.f32.mrb[0].mxu0
    %v6652 = vadd.f32 0.0, %v6651
    %v6653 = vpop.f32.mrb[0].mxu0
    %6654 = vmatprep.mubr.f32.mxu0 0.0
    %6655 = vmatmul.mubr.f32.gmra.mrb[0].mxu0 %v5609
    %v6656 = vpop.f32.mrb[0].mxu0
    %v6657 = vadd.f32 0.0, %v6656
    %v6658 = vpop.f32.mrb[0].mxu0
    %6659 = vmatprep.mubr.f32.mxu0 0.0
    %6660 = vmatmul.mubr.f32.gmra.mrb[0].mxu0 %v5611
    %v6661 = vpop.f32.mrb[0].mxu0
    %v6662 = vadd.f32 0.0, %v6661
    %v6663 = vpop.f32.mrb[0].mxu0
    %6664 = vmatprep.mubr.f32.mxu0 0.0
    %6665 = vmatmul.mubr.f32.gmra.mrb[0].mxu0 %v5613
    %v6666 = vpop.f32.mrb[0].mxu0
    %v6667 = vadd.f32 0.0, %v6666
    %v6668 = vpop.f32.mrb[0].mxu0
    %6669 = vmatprep.mubr.f32.mxu0 0.0
    %6670 = vmatmul.mubr.f32.gmra.mrb[0].mxu0 %v5615
    %v6671 = vpop.f32.mrb[0].mxu0
    %v6672 = vadd.f32 0.0, %v6671
    %v6673 = vpop.f32.mrb[0].mxu0
    %6674 = vmatprep.mubr.f32.mxu0 0.0
    %6675 = vmatmul.mubr.f32.gmra.mrb[0].mxu0 %v5617
    %v6676 = vpop.f32.mrb[0].mxu0
    %v6677 = vadd.f32 0.0, %v6676
    %v6678 = vpop.f32.mrb[0].mxu0
    %6679 = vmatprep.mubr.f32.mxu0 0.0
    %6680 = vmatmul.mubr.f32.gmra.mrb[0].mxu0 %v5619
    %v6681 = vpop.f32.mrb[0].mxu0
    %v6682 = vadd.f32 0.0, %v6681
    %v6683 = vpop.f32.mrb[0].mxu0
    %6684 = vmatprep.mubr.f32.mxu0 0.0
    %6685 = vmatmul.mubr.f32.gmra.mrb[0].mxu0 %v6022
    %v6686 = vpop.f32.mrb[0].mxu0
    %v6687 = vadd.f32 0.0, %v6686
    %v6688 = vpop.f32.mrb[0].mxu0
    %6689 = vmatprep.mubr.f32.mxu0 0.0
    %6690 = vmatmul.mubr.f32.gmra.mrb[0].mxu0 %v6548
    %v6691 = vpop.f32.mrb[0].mxu0
    %v6692 = vadd.f32 0.0, %v6691
    %v6693 = vpop.f32.mrb[0].mxu0
    %6694 = vdwg.mxu0
    %v6695 = vadd.f32 %v6523, %v6617
    %v6696 = vadd.f32 %v6524, %v6622
    %v6697 = vadd.f32 %v6525, %v6627
    %v6698 = vadd.f32 %v6526, %v6632
    %v6699 = vadd.f32 %v6527, %v6637
    %v6700 = vadd.f32 %v6528, %v6642
    %v6701 = vadd.f32 %v6529, %v6647
    %v6702 = vadd.f32 %v6530, %v6652
    %v6703 = vadd.f32 %v6531, %v6657
    %v6704 = vadd.f32 %v6532, %v6662
    %v6705 = vadd.f32 %v6533, %v6667
    %v6706 = vadd.f32 %v6534, %v6672
    %v6707 = vadd.f32 %v6535, %v6677
    %v6708 = vadd.f32 %v6536, %v6682
    %v6709 = vadd.f32 %v6537, %v6687
    %v6710 = vadd.f32 %v6538, %v6692
    %v6713 = vrot.slane %v5299, 1
    %v6714 = vrot.slane %v5300, 1
    %v6715 = vsel %vm5358, %v6713, %v6714
    %v6716 = vrot.slane %v5319, 1
    %v6717 = vrot.slane %v5320, 1
    %v6718 = vsel %vm5358, %v6716, %v6717
    %s6719 = scalar_lea.vmem %s1, 512
    %v6720 = vld [vmem:[%s6719] sm:$0xff]
    %v6721 = vld [vmem:[%s6719 + $0x8] sm:$0xff]
    %v6722 = vld [vmem:[%s6719 + $0x10] sm:$0xff]
    %v6723 = vld [vmem:[%s6719 + $0x18] sm:$0xff]
    %v6724 = vsel %vm828, %v6715, 0
    %v6726 = vsel %vm828, %v6718, 0
    %6728 = vmatprep.subr.mxu0 0.0
    %6729 = vmatpush1.msra.mxu0 %v6720
    %6730 = vmatprep.subr.mxu0 0.0
    %6731 = vmatpush1.msra.mxu0 %v6721
    %6732 = vmatprep.subr.mxu0 0.0
    %6733 = vmatpush1.msra.mxu0 %v6722
    %6734 = vmatprep.subr.mxu0 0.0
    %6735 = vmatpush1.msra.mxu0 %v6723
    %6736 = vmatprep.subr.mxu0 0.0
    %6737 = vmatpush1.msra.mxu0 0.0
    %6738 = vmatprep.subr.mxu0 0.0
    %6739 = vmatpush1.msra.mxu0 0.0
    %6740 = vmatprep.subr.mxu0 0.0
    %6741 = vmatpush1.msra.mxu0 0.0
    %6742 = vmatprep.subr.mxu0 0.0
    %6743 = vmatpush1.msra.mxu0 0.0
    %6744 = vmatprep.subr.mxu0 0.0
    %6745 = vmatpush1.msra.mxu0 0.0
    %6746 = vmatprep.subr.mxu0 0.0
    %6747 = vmatpush1.msra.mxu0 0.0
    %6748 = vmatprep.subr.mxu0 0.0
    %6749 = vmatpush1.msra.mxu0 0.0
    %6750 = vmatprep.subr.mxu0 0.0
    %6751 = vmatpush1.msra.mxu0 0.0
    %6752 = vmatprep.subr.mxu0 0.0
    %6753 = vmatpush1.msra.mxu0 0.0
    %6754 = vmatprep.subr.mxu0 0.0
    %6755 = vmatpush1.msra.mxu0 0.0
    %6756 = vmatprep.subr.mxu0 0.0
    %6757 = vmatpush1.msra.mxu0 0.0
    %6758 = vmatprep.subr.mxu0 0.0
    %6759 = vmatpush1.msra.mxu0 0.0
    %6760 = vmatprep.subr.mxu0 0.0
    %6761 = vmatpush1.msra.mxu0 0.0
    %6762 = vmatprep.subr.mxu0 0.0
    %6763 = vmatpush1.msra.mxu0 0.0
    %6764 = vmatprep.subr.mxu0 0.0
    %6765 = vmatpush1.msra.mxu0 0.0
    %6766 = vmatprep.subr.mxu0 0.0
    %6767 = vmatpush1.msra.mxu0 0.0
    %6768 = vmatprep.subr.mxu0 0.0
    %6769 = vmatpush1.msra.mxu0 0.0
    %6770 = vmatprep.subr.mxu0 0.0
    %6771 = vmatpush1.msra.mxu0 0.0
    %6772 = vmatprep.subr.mxu0 0.0
    %6773 = vmatpush1.msra.mxu0 0.0
    %6774 = vmatprep.subr.mxu0 0.0
    %6775 = vmatpush1.msra.mxu0 0.0
    %6776 = vmatprep.subr.mxu0 0.0
    %6777 = vmatpush1.msra.mxu0 0.0
    %6778 = vmatprep.subr.mxu0 0.0
    %6779 = vmatpush1.msra.mxu0 0.0
    %6780 = vmatprep.subr.mxu0 0.0
    %6781 = vmatpush1.msra.mxu0 0.0
    %6782 = vmatprep.subr.mxu0 0.0
    %6783 = vmatpush1.msra.mxu0 0.0
    %6784 = vmatprep.subr.mxu0 0.0
    %6785 = vmatpush1.msra.mxu0 0.0
    %6786 = vmatprep.subr.mxu0 0.0
    %6787 = vmatpush1.msra.mxu0 0.0
    %6788 = vmatprep.subr.mxu0 0.0
    %6789 = vmatpush1.msra.mxu0 0.0
    %6790 = vmatprep.subr.mxu0 0.0
    %6791 = vmatpush1.msra.mxu0 0.0
    %6792 = vmatprep.mubr.f32.mxu0 0.0
    %6793 = vmatmul.mubr.f32.gmra.mrb[0].mxu0 %v5416
    %v6794 = vpop.f32.mrb[0].mxu0
    %v6795 = vadd.f32 0.0, %v6794
    %v6796 = vpop.f32.mrb[0].mxu0
    %6797 = vmatprep.mubr.f32.mxu0 0.0
    %6798 = vmatmul.mubr.f32.gmra.mrb[0].mxu0 %v5418
    %v6799 = vpop.f32.mrb[0].mxu0
    %v6800 = vadd.f32 0.0, %v6799
    %v6801 = vpop.f32.mrb[0].mxu0
    %6802 = vmatprep.mubr.f32.mxu0 0.0
    %6803 = vmatmul.mubr.f32.gmra.mrb[0].mxu0 %v5420
    %v6804 = vpop.f32.mrb[0].mxu0
    %v6805 = vadd.f32 0.0, %v6804
    %v6806 = vpop.f32.mrb[0].mxu0
    %6807 = vmatprep.mubr.f32.mxu0 0.0
    %6808 = vmatmul.mubr.f32.gmra.mrb[0].mxu0 %v5422
    %v6809 = vpop.f32.mrb[0].mxu0
    %v6810 = vadd.f32 0.0, %v6809
    %v6811 = vpop.f32.mrb[0].mxu0
    %6812 = vmatprep.mubr.f32.mxu0 0.0
    %6813 = vmatmul.mubr.f32.gmra.mrb[0].mxu0 %v5424
    %v6814 = vpop.f32.mrb[0].mxu0
    %v6815 = vadd.f32 0.0, %v6814
    %v6816 = vpop.f32.mrb[0].mxu0
    %6817 = vmatprep.mubr.f32.mxu0 0.0
    %6818 = vmatmul.mubr.f32.gmra.mrb[0].mxu0 %v5426
    %v6819 = vpop.f32.mrb[0].mxu0
    %v6820 = vadd.f32 0.0, %v6819
    %v6821 = vpop.f32.mrb[0].mxu0
    %6822 = vmatprep.mubr.f32.mxu0 0.0
    %6823 = vmatmul.mubr.f32.gmra.mrb[0].mxu0 %v6198
    %v6824 = vpop.f32.mrb[0].mxu0
    %v6825 = vadd.f32 0.0, %v6824
    %v6826 = vpop.f32.mrb[0].mxu0
    %6827 = vmatprep.mubr.f32.mxu0 0.0
    %6828 = vmatmul.mubr.f32.gmra.mrb[0].mxu0 %v6724
    %v6829 = vpop.f32.mrb[0].mxu0
    %v6830 = vadd.f32 0.0, %v6829
    %v6831 = vpop.f32.mrb[0].mxu0
    %6832 = vmatprep.mubr.f32.mxu0 0.0
    %6833 = vmatmul.mubr.f32.gmra.mrb[0].mxu0 %v5432
    %v6834 = vpop.f32.mrb[0].mxu0
    %v6835 = vadd.f32 0.0, %v6834
    %v6836 = vpop.f32.mrb[0].mxu0
    %6837 = vmatprep.mubr.f32.mxu0 0.0
    %6838 = vmatmul.mubr.f32.gmra.mrb[0].mxu0 %v5434
    %v6839 = vpop.f32.mrb[0].mxu0
    %v6840 = vadd.f32 0.0, %v6839
    %v6841 = vpop.f32.mrb[0].mxu0
    %6842 = vmatprep.mubr.f32.mxu0 0.0
    %6843 = vmatmul.mubr.f32.gmra.mrb[0].mxu0 %v5436
    %v6844 = vpop.f32.mrb[0].mxu0
    %v6845 = vadd.f32 0.0, %v6844
    %v6846 = vpop.f32.mrb[0].mxu0
    %6847 = vmatprep.mubr.f32.mxu0 0.0
    %6848 = vmatmul.mubr.f32.gmra.mrb[0].mxu0 %v5438
    %v6849 = vpop.f32.mrb[0].mxu0
    %v6850 = vadd.f32 0.0, %v6849
    %v6851 = vpop.f32.mrb[0].mxu0
    %6852 = vmatprep.mubr.f32.mxu0 0.0
    %6853 = vmatmul.mubr.f32.gmra.mrb[0].mxu0 %v5440
    %v6854 = vpop.f32.mrb[0].mxu0
    %v6855 = vadd.f32 0.0, %v6854
    %v6856 = vpop.f32.mrb[0].mxu0
    %6857 = vmatprep.mubr.f32.mxu0 0.0
    %6858 = vmatmul.mubr.f32.gmra.mrb[0].mxu0 %v5442
    %v6859 = vpop.f32.mrb[0].mxu0
    %v6860 = vadd.f32 0.0, %v6859
    %v6861 = vpop.f32.mrb[0].mxu0
    %6862 = vmatprep.mubr.f32.mxu0 0.0
    %6863 = vmatmul.mubr.f32.gmra.mrb[0].mxu0 %v6200
    %v6864 = vpop.f32.mrb[0].mxu0
    %v6865 = vadd.f32 0.0, %v6864
    %v6866 = vpop.f32.mrb[0].mxu0
    %6867 = vmatprep.mubr.f32.mxu0 0.0
    %6868 = vmatmul.mubr.f32.gmra.mrb[0].mxu0 %v6726
    %v6869 = vpop.f32.mrb[0].mxu0
    %v6870 = vadd.f32 0.0, %v6869
    %v6871 = vpop.f32.mrb[0].mxu0
    %6872 = vdwg.mxu0
    %v6873 = vadd.f32 %v6695, %v6795
    %v6874 = vadd.f32 %v6696, %v6800
    %v6875 = vadd.f32 %v6697, %v6805
    %v6876 = vadd.f32 %v6698, %v6810
    %v6877 = vadd.f32 %v6699, %v6815
    %v6878 = vadd.f32 %v6700, %v6820
    %v6879 = vadd.f32 %v6701, %v6825
    %v6880 = vadd.f32 %v6702, %v6830
    %v6881 = vadd.f32 %v6703, %v6835
    %v6882 = vadd.f32 %v6704, %v6840
    %v6883 = vadd.f32 %v6705, %v6845
    %v6884 = vadd.f32 %v6706, %v6850
    %v6885 = vadd.f32 %v6707, %v6855
    %v6886 = vadd.f32 %v6708, %v6860
    %v6887 = vadd.f32 %v6709, %v6865
    %v6888 = vadd.f32 %v6710, %v6870
    %v6889 = vrot.slane %v5299, 2
    %v6890 = vrot.slane %v5300, 2
    %v6891 = vsel %vm5766, %v6889, %v6890
    %v6892 = vrot.slane %v5319, 2
    %v6893 = vrot.slane %v5320, 2
    %v6894 = vsel %vm5766, %v6892, %v6893
    %s6895 = scalar_lea.vmem %s1, 544
    %v6896 = vld [vmem:[%s6895] sm:$0xff]
    %v6897 = vld [vmem:[%s6895 + $0x8] sm:$0xff]
    %v6898 = vld [vmem:[%s6895 + $0x10] sm:$0xff]
    %v6899 = vld [vmem:[%s6895 + $0x18] sm:$0xff]
    %v6900 = vsel %vm828, %v6891, 0
    %v6902 = vsel %vm828, %v6894, 0
    %6904 = vmatprep.subr.mxu0 0.0
    %6905 = vmatpush1.msra.mxu0 %v6896
    %6906 = vmatprep.subr.mxu0 0.0
    %6907 = vmatpush1.msra.mxu0 %v6897
    %6908 = vmatprep.subr.mxu0 0.0
    %6909 = vmatpush1.msra.mxu0 %v6898
    %6910 = vmatprep.subr.mxu0 0.0
    %6911 = vmatpush1.msra.mxu0 %v6899
    %6912 = vmatprep.subr.mxu0 0.0
    %6913 = vmatpush1.msra.mxu0 0.0
    %6914 = vmatprep.subr.mxu0 0.0
    %6915 = vmatpush1.msra.mxu0 0.0
    %6916 = vmatprep.subr.mxu0 0.0
    %6917 = vmatpush1.msra.mxu0 0.0
    %6918 = vmatprep.subr.mxu0 0.0
    %6919 = vmatpush1.msra.mxu0 0.0
    %6920 = vmatprep.subr.mxu0 0.0
    %6921 = vmatpush1.msra.mxu0 0.0
    %6922 = vmatprep.subr.mxu0 0.0
    %6923 = vmatpush1.msra.mxu0 0.0
    %6924 = vmatprep.subr.mxu0 0.0
    %6925 = vmatpush1.msra.mxu0 0.0
    %6926 = vmatprep.subr.mxu0 0.0
    %6927 = vmatpush1.msra.mxu0 0.0
    %6928 = vmatprep.subr.mxu0 0.0
    %6929 = vmatpush1.msra.mxu0 0.0
    %6930 = vmatprep.subr.mxu0 0.0
    %6931 = vmatpush1.msra.mxu0 0.0
    %6932 = vmatprep.subr.mxu0 0.0
    %6933 = vmatpush1.msra.mxu0 0.0
    %6934 = vmatprep.subr.mxu0 0.0
    %6935 = vmatpush1.msra.mxu0 0.0
    %6936 = vmatprep.subr.mxu0 0.0
    %6937 = vmatpush1.msra.mxu0 0.0
    %6938 = vmatprep.subr.mxu0 0.0
    %6939 = vmatpush1.msra.mxu0 0.0
    %6940 = vmatprep.subr.mxu0 0.0
    %6941 = vmatpush1.msra.mxu0 0.0
    %6942 = vmatprep.subr.mxu0 0.0
    %6943 = vmatpush1.msra.mxu0 0.0
    %6944 = vmatprep.subr.mxu0 0.0
    %6945 = vmatpush1.msra.mxu0 0.0
    %6946 = vmatprep.subr.mxu0 0.0
    %6947 = vmatpush1.msra.mxu0 0.0
    %6948 = vmatprep.subr.mxu0 0.0
    %6949 = vmatpush1.msra.mxu0 0.0
    %6950 = vmatprep.subr.mxu0 0.0
    %6951 = vmatpush1.msra.mxu0 0.0
    %6952 = vmatprep.subr.mxu0 0.0
    %6953 = vmatpush1.msra.mxu0 0.0
    %6954 = vmatprep.subr.mxu0 0.0
    %6955 = vmatpush1.msra.mxu0 0.0
    %6956 = vmatprep.subr.mxu0 0.0
    %6957 = vmatpush1.msra.mxu0 0.0
    %6958 = vmatprep.subr.mxu0 0.0
    %6959 = vmatpush1.msra.mxu0 0.0
    %6960 = vmatprep.subr.mxu0 0.0
    %6961 = vmatpush1.msra.mxu0 0.0
    %6962 = vmatprep.subr.mxu0 0.0
    %6963 = vmatpush1.msra.mxu0 0.0
    %6964 = vmatprep.subr.mxu0 0.0
    %6965 = vmatpush1.msra.mxu0 0.0
    %6966 = vmatprep.subr.mxu0 0.0
    %6967 = vmatpush1.msra.mxu0 0.0
    %6968 = vmatprep.mubr.f32.mxu0 0.0
    %6969 = vmatmul.mubr.f32.gmra.mrb[0].mxu0 %v5824
    %v6970 = vpop.f32.mrb[0].mxu0
    %v6971 = vadd.f32 0.0, %v6970
    %v6972 = vpop.f32.mrb[0].mxu0
    %6973 = vmatprep.mubr.f32.mxu0 0.0
    %6974 = vmatmul.mubr.f32.gmra.mrb[0].mxu0 %v5826
    %v6975 = vpop.f32.mrb[0].mxu0
    %v6976 = vadd.f32 0.0, %v6975
    %v6977 = vpop.f32.mrb[0].mxu0
    %6978 = vmatprep.mubr.f32.mxu0 0.0
    %6979 = vmatmul.mubr.f32.gmra.mrb[0].mxu0 %v5828
    %v6980 = vpop.f32.mrb[0].mxu0
    %v6981 = vadd.f32 0.0, %v6980
    %v6982 = vpop.f32.mrb[0].mxu0
    %6983 = vmatprep.mubr.f32.mxu0 0.0
    %6984 = vmatmul.mubr.f32.gmra.mrb[0].mxu0 %v5830
    %v6985 = vpop.f32.mrb[0].mxu0
    %v6986 = vadd.f32 0.0, %v6985
    %v6987 = vpop.f32.mrb[0].mxu0
    %6988 = vmatprep.mubr.f32.mxu0 0.0
    %6989 = vmatmul.mubr.f32.gmra.mrb[0].mxu0 %v5832
    %v6990 = vpop.f32.mrb[0].mxu0
    %v6991 = vadd.f32 0.0, %v6990
    %v6992 = vpop.f32.mrb[0].mxu0
    %6993 = vmatprep.mubr.f32.mxu0 0.0
    %6994 = vmatmul.mubr.f32.gmra.mrb[0].mxu0 %v5834
    %v6995 = vpop.f32.mrb[0].mxu0
    %v6996 = vadd.f32 0.0, %v6995
    %v6997 = vpop.f32.mrb[0].mxu0
    %6998 = vmatprep.mubr.f32.mxu0 0.0
    %6999 = vmatmul.mubr.f32.gmra.mrb[0].mxu0 %v6374
    %v7000 = vpop.f32.mrb[0].mxu0
    %v7001 = vadd.f32 0.0, %v7000
    %v7002 = vpop.f32.mrb[0].mxu0
    %7003 = vmatprep.mubr.f32.mxu0 0.0
    %7004 = vmatmul.mubr.f32.gmra.mrb[0].mxu0 %v6900
    %v7005 = vpop.f32.mrb[0].mxu0
    %v7006 = vadd.f32 0.0, %v7005
    %v7007 = vpop.f32.mrb[0].mxu0
    %7008 = vmatprep.mubr.f32.mxu0 0.0
    %7009 = vmatmul.mubr.f32.gmra.mrb[0].mxu0 %v5840
    %v7010 = vpop.f32.mrb[0].mxu0
    %v7011 = vadd.f32 0.0, %v7010
    %v7012 = vpop.f32.mrb[0].mxu0
    %7013 = vmatprep.mubr.f32.mxu0 0.0
    %7014 = vmatmul.mubr.f32.gmra.mrb[0].mxu0 %v5842
    %v7015 = vpop.f32.mrb[0].mxu0
    %v7016 = vadd.f32 0.0, %v7015
    %v7017 = vpop.f32.mrb[0].mxu0
    %7018 = vmatprep.mubr.f32.mxu0 0.0
    %7019 = vmatmul.mubr.f32.gmra.mrb[0].mxu0 %v5844
    %v7020 = vpop.f32.mrb[0].mxu0
    %v7021 = vadd.f32 0.0, %v7020
    %v7022 = vpop.f32.mrb[0].mxu0
    %7023 = vmatprep.mubr.f32.mxu0 0.0
    %7024 = vmatmul.mubr.f32.gmra.mrb[0].mxu0 %v5846
    %v7025 = vpop.f32.mrb[0].mxu0
    %v7026 = vadd.f32 0.0, %v7025
    %v7027 = vpop.f32.mrb[0].mxu0
    %7028 = vmatprep.mubr.f32.mxu0 0.0
    %7029 = vmatmul.mubr.f32.gmra.mrb[0].mxu0 %v5848
    %v7030 = vpop.f32.mrb[0].mxu0
    %v7031 = vadd.f32 0.0, %v7030
    %v7032 = vpop.f32.mrb[0].mxu0
    %7033 = vmatprep.mubr.f32.mxu0 0.0
    %7034 = vmatmul.mubr.f32.gmra.mrb[0].mxu0 %v5850
    %v7035 = vpop.f32.mrb[0].mxu0
    %v7036 = vadd.f32 0.0, %v7035
    %v7037 = vpop.f32.mrb[0].mxu0
    %7038 = vmatprep.mubr.f32.mxu0 0.0
    %7039 = vmatmul.mubr.f32.gmra.mrb[0].mxu0 %v6376
    %v7040 = vpop.f32.mrb[0].mxu0
    %v7041 = vadd.f32 0.0, %v7040
    %v7042 = vpop.f32.mrb[0].mxu0
    %7043 = vmatprep.mubr.f32.mxu0 0.0
    %7044 = vmatmul.mubr.f32.gmra.mrb[0].mxu0 %v6902
    %v7045 = vpop.f32.mrb[0].mxu0
    %v7046 = vadd.f32 0.0, %v7045
    %v7047 = vpop.f32.mrb[0].mxu0
    %7048 = vdwg.mxu0
    %v7049 = vadd.f32 %v6873, %v6971
    %v7050 = vadd.f32 %v6874, %v6976
    %v7051 = vadd.f32 %v6875, %v6981
    %v7052 = vadd.f32 %v6876, %v6986
    %v7053 = vadd.f32 %v6877, %v6991
    %v7054 = vadd.f32 %v6878, %v6996
    %v7055 = vadd.f32 %v6879, %v7001
    %v7056 = vadd.f32 %v6880, %v7006
    %v7057 = vadd.f32 %v6881, %v7011
    %v7058 = vadd.f32 %v6882, %v7016
    %v7059 = vadd.f32 %v6883, %v7021
    %v7060 = vadd.f32 %v6884, %v7026
    %v7061 = vadd.f32 %v6885, %v7031
    %v7062 = vadd.f32 %v6886, %v7036
    %v7063 = vadd.f32 %v6887, %v7041
    %v7064 = vadd.f32 %v6888, %v7046
    %v7065 = vsel %vm828, %v7049, 0.0
    %v7066 = vsel %vm828, %v7050, 0.0
    %v7067 = vadd.f32 %v7065, %v7066
    %v7068 = vsel %vm828, %v7051, 0.0
    %v7069 = vadd.f32 %v7067, %v7068
    %v7070 = vsel %vm828, %v7052, 0.0
    %v7071 = vadd.f32 %v7069, %v7070
    %v7072 = vsel %vm828, %v7053, 0.0
    %v7073 = vadd.f32 %v7071, %v7072
    %v7074 = vsel %vm828, %v7054, 0.0
    %v7075 = vadd.f32 %v7073, %v7074
    %v7076 = vsel %vm828, %v7055, 0.0
    %v7077 = vadd.f32 %v7075, %v7076
    %v7078 = vsel %vm828, %v7056, 0.0
    %v7079 = vadd.f32 %v7077, %v7078
    %v7080 = vsel %vm828, %v7057, 0.0
    %v7081 = vadd.f32 %v7079, %v7080
    %v7082 = vsel %vm828, %v7058, 0.0
    %v7083 = vadd.f32 %v7081, %v7082
    %v7084 = vsel %vm828, %v7059, 0.0
    %v7085 = vadd.f32 %v7083, %v7084
    %v7086 = vsel %vm828, %v7060, 0.0
    %v7087 = vadd.f32 %v7085, %v7086
    %v7088 = vsel %vm828, %v7061, 0.0
    %v7089 = vadd.f32 %v7087, %v7088
    %v7090 = vsel %vm828, %v7062, 0.0
    %v7091 = vadd.f32 %v7089, %v7090
    %v7092 = vsel %vm828, %v7063, 0.0
    %v7093 = vadd.f32 %v7091, %v7092
    %v7094 = vsel %vm828, %v7064, 0.0
    %v7095 = vadd.f32 %v7093, %v7094
    %v7096 = vrot.slane %v7095, 4
    %v7097 = vadd.f32 %v7095, %v7096
    %v7098 = vrot.slane %v7097, 2
    %v7099 = vadd.f32 %v7097, %v7098
    %v7100 = vrot.slane %v7099, 1
    %v7101 = vadd.f32 %v7099, %v7100
    %v7102 = vmul.f32 %v7101, 0.0078125
    %v7103 = vmul.f32 %v7049, %v7049
    %v7104 = vmul.f32 %v7050, %v7050
    %v7105 = vmul.f32 %v7051, %v7051
    %v7106 = vmul.f32 %v7052, %v7052
    %v7107 = vmul.f32 %v7053, %v7053
    %v7108 = vmul.f32 %v7054, %v7054
    %v7109 = vmul.f32 %v7055, %v7055
    %v7110 = vmul.f32 %v7056, %v7056
    %v7111 = vmul.f32 %v7057, %v7057
    %v7112 = vmul.f32 %v7058, %v7058
    %v7113 = vmul.f32 %v7059, %v7059
    %v7114 = vmul.f32 %v7060, %v7060
    %v7115 = vmul.f32 %v7061, %v7061
    %v7116 = vmul.f32 %v7062, %v7062
    %v7117 = vmul.f32 %v7063, %v7063
    %v7118 = vmul.f32 %v7064, %v7064
    %v7119 = vsel %vm828, %v7103, 0.0
    %v7120 = vsel %vm828, %v7104, 0.0
    %v7121 = vadd.f32 %v7119, %v7120
    %v7122 = vsel %vm828, %v7105, 0.0
    %v7123 = vadd.f32 %v7121, %v7122
    %v7124 = vsel %vm828, %v7106, 0.0
    %v7125 = vadd.f32 %v7123, %v7124
    %v7126 = vsel %vm828, %v7107, 0.0
    %v7127 = vadd.f32 %v7125, %v7126
    %v7128 = vsel %vm828, %v7108, 0.0
    %v7129 = vadd.f32 %v7127, %v7128
    %v7130 = vsel %vm828, %v7109, 0.0
    %v7131 = vadd.f32 %v7129, %v7130
    %v7132 = vsel %vm828, %v7110, 0.0
    %v7133 = vadd.f32 %v7131, %v7132
    %v7134 = vsel %vm828, %v7111, 0.0
    %v7135 = vadd.f32 %v7133, %v7134
    %v7136 = vsel %vm828, %v7112, 0.0
    %v7137 = vadd.f32 %v7135, %v7136
    %v7138 = vsel %vm828, %v7113, 0.0
    %v7139 = vadd.f32 %v7137, %v7138
    %v7140 = vsel %vm828, %v7114, 0.0
    %v7141 = vadd.f32 %v7139, %v7140
    %v7142 = vsel %vm828, %v7115, 0.0
    %v7143 = vadd.f32 %v7141, %v7142
    %v7144 = vsel %vm828, %v7116, 0.0
    %v7145 = vadd.f32 %v7143, %v7144
    %v7146 = vsel %vm828, %v7117, 0.0
    %v7147 = vadd.f32 %v7145, %v7146
    %v7148 = vsel %vm828, %v7118, 0.0
    %v7149 = vadd.f32 %v7147, %v7148
    %v7150 = vrot.slane %v7149, 4
    %v7151 = vadd.f32 %v7149, %v7150
    %v7152 = vrot.slane %v7151, 2
    %v7153 = vadd.f32 %v7151, %v7152
    %v7154 = vrot.slane %v7153, 1
    %v7155 = vadd.f32 %v7153, %v7154
    %v7156 = vmul.f32 %v7155, 0.0078125
    %v7157 = vmul.f32 %v7102, %v7102
    %v7158 = vsub.f32 %v7156, %v7157
    %v7159 = vadd.f32 %v7158, 1e-05
    %v7160 = vrsqrt.pop %v7159
    %v7161 = vmul.f32 %v7160, %v738
    %v7162 = vmul.f32 %v7102, %v7161
    %v7164 = vrot.slane %v7162, 7
    %v7166 = vsub.f32 %v738, %v7164
    %v7167 = vld [vmem:[%s3480 + $0x2] sm:$0xff]
    %v7168 = vld [vmem:[%s3480 + $0x1a] sm:$0xff]
    %v7169 = vld [vmem:[%s3480 + $0x32] sm:$0xff]
    %v7170 = vld [vmem:[%s3480 + $0x4a] sm:$0xff]
    %v7171 = vld [vmem:[%s3480 + $0x62] sm:$0xff]
    %v7172 = vld [vmem:[%s3480 + $0x7a] sm:$0xff]
    %v7173 = vld [vmem:[%s3480 + $0x92] sm:$0xff]
    %v7174 = vld [vmem:[%s3480 + $0xaa] sm:$0xff]
    %v7175 = vld [vmem:[%s3480 + $0x122] sm:$0xff]
    %v7176 = vld [vmem:[%s3480 + $0x13a] sm:$0xff]
    %v7177 = vld [vmem:[%s3480 + $0x152] sm:$0xff]
    %v7178 = vld [vmem:[%s3480 + $0x16a] sm:$0xff]
    %v7179 = vld [vmem:[%s3480 + $0x182] sm:$0xff]
    %v7180 = vld [vmem:[%s3480 + $0x19a] sm:$0xff]
    %v7181 = vld [vmem:[%s3480 + $0x1b2] sm:$0xff]
    %v7182 = vld [vmem:[%s3480 + $0x1ca] sm:$0xff]
    %v7183 = vlaneseq
    %v7184 = vshrl.u32 %v7183, 7
    %v7185 = vsub.s32 2, %v7184
    %v7186 = vrot.slane %v7161, %v7185
    %v7187 = vmul.f32 %v7049, %v7186
    %v7188 = vmul.f32 %v7050, %v7186
    %v7189 = vmul.f32 %v7051, %v7186
    %v7190 = vmul.f32 %v7052, %v7186
    %v7191 = vmul.f32 %v7053, %v7186
    %v7192 = vmul.f32 %v7054, %v7186
    %v7193 = vmul.f32 %v7055, %v7186
    %v7194 = vmul.f32 %v7056, %v7186
    %v7195 = vmul.f32 %v7057, %v7186
    %v7196 = vmul.f32 %v7058, %v7186
    %v7197 = vmul.f32 %v7059, %v7186
    %v7198 = vmul.f32 %v7060, %v7186
    %v7199 = vmul.f32 %v7061, %v7186
    %v7200 = vmul.f32 %v7062, %v7186
    %v7201 = vmul.f32 %v7063, %v7186
    %v7202 = vmul.f32 %v7064, %v7186
    %v7203 = vlaneseq
    %v7204 = vshrl.u32 %v7203, 7
    %v7205 = vsub.s32 3, %v7204
    %v7206 = vrot.slane %v7166, %v7205
    %v7207 = vadd.f32 %v7187, %v7206
    %v7208 = vadd.f32 %v7188, %v7206
    %v7209 = vadd.f32 %v7189, %v7206
    %v7210 = vadd.f32 %v7190, %v7206
    %v7211 = vadd.f32 %v7191, %v7206
    %v7212 = vadd.f32 %v7192, %v7206
    %v7213 = vadd.f32 %v7193, %v7206
    %v7214 = vadd.f32 %v7194, %v7206
    %v7215 = vadd.f32 %v7195, %v7206
    %v7216 = vadd.f32 %v7196, %v7206
    %v7217 = vadd.f32 %v7197, %v7206
    %v7218 = vadd.f32 %v7198, %v7206
    %v7219 = vadd.f32 %v7199, %v7206
    %v7220 = vadd.f32 %v7200, %v7206
    %v7221 = vadd.f32 %v7201, %v7206
    %v7222 = vadd.f32 %v7202, %v7206
    %v7223 = vadd.f32 %v7207, %v7167
    %v7224 = vadd.f32 %v7208, %v7168
    %v7225 = vadd.f32 %v7209, %v7169
    %v7226 = vadd.f32 %v7210, %v7170
    %v7227 = vadd.f32 %v7211, %v7171
    %v7228 = vadd.f32 %v7212, %v7172
    %v7229 = vadd.f32 %v7213, %v7173
    %v7230 = vadd.f32 %v7214, %v7174
    %v7231 = vadd.f32 %v7215, %v7175
    %v7232 = vadd.f32 %v7216, %v7176
    %v7233 = vadd.f32 %v7217, %v7177
    %v7234 = vadd.f32 %v7218, %v7178
    %v7235 = vadd.f32 %v7219, %v7179
    %v7236 = vadd.f32 %v7220, %v7180
    %v7237 = vadd.f32 %v7221, %v7181
    %v7238 = vadd.f32 %v7222, %v7182
    %v7239 = vmax.f32 %v7223, 0.0
    %v7240 = vmax.f32 %v7224, 0.0
    %v7241 = vmax.f32 %v7225, 0.0
    %v7242 = vmax.f32 %v7226, 0.0
    %v7243 = vmax.f32 %v7227, 0.0
    %v7244 = vmax.f32 %v7228, 0.0
    %v7245 = vmax.f32 %v7229, 0.0
    %v7246 = vmax.f32 %v7230, 0.0
    %v7247 = vmax.f32 %v7231, 0.0
    %v7248 = vmax.f32 %v7232, 0.0
    %v7249 = vmax.f32 %v7233, 0.0
    %v7250 = vmax.f32 %v7234, 0.0
    %v7251 = vmax.f32 %v7235, 0.0
    %v7252 = vmax.f32 %v7236, 0.0
    %v7253 = vmax.f32 %v7237, 0.0
    %v7254 = vmax.f32 %v7238, 0.0
    %7255 = vst.msk [vmem:[#allocation2] sm:$0xff] %vm828, %v7239
    %7256 = vst.msk [vmem:[#allocation2 + $0x8] sm:$0xff] %vm828, %v7240
    %7257 = vst.msk [vmem:[#allocation2 + $0x10] sm:$0xff] %vm828, %v7241
    %7258 = vst.msk [vmem:[#allocation2 + $0x18] sm:$0xff] %vm828, %v7242
    %7259 = vst.msk [vmem:[#allocation2 + $0x20] sm:$0xff] %vm828, %v7243
    %7260 = vst.msk [vmem:[#allocation2 + $0x28] sm:$0xff] %vm828, %v7244
    %7261 = vst.msk [vmem:[#allocation2 + $0x30] sm:$0xff] %vm828, %v7245
    %7262 = vst.msk [vmem:[#allocation2 + $0x38] sm:$0xff] %vm828, %v7246
    %7263 = vst.msk [vmem:[#allocation2 + $0x40] sm:$0xff] %vm828, %v7247
    %7264 = vst.msk [vmem:[#allocation2 + $0x48] sm:$0xff] %vm828, %v7248
    %7265 = vst.msk [vmem:[#allocation2 + $0x50] sm:$0xff] %vm828, %v7249
    %7266 = vst.msk [vmem:[#allocation2 + $0x58] sm:$0xff] %vm828, %v7250
    %7267 = vst.msk [vmem:[#allocation2 + $0x60] sm:$0xff] %vm828, %v7251
    %7268 = vst.msk [vmem:[#allocation2 + $0x68] sm:$0xff] %vm828, %v7252
    %7269 = vst.msk [vmem:[#allocation2 + $0x70] sm:$0xff] %vm828, %v7253
    %7270 = vst.msk [vmem:[#allocation2 + $0x78] sm:$0xff] %vm828, %v7254
    // Predicated region
    $region14: #{resblock_forward.1} parent=1 // pred_check
      _
    $region15: #{resblock_forward.1} parent=1 // pred_check_branch
      %7272 = sbr.rel (0) target = $region17
    $region16: #{resblock_forward.1} parent=1 // pred_region
      %s7274 = ssub.s32 2048, 2048
      %7275 = vsyncadd [#allocation3], %s7274
      %s7276 = sshll.u32 [#allocation2], 4
      %s7277 = int_to_ptr.vmem [resolvable:$true] %s7276
      %7282 = dma.vmem_to_hbm [thread:$0]  %s7277, 2048, %s3, [#allocation3], 128, 128, 8
    $region17: #{resblock_forward.1} parent=1 // pred_fallthru
      _
    // Predicated region
    $region18: #{resblock_forward.1} parent=1 // pred_check
      _
    $region19: #{resblock_forward.1} parent=1 // pred_check_branch
      %7284 = sbr.rel (0) target = $region21
    $region20: #{resblock_forward.1} parent=1 // pred_region
      %7285 = dma.done [#allocation3], 2048
    $region21: #{resblock_forward.1} parent=1 // pred_fallthru
      _
    %7286 = vsyncpa [#allocation3], 1

</llo_original>
